<compile_context>
chip_gen: v7x
topology: tpu7x:2x2x1
jax: 0.10.0
libtpu: 0.0.40
codegen_flags: <defaults>
</compile_context>

<pallas_src>
import functools
import math

import jax
import jax.numpy as jnp
from jax.experimental import pallas as pl
from jax.experimental.pallas import tpu as pltpu

# Keep the pure-JAX reference at full f32 matmul precision so the comparison is meaningful.
jax.config.update("jax_default_matmul_precision", "highest")

# ----------------------------- configuration -----------------------------
D_MODEL = 32
NHEAD = 4
BATCH = 2
SEQ = 8
LN_EPS = 1e-5


# ----------------------------- fused Pallas kernel -----------------------------
def _mha_kernel(x_ref, wqkv_ref, wo_ref, vec_ref, o_ref, ctx_ref, *, batch, seq, nhead):
    """Whole module in one invocation.

    x_ref:    (3*B*S, E)  rows [0:BS) = query, [BS:2BS) = key, [2BS:3BS) = value
    wqkv_ref: (E, 3*E)    Wq | Wk | Wv (output-dim concat)
    wo_ref:   (E, E)
    vec_ref:  (2, 3*E)    row 0 = bq|bk|bv, row 1 = bo|gamma|beta
    o_ref:    (B*S, E)
    ctx_ref:  (B*S, E)    VMEM scratch (per-head context written in place)
    """
    bs = batch * seq
    e_dim = x_ref.shape[-1]
    dk = e_dim // nhead
    scale = 1.0 / math.sqrt(dk)

    x = x_ref[...]                      # (3*BS, E)
    query = x[0:bs, :]                  # residual input

    # --- one fused QKV projection (single MXU push, lane-dense output) ---
    y = jnp.dot(x, wqkv_ref[...], preferred_element_type=jnp.float32) + vec_ref[0:1, :]
    q = y[0:bs, 0:e_dim] * scale                    # (BS, E), pre-scaled by 1/sqrt(d_k)
    k = y[bs:2 * bs, e_dim:2 * e_dim]               # (BS, E)
    v = y[2 * bs:3 * bs, 2 * e_dim:3 * e_dim]       # (BS, E)

    # --- all B*H QK^T matmuls back-to-back (no transposes materialized) ---
    score_parts = []
    for b in range(batch):
        r0 = b * seq
        for h in range(nhead):
            c0 = h * dk
            qh = q[r0:r0 + seq, c0:c0 + dk]
            kh = k[r0:r0 + seq, c0:c0 + dk]
            score_parts.append(
                jax.lax.dot_general(qh, kh, (((1,), (1,)), ((), ())),
                                    preferred_element_type=jnp.float32))
    s = jnp.concatenate(score_parts, axis=0)        # (B*H*S, S) = (64, 8)

    # --- one vectorized softmax over the stacked score tiles (dropout = identity) ---
    m = jnp.max(s, axis=-1, keepdims=True)
    e = jnp.exp(s - m)
    p = e / jnp.sum(e, axis=-1, keepdims=True)

    # --- PV matmuls, written straight into the ctx scratch (no lane concat) ---
    idx = 0
    for b in range(batch):
        r0 = b * seq
        for h in range(nhead):
            c0 = h * dk
            ph = p[idx * seq:(idx + 1) * seq, :]
            vh = v[r0:r0 + seq, c0:c0 + dk]
            ctx_ref[r0:r0 + seq, c0:c0 + dk] = jnp.dot(
                ph, vh, preferred_element_type=jnp.float32)
            idx += 1

    # --- output projection + residual + LayerNorm (eps = 1e-5, PyTorch default) ---
    bo = vec_ref[1:2, 0:e_dim]
    gamma = vec_ref[1:2, e_dim:2 * e_dim]
    beta = vec_ref[1:2, 2 * e_dim:3 * e_dim]
    out = jnp.dot(ctx_ref[...], wo_ref[...], preferred_element_type=jnp.float32) + bo
    r = out + query
    mean = jnp.mean(r, axis=-1, keepdims=True)
    var = jnp.mean((r - mean) ** 2, axis=-1, keepdims=True)
    o_ref[...] = (r - mean) * jax.lax.rsqrt(var + LN_EPS) * gamma + beta


@functools.partial(jax.jit, static_argnames=("nhead",))
def multi_head_attention(query, key, value, params, nhead=NHEAD):
    """query/key/value: (B, S, E) -> (B, S, E).  mask=None path of the PyTorch module."""
    B, S, E = query.shape
    BS = B * S

    # Fused lane-dense QKV weight and packed bias/LN vectors (single DMAs each).
    w_qkv = jnp.concatenate([params["wq"], params["wk"], params["wv"]], axis=1)   # (E, 3E)
    vec0 = jnp.concatenate([params["bq"], params["bk"], params["bv"]])            # (3E,)
    vec1 = jnp.concatenate([params["bo"], params["gamma"], params["beta"]])       # (3E,)
    vecs = jnp.stack([vec0, vec1], axis=0)                                        # (2, 3E)

    # Stack query/key/value along sublanes so the whole QKV projection is ONE matmul.
    x_stacked = jnp.concatenate(
        [query.reshape(BS, E), key.reshape(BS, E), value.reshape(BS, E)], axis=0)  # (3*BS, E)

    vmem_spec = pl.BlockSpec(memory_space=pltpu.MemorySpace.VMEM)
    out_flat = pl.pallas_call(
        functools.partial(_mha_kernel, batch=B, seq=S, nhead=nhead),
        in_specs=[vmem_spec, vmem_spec, vmem_spec, vmem_spec],
        out_specs=vmem_spec,
        out_shape=jax.ShapeDtypeStruct((BS, E), jnp.float32),
        scratch_shapes=[pltpu.VMEM((BS, E), jnp.float32)],
    )(x_stacked, w_qkv, params["wo"], vecs)

    return out_flat.reshape(B, S, E)


# ----------------------------- pure-JAX reference (for correctness check) -----------------------------
def reference_mha(query, key, value, params, nhead=NHEAD):
    B, S, E = query.shape
    dk = E // nhead
    q = query @ params["wq"] + params["bq"]
    k = key @ params["wk"] + params["bk"]
    v = value @ params["wv"] + params["bv"]

    def split(t):  # (B, S, E) -> (B, H, S, dk)
        return t.reshape(B, S, nhead, dk).transpose(0, 2, 1, 3)

    Q, K, V = split(q), split(k), split(v)
    s = jnp.einsum("bhqd,bhkd->bhqk", Q, K) / math.sqrt(dk)
    p = jax.nn.softmax(s, axis=-1)
    ctx = jnp.einsum("bhqk,bhkd->bhqd", p, V)
    ctx = ctx.transpose(0, 2, 1, 3).reshape(B, S, E)
    out = ctx @ params["wo"] + params["bo"]
    y = out + query
    mean = y.mean(axis=-1, keepdims=True)
    var = ((y - mean) ** 2).mean(axis=-1, keepdims=True)
    return (y - mean) / jnp.sqrt(var + LN_EPS) * params["gamma"] + params["beta"]


# ----------------------------- deterministic parameter init -----------------------------
def _torch_linear(key, din, dout):
    """nn.Linear default init: U(-1/sqrt(fan_in), 1/sqrt(fan_in)) for weight and bias.

    Weight stored transposed, (din, dout), so x @ w matches PyTorch x @ W.T.
    """
    bound = 1.0 / math.sqrt(din)
    kw, kb = jax.random.split(key)
    w = jax.random.uniform(kw, (din, dout), minval=-bound, maxval=bound, dtype=jnp.float32)
    b = jax.random.uniform(kb, (dout,), minval=-bound, maxval=bound, dtype=jnp.float32)
    return w, b


def init_params(key, d_model=D_MODEL):
    ks = jax.random.split(key, 4)
    p = {}
    p["wq"], p["bq"] = _torch_linear(ks[0], d_model, d_model)
    p["wk"], p["bk"] = _torch_linear(ks[1], d_model, d_model)
    p["wv"], p["bv"] = _torch_linear(ks[2], d_model, d_model)
    p["wo"], p["bo"] = _torch_linear(ks[3], d_model, d_model)
    p["gamma"] = jnp.ones((d_model,), jnp.float32)
    p["beta"] = jnp.zeros((d_model,), jnp.float32)
    return p


# ----------------------------- main -----------------------------
if __name__ == "__main__":
    root = jax.random.PRNGKey(0)
    kp, kq, kk, kv = jax.random.split(root, 4)
    params = init_params(kp)

    query = jax.random.normal(kq, (BATCH, SEQ, D_MODEL), dtype=jnp.float32)
    key_t = jax.random.normal(kk, (BATCH, SEQ, D_MODEL), dtype=jnp.float32)
    value = jax.random.normal(kv, (BATCH, SEQ, D_MODEL), dtype=jnp.float32)

    out = multi_head_attention(query, key_t, value, params)
    jax.block_until_ready(out)

    assert out.shape == (BATCH, SEQ, D_MODEL)

    ref = reference_mha(query, key_t, value, params)
    max_err = float(jnp.max(jnp.abs(out - ref)))
    assert max_err < 1e-4, f"mismatch vs reference: max abs err {max_err}"

    print("KERNEL_OK")
</pallas_src>

<mosaic_0001>
module attributes {stable_mosaic.version = 11 : i64} {
  func.func @_mha_kernel(%arg0: memref<48x32xf32, #tpu.memory_space<vmem>>, %arg1: memref<32x96xf32, #tpu.memory_space<vmem>>, %arg2: memref<32x32xf32, #tpu.memory_space<vmem>>, %arg3: memref<2x96xf32, #tpu.memory_space<vmem>>, %arg4: memref<16x32xf32, #tpu.memory_space<vmem>>, %arg5: memref<16x32xf32, #tpu.memory_space<vmem>>) attributes {dimension_semantics = [], scalar_prefetch = 0 : i64, scratch_operands = 1 : i64, tpu.core_type = #tpu.core_type<tc>} {
    %c0 = arith.constant 0 : index
    %c0_0 = arith.constant 0 : index
    %0 = vector.load %arg0[%c0, %c0_0] : memref<48x32xf32, #tpu.memory_space<vmem>>, vector<48x32xf32>
    %1 = vector.extract_strided_slice %0 {offsets = [0, 0], sizes = [16, 32], strides = [1, 1]} : vector<48x32xf32> to vector<16x32xf32>
    %c0_1 = arith.constant 0 : index
    %c0_2 = arith.constant 0 : index
    %2 = vector.load %arg1[%c0_1, %c0_2] : memref<32x96xf32, #tpu.memory_space<vmem>>, vector<32x96xf32>
    %cst = arith.constant dense<0.000000e+00> : vector<48x96xf32>
    %3 = tpu.matmul %0, %2, %cst {dimension_numbers = #tpu.dot_dimension_numbers<[1], [0], [0], [1], [0, 0, 1, 1], [], []>, precision = #tpu.contract_precision<fp32>} : vector<48x32xf32>, vector<32x96xf32>, vector<48x96xf32> -> vector<48x96xf32>
    %c0_3 = arith.constant 0 : index
    %c0_4 = arith.constant 0 : index
    %4 = vector.load %arg3[%c0_3, %c0_4] : memref<2x96xf32, #tpu.memory_space<vmem>>, vector<1x96xf32>
    %5 = vector.broadcast %4 : vector<1x96xf32> to vector<48x96xf32>
    %6 = arith.addf %3, %5 : vector<48x96xf32>
    %7 = vector.extract_strided_slice %6 {offsets = [0, 0], sizes = [16, 32], strides = [1, 1]} : vector<48x96xf32> to vector<16x32xf32>
    %cst_5 = arith.constant 0.353553385 : f32
    %8 = vector.broadcast %cst_5 : f32 to vector<16x32xf32>
    %9 = arith.mulf %7, %8 : vector<16x32xf32>
    %10 = vector.extract_strided_slice %6 {offsets = [16, 32], sizes = [16, 32], strides = [1, 1]} : vector<48x96xf32> to vector<16x32xf32>
    %11 = vector.extract_strided_slice %6 {offsets = [32, 64], sizes = [16, 32], strides = [1, 1]} : vector<48x96xf32> to vector<16x32xf32>
    %12 = vector.extract_strided_slice %9 {offsets = [0, 0], sizes = [8, 8], strides = [1, 1]} : vector<16x32xf32> to vector<8x8xf32>
    %13 = vector.extract_strided_slice %10 {offsets = [0, 0], sizes = [8, 8], strides = [1, 1]} : vector<16x32xf32> to vector<8x8xf32>
    %cst_6 = arith.constant dense<0.000000e+00> : vector<8x8xf32>
    %14 = tpu.matmul %12, %13, %cst_6 {dimension_numbers = #tpu.dot_dimension_numbers<[1], [1], [0], [0], [0, 0, 1, 0], [], []>, precision = #tpu.contract_precision<fp32>} : vector<8x8xf32>, vector<8x8xf32>, vector<8x8xf32> -> vector<8x8xf32>
    %15 = vector.extract_strided_slice %9 {offsets = [0, 8], sizes = [8, 8], strides = [1, 1]} : vector<16x32xf32> to vector<8x8xf32>
    %16 = vector.extract_strided_slice %10 {offsets = [0, 8], sizes = [8, 8], strides = [1, 1]} : vector<16x32xf32> to vector<8x8xf32>
    %cst_7 = arith.constant dense<0.000000e+00> : vector<8x8xf32>
    %17 = tpu.matmul %15, %16, %cst_7 {dimension_numbers = #tpu.dot_dimension_numbers<[1], [1], [0], [0], [0, 0, 1, 0], [], []>, precision = #tpu.contract_precision<fp32>} : vector<8x8xf32>, vector<8x8xf32>, vector<8x8xf32> -> vector<8x8xf32>
    %18 = vector.extract_strided_slice %9 {offsets = [0, 16], sizes = [8, 8], strides = [1, 1]} : vector<16x32xf32> to vector<8x8xf32>
    %19 = vector.extract_strided_slice %10 {offsets = [0, 16], sizes = [8, 8], strides = [1, 1]} : vector<16x32xf32> to vector<8x8xf32>
    %cst_8 = arith.constant dense<0.000000e+00> : vector<8x8xf32>
    %20 = tpu.matmul %18, %19, %cst_8 {dimension_numbers = #tpu.dot_dimension_numbers<[1], [1], [0], [0], [0, 0, 1, 0], [], []>, precision = #tpu.contract_precision<fp32>} : vector<8x8xf32>, vector<8x8xf32>, vector<8x8xf32> -> vector<8x8xf32>
    %21 = vector.extract_strided_slice %9 {offsets = [0, 24], sizes = [8, 8], strides = [1, 1]} : vector<16x32xf32> to vector<8x8xf32>
    %22 = vector.extract_strided_slice %10 {offsets = [0, 24], sizes = [8, 8], strides = [1, 1]} : vector<16x32xf32> to vector<8x8xf32>
    %cst_9 = arith.constant dense<0.000000e+00> : vector<8x8xf32>
    %23 = tpu.matmul %21, %22, %cst_9 {dimension_numbers = #tpu.dot_dimension_numbers<[1], [1], [0], [0], [0, 0, 1, 0], [], []>, precision = #tpu.contract_precision<fp32>} : vector<8x8xf32>, vector<8x8xf32>, vector<8x8xf32> -> vector<8x8xf32>
    %24 = vector.extract_strided_slice %9 {offsets = [8, 0], sizes = [8, 8], strides = [1, 1]} : vector<16x32xf32> to vector<8x8xf32>
    %25 = vector.extract_strided_slice %10 {offsets = [8, 0], sizes = [8, 8], strides = [1, 1]} : vector<16x32xf32> to vector<8x8xf32>
    %cst_10 = arith.constant dense<0.000000e+00> : vector<8x8xf32>
    %26 = tpu.matmul %24, %25, %cst_10 {dimension_numbers = #tpu.dot_dimension_numbers<[1], [1], [0], [0], [0, 0, 1, 0], [], []>, precision = #tpu.contract_precision<fp32>} : vector<8x8xf32>, vector<8x8xf32>, vector<8x8xf32> -> vector<8x8xf32>
    %27 = vector.extract_strided_slice %9 {offsets = [8, 8], sizes = [8, 8], strides = [1, 1]} : vector<16x32xf32> to vector<8x8xf32>
    %28 = vector.extract_strided_slice %10 {offsets = [8, 8], sizes = [8, 8], strides = [1, 1]} : vector<16x32xf32> to vector<8x8xf32>
    %cst_11 = arith.constant dense<0.000000e+00> : vector<8x8xf32>
    %29 = tpu.matmul %27, %28, %cst_11 {dimension_numbers = #tpu.dot_dimension_numbers<[1], [1], [0], [0], [0, 0, 1, 0], [], []>, precision = #tpu.contract_precision<fp32>} : vector<8x8xf32>, vector<8x8xf32>, vector<8x8xf32> -> vector<8x8xf32>
    %30 = vector.extract_strided_slice %9 {offsets = [8, 16], sizes = [8, 8], strides = [1, 1]} : vector<16x32xf32> to vector<8x8xf32>
    %31 = vector.extract_strided_slice %10 {offsets = [8, 16], sizes = [8, 8], strides = [1, 1]} : vector<16x32xf32> to vector<8x8xf32>
    %cst_12 = arith.constant dense<0.000000e+00> : vector<8x8xf32>
    %32 = tpu.matmul %30, %31, %cst_12 {dimension_numbers = #tpu.dot_dimension_numbers<[1], [1], [0], [0], [0, 0, 1, 0], [], []>, precision = #tpu.contract_precision<fp32>} : vector<8x8xf32>, vector<8x8xf32>, vector<8x8xf32> -> vector<8x8xf32>
    %33 = vector.extract_strided_slice %9 {offsets = [8, 24], sizes = [8, 8], strides = [1, 1]} : vector<16x32xf32> to vector<8x8xf32>
    %34 = vector.extract_strided_slice %10 {offsets = [8, 24], sizes = [8, 8], strides = [1, 1]} : vector<16x32xf32> to vector<8x8xf32>
    %cst_13 = arith.constant dense<0.000000e+00> : vector<8x8xf32>
    %35 = tpu.matmul %33, %34, %cst_13 {dimension_numbers = #tpu.dot_dimension_numbers<[1], [1], [0], [0], [0, 0, 1, 0], [], []>, precision = #tpu.contract_precision<fp32>} : vector<8x8xf32>, vector<8x8xf32>, vector<8x8xf32> -> vector<8x8xf32>
    %36 = tpu.concatenate %14, %17, %20, %23, %26, %29, %32, %35 in 0 : vector<8x8xf32>, vector<8x8xf32>, vector<8x8xf32>, vector<8x8xf32>, vector<8x8xf32>, vector<8x8xf32>, vector<8x8xf32>, vector<8x8xf32> -> vector<64x8xf32>
    %cst_14 = arith.constant dense<0xFF800000> : vector<64xf32>
    %37 = vector.multi_reduction <maximumf>, %36, %cst_14 [1] : vector<64x8xf32> to vector<64xf32>
    %38 = vector.shape_cast %37 : vector<64xf32> to vector<64x1xf32>
    %39 = vector.broadcast %38 : vector<64x1xf32> to vector<64x8xf32>
    %40 = arith.subf %36, %39 : vector<64x8xf32>
    %41 = math.exp %40 : vector<64x8xf32>
    %cst_15 = arith.constant dense<0.000000e+00> : vector<64xf32>
    %42 = vector.multi_reduction <add>, %41, %cst_15 [1] : vector<64x8xf32> to vector<64xf32>
    %43 = vector.shape_cast %42 : vector<64xf32> to vector<64x1xf32>
    %44 = vector.broadcast %43 : vector<64x1xf32> to vector<64x8xf32>
    %45 = arith.divf %41, %44 : vector<64x8xf32>
    %46 = vector.extract_strided_slice %45 {offsets = [0, 0], sizes = [8, 8], strides = [1, 1]} : vector<64x8xf32> to vector<8x8xf32>
    %47 = vector.extract_strided_slice %11 {offsets = [0, 0], sizes = [8, 8], strides = [1, 1]} : vector<16x32xf32> to vector<8x8xf32>
    %cst_16 = arith.constant dense<0.000000e+00> : vector<8x8xf32>
    %48 = tpu.matmul %46, %47, %cst_16 {dimension_numbers = #tpu.dot_dimension_numbers<[1], [0], [0], [1], [0, 0, 1, 1], [], []>, precision = #tpu.contract_precision<fp32>} : vector<8x8xf32>, vector<8x8xf32>, vector<8x8xf32> -> vector<8x8xf32>
    %c0_17 = arith.constant 0 : index
    %c0_18 = arith.constant 0 : index
    %49 = vector.load %arg5[%c0_17, %c0_18] : memref<16x32xf32, #tpu.memory_space<vmem>>, vector<8x8xf32>
    tpu.vector_store %arg5[%c0_17, %c0_18], %48 {strides = array<i32>} : memref<16x32xf32, #tpu.memory_space<vmem>>, vector<8x8xf32>,
    %50 = vector.extract_strided_slice %45 {offsets = [8, 0], sizes = [8, 8], strides = [1, 1]} : vector<64x8xf32> to vector<8x8xf32>
    %51 = vector.extract_strided_slice %11 {offsets = [0, 8], sizes = [8, 8], strides = [1, 1]} : vector<16x32xf32> to vector<8x8xf32>
    %cst_19 = arith.constant dense<0.000000e+00> : vector<8x8xf32>
    %52 = tpu.matmul %50, %51, %cst_19 {dimension_numbers = #tpu.dot_dimension_numbers<[1], [0], [0], [1], [0, 0, 1, 1], [], []>, precision = #tpu.contract_precision<fp32>} : vector<8x8xf32>, vector<8x8xf32>, vector<8x8xf32> -> vector<8x8xf32>
    %c0_20 = arith.constant 0 : index
    %c8 = arith.constant 8 : index
    %53 = vector.load %arg5[%c0_20, %c8] : memref<16x32xf32, #tpu.memory_space<vmem>>, vector<8x8xf32>
    tpu.vector_store %arg5[%c0_20, %c8], %52 {strides = array<i32>} : memref<16x32xf32, #tpu.memory_space<vmem>>, vector<8x8xf32>,
    %54 = vector.extract_strided_slice %45 {offsets = [16, 0], sizes = [8, 8], strides = [1, 1]} : vector<64x8xf32> to vector<8x8xf32>
    %55 = vector.extract_strided_slice %11 {offsets = [0, 16], sizes = [8, 8], strides = [1, 1]} : vector<16x32xf32> to vector<8x8xf32>
    %cst_21 = arith.constant dense<0.000000e+00> : vector<8x8xf32>
    %56 = tpu.matmul %54, %55, %cst_21 {dimension_numbers = #tpu.dot_dimension_numbers<[1], [0], [0], [1], [0, 0, 1, 1], [], []>, precision = #tpu.contract_precision<fp32>} : vector<8x8xf32>, vector<8x8xf32>, vector<8x8xf32> -> vector<8x8xf32>
    %c0_22 = arith.constant 0 : index
    %c16 = arith.constant 16 : index
    %57 = vector.load %arg5[%c0_22, %c16] : memref<16x32xf32, #tpu.memory_space<vmem>>, vector<8x8xf32>
    tpu.vector_store %arg5[%c0_22, %c16], %56 {strides = array<i32>} : memref<16x32xf32, #tpu.memory_space<vmem>>, vector<8x8xf32>,
    %58 = vector.extract_strided_slice %45 {offsets = [24, 0], sizes = [8, 8], strides = [1, 1]} : vector<64x8xf32> to vector<8x8xf32>
    %59 = vector.extract_strided_slice %11 {offsets = [0, 24], sizes = [8, 8], strides = [1, 1]} : vector<16x32xf32> to vector<8x8xf32>
    %cst_23 = arith.constant dense<0.000000e+00> : vector<8x8xf32>
    %60 = tpu.matmul %58, %59, %cst_23 {dimension_numbers = #tpu.dot_dimension_numbers<[1], [0], [0], [1], [0, 0, 1, 1], [], []>, precision = #tpu.contract_precision<fp32>} : vector<8x8xf32>, vector<8x8xf32>, vector<8x8xf32> -> vector<8x8xf32>
    %c0_24 = arith.constant 0 : index
    %c24 = arith.constant 24 : index
    %61 = vector.load %arg5[%c0_24, %c24] : memref<16x32xf32, #tpu.memory_space<vmem>>, vector<8x8xf32>
    tpu.vector_store %arg5[%c0_24, %c24], %60 {strides = array<i32>} : memref<16x32xf32, #tpu.memory_space<vmem>>, vector<8x8xf32>,
    %62 = vector.extract_strided_slice %45 {offsets = [32, 0], sizes = [8, 8], strides = [1, 1]} : vector<64x8xf32> to vector<8x8xf32>
    %63 = vector.extract_strided_slice %11 {offsets = [8, 0], sizes = [8, 8], strides = [1, 1]} : vector<16x32xf32> to vector<8x8xf32>
    %cst_25 = arith.constant dense<0.000000e+00> : vector<8x8xf32>
    %64 = tpu.matmul %62, %63, %cst_25 {dimension_numbers = #tpu.dot_dimension_numbers<[1], [0], [0], [1], [0, 0, 1, 1], [], []>, precision = #tpu.contract_precision<fp32>} : vector<8x8xf32>, vector<8x8xf32>, vector<8x8xf32> -> vector<8x8xf32>
    %c8_26 = arith.constant 8 : index
    %c0_27 = arith.constant 0 : index
    %65 = vector.load %arg5[%c8_26, %c0_27] : memref<16x32xf32, #tpu.memory_space<vmem>>, vector<8x8xf32>
    tpu.vector_store %arg5[%c8_26, %c0_27], %64 {strides = array<i32>} : memref<16x32xf32, #tpu.memory_space<vmem>>, vector<8x8xf32>,
    %66 = vector.extract_strided_slice %45 {offsets = [40, 0], sizes = [8, 8], strides = [1, 1]} : vector<64x8xf32> to vector<8x8xf32>
    %67 = vector.extract_strided_slice %11 {offsets = [8, 8], sizes = [8, 8], strides = [1, 1]} : vector<16x32xf32> to vector<8x8xf32>
    %cst_28 = arith.constant dense<0.000000e+00> : vector<8x8xf32>
    %68 = tpu.matmul %66, %67, %cst_28 {dimension_numbers = #tpu.dot_dimension_numbers<[1], [0], [0], [1], [0, 0, 1, 1], [], []>, precision = #tpu.contract_precision<fp32>} : vector<8x8xf32>, vector<8x8xf32>, vector<8x8xf32> -> vector<8x8xf32>
    %c8_29 = arith.constant 8 : index
    %c8_30 = arith.constant 8 : index
    %69 = vector.load %arg5[%c8_29, %c8_30] : memref<16x32xf32, #tpu.memory_space<vmem>>, vector<8x8xf32>
    tpu.vector_store %arg5[%c8_29, %c8_30], %68 {strides = array<i32>} : memref<16x32xf32, #tpu.memory_space<vmem>>, vector<8x8xf32>,
    %70 = vector.extract_strided_slice %45 {offsets = [48, 0], sizes = [8, 8], strides = [1, 1]} : vector<64x8xf32> to vector<8x8xf32>
    %71 = vector.extract_strided_slice %11 {offsets = [8, 16], sizes = [8, 8], strides = [1, 1]} : vector<16x32xf32> to vector<8x8xf32>
    %cst_31 = arith.constant dense<0.000000e+00> : vector<8x8xf32>
    %72 = tpu.matmul %70, %71, %cst_31 {dimension_numbers = #tpu.dot_dimension_numbers<[1], [0], [0], [1], [0, 0, 1, 1], [], []>, precision = #tpu.contract_precision<fp32>} : vector<8x8xf32>, vector<8x8xf32>, vector<8x8xf32> -> vector<8x8xf32>
    %c8_32 = arith.constant 8 : index
    %c16_33 = arith.constant 16 : index
    %73 = vector.load %arg5[%c8_32, %c16_33] : memref<16x32xf32, #tpu.memory_space<vmem>>, vector<8x8xf32>
    tpu.vector_store %arg5[%c8_32, %c16_33], %72 {strides = array<i32>} : memref<16x32xf32, #tpu.memory_space<vmem>>, vector<8x8xf32>,
    %74 = vector.extract_strided_slice %45 {offsets = [56, 0], sizes = [8, 8], strides = [1, 1]} : vector<64x8xf32> to vector<8x8xf32>
    %75 = vector.extract_strided_slice %11 {offsets = [8, 24], sizes = [8, 8], strides = [1, 1]} : vector<16x32xf32> to vector<8x8xf32>
    %cst_34 = arith.constant dense<0.000000e+00> : vector<8x8xf32>
    %76 = tpu.matmul %74, %75, %cst_34 {dimension_numbers = #tpu.dot_dimension_numbers<[1], [0], [0], [1], [0, 0, 1, 1], [], []>, precision = #tpu.contract_precision<fp32>} : vector<8x8xf32>, vector<8x8xf32>, vector<8x8xf32> -> vector<8x8xf32>
    %c8_35 = arith.constant 8 : index
    %c24_36 = arith.constant 24 : index
    %77 = vector.load %arg5[%c8_35, %c24_36] : memref<16x32xf32, #tpu.memory_space<vmem>>, vector<8x8xf32>
    tpu.vector_store %arg5[%c8_35, %c24_36], %76 {strides = array<i32>} : memref<16x32xf32, #tpu.memory_space<vmem>>, vector<8x8xf32>,
    %c1 = arith.constant 1 : index
    %c0_37 = arith.constant 0 : index
    %78 = vector.load %arg3[%c1, %c0_37] : memref<2x96xf32, #tpu.memory_space<vmem>>, vector<1x32xf32>
    %c1_38 = arith.constant 1 : index
    %c32 = arith.constant 32 : index
    %79 = vector.load %arg3[%c1_38, %c32] : memref<2x96xf32, #tpu.memory_space<vmem>>, vector<1x32xf32>
    %c1_39 = arith.constant 1 : index
    %c64 = arith.constant 64 : index
    %80 = vector.load %arg3[%c1_39, %c64] : memref<2x96xf32, #tpu.memory_space<vmem>>, vector<1x32xf32>
    %c0_40 = arith.constant 0 : index
    %c0_41 = arith.constant 0 : index
    %81 = vector.load %arg5[%c0_40, %c0_41] : memref<16x32xf32, #tpu.memory_space<vmem>>, vector<16x32xf32>
    %c0_42 = arith.constant 0 : index
    %c0_43 = arith.constant 0 : index
    %82 = vector.load %arg2[%c0_42, %c0_43] : memref<32x32xf32, #tpu.memory_space<vmem>>, vector<32x32xf32>
    %cst_44 = arith.constant dense<0.000000e+00> : vector<16x32xf32>
    %83 = tpu.matmul %81, %82, %cst_44 {dimension_numbers = #tpu.dot_dimension_numbers<[1], [0], [0], [1], [0, 0, 1, 1], [], []>, precision = #tpu.contract_precision<fp32>} : vector<16x32xf32>, vector<32x32xf32>, vector<16x32xf32> -> vector<16x32xf32>
    %84 = vector.broadcast %78 : vector<1x32xf32> to vector<16x32xf32>
    %85 = arith.addf %83, %84 : vector<16x32xf32>
    %86 = arith.addf %85, %1 : vector<16x32xf32>
    %cst_45 = arith.constant dense<0.000000e+00> : vector<16xf32>
    %87 = vector.multi_reduction <add>, %86, %cst_45 [1] : vector<16x32xf32> to vector<16xf32>
    %88 = vector.shape_cast %87 : vector<16xf32> to vector<16x1xf32>
    %cst_46 = arith.constant 3.200000e+01 : f32
    %89 = vector.broadcast %cst_46 : f32 to vector<16x1xf32>
    %90 = arith.divf %88, %89 : vector<16x1xf32>
    %91 = vector.broadcast %90 : vector<16x1xf32> to vector<16x32xf32>
    %92 = arith.subf %86, %91 : vector<16x32xf32>
    %93 = arith.mulf %92, %92 : vector<16x32xf32>
    %cst_47 = arith.constant dense<0.000000e+00> : vector<16xf32>
    %94 = vector.multi_reduction <add>, %93, %cst_47 [1] : vector<16x32xf32> to vector<16xf32>
    %95 = vector.shape_cast %94 : vector<16xf32> to vector<16x1xf32>
    %cst_48 = arith.constant 3.200000e+01 : f32
    %96 = vector.broadcast %cst_48 : f32 to vector<16x1xf32>
    %97 = arith.divf %95, %96 : vector<16x1xf32>
    %98 = vector.broadcast %90 : vector<16x1xf32> to vector<16x32xf32>
    %99 = arith.subf %86, %98 : vector<16x32xf32>
    %cst_49 = arith.constant 9.99999974E-6 : f32
    %100 = vector.broadcast %cst_49 : f32 to vector<16x1xf32>
    %101 = arith.addf %97, %100 : vector<16x1xf32>
    %102 = math.rsqrt %101 : vector<16x1xf32>
    %103 = vector.broadcast %102 : vector<16x1xf32> to vector<16x32xf32>
    %104 = arith.mulf %99, %103 : vector<16x32xf32>
    %105 = vector.broadcast %79 : vector<1x32xf32> to vector<16x32xf32>
    %106 = arith.mulf %104, %105 : vector<16x32xf32>
    %107 = vector.broadcast %80 : vector<1x32xf32> to vector<16x32xf32>
    %108 = arith.addf %106, %107 : vector<16x32xf32>
    %c0_50 = arith.constant 0 : index
    %c0_51 = arith.constant 0 : index
    %109 = vector.load %arg4[%c0_50, %c0_51] : memref<16x32xf32, #tpu.memory_space<vmem>>, vector<16x32xf32>
    tpu.vector_store %arg4[%c0_50, %c0_51], %108 {strides = array<i32>} : memref<16x32xf32, #tpu.memory_space<vmem>>, vector<16x32xf32>,
    return
  }
}

</mosaic_0001>

<llo_original>
// kernel: multi_head_attention.1
$region0: #{multi_head_attention.1}
  #allocation0 [shape = 'u32[]', space=smem, size = 0x4, offset = 0x4, fixed_abs, tag = 'smem constant byte address 0x4 - core index']
  #allocation1 [shape = 'u32[144,128]{1,0:T(1,128)}', space=vmem, size = 0x12000, scoped, tag = 'internal scratch']
  #allocation2 [shape = 'f32[16,32]{1,0:T(8,128)}', space=vmem, size = 0x2000, scoped, tag = 'scratch operand']
  %s0 = inlined_call_operand.vmem [shape: f32[48,32], index: 0, kind: input, shape index: {}]
  %s1 = inlined_call_operand.vmem [shape: f32[32,96], index: 1, kind: input, shape index: {}]
  %s2 = inlined_call_operand.vmem [shape: f32[32,32], index: 2, kind: input, shape index: {}]
  %s3 = inlined_call_operand.vmem [shape: f32[2,96], index: 3, kind: input, shape index: {}]
  %s4 = inlined_call_operand.hbm [shape: f32[16,32], index: 4, kind: output, shape index: {}]
  %s5 = sld [smem:[#allocation0]]
  $region26: #{multi_head_attention.1} parent=0
    _
  %s7 = ssub.s32 1, %s5
  %s8 = scalar_select 0, %s7, %s5
  $region1: #{multi_head_attention.1} parent=0
    #allocation3 [shape = 'u8[8192]{0}', space=vmem, size = 0x2000, scoped, tag = 'output window, operand 0, single buffered']
    #allocation4 [shape = 's32[1]{0}', space=sflag, size = 0x4, scoped, tag = 'scoped memory for multi_head_attention.1']
    %9 = vsyncpa [#allocation4], 0
    // Predicated region
    $region2: #{multi_head_attention.1} parent=1 // pred_check
      _
    $region3: #{multi_head_attention.1} parent=1 // pred_check_branch
      %11 = sbr.rel (0) target = $region5
    $region4: #{multi_head_attention.1} parent=1 // pred_region
      _
    $region5: #{multi_head_attention.1} parent=1 // pred_fallthru
      _
    // Predicated region
    $region6: #{multi_head_attention.1} parent=1 // pred_check
      _
    $region7: #{multi_head_attention.1} parent=1 // pred_check_branch
      %13 = sbr.rel (0) target = $region9
    $region8: #{multi_head_attention.1} parent=1 // pred_region
      _
    $region9: #{multi_head_attention.1} parent=1 // pred_fallthru
      _
    // Predicated region
    $region10: #{multi_head_attention.1} parent=1 // pred_check
      _
    $region11: #{multi_head_attention.1} parent=1 // pred_check_branch
      %15 = sbr.rel (0) target = $region13
    $region12: #{multi_head_attention.1} parent=1 // pred_region
      _
    $region13: #{multi_head_attention.1} parent=1 // pred_fallthru
      _
    // Predicated region
    $region14: #{multi_head_attention.1} parent=1 // pred_check
      _
    $region15: #{multi_head_attention.1} parent=1 // pred_check_branch
      %17 = sbr.rel (0) target = $region17
    $region16: #{multi_head_attention.1} parent=1 // pred_region
      _
    $region17: #{multi_head_attention.1} parent=1 // pred_fallthru
      _
    %v18 = vld [vmem:[%s0] sm:$0xff]
    %v19 = vld [vmem:[%s0 + $0x8] sm:$0xff]
    %v20 = vld [vmem:[%s0 + $0x10] sm:$0xff]
    %v21 = vld [vmem:[%s0 + $0x18] sm:$0xff]
    %v22 = vld [vmem:[%s0 + $0x20] sm:$0xff]
    %v23 = vld [vmem:[%s0 + $0x28] sm:$0xff]
    %v24 = vld [vmem:[%s1] sm:$0xff]
    %v25 = vld [vmem:[%s1 + $0x8] sm:$0xff]
    %v26 = vld [vmem:[%s1 + $0x10] sm:$0xff]
    %v27 = vld [vmem:[%s1 + $0x18] sm:$0xff]
    %v28 = vld [vmem:[%s3] sm:$0x1]
    %v29 = vlaneseq
    %v30 = vshrl.u32 %v29, 7
    %v31 = vsub.s32 0, %v30
    %v32 = vrot.slane %v28, %v31
    %vm33 = vcmask 261120
    %v35 = vsel %vm33, %v18, 0
    %v38 = vsel %vm33, %v19, 0
    %v41 = vsel %vm33, %v20, 0
    %v44 = vsel %vm33, %v21, 0
    %v47 = vsel %vm33, %v22, 0
    %v50 = vsel %vm33, %v23, 0
    %52 = vmatprep.subr.mxu0 0.0
    %v53 = vand.u32 %v24, 4294901760
    %54 = vmatpush1.msra.mxu0 %v53
    %55 = vmatprep.subr.mxu0 0.0
    %v56 = vand.u32 %v25, 4294901760
    %57 = vmatpush1.msra.mxu0 %v56
    %58 = vmatprep.subr.mxu0 0.0
    %v59 = vand.u32 %v26, 4294901760
    %60 = vmatpush1.msra.mxu0 %v59
    %61 = vmatprep.subr.mxu0 0.0
    %v62 = vand.u32 %v27, 4294901760
    %63 = vmatpush1.msra.mxu0 %v62
    %64 = vmatprep.subr.mxu0 0.0
    %65 = vmatpush1.msra.mxu0 0.0
    %66 = vmatprep.subr.mxu0 0.0
    %67 = vmatpush1.msra.mxu0 0.0
    %68 = vmatprep.subr.mxu0 0.0
    %69 = vmatpush1.msra.mxu0 0.0
    %70 = vmatprep.subr.mxu0 0.0
    %71 = vmatpush1.msra.mxu0 0.0
    %72 = vmatprep.subr.mxu0 0.0
    %73 = vmatpush1.msra.mxu0 0.0
    %74 = vmatprep.subr.mxu0 0.0
    %75 = vmatpush1.msra.mxu0 0.0
    %76 = vmatprep.subr.mxu0 0.0
    %77 = vmatpush1.msra.mxu0 0.0
    %78 = vmatprep.subr.mxu0 0.0
    %79 = vmatpush1.msra.mxu0 0.0
    %80 = vmatprep.subr.mxu0 0.0
    %81 = vmatpush1.msra.mxu0 0.0
    %82 = vmatprep.subr.mxu0 0.0
    %83 = vmatpush1.msra.mxu0 0.0
    %84 = vmatprep.subr.mxu0 0.0
    %85 = vmatpush1.msra.mxu0 0.0
    %86 = vmatprep.subr.mxu0 0.0
    %87 = vmatpush1.msra.mxu0 0.0
    %88 = vmatprep.subr.mxu0 0.0
    %89 = vmatpush1.msra.mxu0 0.0
    %90 = vmatprep.subr.mxu0 0.0
    %91 = vmatpush1.msra.mxu0 0.0
    %92 = vmatprep.subr.mxu0 0.0
    %93 = vmatpush1.msra.mxu0 0.0
    %94 = vmatprep.subr.mxu0 0.0
    %95 = vmatpush1.msra.mxu0 0.0
    %96 = vmatprep.subr.mxu0 0.0
    %97 = vmatpush1.msra.mxu0 0.0
    %98 = vmatprep.subr.mxu0 0.0
    %99 = vmatpush1.msra.mxu0 0.0
    %100 = vmatprep.subr.mxu0 0.0
    %101 = vmatpush1.msra.mxu0 0.0
    %102 = vmatprep.subr.mxu0 0.0
    %103 = vmatpush1.msra.mxu0 0.0
    %104 = vmatprep.subr.mxu0 0.0
    %105 = vmatpush1.msra.mxu0 0.0
    %106 = vmatprep.subr.mxu0 0.0
    %107 = vmatpush1.msra.mxu0 0.0
    %108 = vmatprep.subr.mxu0 0.0
    %109 = vmatpush1.msra.mxu0 0.0
    %110 = vmatprep.subr.mxu0 0.0
    %111 = vmatpush1.msra.mxu0 0.0
    %112 = vmatprep.subr.mxu0 0.0
    %113 = vmatpush1.msra.mxu0 0.0
    %114 = vmatprep.subr.mxu0 0.0
    %115 = vmatpush1.msra.mxu0 0.0
    %116 = vmatprep.subr.mxu0 0.0
    %117 = vmatpush1.msra.mxu0 0.0
    %118 = vmatprep.subr.mxu0 0.0
    %119 = vmatpush1.msra.mxu0 0.0
    %120 = vmatprep.mubr.f32.mxu0 0.0
    %v121 = vand.u32 %v35, 4294901760
    %v122 = vsub.f32 %v35, %v121
    %v123 = vand.u32 %v122, 4294901760
    %v124 = vsub.f32 %v122, %v123
    %v125 = vand.u32 %v124, 4294901760
    %126 = vmatmul.mubr.f32.gmra.mrb[0].mxu0 %v125
    %v127 = vpop.f32.mrb[0].mxu0
    %v128 = vadd.f32 %v32, %v127
    %v129 = vpop.f32.mrb[0].mxu0
    %130 = vmatprep.mubr.f32.mxu0 0.0
    %v131 = vand.u32 %v38, 4294901760
    %v132 = vsub.f32 %v38, %v131
    %v133 = vand.u32 %v132, 4294901760
    %v134 = vsub.f32 %v132, %v133
    %v135 = vand.u32 %v134, 4294901760
    %136 = vmatmul.mubr.f32.gmra.mrb[0].mxu0 %v135
    %v137 = vpop.f32.mrb[0].mxu0
    %v138 = vadd.f32 %v32, %v137
    %v139 = vpop.f32.mrb[0].mxu0
    %140 = vmatprep.mubr.f32.mxu0 0.0
    %v141 = vand.u32 %v41, 4294901760
    %v142 = vsub.f32 %v41, %v141
    %v143 = vand.u32 %v142, 4294901760
    %v144 = vsub.f32 %v142, %v143
    %v145 = vand.u32 %v144, 4294901760
    %146 = vmatmul.mubr.f32.gmra.mrb[0].mxu0 %v145
    %v147 = vpop.f32.mrb[0].mxu0
    %v148 = vadd.f32 %v32, %v147
    %v149 = vpop.f32.mrb[0].mxu0
    %150 = vmatprep.mubr.f32.mxu0 0.0
    %v151 = vand.u32 %v44, 4294901760
    %v152 = vsub.f32 %v44, %v151
    %v153 = vand.u32 %v152, 4294901760
    %v154 = vsub.f32 %v152, %v153
    %v155 = vand.u32 %v154, 4294901760
    %156 = vmatmul.mubr.f32.gmra.mrb[0].mxu0 %v155
    %v157 = vpop.f32.mrb[0].mxu0
    %v158 = vadd.f32 %v32, %v157
    %v159 = vpop.f32.mrb[0].mxu0
    %160 = vmatprep.mubr.f32.mxu0 0.0
    %v161 = vand.u32 %v47, 4294901760
    %v162 = vsub.f32 %v47, %v161
    %v163 = vand.u32 %v162, 4294901760
    %v164 = vsub.f32 %v162, %v163
    %v165 = vand.u32 %v164, 4294901760
    %166 = vmatmul.mubr.f32.gmra.mrb[0].mxu0 %v165
    %v167 = vpop.f32.mrb[0].mxu0
    %v168 = vadd.f32 %v32, %v167
    %v169 = vpop.f32.mrb[0].mxu0
    %170 = vmatprep.mubr.f32.mxu0 0.0
    %v171 = vand.u32 %v50, 4294901760
    %v172 = vsub.f32 %v50, %v171
    %v173 = vand.u32 %v172, 4294901760
    %v174 = vsub.f32 %v172, %v173
    %v175 = vand.u32 %v174, 4294901760
    %176 = vmatmul.mubr.f32.gmra.mrb[0].mxu0 %v175
    %v177 = vpop.f32.mrb[0].mxu0
    %v178 = vadd.f32 %v32, %v177
    %v179 = vpop.f32.mrb[0].mxu0
    %180 = vdwg.mxu0
    %181 = vmatprep.subr.mxu0 0.0
    %v182 = vand.u32 %v24, 4294901760
    %v183 = vsub.f32 %v24, %v182
    %v184 = vand.u32 %v183, 4294901760
    %v185 = vsub.f32 %v183, %v184
    %v186 = vand.u32 %v185, 4294901760
    %187 = vmatpush1.msra.mxu0 %v186
    %188 = vmatprep.subr.mxu0 0.0
    %v189 = vand.u32 %v25, 4294901760
    %v190 = vsub.f32 %v25, %v189
    %v191 = vand.u32 %v190, 4294901760
    %v192 = vsub.f32 %v190, %v191
    %v193 = vand.u32 %v192, 4294901760
    %194 = vmatpush1.msra.mxu0 %v193
    %195 = vmatprep.subr.mxu0 0.0
    %v196 = vand.u32 %v26, 4294901760
    %v197 = vsub.f32 %v26, %v196
    %v198 = vand.u32 %v197, 4294901760
    %v199 = vsub.f32 %v197, %v198
    %v200 = vand.u32 %v199, 4294901760
    %201 = vmatpush1.msra.mxu0 %v200
    %202 = vmatprep.subr.mxu0 0.0
    %v203 = vand.u32 %v27, 4294901760
    %v204 = vsub.f32 %v27, %v203
    %v205 = vand.u32 %v204, 4294901760
    %v206 = vsub.f32 %v204, %v205
    %v207 = vand.u32 %v206, 4294901760
    %208 = vmatpush1.msra.mxu0 %v207
    %209 = vmatprep.subr.mxu0 0.0
    %210 = vmatpush1.msra.mxu0 0.0
    %211 = vmatprep.subr.mxu0 0.0
    %212 = vmatpush1.msra.mxu0 0.0
    %213 = vmatprep.subr.mxu0 0.0
    %214 = vmatpush1.msra.mxu0 0.0
    %215 = vmatprep.subr.mxu0 0.0
    %216 = vmatpush1.msra.mxu0 0.0
    %217 = vmatprep.subr.mxu0 0.0
    %218 = vmatpush1.msra.mxu0 0.0
    %219 = vmatprep.subr.mxu0 0.0
    %220 = vmatpush1.msra.mxu0 0.0
    %221 = vmatprep.subr.mxu0 0.0
    %222 = vmatpush1.msra.mxu0 0.0
    %223 = vmatprep.subr.mxu0 0.0
    %224 = vmatpush1.msra.mxu0 0.0
    %225 = vmatprep.subr.mxu0 0.0
    %226 = vmatpush1.msra.mxu0 0.0
    %227 = vmatprep.subr.mxu0 0.0
    %228 = vmatpush1.msra.mxu0 0.0
    %229 = vmatprep.subr.mxu0 0.0
    %230 = vmatpush1.msra.mxu0 0.0
    %231 = vmatprep.subr.mxu0 0.0
    %232 = vmatpush1.msra.mxu0 0.0
    %233 = vmatprep.subr.mxu0 0.0
    %234 = vmatpush1.msra.mxu0 0.0
    %235 = vmatprep.subr.mxu0 0.0
    %236 = vmatpush1.msra.mxu0 0.0
    %237 = vmatprep.subr.mxu0 0.0
    %238 = vmatpush1.msra.mxu0 0.0
    %239 = vmatprep.subr.mxu0 0.0
    %240 = vmatpush1.msra.mxu0 0.0
    %241 = vmatprep.subr.mxu0 0.0
    %242 = vmatpush1.msra.mxu0 0.0
    %243 = vmatprep.subr.mxu0 0.0
    %244 = vmatpush1.msra.mxu0 0.0
    %245 = vmatprep.subr.mxu0 0.0
    %246 = vmatpush1.msra.mxu0 0.0
    %247 = vmatprep.subr.mxu0 0.0
    %248 = vmatpush1.msra.mxu0 0.0
    %249 = vmatprep.subr.mxu0 0.0
    %250 = vmatpush1.msra.mxu0 0.0
    %251 = vmatprep.subr.mxu0 0.0
    %252 = vmatpush1.msra.mxu0 0.0
    %253 = vmatprep.subr.mxu0 0.0
    %254 = vmatpush1.msra.mxu0 0.0
    %255 = vmatprep.subr.mxu0 0.0
    %256 = vmatpush1.msra.mxu0 0.0
    %257 = vmatprep.subr.mxu0 0.0
    %258 = vmatpush1.msra.mxu0 0.0
    %259 = vmatprep.subr.mxu0 0.0
    %260 = vmatpush1.msra.mxu0 0.0
    %261 = vmatprep.subr.mxu0 0.0
    %262 = vmatpush1.msra.mxu0 0.0
    %263 = vmatprep.subr.mxu0 0.0
    %264 = vmatpush1.msra.mxu0 0.0
    %265 = vmatprep.mubr.f32.mxu0 0.0
    %v266 = vand.u32 %v35, 4294901760
    %267 = vmatmul.mubr.f32.gmra.mrb[0].mxu0 %v266
    %v268 = vpop.f32.mrb[0].mxu0
    %v269 = vadd.f32 %v128, %v268
    %v270 = vpop.f32.mrb[0].mxu0
    %271 = vmatprep.mubr.f32.mxu0 0.0
    %v272 = vand.u32 %v38, 4294901760
    %273 = vmatmul.mubr.f32.gmra.mrb[0].mxu0 %v272
    %v274 = vpop.f32.mrb[0].mxu0
    %v275 = vadd.f32 %v138, %v274
    %v276 = vpop.f32.mrb[0].mxu0
    %277 = vmatprep.mubr.f32.mxu0 0.0
    %v278 = vand.u32 %v41, 4294901760
    %279 = vmatmul.mubr.f32.gmra.mrb[0].mxu0 %v278
    %v280 = vpop.f32.mrb[0].mxu0
    %v281 = vadd.f32 %v148, %v280
    %v282 = vpop.f32.mrb[0].mxu0
    %283 = vmatprep.mubr.f32.mxu0 0.0
    %v284 = vand.u32 %v44, 4294901760
    %285 = vmatmul.mubr.f32.gmra.mrb[0].mxu0 %v284
    %v286 = vpop.f32.mrb[0].mxu0
    %v287 = vadd.f32 %v158, %v286
    %v288 = vpop.f32.mrb[0].mxu0
    %289 = vmatprep.mubr.f32.mxu0 0.0
    %v290 = vand.u32 %v47, 4294901760
    %291 = vmatmul.mubr.f32.gmra.mrb[0].mxu0 %v290
    %v292 = vpop.f32.mrb[0].mxu0
    %v293 = vadd.f32 %v168, %v292
    %v294 = vpop.f32.mrb[0].mxu0
    %295 = vmatprep.mubr.f32.mxu0 0.0
    %v296 = vand.u32 %v50, 4294901760
    %297 = vmatmul.mubr.f32.gmra.mrb[0].mxu0 %v296
    %v298 = vpop.f32.mrb[0].mxu0
    %v299 = vadd.f32 %v178, %v298
    %v300 = vpop.f32.mrb[0].mxu0
    %301 = vdwg.mxu0
    %302 = vmatprep.subr.mxu0 0.0
    %v303 = vand.u32 %v24, 4294901760
    %v304 = vsub.f32 %v24, %v303
    %305 = vmatpush1.msra.mxu0 %v304
    %306 = vmatprep.subr.mxu0 0.0
    %v307 = vand.u32 %v25, 4294901760
    %v308 = vsub.f32 %v25, %v307
    %309 = vmatpush1.msra.mxu0 %v308
    %310 = vmatprep.subr.mxu0 0.0
    %v311 = vand.u32 %v26, 4294901760
    %v312 = vsub.f32 %v26, %v311
    %313 = vmatpush1.msra.mxu0 %v312
    %314 = vmatprep.subr.mxu0 0.0
    %v315 = vand.u32 %v27, 4294901760
    %v316 = vsub.f32 %v27, %v315
    %317 = vmatpush1.msra.mxu0 %v316
    %318 = vmatprep.subr.mxu0 0.0
    %319 = vmatpush1.msra.mxu0 0.0
    %320 = vmatprep.subr.mxu0 0.0
    %321 = vmatpush1.msra.mxu0 0.0
    %322 = vmatprep.subr.mxu0 0.0
    %323 = vmatpush1.msra.mxu0 0.0
    %324 = vmatprep.subr.mxu0 0.0
    %325 = vmatpush1.msra.mxu0 0.0
    %326 = vmatprep.subr.mxu0 0.0
    %327 = vmatpush1.msra.mxu0 0.0
    %328 = vmatprep.subr.mxu0 0.0
    %329 = vmatpush1.msra.mxu0 0.0
    %330 = vmatprep.subr.mxu0 0.0
    %331 = vmatpush1.msra.mxu0 0.0
    %332 = vmatprep.subr.mxu0 0.0
    %333 = vmatpush1.msra.mxu0 0.0
    %334 = vmatprep.subr.mxu0 0.0
    %335 = vmatpush1.msra.mxu0 0.0
    %336 = vmatprep.subr.mxu0 0.0
    %337 = vmatpush1.msra.mxu0 0.0
    %338 = vmatprep.subr.mxu0 0.0
    %339 = vmatpush1.msra.mxu0 0.0
    %340 = vmatprep.subr.mxu0 0.0
    %341 = vmatpush1.msra.mxu0 0.0
    %342 = vmatprep.subr.mxu0 0.0
    %343 = vmatpush1.msra.mxu0 0.0
    %344 = vmatprep.subr.mxu0 0.0
    %345 = vmatpush1.msra.mxu0 0.0
    %346 = vmatprep.subr.mxu0 0.0
    %347 = vmatpush1.msra.mxu0 0.0
    %348 = vmatprep.subr.mxu0 0.0
    %349 = vmatpush1.msra.mxu0 0.0
    %350 = vmatprep.subr.mxu0 0.0
    %351 = vmatpush1.msra.mxu0 0.0
    %352 = vmatprep.subr.mxu0 0.0
    %353 = vmatpush1.msra.mxu0 0.0
    %354 = vmatprep.subr.mxu0 0.0
    %355 = vmatpush1.msra.mxu0 0.0
    %356 = vmatprep.subr.mxu0 0.0
    %357 = vmatpush1.msra.mxu0 0.0
    %358 = vmatprep.subr.mxu0 0.0
    %359 = vmatpush1.msra.mxu0 0.0
    %360 = vmatprep.subr.mxu0 0.0
    %361 = vmatpush1.msra.mxu0 0.0
    %362 = vmatprep.subr.mxu0 0.0
    %363 = vmatpush1.msra.mxu0 0.0
    %364 = vmatprep.subr.mxu0 0.0
    %365 = vmatpush1.msra.mxu0 0.0
    %366 = vmatprep.subr.mxu0 0.0
    %367 = vmatpush1.msra.mxu0 0.0
    %368 = vmatprep.subr.mxu0 0.0
    %369 = vmatpush1.msra.mxu0 0.0
    %370 = vmatprep.subr.mxu0 0.0
    %371 = vmatpush1.msra.mxu0 0.0
    %372 = vmatprep.subr.mxu0 0.0
    %373 = vmatpush1.msra.mxu0 0.0
    %374 = vmatprep.mubr.f32.mxu0 0.0
    %v375 = vand.u32 %v35, 4294901760
    %v376 = vsub.f32 %v35, %v375
    %377 = vmatmul.mubr.f32.gmra.mrb[0].mxu0 %v376
    %v378 = vpop.f32.mrb[0].mxu0
    %v379 = vadd.f32 %v269, %v378
    %v380 = vpop.f32.mrb[0].mxu0
    %381 = vmatprep.mubr.f32.mxu0 0.0
    %v382 = vand.u32 %v38, 4294901760
    %v383 = vsub.f32 %v38, %v382
    %384 = vmatmul.mubr.f32.gmra.mrb[0].mxu0 %v383
    %v385 = vpop.f32.mrb[0].mxu0
    %v386 = vadd.f32 %v275, %v385
    %v387 = vpop.f32.mrb[0].mxu0
    %388 = vmatprep.mubr.f32.mxu0 0.0
    %v389 = vand.u32 %v41, 4294901760
    %v390 = vsub.f32 %v41, %v389
    %391 = vmatmul.mubr.f32.gmra.mrb[0].mxu0 %v390
    %v392 = vpop.f32.mrb[0].mxu0
    %v393 = vadd.f32 %v281, %v392
    %v394 = vpop.f32.mrb[0].mxu0
    %395 = vmatprep.mubr.f32.mxu0 0.0
    %v396 = vand.u32 %v44, 4294901760
    %v397 = vsub.f32 %v44, %v396
    %398 = vmatmul.mubr.f32.gmra.mrb[0].mxu0 %v397
    %v399 = vpop.f32.mrb[0].mxu0
    %v400 = vadd.f32 %v287, %v399
    %v401 = vpop.f32.mrb[0].mxu0
    %402 = vmatprep.mubr.f32.mxu0 0.0
    %v403 = vand.u32 %v47, 4294901760
    %v404 = vsub.f32 %v47, %v403
    %405 = vmatmul.mubr.f32.gmra.mrb[0].mxu0 %v404
    %v406 = vpop.f32.mrb[0].mxu0
    %v407 = vadd.f32 %v293, %v406
    %v408 = vpop.f32.mrb[0].mxu0
    %409 = vmatprep.mubr.f32.mxu0 0.0
    %v410 = vand.u32 %v50, 4294901760
    %v411 = vsub.f32 %v50, %v410
    %412 = vmatmul.mubr.f32.gmra.mrb[0].mxu0 %v411
    %v413 = vpop.f32.mrb[0].mxu0
    %v414 = vadd.f32 %v299, %v413
    %v415 = vpop.f32.mrb[0].mxu0
    %416 = vdwg.mxu0
    %417 = vmatprep.subr.mxu0 0.0
    %v418 = vand.u32 %v24, 4294901760
    %419 = vmatpush1.msra.mxu0 %v418
    %420 = vmatprep.subr.mxu0 0.0
    %v421 = vand.u32 %v25, 4294901760
    %422 = vmatpush1.msra.mxu0 %v421
    %423 = vmatprep.subr.mxu0 0.0
    %v424 = vand.u32 %v26, 4294901760
    %425 = vmatpush1.msra.mxu0 %v424
    %426 = vmatprep.subr.mxu0 0.0
    %v427 = vand.u32 %v27, 4294901760
    %428 = vmatpush1.msra.mxu0 %v427
    %429 = vmatprep.subr.mxu0 0.0
    %430 = vmatpush1.msra.mxu0 0.0
    %431 = vmatprep.subr.mxu0 0.0
    %432 = vmatpush1.msra.mxu0 0.0
    %433 = vmatprep.subr.mxu0 0.0
    %434 = vmatpush1.msra.mxu0 0.0
    %435 = vmatprep.subr.mxu0 0.0
    %436 = vmatpush1.msra.mxu0 0.0
    %437 = vmatprep.subr.mxu0 0.0
    %438 = vmatpush1.msra.mxu0 0.0
    %439 = vmatprep.subr.mxu0 0.0
    %440 = vmatpush1.msra.mxu0 0.0
    %441 = vmatprep.subr.mxu0 0.0
    %442 = vmatpush1.msra.mxu0 0.0
    %443 = vmatprep.subr.mxu0 0.0
    %444 = vmatpush1.msra.mxu0 0.0
    %445 = vmatprep.subr.mxu0 0.0
    %446 = vmatpush1.msra.mxu0 0.0
    %447 = vmatprep.subr.mxu0 0.0
    %448 = vmatpush1.msra.mxu0 0.0
    %449 = vmatprep.subr.mxu0 0.0
    %450 = vmatpush1.msra.mxu0 0.0
    %451 = vmatprep.subr.mxu0 0.0
    %452 = vmatpush1.msra.mxu0 0.0
    %453 = vmatprep.subr.mxu0 0.0
    %454 = vmatpush1.msra.mxu0 0.0
    %455 = vmatprep.subr.mxu0 0.0
    %456 = vmatpush1.msra.mxu0 0.0
    %457 = vmatprep.subr.mxu0 0.0
    %458 = vmatpush1.msra.mxu0 0.0
    %459 = vmatprep.subr.mxu0 0.0
    %460 = vmatpush1.msra.mxu0 0.0
    %461 = vmatprep.subr.mxu0 0.0
    %462 = vmatpush1.msra.mxu0 0.0
    %463 = vmatprep.subr.mxu0 0.0
    %464 = vmatpush1.msra.mxu0 0.0
    %465 = vmatprep.subr.mxu0 0.0
    %466 = vmatpush1.msra.mxu0 0.0
    %467 = vmatprep.subr.mxu0 0.0
    %468 = vmatpush1.msra.mxu0 0.0
    %469 = vmatprep.subr.mxu0 0.0
    %470 = vmatpush1.msra.mxu0 0.0
    %471 = vmatprep.subr.mxu0 0.0
    %472 = vmatpush1.msra.mxu0 0.0
    %473 = vmatprep.subr.mxu0 0.0
    %474 = vmatpush1.msra.mxu0 0.0
    %475 = vmatprep.subr.mxu0 0.0
    %476 = vmatpush1.msra.mxu0 0.0
    %477 = vmatprep.subr.mxu0 0.0
    %478 = vmatpush1.msra.mxu0 0.0
    %479 = vmatprep.subr.mxu0 0.0
    %480 = vmatpush1.msra.mxu0 0.0
    %481 = vmatprep.subr.mxu0 0.0
    %482 = vmatpush1.msra.mxu0 0.0
    %483 = vmatprep.subr.mxu0 0.0
    %484 = vmatpush1.msra.mxu0 0.0
    %485 = vmatprep.mubr.f32.mxu0 0.0
    %v486 = vand.u32 %v35, 4294901760
    %v487 = vsub.f32 %v35, %v486
    %v488 = vand.u32 %v487, 4294901760
    %489 = vmatmul.mubr.f32.gmra.mrb[0].mxu0 %v488
    %v490 = vpop.f32.mrb[0].mxu0
    %v491 = vadd.f32 %v379, %v490
    %v492 = vpop.f32.mrb[0].mxu0
    %493 = vmatprep.mubr.f32.mxu0 0.0
    %v494 = vand.u32 %v38, 4294901760
    %v495 = vsub.f32 %v38, %v494
    %v496 = vand.u32 %v495, 4294901760
    %497 = vmatmul.mubr.f32.gmra.mrb[0].mxu0 %v496
    %v498 = vpop.f32.mrb[0].mxu0
    %v499 = vadd.f32 %v386, %v498
    %v500 = vpop.f32.mrb[0].mxu0
    %501 = vmatprep.mubr.f32.mxu0 0.0
    %v502 = vand.u32 %v41, 4294901760
    %v503 = vsub.f32 %v41, %v502
    %v504 = vand.u32 %v503, 4294901760
    %505 = vmatmul.mubr.f32.gmra.mrb[0].mxu0 %v504
    %v506 = vpop.f32.mrb[0].mxu0
    %v507 = vadd.f32 %v393, %v506
    %v508 = vpop.f32.mrb[0].mxu0
    %509 = vmatprep.mubr.f32.mxu0 0.0
    %v510 = vand.u32 %v44, 4294901760
    %v511 = vsub.f32 %v44, %v510
    %v512 = vand.u32 %v511, 4294901760
    %513 = vmatmul.mubr.f32.gmra.mrb[0].mxu0 %v512
    %v514 = vpop.f32.mrb[0].mxu0
    %v515 = vadd.f32 %v400, %v514
    %v516 = vpop.f32.mrb[0].mxu0
    %517 = vmatprep.mubr.f32.mxu0 0.0
    %v518 = vand.u32 %v47, 4294901760
    %v519 = vsub.f32 %v47, %v518
    %v520 = vand.u32 %v519, 4294901760
    %521 = vmatmul.mubr.f32.gmra.mrb[0].mxu0 %v520
    %v522 = vpop.f32.mrb[0].mxu0
    %v523 = vadd.f32 %v407, %v522
    %v524 = vpop.f32.mrb[0].mxu0
    %525 = vmatprep.mubr.f32.mxu0 0.0
    %v526 = vand.u32 %v50, 4294901760
    %v527 = vsub.f32 %v50, %v526
    %v528 = vand.u32 %v527, 4294901760
    %529 = vmatmul.mubr.f32.gmra.mrb[0].mxu0 %v528
    %v530 = vpop.f32.mrb[0].mxu0
    %v531 = vadd.f32 %v414, %v530
    %v532 = vpop.f32.mrb[0].mxu0
    %533 = vdwg.mxu0
    %534 = vmatprep.subr.mxu0 0.0
    %v535 = vand.u32 %v24, 4294901760
    %v536 = vsub.f32 %v24, %v535
    %v537 = vand.u32 %v536, 4294901760
    %538 = vmatpush1.msra.mxu0 %v537
    %539 = vmatprep.subr.mxu0 0.0
    %v540 = vand.u32 %v25, 4294901760
    %v541 = vsub.f32 %v25, %v540
    %v542 = vand.u32 %v541, 4294901760
    %543 = vmatpush1.msra.mxu0 %v542
    %544 = vmatprep.subr.mxu0 0.0
    %v545 = vand.u32 %v26, 4294901760
    %v546 = vsub.f32 %v26, %v545
    %v547 = vand.u32 %v546, 4294901760
    %548 = vmatpush1.msra.mxu0 %v547
    %549 = vmatprep.subr.mxu0 0.0
    %v550 = vand.u32 %v27, 4294901760
    %v551 = vsub.f32 %v27, %v550
    %v552 = vand.u32 %v551, 4294901760
    %553 = vmatpush1.msra.mxu0 %v552
    %554 = vmatprep.subr.mxu0 0.0
    %555 = vmatpush1.msra.mxu0 0.0
    %556 = vmatprep.subr.mxu0 0.0
    %557 = vmatpush1.msra.mxu0 0.0
    %558 = vmatprep.subr.mxu0 0.0
    %559 = vmatpush1.msra.mxu0 0.0
    %560 = vmatprep.subr.mxu0 0.0
    %561 = vmatpush1.msra.mxu0 0.0
    %562 = vmatprep.subr.mxu0 0.0
    %563 = vmatpush1.msra.mxu0 0.0
    %564 = vmatprep.subr.mxu0 0.0
    %565 = vmatpush1.msra.mxu0 0.0
    %566 = vmatprep.subr.mxu0 0.0
    %567 = vmatpush1.msra.mxu0 0.0
    %568 = vmatprep.subr.mxu0 0.0
    %569 = vmatpush1.msra.mxu0 0.0
    %570 = vmatprep.subr.mxu0 0.0
    %571 = vmatpush1.msra.mxu0 0.0
    %572 = vmatprep.subr.mxu0 0.0
    %573 = vmatpush1.msra.mxu0 0.0
    %574 = vmatprep.subr.mxu0 0.0
    %575 = vmatpush1.msra.mxu0 0.0
    %576 = vmatprep.subr.mxu0 0.0
    %577 = vmatpush1.msra.mxu0 0.0
    %578 = vmatprep.subr.mxu0 0.0
    %579 = vmatpush1.msra.mxu0 0.0
    %580 = vmatprep.subr.mxu0 0.0
    %581 = vmatpush1.msra.mxu0 0.0
    %582 = vmatprep.subr.mxu0 0.0
    %583 = vmatpush1.msra.mxu0 0.0
    %584 = vmatprep.subr.mxu0 0.0
    %585 = vmatpush1.msra.mxu0 0.0
    %586 = vmatprep.subr.mxu0 0.0
    %587 = vmatpush1.msra.mxu0 0.0
    %588 = vmatprep.subr.mxu0 0.0
    %589 = vmatpush1.msra.mxu0 0.0
    %590 = vmatprep.subr.mxu0 0.0
    %591 = vmatpush1.msra.mxu0 0.0
    %592 = vmatprep.subr.mxu0 0.0
    %593 = vmatpush1.msra.mxu0 0.0
    %594 = vmatprep.subr.mxu0 0.0
    %595 = vmatpush1.msra.mxu0 0.0
    %596 = vmatprep.subr.mxu0 0.0
    %597 = vmatpush1.msra.mxu0 0.0
    %598 = vmatprep.subr.mxu0 0.0
    %599 = vmatpush1.msra.mxu0 0.0
    %600 = vmatprep.subr.mxu0 0.0
    %601 = vmatpush1.msra.mxu0 0.0
    %602 = vmatprep.subr.mxu0 0.0
    %603 = vmatpush1.msra.mxu0 0.0
    %604 = vmatprep.subr.mxu0 0.0
    %605 = vmatpush1.msra.mxu0 0.0
    %606 = vmatprep.subr.mxu0 0.0
    %607 = vmatpush1.msra.mxu0 0.0
    %608 = vmatprep.subr.mxu0 0.0
    %609 = vmatpush1.msra.mxu0 0.0
    %610 = vmatprep.mubr.f32.mxu0 0.0
    %v611 = vand.u32 %v35, 4294901760
    %612 = vmatmul.mubr.f32.gmra.mrb[0].mxu0 %v611
    %v613 = vpop.f32.mrb[0].mxu0
    %v614 = vadd.f32 %v491, %v613
    %v615 = vpop.f32.mrb[0].mxu0
    %616 = vmatprep.mubr.f32.mxu0 0.0
    %v617 = vand.u32 %v38, 4294901760
    %618 = vmatmul.mubr.f32.gmra.mrb[0].mxu0 %v617
    %v619 = vpop.f32.mrb[0].mxu0
    %v620 = vadd.f32 %v499, %v619
    %v621 = vpop.f32.mrb[0].mxu0
    %622 = vmatprep.mubr.f32.mxu0 0.0
    %v623 = vand.u32 %v41, 4294901760
    %624 = vmatmul.mubr.f32.gmra.mrb[0].mxu0 %v623
    %v625 = vpop.f32.mrb[0].mxu0
    %v626 = vadd.f32 %v507, %v625
    %v627 = vpop.f32.mrb[0].mxu0
    %628 = vmatprep.mubr.f32.mxu0 0.0
    %v629 = vand.u32 %v44, 4294901760
    %630 = vmatmul.mubr.f32.gmra.mrb[0].mxu0 %v629
    %v631 = vpop.f32.mrb[0].mxu0
    %v632 = vadd.f32 %v515, %v631
    %v633 = vpop.f32.mrb[0].mxu0
    %634 = vmatprep.mubr.f32.mxu0 0.0
    %v635 = vand.u32 %v47, 4294901760
    %636 = vmatmul.mubr.f32.gmra.mrb[0].mxu0 %v635
    %v637 = vpop.f32.mrb[0].mxu0
    %v638 = vadd.f32 %v523, %v637
    %v639 = vpop.f32.mrb[0].mxu0
    %640 = vmatprep.mubr.f32.mxu0 0.0
    %v641 = vand.u32 %v50, 4294901760
    %642 = vmatmul.mubr.f32.gmra.mrb[0].mxu0 %v641
    %v643 = vpop.f32.mrb[0].mxu0
    %v644 = vadd.f32 %v531, %v643
    %v645 = vpop.f32.mrb[0].mxu0
    %646 = vdwg.mxu0
    %647 = vmatprep.subr.mxu0 0.0
    %v648 = vand.u32 %v24, 4294901760
    %649 = vmatpush1.msra.mxu0 %v648
    %650 = vmatprep.subr.mxu0 0.0
    %v651 = vand.u32 %v25, 4294901760
    %652 = vmatpush1.msra.mxu0 %v651
    %653 = vmatprep.subr.mxu0 0.0
    %v654 = vand.u32 %v26, 4294901760
    %655 = vmatpush1.msra.mxu0 %v654
    %656 = vmatprep.subr.mxu0 0.0
    %v657 = vand.u32 %v27, 4294901760
    %658 = vmatpush1.msra.mxu0 %v657
    %659 = vmatprep.subr.mxu0 0.0
    %660 = vmatpush1.msra.mxu0 0.0
    %661 = vmatprep.subr.mxu0 0.0
    %662 = vmatpush1.msra.mxu0 0.0
    %663 = vmatprep.subr.mxu0 0.0
    %664 = vmatpush1.msra.mxu0 0.0
    %665 = vmatprep.subr.mxu0 0.0
    %666 = vmatpush1.msra.mxu0 0.0
    %667 = vmatprep.subr.mxu0 0.0
    %668 = vmatpush1.msra.mxu0 0.0
    %669 = vmatprep.subr.mxu0 0.0
    %670 = vmatpush1.msra.mxu0 0.0
    %671 = vmatprep.subr.mxu0 0.0
    %672 = vmatpush1.msra.mxu0 0.0
    %673 = vmatprep.subr.mxu0 0.0
    %674 = vmatpush1.msra.mxu0 0.0
    %675 = vmatprep.subr.mxu0 0.0
    %676 = vmatpush1.msra.mxu0 0.0
    %677 = vmatprep.subr.mxu0 0.0
    %678 = vmatpush1.msra.mxu0 0.0
    %679 = vmatprep.subr.mxu0 0.0
    %680 = vmatpush1.msra.mxu0 0.0
    %681 = vmatprep.subr.mxu0 0.0
    %682 = vmatpush1.msra.mxu0 0.0
    %683 = vmatprep.subr.mxu0 0.0
    %684 = vmatpush1.msra.mxu0 0.0
    %685 = vmatprep.subr.mxu0 0.0
    %686 = vmatpush1.msra.mxu0 0.0
    %687 = vmatprep.subr.mxu0 0.0
    %688 = vmatpush1.msra.mxu0 0.0
    %689 = vmatprep.subr.mxu0 0.0
    %690 = vmatpush1.msra.mxu0 0.0
    %691 = vmatprep.subr.mxu0 0.0
    %692 = vmatpush1.msra.mxu0 0.0
    %693 = vmatprep.subr.mxu0 0.0
    %694 = vmatpush1.msra.mxu0 0.0
    %695 = vmatprep.subr.mxu0 0.0
    %696 = vmatpush1.msra.mxu0 0.0
    %697 = vmatprep.subr.mxu0 0.0
    %698 = vmatpush1.msra.mxu0 0.0
    %699 = vmatprep.subr.mxu0 0.0
    %700 = vmatpush1.msra.mxu0 0.0
    %701 = vmatprep.subr.mxu0 0.0
    %702 = vmatpush1.msra.mxu0 0.0
    %703 = vmatprep.subr.mxu0 0.0
    %704 = vmatpush1.msra.mxu0 0.0
    %705 = vmatprep.subr.mxu0 0.0
    %706 = vmatpush1.msra.mxu0 0.0
    %707 = vmatprep.subr.mxu0 0.0
    %708 = vmatpush1.msra.mxu0 0.0
    %709 = vmatprep.subr.mxu0 0.0
    %710 = vmatpush1.msra.mxu0 0.0
    %711 = vmatprep.subr.mxu0 0.0
    %712 = vmatpush1.msra.mxu0 0.0
    %713 = vmatprep.subr.mxu0 0.0
    %714 = vmatpush1.msra.mxu0 0.0
    %715 = vmatprep.mubr.f32.mxu0 0.0
    %v716 = vand.u32 %v35, 4294901760
    %717 = vmatmul.mubr.f32.gmra.mrb[0].mxu0 %v716
    %v718 = vpop.f32.mrb[0].mxu0
    %v719 = vadd.f32 %v614, %v718
    %v720 = vpop.f32.mrb[0].mxu0
    %721 = vmatprep.mubr.f32.mxu0 0.0
    %v722 = vand.u32 %v38, 4294901760
    %723 = vmatmul.mubr.f32.gmra.mrb[0].mxu0 %v722
    %v724 = vpop.f32.mrb[0].mxu0
    %v725 = vadd.f32 %v620, %v724
    %v726 = vpop.f32.mrb[0].mxu0
    %727 = vmatprep.mubr.f32.mxu0 0.0
    %v728 = vand.u32 %v41, 4294901760
    %729 = vmatmul.mubr.f32.gmra.mrb[0].mxu0 %v728
    %v730 = vpop.f32.mrb[0].mxu0
    %v731 = vadd.f32 %v626, %v730
    %v732 = vpop.f32.mrb[0].mxu0
    %733 = vmatprep.mubr.f32.mxu0 0.0
    %v734 = vand.u32 %v44, 4294901760
    %735 = vmatmul.mubr.f32.gmra.mrb[0].mxu0 %v734
    %v736 = vpop.f32.mrb[0].mxu0
    %v737 = vadd.f32 %v632, %v736
    %v738 = vpop.f32.mrb[0].mxu0
    %739 = vmatprep.mubr.f32.mxu0 0.0
    %v740 = vand.u32 %v47, 4294901760
    %741 = vmatmul.mubr.f32.gmra.mrb[0].mxu0 %v740
    %v742 = vpop.f32.mrb[0].mxu0
    %v743 = vadd.f32 %v638, %v742
    %v744 = vpop.f32.mrb[0].mxu0
    %745 = vmatprep.mubr.f32.mxu0 0.0
    %v746 = vand.u32 %v50, 4294901760
    %747 = vmatmul.mubr.f32.gmra.mrb[0].mxu0 %v746
    %v748 = vpop.f32.mrb[0].mxu0
    %v749 = vadd.f32 %v644, %v748
    %v750 = vpop.f32.mrb[0].mxu0
    %751 = vdwg.mxu0
    %v752 = vmul.f32 %v719, 0.35355338
    %v753 = vmul.f32 %v725, 0.35355338
    %755 = vrot.lane.b32.xlu0 %v731, 96
    %v756 = vpop.permute.xlu0 %755
    %vm757 = vcmask 64512
    %v759 = vsel %vm757, %v752, 0
    %v761 = vsel %vm757, %v756, 0
    %763 = vmatprep.subr.mxu0 0.0
    %v764 = vand.u32 %v761, 4294901760
    %765 = vmatpush1.xpose.msra.mxu0 %v764
    %766 = vmatprep.subr.mxu0 0.0
    %767 = vmatpush1.xpose.msra.mxu0 0.0
    %768 = vmatprep.subr.mxu0 0.0
    %769 = vmatpush1.xpose.msra.mxu0 0.0
    %770 = vmatprep.subr.mxu0 0.0
    %771 = vmatpush1.xpose.msra.mxu0 0.0
    %772 = vmatprep.subr.mxu0 0.0
    %773 = vmatpush1.xpose.msra.mxu0 0.0
    %774 = vmatprep.subr.mxu0 0.0
    %775 = vmatpush1.xpose.msra.mxu0 0.0
    %776 = vmatprep.subr.mxu0 0.0
    %777 = vmatpush1.xpose.msra.mxu0 0.0
    %778 = vmatprep.subr.mxu0 0.0
    %779 = vmatpush1.xpose.msra.mxu0 0.0
    %780 = vmatprep.subr.mxu0 0.0
    %781 = vmatpush1.xpose.msra.mxu0 0.0
    %782 = vmatprep.subr.mxu0 0.0
    %783 = vmatpush1.xpose.msra.mxu0 0.0
    %784 = vmatprep.subr.mxu0 0.0
    %785 = vmatpush1.xpose.msra.mxu0 0.0
    %786 = vmatprep.subr.mxu0 0.0
    %787 = vmatpush1.xpose.msra.mxu0 0.0
    %788 = vmatprep.subr.mxu0 0.0
    %789 = vmatpush1.xpose.msra.mxu0 0.0
    %790 = vmatprep.subr.mxu0 0.0
    %791 = vmatpush1.xpose.msra.mxu0 0.0
    %792 = vmatprep.subr.mxu0 0.0
    %793 = vmatpush1.xpose.msra.mxu0 0.0
    %794 = vmatprep.subr.mxu0 0.0
    %795 = vmatpush1.xpose.msra.mxu0 0.0
    %796 = vmatprep.subr.mxu0 0.0
    %797 = vmatpush1.xpose.msra.mxu0 0.0
    %798 = vmatprep.subr.mxu0 0.0
    %799 = vmatpush1.xpose.msra.mxu0 0.0
    %800 = vmatprep.subr.mxu0 0.0
    %801 = vmatpush1.xpose.msra.mxu0 0.0
    %802 = vmatprep.subr.mxu0 0.0
    %803 = vmatpush1.xpose.msra.mxu0 0.0
    %804 = vmatprep.subr.mxu0 0.0
    %805 = vmatpush1.xpose.msra.mxu0 0.0
    %806 = vmatprep.subr.mxu0 0.0
    %807 = vmatpush1.xpose.msra.mxu0 0.0
    %808 = vmatprep.subr.mxu0 0.0
    %809 = vmatpush1.xpose.msra.mxu0 0.0
    %810 = vmatprep.subr.mxu0 0.0
    %811 = vmatpush1.xpose.msra.mxu0 0.0
    %812 = vmatprep.subr.mxu0 0.0
    %813 = vmatpush1.xpose.msra.mxu0 0.0
    %814 = vmatprep.subr.mxu0 0.0
    %815 = vmatpush1.xpose.msra.mxu0 0.0
    %816 = vmatprep.subr.mxu0 0.0
    %817 = vmatpush1.xpose.msra.mxu0 0.0
    %818 = vmatprep.subr.mxu0 0.0
    %819 = vmatpush1.xpose.msra.mxu0 0.0
    %820 = vmatprep.subr.mxu0 0.0
    %821 = vmatpush1.xpose.msra.mxu0 0.0
    %822 = vmatprep.subr.mxu0 0.0
    %823 = vmatpush1.xpose.msra.mxu0 0.0
    %824 = vmatprep.subr.mxu0 0.0
    %825 = vmatpush1.xpose.msra.mxu0 0.0
    %826 = vmatprep.subr.mxu0 0.0
    %827 = vmatpush1.xpose.msra.mxu0 0.0
    %828 = vmatprep.mubr.f32.mxu0 0.0
    %v829 = vand.u32 %v759, 4294901760
    %v830 = vsub.f32 %v759, %v829
    %v831 = vand.u32 %v830, 4294901760
    %v832 = vsub.f32 %v830, %v831
    %v833 = vand.u32 %v832, 4294901760
    %834 = vmatmul.mubr.f32.gmra.mrb[0].mxu0 %v833
    %v835 = vpop.f32.mrb[0].mxu0
    %v836 = vadd.f32 0.0, %v835
    %v837 = vpop.f32.mrb[0].mxu0
    %838 = vdwg.mxu0
    %839 = vmatprep.subr.mxu0 0.0
    %v840 = vand.u32 %v761, 4294901760
    %v841 = vsub.f32 %v761, %v840
    %v842 = vand.u32 %v841, 4294901760
    %v843 = vsub.f32 %v841, %v842
    %v844 = vand.u32 %v843, 4294901760
    %845 = vmatpush1.xpose.msra.mxu0 %v844
    %846 = vmatprep.subr.mxu0 0.0
    %847 = vmatpush1.xpose.msra.mxu0 0.0
    %848 = vmatprep.subr.mxu0 0.0
    %849 = vmatpush1.xpose.msra.mxu0 0.0
    %850 = vmatprep.subr.mxu0 0.0
    %851 = vmatpush1.xpose.msra.mxu0 0.0
    %852 = vmatprep.subr.mxu0 0.0
    %853 = vmatpush1.xpose.msra.mxu0 0.0
    %854 = vmatprep.subr.mxu0 0.0
    %855 = vmatpush1.xpose.msra.mxu0 0.0
    %856 = vmatprep.subr.mxu0 0.0
    %857 = vmatpush1.xpose.msra.mxu0 0.0
    %858 = vmatprep.subr.mxu0 0.0
    %859 = vmatpush1.xpose.msra.mxu0 0.0
    %860 = vmatprep.subr.mxu0 0.0
    %861 = vmatpush1.xpose.msra.mxu0 0.0
    %862 = vmatprep.subr.mxu0 0.0
    %863 = vmatpush1.xpose.msra.mxu0 0.0
    %864 = vmatprep.subr.mxu0 0.0
    %865 = vmatpush1.xpose.msra.mxu0 0.0
    %866 = vmatprep.subr.mxu0 0.0
    %867 = vmatpush1.xpose.msra.mxu0 0.0
    %868 = vmatprep.subr.mxu0 0.0
    %869 = vmatpush1.xpose.msra.mxu0 0.0
    %870 = vmatprep.subr.mxu0 0.0
    %871 = vmatpush1.xpose.msra.mxu0 0.0
    %872 = vmatprep.subr.mxu0 0.0
    %873 = vmatpush1.xpose.msra.mxu0 0.0
    %874 = vmatprep.subr.mxu0 0.0
    %875 = vmatpush1.xpose.msra.mxu0 0.0
    %876 = vmatprep.subr.mxu0 0.0
    %877 = vmatpush1.xpose.msra.mxu0 0.0
    %878 = vmatprep.subr.mxu0 0.0
    %879 = vmatpush1.xpose.msra.mxu0 0.0
    %880 = vmatprep.subr.mxu0 0.0
    %881 = vmatpush1.xpose.msra.mxu0 0.0
    %882 = vmatprep.subr.mxu0 0.0
    %883 = vmatpush1.xpose.msra.mxu0 0.0
    %884 = vmatprep.subr.mxu0 0.0
    %885 = vmatpush1.xpose.msra.mxu0 0.0
    %886 = vmatprep.subr.mxu0 0.0
    %887 = vmatpush1.xpose.msra.mxu0 0.0
    %888 = vmatprep.subr.mxu0 0.0
    %889 = vmatpush1.xpose.msra.mxu0 0.0
    %890 = vmatprep.subr.mxu0 0.0
    %891 = vmatpush1.xpose.msra.mxu0 0.0
    %892 = vmatprep.subr.mxu0 0.0
    %893 = vmatpush1.xpose.msra.mxu0 0.0
    %894 = vmatprep.subr.mxu0 0.0
    %895 = vmatpush1.xpose.msra.mxu0 0.0
    %896 = vmatprep.subr.mxu0 0.0
    %897 = vmatpush1.xpose.msra.mxu0 0.0
    %898 = vmatprep.subr.mxu0 0.0
    %899 = vmatpush1.xpose.msra.mxu0 0.0
    %900 = vmatprep.subr.mxu0 0.0
    %901 = vmatpush1.xpose.msra.mxu0 0.0
    %902 = vmatprep.subr.mxu0 0.0
    %903 = vmatpush1.xpose.msra.mxu0 0.0
    %904 = vmatprep.subr.mxu0 0.0
    %905 = vmatpush1.xpose.msra.mxu0 0.0
    %906 = vmatprep.subr.mxu0 0.0
    %907 = vmatpush1.xpose.msra.mxu0 0.0
    %908 = vmatprep.mubr.f32.mxu0 0.0
    %v909 = vand.u32 %v759, 4294901760
    %910 = vmatmul.mubr.f32.gmra.mrb[0].mxu0 %v909
    %v911 = vpop.f32.mrb[0].mxu0
    %v912 = vadd.f32 %v836, %v911
    %v913 = vpop.f32.mrb[0].mxu0
    %914 = vdwg.mxu0
    %915 = vmatprep.subr.mxu0 0.0
    %v916 = vand.u32 %v761, 4294901760
    %v917 = vsub.f32 %v761, %v916
    %918 = vmatpush1.xpose.msra.mxu0 %v917
    %919 = vmatprep.subr.mxu0 0.0
    %920 = vmatpush1.xpose.msra.mxu0 0.0
    %921 = vmatprep.subr.mxu0 0.0
    %922 = vmatpush1.xpose.msra.mxu0 0.0
    %923 = vmatprep.subr.mxu0 0.0
    %924 = vmatpush1.xpose.msra.mxu0 0.0
    %925 = vmatprep.subr.mxu0 0.0
    %926 = vmatpush1.xpose.msra.mxu0 0.0
    %927 = vmatprep.subr.mxu0 0.0
    %928 = vmatpush1.xpose.msra.mxu0 0.0
    %929 = vmatprep.subr.mxu0 0.0
    %930 = vmatpush1.xpose.msra.mxu0 0.0
    %931 = vmatprep.subr.mxu0 0.0
    %932 = vmatpush1.xpose.msra.mxu0 0.0
    %933 = vmatprep.subr.mxu0 0.0
    %934 = vmatpush1.xpose.msra.mxu0 0.0
    %935 = vmatprep.subr.mxu0 0.0
    %936 = vmatpush1.xpose.msra.mxu0 0.0
    %937 = vmatprep.subr.mxu0 0.0
    %938 = vmatpush1.xpose.msra.mxu0 0.0
    %939 = vmatprep.subr.mxu0 0.0
    %940 = vmatpush1.xpose.msra.mxu0 0.0
    %941 = vmatprep.subr.mxu0 0.0
    %942 = vmatpush1.xpose.msra.mxu0 0.0
    %943 = vmatprep.subr.mxu0 0.0
    %944 = vmatpush1.xpose.msra.mxu0 0.0
    %945 = vmatprep.subr.mxu0 0.0
    %946 = vmatpush1.xpose.msra.mxu0 0.0
    %947 = vmatprep.subr.mxu0 0.0
    %948 = vmatpush1.xpose.msra.mxu0 0.0
    %949 = vmatprep.subr.mxu0 0.0
    %950 = vmatpush1.xpose.msra.mxu0 0.0
    %951 = vmatprep.subr.mxu0 0.0
    %952 = vmatpush1.xpose.msra.mxu0 0.0
    %953 = vmatprep.subr.mxu0 0.0
    %954 = vmatpush1.xpose.msra.mxu0 0.0
    %955 = vmatprep.subr.mxu0 0.0
    %956 = vmatpush1.xpose.msra.mxu0 0.0
    %957 = vmatprep.subr.mxu0 0.0
    %958 = vmatpush1.xpose.msra.mxu0 0.0
    %959 = vmatprep.subr.mxu0 0.0
    %960 = vmatpush1.xpose.msra.mxu0 0.0
    %961 = vmatprep.subr.mxu0 0.0
    %962 = vmatpush1.xpose.msra.mxu0 0.0
    %963 = vmatprep.subr.mxu0 0.0
    %964 = vmatpush1.xpose.msra.mxu0 0.0
    %965 = vmatprep.subr.mxu0 0.0
    %966 = vmatpush1.xpose.msra.mxu0 0.0
    %967 = vmatprep.subr.mxu0 0.0
    %968 = vmatpush1.xpose.msra.mxu0 0.0
    %969 = vmatprep.subr.mxu0 0.0
    %970 = vmatpush1.xpose.msra.mxu0 0.0
    %971 = vmatprep.subr.mxu0 0.0
    %972 = vmatpush1.xpose.msra.mxu0 0.0
    %973 = vmatprep.subr.mxu0 0.0
    %974 = vmatpush1.xpose.msra.mxu0 0.0
    %975 = vmatprep.subr.mxu0 0.0
    %976 = vmatpush1.xpose.msra.mxu0 0.0
    %977 = vmatprep.subr.mxu0 0.0
    %978 = vmatpush1.xpose.msra.mxu0 0.0
    %979 = vmatprep.subr.mxu0 0.0
    %980 = vmatpush1.xpose.msra.mxu0 0.0
    %981 = vmatprep.mubr.f32.mxu0 0.0
    %v982 = vand.u32 %v759, 4294901760
    %v983 = vsub.f32 %v759, %v982
    %984 = vmatmul.mubr.f32.gmra.mrb[0].mxu0 %v983
    %v985 = vpop.f32.mrb[0].mxu0
    %v986 = vadd.f32 %v912, %v985
    %v987 = vpop.f32.mrb[0].mxu0
    %988 = vdwg.mxu0
    %989 = vmatprep.subr.mxu0 0.0
    %v990 = vand.u32 %v761, 4294901760
    %991 = vmatpush1.xpose.msra.mxu0 %v990
    %992 = vmatprep.subr.mxu0 0.0
    %993 = vmatpush1.xpose.msra.mxu0 0.0
    %994 = vmatprep.subr.mxu0 0.0
    %995 = vmatpush1.xpose.msra.mxu0 0.0
    %996 = vmatprep.subr.mxu0 0.0
    %997 = vmatpush1.xpose.msra.mxu0 0.0
    %998 = vmatprep.subr.mxu0 0.0
    %999 = vmatpush1.xpose.msra.mxu0 0.0
    %1000 = vmatprep.subr.mxu0 0.0
    %1001 = vmatpush1.xpose.msra.mxu0 0.0
    %1002 = vmatprep.subr.mxu0 0.0
    %1003 = vmatpush1.xpose.msra.mxu0 0.0
    %1004 = vmatprep.subr.mxu0 0.0
    %1005 = vmatpush1.xpose.msra.mxu0 0.0
    %1006 = vmatprep.subr.mxu0 0.0
    %1007 = vmatpush1.xpose.msra.mxu0 0.0
    %1008 = vmatprep.subr.mxu0 0.0
    %1009 = vmatpush1.xpose.msra.mxu0 0.0
    %1010 = vmatprep.subr.mxu0 0.0
    %1011 = vmatpush1.xpose.msra.mxu0 0.0
    %1012 = vmatprep.subr.mxu0 0.0
    %1013 = vmatpush1.xpose.msra.mxu0 0.0
    %1014 = vmatprep.subr.mxu0 0.0
    %1015 = vmatpush1.xpose.msra.mxu0 0.0
    %1016 = vmatprep.subr.mxu0 0.0
    %1017 = vmatpush1.xpose.msra.mxu0 0.0
    %1018 = vmatprep.subr.mxu0 0.0
    %1019 = vmatpush1.xpose.msra.mxu0 0.0
    %1020 = vmatprep.subr.mxu0 0.0
    %1021 = vmatpush1.xpose.msra.mxu0 0.0
    %1022 = vmatprep.subr.mxu0 0.0
    %1023 = vmatpush1.xpose.msra.mxu0 0.0
    %1024 = vmatprep.subr.mxu0 0.0
    %1025 = vmatpush1.xpose.msra.mxu0 0.0
    %1026 = vmatprep.subr.mxu0 0.0
    %1027 = vmatpush1.xpose.msra.mxu0 0.0
    %1028 = vmatprep.subr.mxu0 0.0
    %1029 = vmatpush1.xpose.msra.mxu0 0.0
    %1030 = vmatprep.subr.mxu0 0.0
    %1031 = vmatpush1.xpose.msra.mxu0 0.0
    %1032 = vmatprep.subr.mxu0 0.0
    %1033 = vmatpush1.xpose.msra.mxu0 0.0
    %1034 = vmatprep.subr.mxu0 0.0
    %1035 = vmatpush1.xpose.msra.mxu0 0.0
    %1036 = vmatprep.subr.mxu0 0.0
    %1037 = vmatpush1.xpose.msra.mxu0 0.0
    %1038 = vmatprep.subr.mxu0 0.0
    %1039 = vmatpush1.xpose.msra.mxu0 0.0
    %1040 = vmatprep.subr.mxu0 0.0
    %1041 = vmatpush1.xpose.msra.mxu0 0.0
    %1042 = vmatprep.subr.mxu0 0.0
    %1043 = vmatpush1.xpose.msra.mxu0 0.0
    %1044 = vmatprep.subr.mxu0 0.0
    %1045 = vmatpush1.xpose.msra.mxu0 0.0
    %1046 = vmatprep.subr.mxu0 0.0
    %1047 = vmatpush1.xpose.msra.mxu0 0.0
    %1048 = vmatprep.subr.mxu0 0.0
    %1049 = vmatpush1.xpose.msra.mxu0 0.0
    %1050 = vmatprep.subr.mxu0 0.0
    %1051 = vmatpush1.xpose.msra.mxu0 0.0
    %1052 = vmatprep.subr.mxu0 0.0
    %1053 = vmatpush1.xpose.msra.mxu0 0.0
    %1054 = vmatprep.mubr.f32.mxu0 0.0
    %v1055 = vand.u32 %v759, 4294901760
    %v1056 = vsub.f32 %v759, %v1055
    %v1057 = vand.u32 %v1056, 4294901760
    %1058 = vmatmul.mubr.f32.gmra.mrb[0].mxu0 %v1057
    %v1059 = vpop.f32.mrb[0].mxu0
    %v1060 = vadd.f32 %v986, %v1059
    %v1061 = vpop.f32.mrb[0].mxu0
    %1062 = vdwg.mxu0
    %1063 = vmatprep.subr.mxu0 0.0
    %v1064 = vand.u32 %v761, 4294901760
    %v1065 = vsub.f32 %v761, %v1064
    %v1066 = vand.u32 %v1065, 4294901760
    %1067 = vmatpush1.xpose.msra.mxu0 %v1066
    %1068 = vmatprep.subr.mxu0 0.0
    %1069 = vmatpush1.xpose.msra.mxu0 0.0
    %1070 = vmatprep.subr.mxu0 0.0
    %1071 = vmatpush1.xpose.msra.mxu0 0.0
    %1072 = vmatprep.subr.mxu0 0.0
    %1073 = vmatpush1.xpose.msra.mxu0 0.0
    %1074 = vmatprep.subr.mxu0 0.0
    %1075 = vmatpush1.xpose.msra.mxu0 0.0
    %1076 = vmatprep.subr.mxu0 0.0
    %1077 = vmatpush1.xpose.msra.mxu0 0.0
    %1078 = vmatprep.subr.mxu0 0.0
    %1079 = vmatpush1.xpose.msra.mxu0 0.0
    %1080 = vmatprep.subr.mxu0 0.0
    %1081 = vmatpush1.xpose.msra.mxu0 0.0
    %1082 = vmatprep.subr.mxu0 0.0
    %1083 = vmatpush1.xpose.msra.mxu0 0.0
    %1084 = vmatprep.subr.mxu0 0.0
    %1085 = vmatpush1.xpose.msra.mxu0 0.0
    %1086 = vmatprep.subr.mxu0 0.0
    %1087 = vmatpush1.xpose.msra.mxu0 0.0
    %1088 = vmatprep.subr.mxu0 0.0
    %1089 = vmatpush1.xpose.msra.mxu0 0.0
    %1090 = vmatprep.subr.mxu0 0.0
    %1091 = vmatpush1.xpose.msra.mxu0 0.0
    %1092 = vmatprep.subr.mxu0 0.0
    %1093 = vmatpush1.xpose.msra.mxu0 0.0
    %1094 = vmatprep.subr.mxu0 0.0
    %1095 = vmatpush1.xpose.msra.mxu0 0.0
    %1096 = vmatprep.subr.mxu0 0.0
    %1097 = vmatpush1.xpose.msra.mxu0 0.0
    %1098 = vmatprep.subr.mxu0 0.0
    %1099 = vmatpush1.xpose.msra.mxu0 0.0
    %1100 = vmatprep.subr.mxu0 0.0
    %1101 = vmatpush1.xpose.msra.mxu0 0.0
    %1102 = vmatprep.subr.mxu0 0.0
    %1103 = vmatpush1.xpose.msra.mxu0 0.0
    %1104 = vmatprep.subr.mxu0 0.0
    %1105 = vmatpush1.xpose.msra.mxu0 0.0
    %1106 = vmatprep.subr.mxu0 0.0
    %1107 = vmatpush1.xpose.msra.mxu0 0.0
    %1108 = vmatprep.subr.mxu0 0.0
    %1109 = vmatpush1.xpose.msra.mxu0 0.0
    %1110 = vmatprep.subr.mxu0 0.0
    %1111 = vmatpush1.xpose.msra.mxu0 0.0
    %1112 = vmatprep.subr.mxu0 0.0
    %1113 = vmatpush1.xpose.msra.mxu0 0.0
    %1114 = vmatprep.subr.mxu0 0.0
    %1115 = vmatpush1.xpose.msra.mxu0 0.0
    %1116 = vmatprep.subr.mxu0 0.0
    %1117 = vmatpush1.xpose.msra.mxu0 0.0
    %1118 = vmatprep.subr.mxu0 0.0
    %1119 = vmatpush1.xpose.msra.mxu0 0.0
    %1120 = vmatprep.subr.mxu0 0.0
    %1121 = vmatpush1.xpose.msra.mxu0 0.0
    %1122 = vmatprep.subr.mxu0 0.0
    %1123 = vmatpush1.xpose.msra.mxu0 0.0
    %1124 = vmatprep.subr.mxu0 0.0
    %1125 = vmatpush1.xpose.msra.mxu0 0.0
    %1126 = vmatprep.subr.mxu0 0.0
    %1127 = vmatpush1.xpose.msra.mxu0 0.0
    %1128 = vmatprep.subr.mxu0 0.0
    %1129 = vmatpush1.xpose.msra.mxu0 0.0
    %1130 = vmatprep.mubr.f32.mxu0 0.0
    %v1131 = vand.u32 %v759, 4294901760
    %1132 = vmatmul.mubr.f32.gmra.mrb[0].mxu0 %v1131
    %v1133 = vpop.f32.mrb[0].mxu0
    %v1134 = vadd.f32 %v1060, %v1133
    %v1135 = vpop.f32.mrb[0].mxu0
    %1136 = vdwg.mxu0
    %1137 = vmatprep.subr.mxu0 0.0
    %v1138 = vand.u32 %v761, 4294901760
    %1139 = vmatpush1.xpose.msra.mxu0 %v1138
    %1140 = vmatprep.subr.mxu0 0.0
    %1141 = vmatpush1.xpose.msra.mxu0 0.0
    %1142 = vmatprep.subr.mxu0 0.0
    %1143 = vmatpush1.xpose.msra.mxu0 0.0
    %1144 = vmatprep.subr.mxu0 0.0
    %1145 = vmatpush1.xpose.msra.mxu0 0.0
    %1146 = vmatprep.subr.mxu0 0.0
    %1147 = vmatpush1.xpose.msra.mxu0 0.0
    %1148 = vmatprep.subr.mxu0 0.0
    %1149 = vmatpush1.xpose.msra.mxu0 0.0
    %1150 = vmatprep.subr.mxu0 0.0
    %1151 = vmatpush1.xpose.msra.mxu0 0.0
    %1152 = vmatprep.subr.mxu0 0.0
    %1153 = vmatpush1.xpose.msra.mxu0 0.0
    %1154 = vmatprep.subr.mxu0 0.0
    %1155 = vmatpush1.xpose.msra.mxu0 0.0
    %1156 = vmatprep.subr.mxu0 0.0
    %1157 = vmatpush1.xpose.msra.mxu0 0.0
    %1158 = vmatprep.subr.mxu0 0.0
    %1159 = vmatpush1.xpose.msra.mxu0 0.0
    %1160 = vmatprep.subr.mxu0 0.0
    %1161 = vmatpush1.xpose.msra.mxu0 0.0
    %1162 = vmatprep.subr.mxu0 0.0
    %1163 = vmatpush1.xpose.msra.mxu0 0.0
    %1164 = vmatprep.subr.mxu0 0.0
    %1165 = vmatpush1.xpose.msra.mxu0 0.0
    %1166 = vmatprep.subr.mxu0 0.0
    %1167 = vmatpush1.xpose.msra.mxu0 0.0
    %1168 = vmatprep.subr.mxu0 0.0
    %1169 = vmatpush1.xpose.msra.mxu0 0.0
    %1170 = vmatprep.subr.mxu0 0.0
    %1171 = vmatpush1.xpose.msra.mxu0 0.0
    %1172 = vmatprep.subr.mxu0 0.0
    %1173 = vmatpush1.xpose.msra.mxu0 0.0
    %1174 = vmatprep.subr.mxu0 0.0
    %1175 = vmatpush1.xpose.msra.mxu0 0.0
    %1176 = vmatprep.subr.mxu0 0.0
    %1177 = vmatpush1.xpose.msra.mxu0 0.0
    %1178 = vmatprep.subr.mxu0 0.0
    %1179 = vmatpush1.xpose.msra.mxu0 0.0
    %1180 = vmatprep.subr.mxu0 0.0
    %1181 = vmatpush1.xpose.msra.mxu0 0.0
    %1182 = vmatprep.subr.mxu0 0.0
    %1183 = vmatpush1.xpose.msra.mxu0 0.0
    %1184 = vmatprep.subr.mxu0 0.0
    %1185 = vmatpush1.xpose.msra.mxu0 0.0
    %1186 = vmatprep.subr.mxu0 0.0
    %1187 = vmatpush1.xpose.msra.mxu0 0.0
    %1188 = vmatprep.subr.mxu0 0.0
    %1189 = vmatpush1.xpose.msra.mxu0 0.0
    %1190 = vmatprep.subr.mxu0 0.0
    %1191 = vmatpush1.xpose.msra.mxu0 0.0
    %1192 = vmatprep.subr.mxu0 0.0
    %1193 = vmatpush1.xpose.msra.mxu0 0.0
    %1194 = vmatprep.subr.mxu0 0.0
    %1195 = vmatpush1.xpose.msra.mxu0 0.0
    %1196 = vmatprep.subr.mxu0 0.0
    %1197 = vmatpush1.xpose.msra.mxu0 0.0
    %1198 = vmatprep.subr.mxu0 0.0
    %1199 = vmatpush1.xpose.msra.mxu0 0.0
    %1200 = vmatprep.subr.mxu0 0.0
    %1201 = vmatpush1.xpose.msra.mxu0 0.0
    %1202 = vmatprep.mubr.f32.mxu0 0.0
    %v1203 = vand.u32 %v759, 4294901760
    %1204 = vmatmul.mubr.f32.gmra.mrb[0].mxu0 %v1203
    %v1205 = vpop.f32.mrb[0].mxu0
    %v1206 = vadd.f32 %v1134, %v1205
    %v1207 = vpop.f32.mrb[0].mxu0
    %1208 = vdwg.mxu0
    %1209 = vrot.lane.b32.xlu0 %v752, 120
    %v1210 = vpop.permute.xlu0 %1209
    %1211 = vrot.lane.b32.xlu0 %v731, 88
    %v1212 = vpop.permute.xlu0 %1211
    %v1213 = vsel %vm757, %v1210, 0
    %v1215 = vsel %vm757, %v1212, 0
    %1217 = vmatprep.subr.mxu0 0.0
    %v1218 = vand.u32 %v1215, 4294901760
    %1219 = vmatpush1.xpose.msra.mxu0 %v1218
    %1220 = vmatprep.subr.mxu0 0.0
    %1221 = vmatpush1.xpose.msra.mxu0 0.0
    %1222 = vmatprep.subr.mxu0 0.0
    %1223 = vmatpush1.xpose.msra.mxu0 0.0
    %1224 = vmatprep.subr.mxu0 0.0
    %1225 = vmatpush1.xpose.msra.mxu0 0.0
    %1226 = vmatprep.subr.mxu0 0.0
    %1227 = vmatpush1.xpose.msra.mxu0 0.0
    %1228 = vmatprep.subr.mxu0 0.0
    %1229 = vmatpush1.xpose.msra.mxu0 0.0
    %1230 = vmatprep.subr.mxu0 0.0
    %1231 = vmatpush1.xpose.msra.mxu0 0.0
    %1232 = vmatprep.subr.mxu0 0.0
    %1233 = vmatpush1.xpose.msra.mxu0 0.0
    %1234 = vmatprep.subr.mxu0 0.0
    %1235 = vmatpush1.xpose.msra.mxu0 0.0
    %1236 = vmatprep.subr.mxu0 0.0
    %1237 = vmatpush1.xpose.msra.mxu0 0.0
    %1238 = vmatprep.subr.mxu0 0.0
    %1239 = vmatpush1.xpose.msra.mxu0 0.0
    %1240 = vmatprep.subr.mxu0 0.0
    %1241 = vmatpush1.xpose.msra.mxu0 0.0
    %1242 = vmatprep.subr.mxu0 0.0
    %1243 = vmatpush1.xpose.msra.mxu0 0.0
    %1244 = vmatprep.subr.mxu0 0.0
    %1245 = vmatpush1.xpose.msra.mxu0 0.0
    %1246 = vmatprep.subr.mxu0 0.0
    %1247 = vmatpush1.xpose.msra.mxu0 0.0
    %1248 = vmatprep.subr.mxu0 0.0
    %1249 = vmatpush1.xpose.msra.mxu0 0.0
    %1250 = vmatprep.subr.mxu0 0.0
    %1251 = vmatpush1.xpose.msra.mxu0 0.0
    %1252 = vmatprep.subr.mxu0 0.0
    %1253 = vmatpush1.xpose.msra.mxu0 0.0
    %1254 = vmatprep.subr.mxu0 0.0
    %1255 = vmatpush1.xpose.msra.mxu0 0.0
    %1256 = vmatprep.subr.mxu0 0.0
    %1257 = vmatpush1.xpose.msra.mxu0 0.0
    %1258 = vmatprep.subr.mxu0 0.0
    %1259 = vmatpush1.xpose.msra.mxu0 0.0
    %1260 = vmatprep.subr.mxu0 0.0
    %1261 = vmatpush1.xpose.msra.mxu0 0.0
    %1262 = vmatprep.subr.mxu0 0.0
    %1263 = vmatpush1.xpose.msra.mxu0 0.0
    %1264 = vmatprep.subr.mxu0 0.0
    %1265 = vmatpush1.xpose.msra.mxu0 0.0
    %1266 = vmatprep.subr.mxu0 0.0
    %1267 = vmatpush1.xpose.msra.mxu0 0.0
    %1268 = vmatprep.subr.mxu0 0.0
    %1269 = vmatpush1.xpose.msra.mxu0 0.0
    %1270 = vmatprep.subr.mxu0 0.0
    %1271 = vmatpush1.xpose.msra.mxu0 0.0
    %1272 = vmatprep.subr.mxu0 0.0
    %1273 = vmatpush1.xpose.msra.mxu0 0.0
    %1274 = vmatprep.subr.mxu0 0.0
    %1275 = vmatpush1.xpose.msra.mxu0 0.0
    %1276 = vmatprep.subr.mxu0 0.0
    %1277 = vmatpush1.xpose.msra.mxu0 0.0
    %1278 = vmatprep.subr.mxu0 0.0
    %1279 = vmatpush1.xpose.msra.mxu0 0.0
    %1280 = vmatprep.subr.mxu0 0.0
    %1281 = vmatpush1.xpose.msra.mxu0 0.0
    %1282 = vmatprep.mubr.f32.mxu0 0.0
    %v1283 = vand.u32 %v1213, 4294901760
    %v1284 = vsub.f32 %v1213, %v1283
    %v1285 = vand.u32 %v1284, 4294901760
    %v1286 = vsub.f32 %v1284, %v1285
    %v1287 = vand.u32 %v1286, 4294901760
    %1288 = vmatmul.mubr.f32.gmra.mrb[0].mxu0 %v1287
    %v1289 = vpop.f32.mrb[0].mxu0
    %v1290 = vadd.f32 0.0, %v1289
    %v1291 = vpop.f32.mrb[0].mxu0
    %1292 = vdwg.mxu0
    %1293 = vmatprep.subr.mxu0 0.0
    %v1294 = vand.u32 %v1215, 4294901760
    %v1295 = vsub.f32 %v1215, %v1294
    %v1296 = vand.u32 %v1295, 4294901760
    %v1297 = vsub.f32 %v1295, %v1296
    %v1298 = vand.u32 %v1297, 4294901760
    %1299 = vmatpush1.xpose.msra.mxu0 %v1298
    %1300 = vmatprep.subr.mxu0 0.0
    %1301 = vmatpush1.xpose.msra.mxu0 0.0
    %1302 = vmatprep.subr.mxu0 0.0
    %1303 = vmatpush1.xpose.msra.mxu0 0.0
    %1304 = vmatprep.subr.mxu0 0.0
    %1305 = vmatpush1.xpose.msra.mxu0 0.0
    %1306 = vmatprep.subr.mxu0 0.0
    %1307 = vmatpush1.xpose.msra.mxu0 0.0
    %1308 = vmatprep.subr.mxu0 0.0
    %1309 = vmatpush1.xpose.msra.mxu0 0.0
    %1310 = vmatprep.subr.mxu0 0.0
    %1311 = vmatpush1.xpose.msra.mxu0 0.0
    %1312 = vmatprep.subr.mxu0 0.0
    %1313 = vmatpush1.xpose.msra.mxu0 0.0
    %1314 = vmatprep.subr.mxu0 0.0
    %1315 = vmatpush1.xpose.msra.mxu0 0.0
    %1316 = vmatprep.subr.mxu0 0.0
    %1317 = vmatpush1.xpose.msra.mxu0 0.0
    %1318 = vmatprep.subr.mxu0 0.0
    %1319 = vmatpush1.xpose.msra.mxu0 0.0
    %1320 = vmatprep.subr.mxu0 0.0
    %1321 = vmatpush1.xpose.msra.mxu0 0.0
    %1322 = vmatprep.subr.mxu0 0.0
    %1323 = vmatpush1.xpose.msra.mxu0 0.0
    %1324 = vmatprep.subr.mxu0 0.0
    %1325 = vmatpush1.xpose.msra.mxu0 0.0
    %1326 = vmatprep.subr.mxu0 0.0
    %1327 = vmatpush1.xpose.msra.mxu0 0.0
    %1328 = vmatprep.subr.mxu0 0.0
    %1329 = vmatpush1.xpose.msra.mxu0 0.0
    %1330 = vmatprep.subr.mxu0 0.0
    %1331 = vmatpush1.xpose.msra.mxu0 0.0
    %1332 = vmatprep.subr.mxu0 0.0
    %1333 = vmatpush1.xpose.msra.mxu0 0.0
    %1334 = vmatprep.subr.mxu0 0.0
    %1335 = vmatpush1.xpose.msra.mxu0 0.0
    %1336 = vmatprep.subr.mxu0 0.0
    %1337 = vmatpush1.xpose.msra.mxu0 0.0
    %1338 = vmatprep.subr.mxu0 0.0
    %1339 = vmatpush1.xpose.msra.mxu0 0.0
    %1340 = vmatprep.subr.mxu0 0.0
    %1341 = vmatpush1.xpose.msra.mxu0 0.0
    %1342 = vmatprep.subr.mxu0 0.0
    %1343 = vmatpush1.xpose.msra.mxu0 0.0
    %1344 = vmatprep.subr.mxu0 0.0
    %1345 = vmatpush1.xpose.msra.mxu0 0.0
    %1346 = vmatprep.subr.mxu0 0.0
    %1347 = vmatpush1.xpose.msra.mxu0 0.0
    %1348 = vmatprep.subr.mxu0 0.0
    %1349 = vmatpush1.xpose.msra.mxu0 0.0
    %1350 = vmatprep.subr.mxu0 0.0
    %1351 = vmatpush1.xpose.msra.mxu0 0.0
    %1352 = vmatprep.subr.mxu0 0.0
    %1353 = vmatpush1.xpose.msra.mxu0 0.0
    %1354 = vmatprep.subr.mxu0 0.0
    %1355 = vmatpush1.xpose.msra.mxu0 0.0
    %1356 = vmatprep.subr.mxu0 0.0
    %1357 = vmatpush1.xpose.msra.mxu0 0.0
    %1358 = vmatprep.subr.mxu0 0.0
    %1359 = vmatpush1.xpose.msra.mxu0 0.0
    %1360 = vmatprep.subr.mxu0 0.0
    %1361 = vmatpush1.xpose.msra.mxu0 0.0
    %1362 = vmatprep.mubr.f32.mxu0 0.0
    %v1363 = vand.u32 %v1213, 4294901760
    %1364 = vmatmul.mubr.f32.gmra.mrb[0].mxu0 %v1363
    %v1365 = vpop.f32.mrb[0].mxu0
    %v1366 = vadd.f32 %v1290, %v1365
    %v1367 = vpop.f32.mrb[0].mxu0
    %1368 = vdwg.mxu0
    %1369 = vmatprep.subr.mxu0 0.0
    %v1370 = vand.u32 %v1215, 4294901760
    %v1371 = vsub.f32 %v1215, %v1370
    %1372 = vmatpush1.xpose.msra.mxu0 %v1371
    %1373 = vmatprep.subr.mxu0 0.0
    %1374 = vmatpush1.xpose.msra.mxu0 0.0
    %1375 = vmatprep.subr.mxu0 0.0
    %1376 = vmatpush1.xpose.msra.mxu0 0.0
    %1377 = vmatprep.subr.mxu0 0.0
    %1378 = vmatpush1.xpose.msra.mxu0 0.0
    %1379 = vmatprep.subr.mxu0 0.0
    %1380 = vmatpush1.xpose.msra.mxu0 0.0
    %1381 = vmatprep.subr.mxu0 0.0
    %1382 = vmatpush1.xpose.msra.mxu0 0.0
    %1383 = vmatprep.subr.mxu0 0.0
    %1384 = vmatpush1.xpose.msra.mxu0 0.0
    %1385 = vmatprep.subr.mxu0 0.0
    %1386 = vmatpush1.xpose.msra.mxu0 0.0
    %1387 = vmatprep.subr.mxu0 0.0
    %1388 = vmatpush1.xpose.msra.mxu0 0.0
    %1389 = vmatprep.subr.mxu0 0.0
    %1390 = vmatpush1.xpose.msra.mxu0 0.0
    %1391 = vmatprep.subr.mxu0 0.0
    %1392 = vmatpush1.xpose.msra.mxu0 0.0
    %1393 = vmatprep.subr.mxu0 0.0
    %1394 = vmatpush1.xpose.msra.mxu0 0.0
    %1395 = vmatprep.subr.mxu0 0.0
    %1396 = vmatpush1.xpose.msra.mxu0 0.0
    %1397 = vmatprep.subr.mxu0 0.0
    %1398 = vmatpush1.xpose.msra.mxu0 0.0
    %1399 = vmatprep.subr.mxu0 0.0
    %1400 = vmatpush1.xpose.msra.mxu0 0.0
    %1401 = vmatprep.subr.mxu0 0.0
    %1402 = vmatpush1.xpose.msra.mxu0 0.0
    %1403 = vmatprep.subr.mxu0 0.0
    %1404 = vmatpush1.xpose.msra.mxu0 0.0
    %1405 = vmatprep.subr.mxu0 0.0
    %1406 = vmatpush1.xpose.msra.mxu0 0.0
    %1407 = vmatprep.subr.mxu0 0.0
    %1408 = vmatpush1.xpose.msra.mxu0 0.0
    %1409 = vmatprep.subr.mxu0 0.0
    %1410 = vmatpush1.xpose.msra.mxu0 0.0
    %1411 = vmatprep.subr.mxu0 0.0
    %1412 = vmatpush1.xpose.msra.mxu0 0.0
    %1413 = vmatprep.subr.mxu0 0.0
    %1414 = vmatpush1.xpose.msra.mxu0 0.0
    %1415 = vmatprep.subr.mxu0 0.0
    %1416 = vmatpush1.xpose.msra.mxu0 0.0
    %1417 = vmatprep.subr.mxu0 0.0
    %1418 = vmatpush1.xpose.msra.mxu0 0.0
    %1419 = vmatprep.subr.mxu0 0.0
    %1420 = vmatpush1.xpose.msra.mxu0 0.0
    %1421 = vmatprep.subr.mxu0 0.0
    %1422 = vmatpush1.xpose.msra.mxu0 0.0
    %1423 = vmatprep.subr.mxu0 0.0
    %1424 = vmatpush1.xpose.msra.mxu0 0.0
    %1425 = vmatprep.subr.mxu0 0.0
    %1426 = vmatpush1.xpose.msra.mxu0 0.0
    %1427 = vmatprep.subr.mxu0 0.0
    %1428 = vmatpush1.xpose.msra.mxu0 0.0
    %1429 = vmatprep.subr.mxu0 0.0
    %1430 = vmatpush1.xpose.msra.mxu0 0.0
    %1431 = vmatprep.subr.mxu0 0.0
    %1432 = vmatpush1.xpose.msra.mxu0 0.0
    %1433 = vmatprep.subr.mxu0 0.0
    %1434 = vmatpush1.xpose.msra.mxu0 0.0
    %1435 = vmatprep.mubr.f32.mxu0 0.0
    %v1436 = vand.u32 %v1213, 4294901760
    %v1437 = vsub.f32 %v1213, %v1436
    %1438 = vmatmul.mubr.f32.gmra.mrb[0].mxu0 %v1437
    %v1439 = vpop.f32.mrb[0].mxu0
    %v1440 = vadd.f32 %v1366, %v1439
    %v1441 = vpop.f32.mrb[0].mxu0
    %1442 = vdwg.mxu0
    %1443 = vmatprep.subr.mxu0 0.0
    %v1444 = vand.u32 %v1215, 4294901760
    %1445 = vmatpush1.xpose.msra.mxu0 %v1444
    %1446 = vmatprep.subr.mxu0 0.0
    %1447 = vmatpush1.xpose.msra.mxu0 0.0
    %1448 = vmatprep.subr.mxu0 0.0
    %1449 = vmatpush1.xpose.msra.mxu0 0.0
    %1450 = vmatprep.subr.mxu0 0.0
    %1451 = vmatpush1.xpose.msra.mxu0 0.0
    %1452 = vmatprep.subr.mxu0 0.0
    %1453 = vmatpush1.xpose.msra.mxu0 0.0
    %1454 = vmatprep.subr.mxu0 0.0
    %1455 = vmatpush1.xpose.msra.mxu0 0.0
    %1456 = vmatprep.subr.mxu0 0.0
    %1457 = vmatpush1.xpose.msra.mxu0 0.0
    %1458 = vmatprep.subr.mxu0 0.0
    %1459 = vmatpush1.xpose.msra.mxu0 0.0
    %1460 = vmatprep.subr.mxu0 0.0
    %1461 = vmatpush1.xpose.msra.mxu0 0.0
    %1462 = vmatprep.subr.mxu0 0.0
    %1463 = vmatpush1.xpose.msra.mxu0 0.0
    %1464 = vmatprep.subr.mxu0 0.0
    %1465 = vmatpush1.xpose.msra.mxu0 0.0
    %1466 = vmatprep.subr.mxu0 0.0
    %1467 = vmatpush1.xpose.msra.mxu0 0.0
    %1468 = vmatprep.subr.mxu0 0.0
    %1469 = vmatpush1.xpose.msra.mxu0 0.0
    %1470 = vmatprep.subr.mxu0 0.0
    %1471 = vmatpush1.xpose.msra.mxu0 0.0
    %1472 = vmatprep.subr.mxu0 0.0
    %1473 = vmatpush1.xpose.msra.mxu0 0.0
    %1474 = vmatprep.subr.mxu0 0.0
    %1475 = vmatpush1.xpose.msra.mxu0 0.0
    %1476 = vmatprep.subr.mxu0 0.0
    %1477 = vmatpush1.xpose.msra.mxu0 0.0
    %1478 = vmatprep.subr.mxu0 0.0
    %1479 = vmatpush1.xpose.msra.mxu0 0.0
    %1480 = vmatprep.subr.mxu0 0.0
    %1481 = vmatpush1.xpose.msra.mxu0 0.0
    %1482 = vmatprep.subr.mxu0 0.0
    %1483 = vmatpush1.xpose.msra.mxu0 0.0
    %1484 = vmatprep.subr.mxu0 0.0
    %1485 = vmatpush1.xpose.msra.mxu0 0.0
    %1486 = vmatprep.subr.mxu0 0.0
    %1487 = vmatpush1.xpose.msra.mxu0 0.0
    %1488 = vmatprep.subr.mxu0 0.0
    %1489 = vmatpush1.xpose.msra.mxu0 0.0
    %1490 = vmatprep.subr.mxu0 0.0
    %1491 = vmatpush1.xpose.msra.mxu0 0.0
    %1492 = vmatprep.subr.mxu0 0.0
    %1493 = vmatpush1.xpose.msra.mxu0 0.0
    %1494 = vmatprep.subr.mxu0 0.0
    %1495 = vmatpush1.xpose.msra.mxu0 0.0
    %1496 = vmatprep.subr.mxu0 0.0
    %1497 = vmatpush1.xpose.msra.mxu0 0.0
    %1498 = vmatprep.subr.mxu0 0.0
    %1499 = vmatpush1.xpose.msra.mxu0 0.0
    %1500 = vmatprep.subr.mxu0 0.0
    %1501 = vmatpush1.xpose.msra.mxu0 0.0
    %1502 = vmatprep.subr.mxu0 0.0
    %1503 = vmatpush1.xpose.msra.mxu0 0.0
    %1504 = vmatprep.subr.mxu0 0.0
    %1505 = vmatpush1.xpose.msra.mxu0 0.0
    %1506 = vmatprep.subr.mxu0 0.0
    %1507 = vmatpush1.xpose.msra.mxu0 0.0
    %1508 = vmatprep.mubr.f32.mxu0 0.0
    %v1509 = vand.u32 %v1213, 4294901760
    %v1510 = vsub.f32 %v1213, %v1509
    %v1511 = vand.u32 %v1510, 4294901760
    %1512 = vmatmul.mubr.f32.gmra.mrb[0].mxu0 %v1511
    %v1513 = vpop.f32.mrb[0].mxu0
    %v1514 = vadd.f32 %v1440, %v1513
    %v1515 = vpop.f32.mrb[0].mxu0
    %1516 = vdwg.mxu0
    %1517 = vmatprep.subr.mxu0 0.0
    %v1518 = vand.u32 %v1215, 4294901760
    %v1519 = vsub.f32 %v1215, %v1518
    %v1520 = vand.u32 %v1519, 4294901760
    %1521 = vmatpush1.xpose.msra.mxu0 %v1520
    %1522 = vmatprep.subr.mxu0 0.0
    %1523 = vmatpush1.xpose.msra.mxu0 0.0
    %1524 = vmatprep.subr.mxu0 0.0
    %1525 = vmatpush1.xpose.msra.mxu0 0.0
    %1526 = vmatprep.subr.mxu0 0.0
    %1527 = vmatpush1.xpose.msra.mxu0 0.0
    %1528 = vmatprep.subr.mxu0 0.0
    %1529 = vmatpush1.xpose.msra.mxu0 0.0
    %1530 = vmatprep.subr.mxu0 0.0
    %1531 = vmatpush1.xpose.msra.mxu0 0.0
    %1532 = vmatprep.subr.mxu0 0.0
    %1533 = vmatpush1.xpose.msra.mxu0 0.0
    %1534 = vmatprep.subr.mxu0 0.0
    %1535 = vmatpush1.xpose.msra.mxu0 0.0
    %1536 = vmatprep.subr.mxu0 0.0
    %1537 = vmatpush1.xpose.msra.mxu0 0.0
    %1538 = vmatprep.subr.mxu0 0.0
    %1539 = vmatpush1.xpose.msra.mxu0 0.0
    %1540 = vmatprep.subr.mxu0 0.0
    %1541 = vmatpush1.xpose.msra.mxu0 0.0
    %1542 = vmatprep.subr.mxu0 0.0
    %1543 = vmatpush1.xpose.msra.mxu0 0.0
    %1544 = vmatprep.subr.mxu0 0.0
    %1545 = vmatpush1.xpose.msra.mxu0 0.0
    %1546 = vmatprep.subr.mxu0 0.0
    %1547 = vmatpush1.xpose.msra.mxu0 0.0
    %1548 = vmatprep.subr.mxu0 0.0
    %1549 = vmatpush1.xpose.msra.mxu0 0.0
    %1550 = vmatprep.subr.mxu0 0.0
    %1551 = vmatpush1.xpose.msra.mxu0 0.0
    %1552 = vmatprep.subr.mxu0 0.0
    %1553 = vmatpush1.xpose.msra.mxu0 0.0
    %1554 = vmatprep.subr.mxu0 0.0
    %1555 = vmatpush1.xpose.msra.mxu0 0.0
    %1556 = vmatprep.subr.mxu0 0.0
    %1557 = vmatpush1.xpose.msra.mxu0 0.0
    %1558 = vmatprep.subr.mxu0 0.0
    %1559 = vmatpush1.xpose.msra.mxu0 0.0
    %1560 = vmatprep.subr.mxu0 0.0
    %1561 = vmatpush1.xpose.msra.mxu0 0.0
    %1562 = vmatprep.subr.mxu0 0.0
    %1563 = vmatpush1.xpose.msra.mxu0 0.0
    %1564 = vmatprep.subr.mxu0 0.0
    %1565 = vmatpush1.xpose.msra.mxu0 0.0
    %1566 = vmatprep.subr.mxu0 0.0
    %1567 = vmatpush1.xpose.msra.mxu0 0.0
    %1568 = vmatprep.subr.mxu0 0.0
    %1569 = vmatpush1.xpose.msra.mxu0 0.0
    %1570 = vmatprep.subr.mxu0 0.0
    %1571 = vmatpush1.xpose.msra.mxu0 0.0
    %1572 = vmatprep.subr.mxu0 0.0
    %1573 = vmatpush1.xpose.msra.mxu0 0.0
    %1574 = vmatprep.subr.mxu0 0.0
    %1575 = vmatpush1.xpose.msra.mxu0 0.0
    %1576 = vmatprep.subr.mxu0 0.0
    %1577 = vmatpush1.xpose.msra.mxu0 0.0
    %1578 = vmatprep.subr.mxu0 0.0
    %1579 = vmatpush1.xpose.msra.mxu0 0.0
    %1580 = vmatprep.subr.mxu0 0.0
    %1581 = vmatpush1.xpose.msra.mxu0 0.0
    %1582 = vmatprep.subr.mxu0 0.0
    %1583 = vmatpush1.xpose.msra.mxu0 0.0
    %1584 = vmatprep.mubr.f32.mxu0 0.0
    %v1585 = vand.u32 %v1213, 4294901760
    %1586 = vmatmul.mubr.f32.gmra.mrb[0].mxu0 %v1585
    %v1587 = vpop.f32.mrb[0].mxu0
    %v1588 = vadd.f32 %v1514, %v1587
    %v1589 = vpop.f32.mrb[0].mxu0
    %1590 = vdwg.mxu0
    %1591 = vmatprep.subr.mxu0 0.0
    %v1592 = vand.u32 %v1215, 4294901760
    %1593 = vmatpush1.xpose.msra.mxu0 %v1592
    %1594 = vmatprep.subr.mxu0 0.0
    %1595 = vmatpush1.xpose.msra.mxu0 0.0
    %1596 = vmatprep.subr.mxu0 0.0
    %1597 = vmatpush1.xpose.msra.mxu0 0.0
    %1598 = vmatprep.subr.mxu0 0.0
    %1599 = vmatpush1.xpose.msra.mxu0 0.0
    %1600 = vmatprep.subr.mxu0 0.0
    %1601 = vmatpush1.xpose.msra.mxu0 0.0
    %1602 = vmatprep.subr.mxu0 0.0
    %1603 = vmatpush1.xpose.msra.mxu0 0.0
    %1604 = vmatprep.subr.mxu0 0.0
    %1605 = vmatpush1.xpose.msra.mxu0 0.0
    %1606 = vmatprep.subr.mxu0 0.0
    %1607 = vmatpush1.xpose.msra.mxu0 0.0
    %1608 = vmatprep.subr.mxu0 0.0
    %1609 = vmatpush1.xpose.msra.mxu0 0.0
    %1610 = vmatprep.subr.mxu0 0.0
    %1611 = vmatpush1.xpose.msra.mxu0 0.0
    %1612 = vmatprep.subr.mxu0 0.0
    %1613 = vmatpush1.xpose.msra.mxu0 0.0
    %1614 = vmatprep.subr.mxu0 0.0
    %1615 = vmatpush1.xpose.msra.mxu0 0.0
    %1616 = vmatprep.subr.mxu0 0.0
    %1617 = vmatpush1.xpose.msra.mxu0 0.0
    %1618 = vmatprep.subr.mxu0 0.0
    %1619 = vmatpush1.xpose.msra.mxu0 0.0
    %1620 = vmatprep.subr.mxu0 0.0
    %1621 = vmatpush1.xpose.msra.mxu0 0.0
    %1622 = vmatprep.subr.mxu0 0.0
    %1623 = vmatpush1.xpose.msra.mxu0 0.0
    %1624 = vmatprep.subr.mxu0 0.0
    %1625 = vmatpush1.xpose.msra.mxu0 0.0
    %1626 = vmatprep.subr.mxu0 0.0
    %1627 = vmatpush1.xpose.msra.mxu0 0.0
    %1628 = vmatprep.subr.mxu0 0.0
    %1629 = vmatpush1.xpose.msra.mxu0 0.0
    %1630 = vmatprep.subr.mxu0 0.0
    %1631 = vmatpush1.xpose.msra.mxu0 0.0
    %1632 = vmatprep.subr.mxu0 0.0
    %1633 = vmatpush1.xpose.msra.mxu0 0.0
    %1634 = vmatprep.subr.mxu0 0.0
    %1635 = vmatpush1.xpose.msra.mxu0 0.0
    %1636 = vmatprep.subr.mxu0 0.0
    %1637 = vmatpush1.xpose.msra.mxu0 0.0
    %1638 = vmatprep.subr.mxu0 0.0
    %1639 = vmatpush1.xpose.msra.mxu0 0.0
    %1640 = vmatprep.subr.mxu0 0.0
    %1641 = vmatpush1.xpose.msra.mxu0 0.0
    %1642 = vmatprep.subr.mxu0 0.0
    %1643 = vmatpush1.xpose.msra.mxu0 0.0
    %1644 = vmatprep.subr.mxu0 0.0
    %1645 = vmatpush1.xpose.msra.mxu0 0.0
    %1646 = vmatprep.subr.mxu0 0.0
    %1647 = vmatpush1.xpose.msra.mxu0 0.0
    %1648 = vmatprep.subr.mxu0 0.0
    %1649 = vmatpush1.xpose.msra.mxu0 0.0
    %1650 = vmatprep.subr.mxu0 0.0
    %1651 = vmatpush1.xpose.msra.mxu0 0.0
    %1652 = vmatprep.subr.mxu0 0.0
    %1653 = vmatpush1.xpose.msra.mxu0 0.0
    %1654 = vmatprep.subr.mxu0 0.0
    %1655 = vmatpush1.xpose.msra.mxu0 0.0
    %1656 = vmatprep.mubr.f32.mxu0 0.0
    %v1657 = vand.u32 %v1213, 4294901760
    %1658 = vmatmul.mubr.f32.gmra.mrb[0].mxu0 %v1657
    %v1659 = vpop.f32.mrb[0].mxu0
    %v1660 = vadd.f32 %v1588, %v1659
    %v1661 = vpop.f32.mrb[0].mxu0
    %1662 = vdwg.mxu0
    %1663 = vrot.lane.b32.xlu0 %v752, 112
    %v1664 = vpop.permute.xlu0 %1663
    %1665 = vrot.lane.b32.xlu0 %v731, 80
    %v1666 = vpop.permute.xlu0 %1665
    %v1667 = vsel %vm757, %v1664, 0
    %v1669 = vsel %vm757, %v1666, 0
    %1671 = vmatprep.subr.mxu0 0.0
    %v1672 = vand.u32 %v1669, 4294901760
    %1673 = vmatpush1.xpose.msra.mxu0 %v1672
    %1674 = vmatprep.subr.mxu0 0.0
    %1675 = vmatpush1.xpose.msra.mxu0 0.0
    %1676 = vmatprep.subr.mxu0 0.0
    %1677 = vmatpush1.xpose.msra.mxu0 0.0
    %1678 = vmatprep.subr.mxu0 0.0
    %1679 = vmatpush1.xpose.msra.mxu0 0.0
    %1680 = vmatprep.subr.mxu0 0.0
    %1681 = vmatpush1.xpose.msra.mxu0 0.0
    %1682 = vmatprep.subr.mxu0 0.0
    %1683 = vmatpush1.xpose.msra.mxu0 0.0
    %1684 = vmatprep.subr.mxu0 0.0
    %1685 = vmatpush1.xpose.msra.mxu0 0.0
    %1686 = vmatprep.subr.mxu0 0.0
    %1687 = vmatpush1.xpose.msra.mxu0 0.0
    %1688 = vmatprep.subr.mxu0 0.0
    %1689 = vmatpush1.xpose.msra.mxu0 0.0
    %1690 = vmatprep.subr.mxu0 0.0
    %1691 = vmatpush1.xpose.msra.mxu0 0.0
    %1692 = vmatprep.subr.mxu0 0.0
    %1693 = vmatpush1.xpose.msra.mxu0 0.0
    %1694 = vmatprep.subr.mxu0 0.0
    %1695 = vmatpush1.xpose.msra.mxu0 0.0
    %1696 = vmatprep.subr.mxu0 0.0
    %1697 = vmatpush1.xpose.msra.mxu0 0.0
    %1698 = vmatprep.subr.mxu0 0.0
    %1699 = vmatpush1.xpose.msra.mxu0 0.0
    %1700 = vmatprep.subr.mxu0 0.0
    %1701 = vmatpush1.xpose.msra.mxu0 0.0
    %1702 = vmatprep.subr.mxu0 0.0
    %1703 = vmatpush1.xpose.msra.mxu0 0.0
    %1704 = vmatprep.subr.mxu0 0.0
    %1705 = vmatpush1.xpose.msra.mxu0 0.0
    %1706 = vmatprep.subr.mxu0 0.0
    %1707 = vmatpush1.xpose.msra.mxu0 0.0
    %1708 = vmatprep.subr.mxu0 0.0
    %1709 = vmatpush1.xpose.msra.mxu0 0.0
    %1710 = vmatprep.subr.mxu0 0.0
    %1711 = vmatpush1.xpose.msra.mxu0 0.0
    %1712 = vmatprep.subr.mxu0 0.0
    %1713 = vmatpush1.xpose.msra.mxu0 0.0
    %1714 = vmatprep.subr.mxu0 0.0
    %1715 = vmatpush1.xpose.msra.mxu0 0.0
    %1716 = vmatprep.subr.mxu0 0.0
    %1717 = vmatpush1.xpose.msra.mxu0 0.0
    %1718 = vmatprep.subr.mxu0 0.0
    %1719 = vmatpush1.xpose.msra.mxu0 0.0
    %1720 = vmatprep.subr.mxu0 0.0
    %1721 = vmatpush1.xpose.msra.mxu0 0.0
    %1722 = vmatprep.subr.mxu0 0.0
    %1723 = vmatpush1.xpose.msra.mxu0 0.0
    %1724 = vmatprep.subr.mxu0 0.0
    %1725 = vmatpush1.xpose.msra.mxu0 0.0
    %1726 = vmatprep.subr.mxu0 0.0
    %1727 = vmatpush1.xpose.msra.mxu0 0.0
    %1728 = vmatprep.subr.mxu0 0.0
    %1729 = vmatpush1.xpose.msra.mxu0 0.0
    %1730 = vmatprep.subr.mxu0 0.0
    %1731 = vmatpush1.xpose.msra.mxu0 0.0
    %1732 = vmatprep.subr.mxu0 0.0
    %1733 = vmatpush1.xpose.msra.mxu0 0.0
    %1734 = vmatprep.subr.mxu0 0.0
    %1735 = vmatpush1.xpose.msra.mxu0 0.0
    %1736 = vmatprep.mubr.f32.mxu0 0.0
    %v1737 = vand.u32 %v1667, 4294901760
    %v1738 = vsub.f32 %v1667, %v1737
    %v1739 = vand.u32 %v1738, 4294901760
    %v1740 = vsub.f32 %v1738, %v1739
    %v1741 = vand.u32 %v1740, 4294901760
    %1742 = vmatmul.mubr.f32.gmra.mrb[0].mxu0 %v1741
    %v1743 = vpop.f32.mrb[0].mxu0
    %v1744 = vadd.f32 0.0, %v1743
    %v1745 = vpop.f32.mrb[0].mxu0
    %1746 = vdwg.mxu0
    %1747 = vmatprep.subr.mxu0 0.0
    %v1748 = vand.u32 %v1669, 4294901760
    %v1749 = vsub.f32 %v1669, %v1748
    %v1750 = vand.u32 %v1749, 4294901760
    %v1751 = vsub.f32 %v1749, %v1750
    %v1752 = vand.u32 %v1751, 4294901760
    %1753 = vmatpush1.xpose.msra.mxu0 %v1752
    %1754 = vmatprep.subr.mxu0 0.0
    %1755 = vmatpush1.xpose.msra.mxu0 0.0
    %1756 = vmatprep.subr.mxu0 0.0
    %1757 = vmatpush1.xpose.msra.mxu0 0.0
    %1758 = vmatprep.subr.mxu0 0.0
    %1759 = vmatpush1.xpose.msra.mxu0 0.0
    %1760 = vmatprep.subr.mxu0 0.0
    %1761 = vmatpush1.xpose.msra.mxu0 0.0
    %1762 = vmatprep.subr.mxu0 0.0
    %1763 = vmatpush1.xpose.msra.mxu0 0.0
    %1764 = vmatprep.subr.mxu0 0.0
    %1765 = vmatpush1.xpose.msra.mxu0 0.0
    %1766 = vmatprep.subr.mxu0 0.0
    %1767 = vmatpush1.xpose.msra.mxu0 0.0
    %1768 = vmatprep.subr.mxu0 0.0
    %1769 = vmatpush1.xpose.msra.mxu0 0.0
    %1770 = vmatprep.subr.mxu0 0.0
    %1771 = vmatpush1.xpose.msra.mxu0 0.0
    %1772 = vmatprep.subr.mxu0 0.0
    %1773 = vmatpush1.xpose.msra.mxu0 0.0
    %1774 = vmatprep.subr.mxu0 0.0
    %1775 = vmatpush1.xpose.msra.mxu0 0.0
    %1776 = vmatprep.subr.mxu0 0.0
    %1777 = vmatpush1.xpose.msra.mxu0 0.0
    %1778 = vmatprep.subr.mxu0 0.0
    %1779 = vmatpush1.xpose.msra.mxu0 0.0
    %1780 = vmatprep.subr.mxu0 0.0
    %1781 = vmatpush1.xpose.msra.mxu0 0.0
    %1782 = vmatprep.subr.mxu0 0.0
    %1783 = vmatpush1.xpose.msra.mxu0 0.0
    %1784 = vmatprep.subr.mxu0 0.0
    %1785 = vmatpush1.xpose.msra.mxu0 0.0
    %1786 = vmatprep.subr.mxu0 0.0
    %1787 = vmatpush1.xpose.msra.mxu0 0.0
    %1788 = vmatprep.subr.mxu0 0.0
    %1789 = vmatpush1.xpose.msra.mxu0 0.0
    %1790 = vmatprep.subr.mxu0 0.0
    %1791 = vmatpush1.xpose.msra.mxu0 0.0
    %1792 = vmatprep.subr.mxu0 0.0
    %1793 = vmatpush1.xpose.msra.mxu0 0.0
    %1794 = vmatprep.subr.mxu0 0.0
    %1795 = vmatpush1.xpose.msra.mxu0 0.0
    %1796 = vmatprep.subr.mxu0 0.0
    %1797 = vmatpush1.xpose.msra.mxu0 0.0
    %1798 = vmatprep.subr.mxu0 0.0
    %1799 = vmatpush1.xpose.msra.mxu0 0.0
    %1800 = vmatprep.subr.mxu0 0.0
    %1801 = vmatpush1.xpose.msra.mxu0 0.0
    %1802 = vmatprep.subr.mxu0 0.0
    %1803 = vmatpush1.xpose.msra.mxu0 0.0
    %1804 = vmatprep.subr.mxu0 0.0
    %1805 = vmatpush1.xpose.msra.mxu0 0.0
    %1806 = vmatprep.subr.mxu0 0.0
    %1807 = vmatpush1.xpose.msra.mxu0 0.0
    %1808 = vmatprep.subr.mxu0 0.0
    %1809 = vmatpush1.xpose.msra.mxu0 0.0
    %1810 = vmatprep.subr.mxu0 0.0
    %1811 = vmatpush1.xpose.msra.mxu0 0.0
    %1812 = vmatprep.subr.mxu0 0.0
    %1813 = vmatpush1.xpose.msra.mxu0 0.0
    %1814 = vmatprep.subr.mxu0 0.0
    %1815 = vmatpush1.xpose.msra.mxu0 0.0
    %1816 = vmatprep.mubr.f32.mxu0 0.0
    %v1817 = vand.u32 %v1667, 4294901760
    %1818 = vmatmul.mubr.f32.gmra.mrb[0].mxu0 %v1817
    %v1819 = vpop.f32.mrb[0].mxu0
    %v1820 = vadd.f32 %v1744, %v1819
    %v1821 = vpop.f32.mrb[0].mxu0
    %1822 = vdwg.mxu0
    %1823 = vmatprep.subr.mxu0 0.0
    %v1824 = vand.u32 %v1669, 4294901760
    %v1825 = vsub.f32 %v1669, %v1824
    %1826 = vmatpush1.xpose.msra.mxu0 %v1825
    %1827 = vmatprep.subr.mxu0 0.0
    %1828 = vmatpush1.xpose.msra.mxu0 0.0
    %1829 = vmatprep.subr.mxu0 0.0
    %1830 = vmatpush1.xpose.msra.mxu0 0.0
    %1831 = vmatprep.subr.mxu0 0.0
    %1832 = vmatpush1.xpose.msra.mxu0 0.0
    %1833 = vmatprep.subr.mxu0 0.0
    %1834 = vmatpush1.xpose.msra.mxu0 0.0
    %1835 = vmatprep.subr.mxu0 0.0
    %1836 = vmatpush1.xpose.msra.mxu0 0.0
    %1837 = vmatprep.subr.mxu0 0.0
    %1838 = vmatpush1.xpose.msra.mxu0 0.0
    %1839 = vmatprep.subr.mxu0 0.0
    %1840 = vmatpush1.xpose.msra.mxu0 0.0
    %1841 = vmatprep.subr.mxu0 0.0
    %1842 = vmatpush1.xpose.msra.mxu0 0.0
    %1843 = vmatprep.subr.mxu0 0.0
    %1844 = vmatpush1.xpose.msra.mxu0 0.0
    %1845 = vmatprep.subr.mxu0 0.0
    %1846 = vmatpush1.xpose.msra.mxu0 0.0
    %1847 = vmatprep.subr.mxu0 0.0
    %1848 = vmatpush1.xpose.msra.mxu0 0.0
    %1849 = vmatprep.subr.mxu0 0.0
    %1850 = vmatpush1.xpose.msra.mxu0 0.0
    %1851 = vmatprep.subr.mxu0 0.0
    %1852 = vmatpush1.xpose.msra.mxu0 0.0
    %1853 = vmatprep.subr.mxu0 0.0
    %1854 = vmatpush1.xpose.msra.mxu0 0.0
    %1855 = vmatprep.subr.mxu0 0.0
    %1856 = vmatpush1.xpose.msra.mxu0 0.0
    %1857 = vmatprep.subr.mxu0 0.0
    %1858 = vmatpush1.xpose.msra.mxu0 0.0
    %1859 = vmatprep.subr.mxu0 0.0
    %1860 = vmatpush1.xpose.msra.mxu0 0.0
    %1861 = vmatprep.subr.mxu0 0.0
    %1862 = vmatpush1.xpose.msra.mxu0 0.0
    %1863 = vmatprep.subr.mxu0 0.0
    %1864 = vmatpush1.xpose.msra.mxu0 0.0
    %1865 = vmatprep.subr.mxu0 0.0
    %1866 = vmatpush1.xpose.msra.mxu0 0.0
    %1867 = vmatprep.subr.mxu0 0.0
    %1868 = vmatpush1.xpose.msra.mxu0 0.0
    %1869 = vmatprep.subr.mxu0 0.0
    %1870 = vmatpush1.xpose.msra.mxu0 0.0
    %1871 = vmatprep.subr.mxu0 0.0
    %1872 = vmatpush1.xpose.msra.mxu0 0.0
    %1873 = vmatprep.subr.mxu0 0.0
    %1874 = vmatpush1.xpose.msra.mxu0 0.0
    %1875 = vmatprep.subr.mxu0 0.0
    %1876 = vmatpush1.xpose.msra.mxu0 0.0
    %1877 = vmatprep.subr.mxu0 0.0
    %1878 = vmatpush1.xpose.msra.mxu0 0.0
    %1879 = vmatprep.subr.mxu0 0.0
    %1880 = vmatpush1.xpose.msra.mxu0 0.0
    %1881 = vmatprep.subr.mxu0 0.0
    %1882 = vmatpush1.xpose.msra.mxu0 0.0
    %1883 = vmatprep.subr.mxu0 0.0
    %1884 = vmatpush1.xpose.msra.mxu0 0.0
    %1885 = vmatprep.subr.mxu0 0.0
    %1886 = vmatpush1.xpose.msra.mxu0 0.0
    %1887 = vmatprep.subr.mxu0 0.0
    %1888 = vmatpush1.xpose.msra.mxu0 0.0
    %1889 = vmatprep.mubr.f32.mxu0 0.0
    %v1890 = vand.u32 %v1667, 4294901760
    %v1891 = vsub.f32 %v1667, %v1890
    %1892 = vmatmul.mubr.f32.gmra.mrb[0].mxu0 %v1891
    %v1893 = vpop.f32.mrb[0].mxu0
    %v1894 = vadd.f32 %v1820, %v1893
    %v1895 = vpop.f32.mrb[0].mxu0
    %1896 = vdwg.mxu0
    %1897 = vmatprep.subr.mxu0 0.0
    %v1898 = vand.u32 %v1669, 4294901760
    %1899 = vmatpush1.xpose.msra.mxu0 %v1898
    %1900 = vmatprep.subr.mxu0 0.0
    %1901 = vmatpush1.xpose.msra.mxu0 0.0
    %1902 = vmatprep.subr.mxu0 0.0
    %1903 = vmatpush1.xpose.msra.mxu0 0.0
    %1904 = vmatprep.subr.mxu0 0.0
    %1905 = vmatpush1.xpose.msra.mxu0 0.0
    %1906 = vmatprep.subr.mxu0 0.0
    %1907 = vmatpush1.xpose.msra.mxu0 0.0
    %1908 = vmatprep.subr.mxu0 0.0
    %1909 = vmatpush1.xpose.msra.mxu0 0.0
    %1910 = vmatprep.subr.mxu0 0.0
    %1911 = vmatpush1.xpose.msra.mxu0 0.0
    %1912 = vmatprep.subr.mxu0 0.0
    %1913 = vmatpush1.xpose.msra.mxu0 0.0
    %1914 = vmatprep.subr.mxu0 0.0
    %1915 = vmatpush1.xpose.msra.mxu0 0.0
    %1916 = vmatprep.subr.mxu0 0.0
    %1917 = vmatpush1.xpose.msra.mxu0 0.0
    %1918 = vmatprep.subr.mxu0 0.0
    %1919 = vmatpush1.xpose.msra.mxu0 0.0
    %1920 = vmatprep.subr.mxu0 0.0
    %1921 = vmatpush1.xpose.msra.mxu0 0.0
    %1922 = vmatprep.subr.mxu0 0.0
    %1923 = vmatpush1.xpose.msra.mxu0 0.0
    %1924 = vmatprep.subr.mxu0 0.0
    %1925 = vmatpush1.xpose.msra.mxu0 0.0
    %1926 = vmatprep.subr.mxu0 0.0
    %1927 = vmatpush1.xpose.msra.mxu0 0.0
    %1928 = vmatprep.subr.mxu0 0.0
    %1929 = vmatpush1.xpose.msra.mxu0 0.0
    %1930 = vmatprep.subr.mxu0 0.0
    %1931 = vmatpush1.xpose.msra.mxu0 0.0
    %1932 = vmatprep.subr.mxu0 0.0
    %1933 = vmatpush1.xpose.msra.mxu0 0.0
    %1934 = vmatprep.subr.mxu0 0.0
    %1935 = vmatpush1.xpose.msra.mxu0 0.0
    %1936 = vmatprep.subr.mxu0 0.0
    %1937 = vmatpush1.xpose.msra.mxu0 0.0
    %1938 = vmatprep.subr.mxu0 0.0
    %1939 = vmatpush1.xpose.msra.mxu0 0.0
    %1940 = vmatprep.subr.mxu0 0.0
    %1941 = vmatpush1.xpose.msra.mxu0 0.0
    %1942 = vmatprep.subr.mxu0 0.0
    %1943 = vmatpush1.xpose.msra.mxu0 0.0
    %1944 = vmatprep.subr.mxu0 0.0
    %1945 = vmatpush1.xpose.msra.mxu0 0.0
    %1946 = vmatprep.subr.mxu0 0.0
    %1947 = vmatpush1.xpose.msra.mxu0 0.0
    %1948 = vmatprep.subr.mxu0 0.0
    %1949 = vmatpush1.xpose.msra.mxu0 0.0
    %1950 = vmatprep.subr.mxu0 0.0
    %1951 = vmatpush1.xpose.msra.mxu0 0.0
    %1952 = vmatprep.subr.mxu0 0.0
    %1953 = vmatpush1.xpose.msra.mxu0 0.0
    %1954 = vmatprep.subr.mxu0 0.0
    %1955 = vmatpush1.xpose.msra.mxu0 0.0
    %1956 = vmatprep.subr.mxu0 0.0
    %1957 = vmatpush1.xpose.msra.mxu0 0.0
    %1958 = vmatprep.subr.mxu0 0.0
    %1959 = vmatpush1.xpose.msra.mxu0 0.0
    %1960 = vmatprep.subr.mxu0 0.0
    %1961 = vmatpush1.xpose.msra.mxu0 0.0
    %1962 = vmatprep.mubr.f32.mxu0 0.0
    %v1963 = vand.u32 %v1667, 4294901760
    %v1964 = vsub.f32 %v1667, %v1963
    %v1965 = vand.u32 %v1964, 4294901760
    %1966 = vmatmul.mubr.f32.gmra.mrb[0].mxu0 %v1965
    %v1967 = vpop.f32.mrb[0].mxu0
    %v1968 = vadd.f32 %v1894, %v1967
    %v1969 = vpop.f32.mrb[0].mxu0
    %1970 = vdwg.mxu0
    %1971 = vmatprep.subr.mxu0 0.0
    %v1972 = vand.u32 %v1669, 4294901760
    %v1973 = vsub.f32 %v1669, %v1972
    %v1974 = vand.u32 %v1973, 4294901760
    %1975 = vmatpush1.xpose.msra.mxu0 %v1974
    %1976 = vmatprep.subr.mxu0 0.0
    %1977 = vmatpush1.xpose.msra.mxu0 0.0
    %1978 = vmatprep.subr.mxu0 0.0
    %1979 = vmatpush1.xpose.msra.mxu0 0.0
    %1980 = vmatprep.subr.mxu0 0.0
    %1981 = vmatpush1.xpose.msra.mxu0 0.0
    %1982 = vmatprep.subr.mxu0 0.0
    %1983 = vmatpush1.xpose.msra.mxu0 0.0
    %1984 = vmatprep.subr.mxu0 0.0
    %1985 = vmatpush1.xpose.msra.mxu0 0.0
    %1986 = vmatprep.subr.mxu0 0.0
    %1987 = vmatpush1.xpose.msra.mxu0 0.0
    %1988 = vmatprep.subr.mxu0 0.0
    %1989 = vmatpush1.xpose.msra.mxu0 0.0
    %1990 = vmatprep.subr.mxu0 0.0
    %1991 = vmatpush1.xpose.msra.mxu0 0.0
    %1992 = vmatprep.subr.mxu0 0.0
    %1993 = vmatpush1.xpose.msra.mxu0 0.0
    %1994 = vmatprep.subr.mxu0 0.0
    %1995 = vmatpush1.xpose.msra.mxu0 0.0
    %1996 = vmatprep.subr.mxu0 0.0
    %1997 = vmatpush1.xpose.msra.mxu0 0.0
    %1998 = vmatprep.subr.mxu0 0.0
    %1999 = vmatpush1.xpose.msra.mxu0 0.0
    %2000 = vmatprep.subr.mxu0 0.0
    %2001 = vmatpush1.xpose.msra.mxu0 0.0
    %2002 = vmatprep.subr.mxu0 0.0
    %2003 = vmatpush1.xpose.msra.mxu0 0.0
    %2004 = vmatprep.subr.mxu0 0.0
    %2005 = vmatpush1.xpose.msra.mxu0 0.0
    %2006 = vmatprep.subr.mxu0 0.0
    %2007 = vmatpush1.xpose.msra.mxu0 0.0
    %2008 = vmatprep.subr.mxu0 0.0
    %2009 = vmatpush1.xpose.msra.mxu0 0.0
    %2010 = vmatprep.subr.mxu0 0.0
    %2011 = vmatpush1.xpose.msra.mxu0 0.0
    %2012 = vmatprep.subr.mxu0 0.0
    %2013 = vmatpush1.xpose.msra.mxu0 0.0
    %2014 = vmatprep.subr.mxu0 0.0
    %2015 = vmatpush1.xpose.msra.mxu0 0.0
    %2016 = vmatprep.subr.mxu0 0.0
    %2017 = vmatpush1.xpose.msra.mxu0 0.0
    %2018 = vmatprep.subr.mxu0 0.0
    %2019 = vmatpush1.xpose.msra.mxu0 0.0
    %2020 = vmatprep.subr.mxu0 0.0
    %2021 = vmatpush1.xpose.msra.mxu0 0.0
    %2022 = vmatprep.subr.mxu0 0.0
    %2023 = vmatpush1.xpose.msra.mxu0 0.0
    %2024 = vmatprep.subr.mxu0 0.0
    %2025 = vmatpush1.xpose.msra.mxu0 0.0
    %2026 = vmatprep.subr.mxu0 0.0
    %2027 = vmatpush1.xpose.msra.mxu0 0.0
    %2028 = vmatprep.subr.mxu0 0.0
    %2029 = vmatpush1.xpose.msra.mxu0 0.0
    %2030 = vmatprep.subr.mxu0 0.0
    %2031 = vmatpush1.xpose.msra.mxu0 0.0
    %2032 = vmatprep.subr.mxu0 0.0
    %2033 = vmatpush1.xpose.msra.mxu0 0.0
    %2034 = vmatprep.subr.mxu0 0.0
    %2035 = vmatpush1.xpose.msra.mxu0 0.0
    %2036 = vmatprep.subr.mxu0 0.0
    %2037 = vmatpush1.xpose.msra.mxu0 0.0
    %2038 = vmatprep.mubr.f32.mxu0 0.0
    %v2039 = vand.u32 %v1667, 4294901760
    %2040 = vmatmul.mubr.f32.gmra.mrb[0].mxu0 %v2039
    %v2041 = vpop.f32.mrb[0].mxu0
    %v2042 = vadd.f32 %v1968, %v2041
    %v2043 = vpop.f32.mrb[0].mxu0
    %2044 = vdwg.mxu0
    %2045 = vmatprep.subr.mxu0 0.0
    %v2046 = vand.u32 %v1669, 4294901760
    %2047 = vmatpush1.xpose.msra.mxu0 %v2046
    %2048 = vmatprep.subr.mxu0 0.0
    %2049 = vmatpush1.xpose.msra.mxu0 0.0
    %2050 = vmatprep.subr.mxu0 0.0
    %2051 = vmatpush1.xpose.msra.mxu0 0.0
    %2052 = vmatprep.subr.mxu0 0.0
    %2053 = vmatpush1.xpose.msra.mxu0 0.0
    %2054 = vmatprep.subr.mxu0 0.0
    %2055 = vmatpush1.xpose.msra.mxu0 0.0
    %2056 = vmatprep.subr.mxu0 0.0
    %2057 = vmatpush1.xpose.msra.mxu0 0.0
    %2058 = vmatprep.subr.mxu0 0.0
    %2059 = vmatpush1.xpose.msra.mxu0 0.0
    %2060 = vmatprep.subr.mxu0 0.0
    %2061 = vmatpush1.xpose.msra.mxu0 0.0
    %2062 = vmatprep.subr.mxu0 0.0
    %2063 = vmatpush1.xpose.msra.mxu0 0.0
    %2064 = vmatprep.subr.mxu0 0.0
    %2065 = vmatpush1.xpose.msra.mxu0 0.0
    %2066 = vmatprep.subr.mxu0 0.0
    %2067 = vmatpush1.xpose.msra.mxu0 0.0
    %2068 = vmatprep.subr.mxu0 0.0
    %2069 = vmatpush1.xpose.msra.mxu0 0.0
    %2070 = vmatprep.subr.mxu0 0.0
    %2071 = vmatpush1.xpose.msra.mxu0 0.0
    %2072 = vmatprep.subr.mxu0 0.0
    %2073 = vmatpush1.xpose.msra.mxu0 0.0
    %2074 = vmatprep.subr.mxu0 0.0
    %2075 = vmatpush1.xpose.msra.mxu0 0.0
    %2076 = vmatprep.subr.mxu0 0.0
    %2077 = vmatpush1.xpose.msra.mxu0 0.0
    %2078 = vmatprep.subr.mxu0 0.0
    %2079 = vmatpush1.xpose.msra.mxu0 0.0
    %2080 = vmatprep.subr.mxu0 0.0
    %2081 = vmatpush1.xpose.msra.mxu0 0.0
    %2082 = vmatprep.subr.mxu0 0.0
    %2083 = vmatpush1.xpose.msra.mxu0 0.0
    %2084 = vmatprep.subr.mxu0 0.0
    %2085 = vmatpush1.xpose.msra.mxu0 0.0
    %2086 = vmatprep.subr.mxu0 0.0
    %2087 = vmatpush1.xpose.msra.mxu0 0.0
    %2088 = vmatprep.subr.mxu0 0.0
    %2089 = vmatpush1.xpose.msra.mxu0 0.0
    %2090 = vmatprep.subr.mxu0 0.0
    %2091 = vmatpush1.xpose.msra.mxu0 0.0
    %2092 = vmatprep.subr.mxu0 0.0
    %2093 = vmatpush1.xpose.msra.mxu0 0.0
    %2094 = vmatprep.subr.mxu0 0.0
    %2095 = vmatpush1.xpose.msra.mxu0 0.0
    %2096 = vmatprep.subr.mxu0 0.0
    %2097 = vmatpush1.xpose.msra.mxu0 0.0
    %2098 = vmatprep.subr.mxu0 0.0
    %2099 = vmatpush1.xpose.msra.mxu0 0.0
    %2100 = vmatprep.subr.mxu0 0.0
    %2101 = vmatpush1.xpose.msra.mxu0 0.0
    %2102 = vmatprep.subr.mxu0 0.0
    %2103 = vmatpush1.xpose.msra.mxu0 0.0
    %2104 = vmatprep.subr.mxu0 0.0
    %2105 = vmatpush1.xpose.msra.mxu0 0.0
    %2106 = vmatprep.subr.mxu0 0.0
    %2107 = vmatpush1.xpose.msra.mxu0 0.0
    %2108 = vmatprep.subr.mxu0 0.0
    %2109 = vmatpush1.xpose.msra.mxu0 0.0
    %2110 = vmatprep.mubr.f32.mxu0 0.0
    %v2111 = vand.u32 %v1667, 4294901760
    %2112 = vmatmul.mubr.f32.gmra.mrb[0].mxu0 %v2111
    %v2113 = vpop.f32.mrb[0].mxu0
    %v2114 = vadd.f32 %v2042, %v2113
    %v2115 = vpop.f32.mrb[0].mxu0
    %2116 = vdwg.mxu0
    %2117 = vrot.lane.b32.xlu0 %v752, 104
    %v2118 = vpop.permute.xlu0 %2117
    %2119 = vrot.lane.b32.xlu0 %v731, 72
    %v2120 = vpop.permute.xlu0 %2119
    %v2121 = vsel %vm757, %v2118, 0
    %v2123 = vsel %vm757, %v2120, 0
    %2125 = vmatprep.subr.mxu0 0.0
    %v2126 = vand.u32 %v2123, 4294901760
    %2127 = vmatpush1.xpose.msra.mxu0 %v2126
    %2128 = vmatprep.subr.mxu0 0.0
    %2129 = vmatpush1.xpose.msra.mxu0 0.0
    %2130 = vmatprep.subr.mxu0 0.0
    %2131 = vmatpush1.xpose.msra.mxu0 0.0
    %2132 = vmatprep.subr.mxu0 0.0
    %2133 = vmatpush1.xpose.msra.mxu0 0.0
    %2134 = vmatprep.subr.mxu0 0.0
    %2135 = vmatpush1.xpose.msra.mxu0 0.0
    %2136 = vmatprep.subr.mxu0 0.0
    %2137 = vmatpush1.xpose.msra.mxu0 0.0
    %2138 = vmatprep.subr.mxu0 0.0
    %2139 = vmatpush1.xpose.msra.mxu0 0.0
    %2140 = vmatprep.subr.mxu0 0.0
    %2141 = vmatpush1.xpose.msra.mxu0 0.0
    %2142 = vmatprep.subr.mxu0 0.0
    %2143 = vmatpush1.xpose.msra.mxu0 0.0
    %2144 = vmatprep.subr.mxu0 0.0
    %2145 = vmatpush1.xpose.msra.mxu0 0.0
    %2146 = vmatprep.subr.mxu0 0.0
    %2147 = vmatpush1.xpose.msra.mxu0 0.0
    %2148 = vmatprep.subr.mxu0 0.0
    %2149 = vmatpush1.xpose.msra.mxu0 0.0
    %2150 = vmatprep.subr.mxu0 0.0
    %2151 = vmatpush1.xpose.msra.mxu0 0.0
    %2152 = vmatprep.subr.mxu0 0.0
    %2153 = vmatpush1.xpose.msra.mxu0 0.0
    %2154 = vmatprep.subr.mxu0 0.0
    %2155 = vmatpush1.xpose.msra.mxu0 0.0
    %2156 = vmatprep.subr.mxu0 0.0
    %2157 = vmatpush1.xpose.msra.mxu0 0.0
    %2158 = vmatprep.subr.mxu0 0.0
    %2159 = vmatpush1.xpose.msra.mxu0 0.0
    %2160 = vmatprep.subr.mxu0 0.0
    %2161 = vmatpush1.xpose.msra.mxu0 0.0
    %2162 = vmatprep.subr.mxu0 0.0
    %2163 = vmatpush1.xpose.msra.mxu0 0.0
    %2164 = vmatprep.subr.mxu0 0.0
    %2165 = vmatpush1.xpose.msra.mxu0 0.0
    %2166 = vmatprep.subr.mxu0 0.0
    %2167 = vmatpush1.xpose.msra.mxu0 0.0
    %2168 = vmatprep.subr.mxu0 0.0
    %2169 = vmatpush1.xpose.msra.mxu0 0.0
    %2170 = vmatprep.subr.mxu0 0.0
    %2171 = vmatpush1.xpose.msra.mxu0 0.0
    %2172 = vmatprep.subr.mxu0 0.0
    %2173 = vmatpush1.xpose.msra.mxu0 0.0
    %2174 = vmatprep.subr.mxu0 0.0
    %2175 = vmatpush1.xpose.msra.mxu0 0.0
    %2176 = vmatprep.subr.mxu0 0.0
    %2177 = vmatpush1.xpose.msra.mxu0 0.0
    %2178 = vmatprep.subr.mxu0 0.0
    %2179 = vmatpush1.xpose.msra.mxu0 0.0
    %2180 = vmatprep.subr.mxu0 0.0
    %2181 = vmatpush1.xpose.msra.mxu0 0.0
    %2182 = vmatprep.subr.mxu0 0.0
    %2183 = vmatpush1.xpose.msra.mxu0 0.0
    %2184 = vmatprep.subr.mxu0 0.0
    %2185 = vmatpush1.xpose.msra.mxu0 0.0
    %2186 = vmatprep.subr.mxu0 0.0
    %2187 = vmatpush1.xpose.msra.mxu0 0.0
    %2188 = vmatprep.subr.mxu0 0.0
    %2189 = vmatpush1.xpose.msra.mxu0 0.0
    %2190 = vmatprep.mubr.f32.mxu0 0.0
    %v2191 = vand.u32 %v2121, 4294901760
    %v2192 = vsub.f32 %v2121, %v2191
    %v2193 = vand.u32 %v2192, 4294901760
    %v2194 = vsub.f32 %v2192, %v2193
    %v2195 = vand.u32 %v2194, 4294901760
    %2196 = vmatmul.mubr.f32.gmra.mrb[0].mxu0 %v2195
    %v2197 = vpop.f32.mrb[0].mxu0
    %v2198 = vadd.f32 0.0, %v2197
    %v2199 = vpop.f32.mrb[0].mxu0
    %2200 = vdwg.mxu0
    %2201 = vmatprep.subr.mxu0 0.0
    %v2202 = vand.u32 %v2123, 4294901760
    %v2203 = vsub.f32 %v2123, %v2202
    %v2204 = vand.u32 %v2203, 4294901760
    %v2205 = vsub.f32 %v2203, %v2204
    %v2206 = vand.u32 %v2205, 4294901760
    %2207 = vmatpush1.xpose.msra.mxu0 %v2206
    %2208 = vmatprep.subr.mxu0 0.0
    %2209 = vmatpush1.xpose.msra.mxu0 0.0
    %2210 = vmatprep.subr.mxu0 0.0
    %2211 = vmatpush1.xpose.msra.mxu0 0.0
    %2212 = vmatprep.subr.mxu0 0.0
    %2213 = vmatpush1.xpose.msra.mxu0 0.0
    %2214 = vmatprep.subr.mxu0 0.0
    %2215 = vmatpush1.xpose.msra.mxu0 0.0
    %2216 = vmatprep.subr.mxu0 0.0
    %2217 = vmatpush1.xpose.msra.mxu0 0.0
    %2218 = vmatprep.subr.mxu0 0.0
    %2219 = vmatpush1.xpose.msra.mxu0 0.0
    %2220 = vmatprep.subr.mxu0 0.0
    %2221 = vmatpush1.xpose.msra.mxu0 0.0
    %2222 = vmatprep.subr.mxu0 0.0
    %2223 = vmatpush1.xpose.msra.mxu0 0.0
    %2224 = vmatprep.subr.mxu0 0.0
    %2225 = vmatpush1.xpose.msra.mxu0 0.0
    %2226 = vmatprep.subr.mxu0 0.0
    %2227 = vmatpush1.xpose.msra.mxu0 0.0
    %2228 = vmatprep.subr.mxu0 0.0
    %2229 = vmatpush1.xpose.msra.mxu0 0.0
    %2230 = vmatprep.subr.mxu0 0.0
    %2231 = vmatpush1.xpose.msra.mxu0 0.0
    %2232 = vmatprep.subr.mxu0 0.0
    %2233 = vmatpush1.xpose.msra.mxu0 0.0
    %2234 = vmatprep.subr.mxu0 0.0
    %2235 = vmatpush1.xpose.msra.mxu0 0.0
    %2236 = vmatprep.subr.mxu0 0.0
    %2237 = vmatpush1.xpose.msra.mxu0 0.0
    %2238 = vmatprep.subr.mxu0 0.0
    %2239 = vmatpush1.xpose.msra.mxu0 0.0
    %2240 = vmatprep.subr.mxu0 0.0
    %2241 = vmatpush1.xpose.msra.mxu0 0.0
    %2242 = vmatprep.subr.mxu0 0.0
    %2243 = vmatpush1.xpose.msra.mxu0 0.0
    %2244 = vmatprep.subr.mxu0 0.0
    %2245 = vmatpush1.xpose.msra.mxu0 0.0
    %2246 = vmatprep.subr.mxu0 0.0
    %2247 = vmatpush1.xpose.msra.mxu0 0.0
    %2248 = vmatprep.subr.mxu0 0.0
    %2249 = vmatpush1.xpose.msra.mxu0 0.0
    %2250 = vmatprep.subr.mxu0 0.0
    %2251 = vmatpush1.xpose.msra.mxu0 0.0
    %2252 = vmatprep.subr.mxu0 0.0
    %2253 = vmatpush1.xpose.msra.mxu0 0.0
    %2254 = vmatprep.subr.mxu0 0.0
    %2255 = vmatpush1.xpose.msra.mxu0 0.0
    %2256 = vmatprep.subr.mxu0 0.0
    %2257 = vmatpush1.xpose.msra.mxu0 0.0
    %2258 = vmatprep.subr.mxu0 0.0
    %2259 = vmatpush1.xpose.msra.mxu0 0.0
    %2260 = vmatprep.subr.mxu0 0.0
    %2261 = vmatpush1.xpose.msra.mxu0 0.0
    %2262 = vmatprep.subr.mxu0 0.0
    %2263 = vmatpush1.xpose.msra.mxu0 0.0
    %2264 = vmatprep.subr.mxu0 0.0
    %2265 = vmatpush1.xpose.msra.mxu0 0.0
    %2266 = vmatprep.subr.mxu0 0.0
    %2267 = vmatpush1.xpose.msra.mxu0 0.0
    %2268 = vmatprep.subr.mxu0 0.0
    %2269 = vmatpush1.xpose.msra.mxu0 0.0
    %2270 = vmatprep.mubr.f32.mxu0 0.0
    %v2271 = vand.u32 %v2121, 4294901760
    %2272 = vmatmul.mubr.f32.gmra.mrb[0].mxu0 %v2271
    %v2273 = vpop.f32.mrb[0].mxu0
    %v2274 = vadd.f32 %v2198, %v2273
    %v2275 = vpop.f32.mrb[0].mxu0
    %2276 = vdwg.mxu0
    %2277 = vmatprep.subr.mxu0 0.0
    %v2278 = vand.u32 %v2123, 4294901760
    %v2279 = vsub.f32 %v2123, %v2278
    %2280 = vmatpush1.xpose.msra.mxu0 %v2279
    %2281 = vmatprep.subr.mxu0 0.0
    %2282 = vmatpush1.xpose.msra.mxu0 0.0
    %2283 = vmatprep.subr.mxu0 0.0
    %2284 = vmatpush1.xpose.msra.mxu0 0.0
    %2285 = vmatprep.subr.mxu0 0.0
    %2286 = vmatpush1.xpose.msra.mxu0 0.0
    %2287 = vmatprep.subr.mxu0 0.0
    %2288 = vmatpush1.xpose.msra.mxu0 0.0
    %2289 = vmatprep.subr.mxu0 0.0
    %2290 = vmatpush1.xpose.msra.mxu0 0.0
    %2291 = vmatprep.subr.mxu0 0.0
    %2292 = vmatpush1.xpose.msra.mxu0 0.0
    %2293 = vmatprep.subr.mxu0 0.0
    %2294 = vmatpush1.xpose.msra.mxu0 0.0
    %2295 = vmatprep.subr.mxu0 0.0
    %2296 = vmatpush1.xpose.msra.mxu0 0.0
    %2297 = vmatprep.subr.mxu0 0.0
    %2298 = vmatpush1.xpose.msra.mxu0 0.0
    %2299 = vmatprep.subr.mxu0 0.0
    %2300 = vmatpush1.xpose.msra.mxu0 0.0
    %2301 = vmatprep.subr.mxu0 0.0
    %2302 = vmatpush1.xpose.msra.mxu0 0.0
    %2303 = vmatprep.subr.mxu0 0.0
    %2304 = vmatpush1.xpose.msra.mxu0 0.0
    %2305 = vmatprep.subr.mxu0 0.0
    %2306 = vmatpush1.xpose.msra.mxu0 0.0
    %2307 = vmatprep.subr.mxu0 0.0
    %2308 = vmatpush1.xpose.msra.mxu0 0.0
    %2309 = vmatprep.subr.mxu0 0.0
    %2310 = vmatpush1.xpose.msra.mxu0 0.0
    %2311 = vmatprep.subr.mxu0 0.0
    %2312 = vmatpush1.xpose.msra.mxu0 0.0
    %2313 = vmatprep.subr.mxu0 0.0
    %2314 = vmatpush1.xpose.msra.mxu0 0.0
    %2315 = vmatprep.subr.mxu0 0.0
    %2316 = vmatpush1.xpose.msra.mxu0 0.0
    %2317 = vmatprep.subr.mxu0 0.0
    %2318 = vmatpush1.xpose.msra.mxu0 0.0
    %2319 = vmatprep.subr.mxu0 0.0
    %2320 = vmatpush1.xpose.msra.mxu0 0.0
    %2321 = vmatprep.subr.mxu0 0.0
    %2322 = vmatpush1.xpose.msra.mxu0 0.0
    %2323 = vmatprep.subr.mxu0 0.0
    %2324 = vmatpush1.xpose.msra.mxu0 0.0
    %2325 = vmatprep.subr.mxu0 0.0
    %2326 = vmatpush1.xpose.msra.mxu0 0.0
    %2327 = vmatprep.subr.mxu0 0.0
    %2328 = vmatpush1.xpose.msra.mxu0 0.0
    %2329 = vmatprep.subr.mxu0 0.0
    %2330 = vmatpush1.xpose.msra.mxu0 0.0
    %2331 = vmatprep.subr.mxu0 0.0
    %2332 = vmatpush1.xpose.msra.mxu0 0.0
    %2333 = vmatprep.subr.mxu0 0.0
    %2334 = vmatpush1.xpose.msra.mxu0 0.0
    %2335 = vmatprep.subr.mxu0 0.0
    %2336 = vmatpush1.xpose.msra.mxu0 0.0
    %2337 = vmatprep.subr.mxu0 0.0
    %2338 = vmatpush1.xpose.msra.mxu0 0.0
    %2339 = vmatprep.subr.mxu0 0.0
    %2340 = vmatpush1.xpose.msra.mxu0 0.0
    %2341 = vmatprep.subr.mxu0 0.0
    %2342 = vmatpush1.xpose.msra.mxu0 0.0
    %2343 = vmatprep.mubr.f32.mxu0 0.0
    %v2344 = vand.u32 %v2121, 4294901760
    %v2345 = vsub.f32 %v2121, %v2344
    %2346 = vmatmul.mubr.f32.gmra.mrb[0].mxu0 %v2345
    %v2347 = vpop.f32.mrb[0].mxu0
    %v2348 = vadd.f32 %v2274, %v2347
    %v2349 = vpop.f32.mrb[0].mxu0
    %2350 = vdwg.mxu0
    %2351 = vmatprep.subr.mxu0 0.0
    %v2352 = vand.u32 %v2123, 4294901760
    %2353 = vmatpush1.xpose.msra.mxu0 %v2352
    %2354 = vmatprep.subr.mxu0 0.0
    %2355 = vmatpush1.xpose.msra.mxu0 0.0
    %2356 = vmatprep.subr.mxu0 0.0
    %2357 = vmatpush1.xpose.msra.mxu0 0.0
    %2358 = vmatprep.subr.mxu0 0.0
    %2359 = vmatpush1.xpose.msra.mxu0 0.0
    %2360 = vmatprep.subr.mxu0 0.0
    %2361 = vmatpush1.xpose.msra.mxu0 0.0
    %2362 = vmatprep.subr.mxu0 0.0
    %2363 = vmatpush1.xpose.msra.mxu0 0.0
    %2364 = vmatprep.subr.mxu0 0.0
    %2365 = vmatpush1.xpose.msra.mxu0 0.0
    %2366 = vmatprep.subr.mxu0 0.0
    %2367 = vmatpush1.xpose.msra.mxu0 0.0
    %2368 = vmatprep.subr.mxu0 0.0
    %2369 = vmatpush1.xpose.msra.mxu0 0.0
    %2370 = vmatprep.subr.mxu0 0.0
    %2371 = vmatpush1.xpose.msra.mxu0 0.0
    %2372 = vmatprep.subr.mxu0 0.0
    %2373 = vmatpush1.xpose.msra.mxu0 0.0
    %2374 = vmatprep.subr.mxu0 0.0
    %2375 = vmatpush1.xpose.msra.mxu0 0.0
    %2376 = vmatprep.subr.mxu0 0.0
    %2377 = vmatpush1.xpose.msra.mxu0 0.0
    %2378 = vmatprep.subr.mxu0 0.0
    %2379 = vmatpush1.xpose.msra.mxu0 0.0
    %2380 = vmatprep.subr.mxu0 0.0
    %2381 = vmatpush1.xpose.msra.mxu0 0.0
    %2382 = vmatprep.subr.mxu0 0.0
    %2383 = vmatpush1.xpose.msra.mxu0 0.0
    %2384 = vmatprep.subr.mxu0 0.0
    %2385 = vmatpush1.xpose.msra.mxu0 0.0
    %2386 = vmatprep.subr.mxu0 0.0
    %2387 = vmatpush1.xpose.msra.mxu0 0.0
    %2388 = vmatprep.subr.mxu0 0.0
    %2389 = vmatpush1.xpose.msra.mxu0 0.0
    %2390 = vmatprep.subr.mxu0 0.0
    %2391 = vmatpush1.xpose.msra.mxu0 0.0
    %2392 = vmatprep.subr.mxu0 0.0
    %2393 = vmatpush1.xpose.msra.mxu0 0.0
    %2394 = vmatprep.subr.mxu0 0.0
    %2395 = vmatpush1.xpose.msra.mxu0 0.0
    %2396 = vmatprep.subr.mxu0 0.0
    %2397 = vmatpush1.xpose.msra.mxu0 0.0
    %2398 = vmatprep.subr.mxu0 0.0
    %2399 = vmatpush1.xpose.msra.mxu0 0.0
    %2400 = vmatprep.subr.mxu0 0.0
    %2401 = vmatpush1.xpose.msra.mxu0 0.0
    %2402 = vmatprep.subr.mxu0 0.0
    %2403 = vmatpush1.xpose.msra.mxu0 0.0
    %2404 = vmatprep.subr.mxu0 0.0
    %2405 = vmatpush1.xpose.msra.mxu0 0.0
    %2406 = vmatprep.subr.mxu0 0.0
    %2407 = vmatpush1.xpose.msra.mxu0 0.0
    %2408 = vmatprep.subr.mxu0 0.0
    %2409 = vmatpush1.xpose.msra.mxu0 0.0
    %2410 = vmatprep.subr.mxu0 0.0
    %2411 = vmatpush1.xpose.msra.mxu0 0.0
    %2412 = vmatprep.subr.mxu0 0.0
    %2413 = vmatpush1.xpose.msra.mxu0 0.0
    %2414 = vmatprep.subr.mxu0 0.0
    %2415 = vmatpush1.xpose.msra.mxu0 0.0
    %2416 = vmatprep.mubr.f32.mxu0 0.0
    %v2417 = vand.u32 %v2121, 4294901760
    %v2418 = vsub.f32 %v2121, %v2417
    %v2419 = vand.u32 %v2418, 4294901760
    %2420 = vmatmul.mubr.f32.gmra.mrb[0].mxu0 %v2419
    %v2421 = vpop.f32.mrb[0].mxu0
    %v2422 = vadd.f32 %v2348, %v2421
    %v2423 = vpop.f32.mrb[0].mxu0
    %2424 = vdwg.mxu0
    %2425 = vmatprep.subr.mxu0 0.0
    %v2426 = vand.u32 %v2123, 4294901760
    %v2427 = vsub.f32 %v2123, %v2426
    %v2428 = vand.u32 %v2427, 4294901760
    %2429 = vmatpush1.xpose.msra.mxu0 %v2428
    %2430 = vmatprep.subr.mxu0 0.0
    %2431 = vmatpush1.xpose.msra.mxu0 0.0
    %2432 = vmatprep.subr.mxu0 0.0
    %2433 = vmatpush1.xpose.msra.mxu0 0.0
    %2434 = vmatprep.subr.mxu0 0.0
    %2435 = vmatpush1.xpose.msra.mxu0 0.0
    %2436 = vmatprep.subr.mxu0 0.0
    %2437 = vmatpush1.xpose.msra.mxu0 0.0
    %2438 = vmatprep.subr.mxu0 0.0
    %2439 = vmatpush1.xpose.msra.mxu0 0.0
    %2440 = vmatprep.subr.mxu0 0.0
    %2441 = vmatpush1.xpose.msra.mxu0 0.0
    %2442 = vmatprep.subr.mxu0 0.0
    %2443 = vmatpush1.xpose.msra.mxu0 0.0
    %2444 = vmatprep.subr.mxu0 0.0
    %2445 = vmatpush1.xpose.msra.mxu0 0.0
    %2446 = vmatprep.subr.mxu0 0.0
    %2447 = vmatpush1.xpose.msra.mxu0 0.0
    %2448 = vmatprep.subr.mxu0 0.0
    %2449 = vmatpush1.xpose.msra.mxu0 0.0
    %2450 = vmatprep.subr.mxu0 0.0
    %2451 = vmatpush1.xpose.msra.mxu0 0.0
    %2452 = vmatprep.subr.mxu0 0.0
    %2453 = vmatpush1.xpose.msra.mxu0 0.0
    %2454 = vmatprep.subr.mxu0 0.0
    %2455 = vmatpush1.xpose.msra.mxu0 0.0
    %2456 = vmatprep.subr.mxu0 0.0
    %2457 = vmatpush1.xpose.msra.mxu0 0.0
    %2458 = vmatprep.subr.mxu0 0.0
    %2459 = vmatpush1.xpose.msra.mxu0 0.0
    %2460 = vmatprep.subr.mxu0 0.0
    %2461 = vmatpush1.xpose.msra.mxu0 0.0
    %2462 = vmatprep.subr.mxu0 0.0
    %2463 = vmatpush1.xpose.msra.mxu0 0.0
    %2464 = vmatprep.subr.mxu0 0.0
    %2465 = vmatpush1.xpose.msra.mxu0 0.0
    %2466 = vmatprep.subr.mxu0 0.0
    %2467 = vmatpush1.xpose.msra.mxu0 0.0
    %2468 = vmatprep.subr.mxu0 0.0
    %2469 = vmatpush1.xpose.msra.mxu0 0.0
    %2470 = vmatprep.subr.mxu0 0.0
    %2471 = vmatpush1.xpose.msra.mxu0 0.0
    %2472 = vmatprep.subr.mxu0 0.0
    %2473 = vmatpush1.xpose.msra.mxu0 0.0
    %2474 = vmatprep.subr.mxu0 0.0
    %2475 = vmatpush1.xpose.msra.mxu0 0.0
    %2476 = vmatprep.subr.mxu0 0.0
    %2477 = vmatpush1.xpose.msra.mxu0 0.0
    %2478 = vmatprep.subr.mxu0 0.0
    %2479 = vmatpush1.xpose.msra.mxu0 0.0
    %2480 = vmatprep.subr.mxu0 0.0
    %2481 = vmatpush1.xpose.msra.mxu0 0.0
    %2482 = vmatprep.subr.mxu0 0.0
    %2483 = vmatpush1.xpose.msra.mxu0 0.0
    %2484 = vmatprep.subr.mxu0 0.0
    %2485 = vmatpush1.xpose.msra.mxu0 0.0
    %2486 = vmatprep.subr.mxu0 0.0
    %2487 = vmatpush1.xpose.msra.mxu0 0.0
    %2488 = vmatprep.subr.mxu0 0.0
    %2489 = vmatpush1.xpose.msra.mxu0 0.0
    %2490 = vmatprep.subr.mxu0 0.0
    %2491 = vmatpush1.xpose.msra.mxu0 0.0
    %2492 = vmatprep.mubr.f32.mxu0 0.0
    %v2493 = vand.u32 %v2121, 4294901760
    %2494 = vmatmul.mubr.f32.gmra.mrb[0].mxu0 %v2493
    %v2495 = vpop.f32.mrb[0].mxu0
    %v2496 = vadd.f32 %v2422, %v2495
    %v2497 = vpop.f32.mrb[0].mxu0
    %2498 = vdwg.mxu0
    %2499 = vmatprep.subr.mxu0 0.0
    %v2500 = vand.u32 %v2123, 4294901760
    %2501 = vmatpush1.xpose.msra.mxu0 %v2500
    %2502 = vmatprep.subr.mxu0 0.0
    %2503 = vmatpush1.xpose.msra.mxu0 0.0
    %2504 = vmatprep.subr.mxu0 0.0
    %2505 = vmatpush1.xpose.msra.mxu0 0.0
    %2506 = vmatprep.subr.mxu0 0.0
    %2507 = vmatpush1.xpose.msra.mxu0 0.0
    %2508 = vmatprep.subr.mxu0 0.0
    %2509 = vmatpush1.xpose.msra.mxu0 0.0
    %2510 = vmatprep.subr.mxu0 0.0
    %2511 = vmatpush1.xpose.msra.mxu0 0.0
    %2512 = vmatprep.subr.mxu0 0.0
    %2513 = vmatpush1.xpose.msra.mxu0 0.0
    %2514 = vmatprep.subr.mxu0 0.0
    %2515 = vmatpush1.xpose.msra.mxu0 0.0
    %2516 = vmatprep.subr.mxu0 0.0
    %2517 = vmatpush1.xpose.msra.mxu0 0.0
    %2518 = vmatprep.subr.mxu0 0.0
    %2519 = vmatpush1.xpose.msra.mxu0 0.0
    %2520 = vmatprep.subr.mxu0 0.0
    %2521 = vmatpush1.xpose.msra.mxu0 0.0
    %2522 = vmatprep.subr.mxu0 0.0
    %2523 = vmatpush1.xpose.msra.mxu0 0.0
    %2524 = vmatprep.subr.mxu0 0.0
    %2525 = vmatpush1.xpose.msra.mxu0 0.0
    %2526 = vmatprep.subr.mxu0 0.0
    %2527 = vmatpush1.xpose.msra.mxu0 0.0
    %2528 = vmatprep.subr.mxu0 0.0
    %2529 = vmatpush1.xpose.msra.mxu0 0.0
    %2530 = vmatprep.subr.mxu0 0.0
    %2531 = vmatpush1.xpose.msra.mxu0 0.0
    %2532 = vmatprep.subr.mxu0 0.0
    %2533 = vmatpush1.xpose.msra.mxu0 0.0
    %2534 = vmatprep.subr.mxu0 0.0
    %2535 = vmatpush1.xpose.msra.mxu0 0.0
    %2536 = vmatprep.subr.mxu0 0.0
    %2537 = vmatpush1.xpose.msra.mxu0 0.0
    %2538 = vmatprep.subr.mxu0 0.0
    %2539 = vmatpush1.xpose.msra.mxu0 0.0
    %2540 = vmatprep.subr.mxu0 0.0
    %2541 = vmatpush1.xpose.msra.mxu0 0.0
    %2542 = vmatprep.subr.mxu0 0.0
    %2543 = vmatpush1.xpose.msra.mxu0 0.0
    %2544 = vmatprep.subr.mxu0 0.0
    %2545 = vmatpush1.xpose.msra.mxu0 0.0
    %2546 = vmatprep.subr.mxu0 0.0
    %2547 = vmatpush1.xpose.msra.mxu0 0.0
    %2548 = vmatprep.subr.mxu0 0.0
    %2549 = vmatpush1.xpose.msra.mxu0 0.0
    %2550 = vmatprep.subr.mxu0 0.0
    %2551 = vmatpush1.xpose.msra.mxu0 0.0
    %2552 = vmatprep.subr.mxu0 0.0
    %2553 = vmatpush1.xpose.msra.mxu0 0.0
    %2554 = vmatprep.subr.mxu0 0.0
    %2555 = vmatpush1.xpose.msra.mxu0 0.0
    %2556 = vmatprep.subr.mxu0 0.0
    %2557 = vmatpush1.xpose.msra.mxu0 0.0
    %2558 = vmatprep.subr.mxu0 0.0
    %2559 = vmatpush1.xpose.msra.mxu0 0.0
    %2560 = vmatprep.subr.mxu0 0.0
    %2561 = vmatpush1.xpose.msra.mxu0 0.0
    %2562 = vmatprep.subr.mxu0 0.0
    %2563 = vmatpush1.xpose.msra.mxu0 0.0
    %2564 = vmatprep.mubr.f32.mxu0 0.0
    %v2565 = vand.u32 %v2121, 4294901760
    %2566 = vmatmul.mubr.f32.gmra.mrb[0].mxu0 %v2565
    %v2567 = vpop.f32.mrb[0].mxu0
    %v2568 = vadd.f32 %v2496, %v2567
    %v2569 = vpop.f32.mrb[0].mxu0
    %2570 = vdwg.mxu0
    %2572 = vrot.lane.b32.xlu0 %v737, 96
    %v2573 = vpop.permute.xlu0 %2572
    %v2575 = vsel %vm757, %v753, 0
    %v2577 = vsel %vm757, %v2573, 0
    %2579 = vmatprep.subr.mxu0 0.0
    %v2580 = vand.u32 %v2577, 4294901760
    %2581 = vmatpush1.xpose.msra.mxu0 %v2580
    %2582 = vmatprep.subr.mxu0 0.0
    %2583 = vmatpush1.xpose.msra.mxu0 0.0
    %2584 = vmatprep.subr.mxu0 0.0
    %2585 = vmatpush1.xpose.msra.mxu0 0.0
    %2586 = vmatprep.subr.mxu0 0.0
    %2587 = vmatpush1.xpose.msra.mxu0 0.0
    %2588 = vmatprep.subr.mxu0 0.0
    %2589 = vmatpush1.xpose.msra.mxu0 0.0
    %2590 = vmatprep.subr.mxu0 0.0
    %2591 = vmatpush1.xpose.msra.mxu0 0.0
    %2592 = vmatprep.subr.mxu0 0.0
    %2593 = vmatpush1.xpose.msra.mxu0 0.0
    %2594 = vmatprep.subr.mxu0 0.0
    %2595 = vmatpush1.xpose.msra.mxu0 0.0
    %2596 = vmatprep.subr.mxu0 0.0
    %2597 = vmatpush1.xpose.msra.mxu0 0.0
    %2598 = vmatprep.subr.mxu0 0.0
    %2599 = vmatpush1.xpose.msra.mxu0 0.0
    %2600 = vmatprep.subr.mxu0 0.0
    %2601 = vmatpush1.xpose.msra.mxu0 0.0
    %2602 = vmatprep.subr.mxu0 0.0
    %2603 = vmatpush1.xpose.msra.mxu0 0.0
    %2604 = vmatprep.subr.mxu0 0.0
    %2605 = vmatpush1.xpose.msra.mxu0 0.0
    %2606 = vmatprep.subr.mxu0 0.0
    %2607 = vmatpush1.xpose.msra.mxu0 0.0
    %2608 = vmatprep.subr.mxu0 0.0
    %2609 = vmatpush1.xpose.msra.mxu0 0.0
    %2610 = vmatprep.subr.mxu0 0.0
    %2611 = vmatpush1.xpose.msra.mxu0 0.0
    %2612 = vmatprep.subr.mxu0 0.0
    %2613 = vmatpush1.xpose.msra.mxu0 0.0
    %2614 = vmatprep.subr.mxu0 0.0
    %2615 = vmatpush1.xpose.msra.mxu0 0.0
    %2616 = vmatprep.subr.mxu0 0.0
    %2617 = vmatpush1.xpose.msra.mxu0 0.0
    %2618 = vmatprep.subr.mxu0 0.0
    %2619 = vmatpush1.xpose.msra.mxu0 0.0
    %2620 = vmatprep.subr.mxu0 0.0
    %2621 = vmatpush1.xpose.msra.mxu0 0.0
    %2622 = vmatprep.subr.mxu0 0.0
    %2623 = vmatpush1.xpose.msra.mxu0 0.0
    %2624 = vmatprep.subr.mxu0 0.0
    %2625 = vmatpush1.xpose.msra.mxu0 0.0
    %2626 = vmatprep.subr.mxu0 0.0
    %2627 = vmatpush1.xpose.msra.mxu0 0.0
    %2628 = vmatprep.subr.mxu0 0.0
    %2629 = vmatpush1.xpose.msra.mxu0 0.0
    %2630 = vmatprep.subr.mxu0 0.0
    %2631 = vmatpush1.xpose.msra.mxu0 0.0
    %2632 = vmatprep.subr.mxu0 0.0
    %2633 = vmatpush1.xpose.msra.mxu0 0.0
    %2634 = vmatprep.subr.mxu0 0.0
    %2635 = vmatpush1.xpose.msra.mxu0 0.0
    %2636 = vmatprep.subr.mxu0 0.0
    %2637 = vmatpush1.xpose.msra.mxu0 0.0
    %2638 = vmatprep.subr.mxu0 0.0
    %2639 = vmatpush1.xpose.msra.mxu0 0.0
    %2640 = vmatprep.subr.mxu0 0.0
    %2641 = vmatpush1.xpose.msra.mxu0 0.0
    %2642 = vmatprep.subr.mxu0 0.0
    %2643 = vmatpush1.xpose.msra.mxu0 0.0
    %2644 = vmatprep.mubr.f32.mxu0 0.0
    %v2645 = vand.u32 %v2575, 4294901760
    %v2646 = vsub.f32 %v2575, %v2645
    %v2647 = vand.u32 %v2646, 4294901760
    %v2648 = vsub.f32 %v2646, %v2647
    %v2649 = vand.u32 %v2648, 4294901760
    %2650 = vmatmul.mubr.f32.gmra.mrb[0].mxu0 %v2649
    %v2651 = vpop.f32.mrb[0].mxu0
    %v2652 = vadd.f32 0.0, %v2651
    %v2653 = vpop.f32.mrb[0].mxu0
    %2654 = vdwg.mxu0
    %2655 = vmatprep.subr.mxu0 0.0
    %v2656 = vand.u32 %v2577, 4294901760
    %v2657 = vsub.f32 %v2577, %v2656
    %v2658 = vand.u32 %v2657, 4294901760
    %v2659 = vsub.f32 %v2657, %v2658
    %v2660 = vand.u32 %v2659, 4294901760
    %2661 = vmatpush1.xpose.msra.mxu0 %v2660
    %2662 = vmatprep.subr.mxu0 0.0
    %2663 = vmatpush1.xpose.msra.mxu0 0.0
    %2664 = vmatprep.subr.mxu0 0.0
    %2665 = vmatpush1.xpose.msra.mxu0 0.0
    %2666 = vmatprep.subr.mxu0 0.0
    %2667 = vmatpush1.xpose.msra.mxu0 0.0
    %2668 = vmatprep.subr.mxu0 0.0
    %2669 = vmatpush1.xpose.msra.mxu0 0.0
    %2670 = vmatprep.subr.mxu0 0.0
    %2671 = vmatpush1.xpose.msra.mxu0 0.0
    %2672 = vmatprep.subr.mxu0 0.0
    %2673 = vmatpush1.xpose.msra.mxu0 0.0
    %2674 = vmatprep.subr.mxu0 0.0
    %2675 = vmatpush1.xpose.msra.mxu0 0.0
    %2676 = vmatprep.subr.mxu0 0.0
    %2677 = vmatpush1.xpose.msra.mxu0 0.0
    %2678 = vmatprep.subr.mxu0 0.0
    %2679 = vmatpush1.xpose.msra.mxu0 0.0
    %2680 = vmatprep.subr.mxu0 0.0
    %2681 = vmatpush1.xpose.msra.mxu0 0.0
    %2682 = vmatprep.subr.mxu0 0.0
    %2683 = vmatpush1.xpose.msra.mxu0 0.0
    %2684 = vmatprep.subr.mxu0 0.0
    %2685 = vmatpush1.xpose.msra.mxu0 0.0
    %2686 = vmatprep.subr.mxu0 0.0
    %2687 = vmatpush1.xpose.msra.mxu0 0.0
    %2688 = vmatprep.subr.mxu0 0.0
    %2689 = vmatpush1.xpose.msra.mxu0 0.0
    %2690 = vmatprep.subr.mxu0 0.0
    %2691 = vmatpush1.xpose.msra.mxu0 0.0
    %2692 = vmatprep.subr.mxu0 0.0
    %2693 = vmatpush1.xpose.msra.mxu0 0.0
    %2694 = vmatprep.subr.mxu0 0.0
    %2695 = vmatpush1.xpose.msra.mxu0 0.0
    %2696 = vmatprep.subr.mxu0 0.0
    %2697 = vmatpush1.xpose.msra.mxu0 0.0
    %2698 = vmatprep.subr.mxu0 0.0
    %2699 = vmatpush1.xpose.msra.mxu0 0.0
    %2700 = vmatprep.subr.mxu0 0.0
    %2701 = vmatpush1.xpose.msra.mxu0 0.0
    %2702 = vmatprep.subr.mxu0 0.0
    %2703 = vmatpush1.xpose.msra.mxu0 0.0
    %2704 = vmatprep.subr.mxu0 0.0
    %2705 = vmatpush1.xpose.msra.mxu0 0.0
    %2706 = vmatprep.subr.mxu0 0.0
    %2707 = vmatpush1.xpose.msra.mxu0 0.0
    %2708 = vmatprep.subr.mxu0 0.0
    %2709 = vmatpush1.xpose.msra.mxu0 0.0
    %2710 = vmatprep.subr.mxu0 0.0
    %2711 = vmatpush1.xpose.msra.mxu0 0.0
    %2712 = vmatprep.subr.mxu0 0.0
    %2713 = vmatpush1.xpose.msra.mxu0 0.0
    %2714 = vmatprep.subr.mxu0 0.0
    %2715 = vmatpush1.xpose.msra.mxu0 0.0
    %2716 = vmatprep.subr.mxu0 0.0
    %2717 = vmatpush1.xpose.msra.mxu0 0.0
    %2718 = vmatprep.subr.mxu0 0.0
    %2719 = vmatpush1.xpose.msra.mxu0 0.0
    %2720 = vmatprep.subr.mxu0 0.0
    %2721 = vmatpush1.xpose.msra.mxu0 0.0
    %2722 = vmatprep.subr.mxu0 0.0
    %2723 = vmatpush1.xpose.msra.mxu0 0.0
    %2724 = vmatprep.mubr.f32.mxu0 0.0
    %v2725 = vand.u32 %v2575, 4294901760
    %2726 = vmatmul.mubr.f32.gmra.mrb[0].mxu0 %v2725
    %v2727 = vpop.f32.mrb[0].mxu0
    %v2728 = vadd.f32 %v2652, %v2727
    %v2729 = vpop.f32.mrb[0].mxu0
    %2730 = vdwg.mxu0
    %2731 = vmatprep.subr.mxu0 0.0
    %v2732 = vand.u32 %v2577, 4294901760
    %v2733 = vsub.f32 %v2577, %v2732
    %2734 = vmatpush1.xpose.msra.mxu0 %v2733
    %2735 = vmatprep.subr.mxu0 0.0
    %2736 = vmatpush1.xpose.msra.mxu0 0.0
    %2737 = vmatprep.subr.mxu0 0.0
    %2738 = vmatpush1.xpose.msra.mxu0 0.0
    %2739 = vmatprep.subr.mxu0 0.0
    %2740 = vmatpush1.xpose.msra.mxu0 0.0
    %2741 = vmatprep.subr.mxu0 0.0
    %2742 = vmatpush1.xpose.msra.mxu0 0.0
    %2743 = vmatprep.subr.mxu0 0.0
    %2744 = vmatpush1.xpose.msra.mxu0 0.0
    %2745 = vmatprep.subr.mxu0 0.0
    %2746 = vmatpush1.xpose.msra.mxu0 0.0
    %2747 = vmatprep.subr.mxu0 0.0
    %2748 = vmatpush1.xpose.msra.mxu0 0.0
    %2749 = vmatprep.subr.mxu0 0.0
    %2750 = vmatpush1.xpose.msra.mxu0 0.0
    %2751 = vmatprep.subr.mxu0 0.0
    %2752 = vmatpush1.xpose.msra.mxu0 0.0
    %2753 = vmatprep.subr.mxu0 0.0
    %2754 = vmatpush1.xpose.msra.mxu0 0.0
    %2755 = vmatprep.subr.mxu0 0.0
    %2756 = vmatpush1.xpose.msra.mxu0 0.0
    %2757 = vmatprep.subr.mxu0 0.0
    %2758 = vmatpush1.xpose.msra.mxu0 0.0
    %2759 = vmatprep.subr.mxu0 0.0
    %2760 = vmatpush1.xpose.msra.mxu0 0.0
    %2761 = vmatprep.subr.mxu0 0.0
    %2762 = vmatpush1.xpose.msra.mxu0 0.0
    %2763 = vmatprep.subr.mxu0 0.0
    %2764 = vmatpush1.xpose.msra.mxu0 0.0
    %2765 = vmatprep.subr.mxu0 0.0
    %2766 = vmatpush1.xpose.msra.mxu0 0.0
    %2767 = vmatprep.subr.mxu0 0.0
    %2768 = vmatpush1.xpose.msra.mxu0 0.0
    %2769 = vmatprep.subr.mxu0 0.0
    %2770 = vmatpush1.xpose.msra.mxu0 0.0
    %2771 = vmatprep.subr.mxu0 0.0
    %2772 = vmatpush1.xpose.msra.mxu0 0.0
    %2773 = vmatprep.subr.mxu0 0.0
    %2774 = vmatpush1.xpose.msra.mxu0 0.0
    %2775 = vmatprep.subr.mxu0 0.0
    %2776 = vmatpush1.xpose.msra.mxu0 0.0
    %2777 = vmatprep.subr.mxu0 0.0
    %2778 = vmatpush1.xpose.msra.mxu0 0.0
    %2779 = vmatprep.subr.mxu0 0.0
    %2780 = vmatpush1.xpose.msra.mxu0 0.0
    %2781 = vmatprep.subr.mxu0 0.0
    %2782 = vmatpush1.xpose.msra.mxu0 0.0
    %2783 = vmatprep.subr.mxu0 0.0
    %2784 = vmatpush1.xpose.msra.mxu0 0.0
    %2785 = vmatprep.subr.mxu0 0.0
    %2786 = vmatpush1.xpose.msra.mxu0 0.0
    %2787 = vmatprep.subr.mxu0 0.0
    %2788 = vmatpush1.xpose.msra.mxu0 0.0
    %2789 = vmatprep.subr.mxu0 0.0
    %2790 = vmatpush1.xpose.msra.mxu0 0.0
    %2791 = vmatprep.subr.mxu0 0.0
    %2792 = vmatpush1.xpose.msra.mxu0 0.0
    %2793 = vmatprep.subr.mxu0 0.0
    %2794 = vmatpush1.xpose.msra.mxu0 0.0
    %2795 = vmatprep.subr.mxu0 0.0
    %2796 = vmatpush1.xpose.msra.mxu0 0.0
    %2797 = vmatprep.mubr.f32.mxu0 0.0
    %v2798 = vand.u32 %v2575, 4294901760
    %v2799 = vsub.f32 %v2575, %v2798
    %2800 = vmatmul.mubr.f32.gmra.mrb[0].mxu0 %v2799
    %v2801 = vpop.f32.mrb[0].mxu0
    %v2802 = vadd.f32 %v2728, %v2801
    %v2803 = vpop.f32.mrb[0].mxu0
    %2804 = vdwg.mxu0
    %2805 = vmatprep.subr.mxu0 0.0
    %v2806 = vand.u32 %v2577, 4294901760
    %2807 = vmatpush1.xpose.msra.mxu0 %v2806
    %2808 = vmatprep.subr.mxu0 0.0
    %2809 = vmatpush1.xpose.msra.mxu0 0.0
    %2810 = vmatprep.subr.mxu0 0.0
    %2811 = vmatpush1.xpose.msra.mxu0 0.0
    %2812 = vmatprep.subr.mxu0 0.0
    %2813 = vmatpush1.xpose.msra.mxu0 0.0
    %2814 = vmatprep.subr.mxu0 0.0
    %2815 = vmatpush1.xpose.msra.mxu0 0.0
    %2816 = vmatprep.subr.mxu0 0.0
    %2817 = vmatpush1.xpose.msra.mxu0 0.0
    %2818 = vmatprep.subr.mxu0 0.0
    %2819 = vmatpush1.xpose.msra.mxu0 0.0
    %2820 = vmatprep.subr.mxu0 0.0
    %2821 = vmatpush1.xpose.msra.mxu0 0.0
    %2822 = vmatprep.subr.mxu0 0.0
    %2823 = vmatpush1.xpose.msra.mxu0 0.0
    %2824 = vmatprep.subr.mxu0 0.0
    %2825 = vmatpush1.xpose.msra.mxu0 0.0
    %2826 = vmatprep.subr.mxu0 0.0
    %2827 = vmatpush1.xpose.msra.mxu0 0.0
    %2828 = vmatprep.subr.mxu0 0.0
    %2829 = vmatpush1.xpose.msra.mxu0 0.0
    %2830 = vmatprep.subr.mxu0 0.0
    %2831 = vmatpush1.xpose.msra.mxu0 0.0
    %2832 = vmatprep.subr.mxu0 0.0
    %2833 = vmatpush1.xpose.msra.mxu0 0.0
    %2834 = vmatprep.subr.mxu0 0.0
    %2835 = vmatpush1.xpose.msra.mxu0 0.0
    %2836 = vmatprep.subr.mxu0 0.0
    %2837 = vmatpush1.xpose.msra.mxu0 0.0
    %2838 = vmatprep.subr.mxu0 0.0
    %2839 = vmatpush1.xpose.msra.mxu0 0.0
    %2840 = vmatprep.subr.mxu0 0.0
    %2841 = vmatpush1.xpose.msra.mxu0 0.0
    %2842 = vmatprep.subr.mxu0 0.0
    %2843 = vmatpush1.xpose.msra.mxu0 0.0
    %2844 = vmatprep.subr.mxu0 0.0
    %2845 = vmatpush1.xpose.msra.mxu0 0.0
    %2846 = vmatprep.subr.mxu0 0.0
    %2847 = vmatpush1.xpose.msra.mxu0 0.0
    %2848 = vmatprep.subr.mxu0 0.0
    %2849 = vmatpush1.xpose.msra.mxu0 0.0
    %2850 = vmatprep.subr.mxu0 0.0
    %2851 = vmatpush1.xpose.msra.mxu0 0.0
    %2852 = vmatprep.subr.mxu0 0.0
    %2853 = vmatpush1.xpose.msra.mxu0 0.0
    %2854 = vmatprep.subr.mxu0 0.0
    %2855 = vmatpush1.xpose.msra.mxu0 0.0
    %2856 = vmatprep.subr.mxu0 0.0
    %2857 = vmatpush1.xpose.msra.mxu0 0.0
    %2858 = vmatprep.subr.mxu0 0.0
    %2859 = vmatpush1.xpose.msra.mxu0 0.0
    %2860 = vmatprep.subr.mxu0 0.0
    %2861 = vmatpush1.xpose.msra.mxu0 0.0
    %2862 = vmatprep.subr.mxu0 0.0
    %2863 = vmatpush1.xpose.msra.mxu0 0.0
    %2864 = vmatprep.subr.mxu0 0.0
    %2865 = vmatpush1.xpose.msra.mxu0 0.0
    %2866 = vmatprep.subr.mxu0 0.0
    %2867 = vmatpush1.xpose.msra.mxu0 0.0
    %2868 = vmatprep.subr.mxu0 0.0
    %2869 = vmatpush1.xpose.msra.mxu0 0.0
    %2870 = vmatprep.mubr.f32.mxu0 0.0
    %v2871 = vand.u32 %v2575, 4294901760
    %v2872 = vsub.f32 %v2575, %v2871
    %v2873 = vand.u32 %v2872, 4294901760
    %2874 = vmatmul.mubr.f32.gmra.mrb[0].mxu0 %v2873
    %v2875 = vpop.f32.mrb[0].mxu0
    %v2876 = vadd.f32 %v2802, %v2875
    %v2877 = vpop.f32.mrb[0].mxu0
    %2878 = vdwg.mxu0
    %2879 = vmatprep.subr.mxu0 0.0
    %v2880 = vand.u32 %v2577, 4294901760
    %v2881 = vsub.f32 %v2577, %v2880
    %v2882 = vand.u32 %v2881, 4294901760
    %2883 = vmatpush1.xpose.msra.mxu0 %v2882
    %2884 = vmatprep.subr.mxu0 0.0
    %2885 = vmatpush1.xpose.msra.mxu0 0.0
    %2886 = vmatprep.subr.mxu0 0.0
    %2887 = vmatpush1.xpose.msra.mxu0 0.0
    %2888 = vmatprep.subr.mxu0 0.0
    %2889 = vmatpush1.xpose.msra.mxu0 0.0
    %2890 = vmatprep.subr.mxu0 0.0
    %2891 = vmatpush1.xpose.msra.mxu0 0.0
    %2892 = vmatprep.subr.mxu0 0.0
    %2893 = vmatpush1.xpose.msra.mxu0 0.0
    %2894 = vmatprep.subr.mxu0 0.0
    %2895 = vmatpush1.xpose.msra.mxu0 0.0
    %2896 = vmatprep.subr.mxu0 0.0
    %2897 = vmatpush1.xpose.msra.mxu0 0.0
    %2898 = vmatprep.subr.mxu0 0.0
    %2899 = vmatpush1.xpose.msra.mxu0 0.0
    %2900 = vmatprep.subr.mxu0 0.0
    %2901 = vmatpush1.xpose.msra.mxu0 0.0
    %2902 = vmatprep.subr.mxu0 0.0
    %2903 = vmatpush1.xpose.msra.mxu0 0.0
    %2904 = vmatprep.subr.mxu0 0.0
    %2905 = vmatpush1.xpose.msra.mxu0 0.0
    %2906 = vmatprep.subr.mxu0 0.0
    %2907 = vmatpush1.xpose.msra.mxu0 0.0
    %2908 = vmatprep.subr.mxu0 0.0
    %2909 = vmatpush1.xpose.msra.mxu0 0.0
    %2910 = vmatprep.subr.mxu0 0.0
    %2911 = vmatpush1.xpose.msra.mxu0 0.0
    %2912 = vmatprep.subr.mxu0 0.0
    %2913 = vmatpush1.xpose.msra.mxu0 0.0
    %2914 = vmatprep.subr.mxu0 0.0
    %2915 = vmatpush1.xpose.msra.mxu0 0.0
    %2916 = vmatprep.subr.mxu0 0.0
    %2917 = vmatpush1.xpose.msra.mxu0 0.0
    %2918 = vmatprep.subr.mxu0 0.0
    %2919 = vmatpush1.xpose.msra.mxu0 0.0
    %2920 = vmatprep.subr.mxu0 0.0
    %2921 = vmatpush1.xpose.msra.mxu0 0.0
    %2922 = vmatprep.subr.mxu0 0.0
    %2923 = vmatpush1.xpose.msra.mxu0 0.0
    %2924 = vmatprep.subr.mxu0 0.0
    %2925 = vmatpush1.xpose.msra.mxu0 0.0
    %2926 = vmatprep.subr.mxu0 0.0
    %2927 = vmatpush1.xpose.msra.mxu0 0.0
    %2928 = vmatprep.subr.mxu0 0.0
    %2929 = vmatpush1.xpose.msra.mxu0 0.0
    %2930 = vmatprep.subr.mxu0 0.0
    %2931 = vmatpush1.xpose.msra.mxu0 0.0
    %2932 = vmatprep.subr.mxu0 0.0
    %2933 = vmatpush1.xpose.msra.mxu0 0.0
    %2934 = vmatprep.subr.mxu0 0.0
    %2935 = vmatpush1.xpose.msra.mxu0 0.0
    %2936 = vmatprep.subr.mxu0 0.0
    %2937 = vmatpush1.xpose.msra.mxu0 0.0
    %2938 = vmatprep.subr.mxu0 0.0
    %2939 = vmatpush1.xpose.msra.mxu0 0.0
    %2940 = vmatprep.subr.mxu0 0.0
    %2941 = vmatpush1.xpose.msra.mxu0 0.0
    %2942 = vmatprep.subr.mxu0 0.0
    %2943 = vmatpush1.xpose.msra.mxu0 0.0
    %2944 = vmatprep.subr.mxu0 0.0
    %2945 = vmatpush1.xpose.msra.mxu0 0.0
    %2946 = vmatprep.mubr.f32.mxu0 0.0
    %v2947 = vand.u32 %v2575, 4294901760
    %2948 = vmatmul.mubr.f32.gmra.mrb[0].mxu0 %v2947
    %v2949 = vpop.f32.mrb[0].mxu0
    %v2950 = vadd.f32 %v2876, %v2949
    %v2951 = vpop.f32.mrb[0].mxu0
    %2952 = vdwg.mxu0
    %2953 = vmatprep.subr.mxu0 0.0
    %v2954 = vand.u32 %v2577, 4294901760
    %2955 = vmatpush1.xpose.msra.mxu0 %v2954
    %2956 = vmatprep.subr.mxu0 0.0
    %2957 = vmatpush1.xpose.msra.mxu0 0.0
    %2958 = vmatprep.subr.mxu0 0.0
    %2959 = vmatpush1.xpose.msra.mxu0 0.0
    %2960 = vmatprep.subr.mxu0 0.0
    %2961 = vmatpush1.xpose.msra.mxu0 0.0
    %2962 = vmatprep.subr.mxu0 0.0
    %2963 = vmatpush1.xpose.msra.mxu0 0.0
    %2964 = vmatprep.subr.mxu0 0.0
    %2965 = vmatpush1.xpose.msra.mxu0 0.0
    %2966 = vmatprep.subr.mxu0 0.0
    %2967 = vmatpush1.xpose.msra.mxu0 0.0
    %2968 = vmatprep.subr.mxu0 0.0
    %2969 = vmatpush1.xpose.msra.mxu0 0.0
    %2970 = vmatprep.subr.mxu0 0.0
    %2971 = vmatpush1.xpose.msra.mxu0 0.0
    %2972 = vmatprep.subr.mxu0 0.0
    %2973 = vmatpush1.xpose.msra.mxu0 0.0
    %2974 = vmatprep.subr.mxu0 0.0
    %2975 = vmatpush1.xpose.msra.mxu0 0.0
    %2976 = vmatprep.subr.mxu0 0.0
    %2977 = vmatpush1.xpose.msra.mxu0 0.0
    %2978 = vmatprep.subr.mxu0 0.0
    %2979 = vmatpush1.xpose.msra.mxu0 0.0
    %2980 = vmatprep.subr.mxu0 0.0
    %2981 = vmatpush1.xpose.msra.mxu0 0.0
    %2982 = vmatprep.subr.mxu0 0.0
    %2983 = vmatpush1.xpose.msra.mxu0 0.0
    %2984 = vmatprep.subr.mxu0 0.0
    %2985 = vmatpush1.xpose.msra.mxu0 0.0
    %2986 = vmatprep.subr.mxu0 0.0
    %2987 = vmatpush1.xpose.msra.mxu0 0.0
    %2988 = vmatprep.subr.mxu0 0.0
    %2989 = vmatpush1.xpose.msra.mxu0 0.0
    %2990 = vmatprep.subr.mxu0 0.0
    %2991 = vmatpush1.xpose.msra.mxu0 0.0
    %2992 = vmatprep.subr.mxu0 0.0
    %2993 = vmatpush1.xpose.msra.mxu0 0.0
    %2994 = vmatprep.subr.mxu0 0.0
    %2995 = vmatpush1.xpose.msra.mxu0 0.0
    %2996 = vmatprep.subr.mxu0 0.0
    %2997 = vmatpush1.xpose.msra.mxu0 0.0
    %2998 = vmatprep.subr.mxu0 0.0
    %2999 = vmatpush1.xpose.msra.mxu0 0.0
    %3000 = vmatprep.subr.mxu0 0.0
    %3001 = vmatpush1.xpose.msra.mxu0 0.0
    %3002 = vmatprep.subr.mxu0 0.0
    %3003 = vmatpush1.xpose.msra.mxu0 0.0
    %3004 = vmatprep.subr.mxu0 0.0
    %3005 = vmatpush1.xpose.msra.mxu0 0.0
    %3006 = vmatprep.subr.mxu0 0.0
    %3007 = vmatpush1.xpose.msra.mxu0 0.0
    %3008 = vmatprep.subr.mxu0 0.0
    %3009 = vmatpush1.xpose.msra.mxu0 0.0
    %3010 = vmatprep.subr.mxu0 0.0
    %3011 = vmatpush1.xpose.msra.mxu0 0.0
    %3012 = vmatprep.subr.mxu0 0.0
    %3013 = vmatpush1.xpose.msra.mxu0 0.0
    %3014 = vmatprep.subr.mxu0 0.0
    %3015 = vmatpush1.xpose.msra.mxu0 0.0
    %3016 = vmatprep.subr.mxu0 0.0
    %3017 = vmatpush1.xpose.msra.mxu0 0.0
    %3018 = vmatprep.mubr.f32.mxu0 0.0
    %v3019 = vand.u32 %v2575, 4294901760
    %3020 = vmatmul.mubr.f32.gmra.mrb[0].mxu0 %v3019
    %v3021 = vpop.f32.mrb[0].mxu0
    %v3022 = vadd.f32 %v2950, %v3021
    %v3023 = vpop.f32.mrb[0].mxu0
    %3024 = vdwg.mxu0
    %3025 = vrot.lane.b32.xlu0 %v753, 120
    %v3026 = vpop.permute.xlu0 %3025
    %3027 = vrot.lane.b32.xlu0 %v737, 88
    %v3028 = vpop.permute.xlu0 %3027
    %v3029 = vsel %vm757, %v3026, 0
    %v3031 = vsel %vm757, %v3028, 0
    %3033 = vmatprep.subr.mxu0 0.0
    %v3034 = vand.u32 %v3031, 4294901760
    %3035 = vmatpush1.xpose.msra.mxu0 %v3034
    %3036 = vmatprep.subr.mxu0 0.0
    %3037 = vmatpush1.xpose.msra.mxu0 0.0
    %3038 = vmatprep.subr.mxu0 0.0
    %3039 = vmatpush1.xpose.msra.mxu0 0.0
    %3040 = vmatprep.subr.mxu0 0.0
    %3041 = vmatpush1.xpose.msra.mxu0 0.0
    %3042 = vmatprep.subr.mxu0 0.0
    %3043 = vmatpush1.xpose.msra.mxu0 0.0
    %3044 = vmatprep.subr.mxu0 0.0
    %3045 = vmatpush1.xpose.msra.mxu0 0.0
    %3046 = vmatprep.subr.mxu0 0.0
    %3047 = vmatpush1.xpose.msra.mxu0 0.0
    %3048 = vmatprep.subr.mxu0 0.0
    %3049 = vmatpush1.xpose.msra.mxu0 0.0
    %3050 = vmatprep.subr.mxu0 0.0
    %3051 = vmatpush1.xpose.msra.mxu0 0.0
    %3052 = vmatprep.subr.mxu0 0.0
    %3053 = vmatpush1.xpose.msra.mxu0 0.0
    %3054 = vmatprep.subr.mxu0 0.0
    %3055 = vmatpush1.xpose.msra.mxu0 0.0
    %3056 = vmatprep.subr.mxu0 0.0
    %3057 = vmatpush1.xpose.msra.mxu0 0.0
    %3058 = vmatprep.subr.mxu0 0.0
    %3059 = vmatpush1.xpose.msra.mxu0 0.0
    %3060 = vmatprep.subr.mxu0 0.0
    %3061 = vmatpush1.xpose.msra.mxu0 0.0
    %3062 = vmatprep.subr.mxu0 0.0
    %3063 = vmatpush1.xpose.msra.mxu0 0.0
    %3064 = vmatprep.subr.mxu0 0.0
    %3065 = vmatpush1.xpose.msra.mxu0 0.0
    %3066 = vmatprep.subr.mxu0 0.0
    %3067 = vmatpush1.xpose.msra.mxu0 0.0
    %3068 = vmatprep.subr.mxu0 0.0
    %3069 = vmatpush1.xpose.msra.mxu0 0.0
    %3070 = vmatprep.subr.mxu0 0.0
    %3071 = vmatpush1.xpose.msra.mxu0 0.0
    %3072 = vmatprep.subr.mxu0 0.0
    %3073 = vmatpush1.xpose.msra.mxu0 0.0
    %3074 = vmatprep.subr.mxu0 0.0
    %3075 = vmatpush1.xpose.msra.mxu0 0.0
    %3076 = vmatprep.subr.mxu0 0.0
    %3077 = vmatpush1.xpose.msra.mxu0 0.0
    %3078 = vmatprep.subr.mxu0 0.0
    %3079 = vmatpush1.xpose.msra.mxu0 0.0
    %3080 = vmatprep.subr.mxu0 0.0
    %3081 = vmatpush1.xpose.msra.mxu0 0.0
    %3082 = vmatprep.subr.mxu0 0.0
    %3083 = vmatpush1.xpose.msra.mxu0 0.0
    %3084 = vmatprep.subr.mxu0 0.0
    %3085 = vmatpush1.xpose.msra.mxu0 0.0
    %3086 = vmatprep.subr.mxu0 0.0
    %3087 = vmatpush1.xpose.msra.mxu0 0.0
    %3088 = vmatprep.subr.mxu0 0.0
    %3089 = vmatpush1.xpose.msra.mxu0 0.0
    %3090 = vmatprep.subr.mxu0 0.0
    %3091 = vmatpush1.xpose.msra.mxu0 0.0
    %3092 = vmatprep.subr.mxu0 0.0
    %3093 = vmatpush1.xpose.msra.mxu0 0.0
    %3094 = vmatprep.subr.mxu0 0.0
    %3095 = vmatpush1.xpose.msra.mxu0 0.0
    %3096 = vmatprep.subr.mxu0 0.0
    %3097 = vmatpush1.xpose.msra.mxu0 0.0
    %3098 = vmatprep.mubr.f32.mxu0 0.0
    %v3099 = vand.u32 %v3029, 4294901760
    %v3100 = vsub.f32 %v3029, %v3099
    %v3101 = vand.u32 %v3100, 4294901760
    %v3102 = vsub.f32 %v3100, %v3101
    %v3103 = vand.u32 %v3102, 4294901760
    %3104 = vmatmul.mubr.f32.gmra.mrb[0].mxu0 %v3103
    %v3105 = vpop.f32.mrb[0].mxu0
    %v3106 = vadd.f32 0.0, %v3105
    %v3107 = vpop.f32.mrb[0].mxu0
    %3108 = vdwg.mxu0
    %3109 = vmatprep.subr.mxu0 0.0
    %v3110 = vand.u32 %v3031, 4294901760
    %v3111 = vsub.f32 %v3031, %v3110
    %v3112 = vand.u32 %v3111, 4294901760
    %v3113 = vsub.f32 %v3111, %v3112
    %v3114 = vand.u32 %v3113, 4294901760
    %3115 = vmatpush1.xpose.msra.mxu0 %v3114
    %3116 = vmatprep.subr.mxu0 0.0
    %3117 = vmatpush1.xpose.msra.mxu0 0.0
    %3118 = vmatprep.subr.mxu0 0.0
    %3119 = vmatpush1.xpose.msra.mxu0 0.0
    %3120 = vmatprep.subr.mxu0 0.0
    %3121 = vmatpush1.xpose.msra.mxu0 0.0
    %3122 = vmatprep.subr.mxu0 0.0
    %3123 = vmatpush1.xpose.msra.mxu0 0.0
    %3124 = vmatprep.subr.mxu0 0.0
    %3125 = vmatpush1.xpose.msra.mxu0 0.0
    %3126 = vmatprep.subr.mxu0 0.0
    %3127 = vmatpush1.xpose.msra.mxu0 0.0
    %3128 = vmatprep.subr.mxu0 0.0
    %3129 = vmatpush1.xpose.msra.mxu0 0.0
    %3130 = vmatprep.subr.mxu0 0.0
    %3131 = vmatpush1.xpose.msra.mxu0 0.0
    %3132 = vmatprep.subr.mxu0 0.0
    %3133 = vmatpush1.xpose.msra.mxu0 0.0
    %3134 = vmatprep.subr.mxu0 0.0
    %3135 = vmatpush1.xpose.msra.mxu0 0.0
    %3136 = vmatprep.subr.mxu0 0.0
    %3137 = vmatpush1.xpose.msra.mxu0 0.0
    %3138 = vmatprep.subr.mxu0 0.0
    %3139 = vmatpush1.xpose.msra.mxu0 0.0
    %3140 = vmatprep.subr.mxu0 0.0
    %3141 = vmatpush1.xpose.msra.mxu0 0.0
    %3142 = vmatprep.subr.mxu0 0.0
    %3143 = vmatpush1.xpose.msra.mxu0 0.0
    %3144 = vmatprep.subr.mxu0 0.0
    %3145 = vmatpush1.xpose.msra.mxu0 0.0
    %3146 = vmatprep.subr.mxu0 0.0
    %3147 = vmatpush1.xpose.msra.mxu0 0.0
    %3148 = vmatprep.subr.mxu0 0.0
    %3149 = vmatpush1.xpose.msra.mxu0 0.0
    %3150 = vmatprep.subr.mxu0 0.0
    %3151 = vmatpush1.xpose.msra.mxu0 0.0
    %3152 = vmatprep.subr.mxu0 0.0
    %3153 = vmatpush1.xpose.msra.mxu0 0.0
    %3154 = vmatprep.subr.mxu0 0.0
    %3155 = vmatpush1.xpose.msra.mxu0 0.0
    %3156 = vmatprep.subr.mxu0 0.0
    %3157 = vmatpush1.xpose.msra.mxu0 0.0
    %3158 = vmatprep.subr.mxu0 0.0
    %3159 = vmatpush1.xpose.msra.mxu0 0.0
    %3160 = vmatprep.subr.mxu0 0.0
    %3161 = vmatpush1.xpose.msra.mxu0 0.0
    %3162 = vmatprep.subr.mxu0 0.0
    %3163 = vmatpush1.xpose.msra.mxu0 0.0
    %3164 = vmatprep.subr.mxu0 0.0
    %3165 = vmatpush1.xpose.msra.mxu0 0.0
    %3166 = vmatprep.subr.mxu0 0.0
    %3167 = vmatpush1.xpose.msra.mxu0 0.0
    %3168 = vmatprep.subr.mxu0 0.0
    %3169 = vmatpush1.xpose.msra.mxu0 0.0
    %3170 = vmatprep.subr.mxu0 0.0
    %3171 = vmatpush1.xpose.msra.mxu0 0.0
    %3172 = vmatprep.subr.mxu0 0.0
    %3173 = vmatpush1.xpose.msra.mxu0 0.0
    %3174 = vmatprep.subr.mxu0 0.0
    %3175 = vmatpush1.xpose.msra.mxu0 0.0
    %3176 = vmatprep.subr.mxu0 0.0
    %3177 = vmatpush1.xpose.msra.mxu0 0.0
    %3178 = vmatprep.mubr.f32.mxu0 0.0
    %v3179 = vand.u32 %v3029, 4294901760
    %3180 = vmatmul.mubr.f32.gmra.mrb[0].mxu0 %v3179
    %v3181 = vpop.f32.mrb[0].mxu0
    %v3182 = vadd.f32 %v3106, %v3181
    %v3183 = vpop.f32.mrb[0].mxu0
    %3184 = vdwg.mxu0
    %3185 = vmatprep.subr.mxu0 0.0
    %v3186 = vand.u32 %v3031, 4294901760
    %v3187 = vsub.f32 %v3031, %v3186
    %3188 = vmatpush1.xpose.msra.mxu0 %v3187
    %3189 = vmatprep.subr.mxu0 0.0
    %3190 = vmatpush1.xpose.msra.mxu0 0.0
    %3191 = vmatprep.subr.mxu0 0.0
    %3192 = vmatpush1.xpose.msra.mxu0 0.0
    %3193 = vmatprep.subr.mxu0 0.0
    %3194 = vmatpush1.xpose.msra.mxu0 0.0
    %3195 = vmatprep.subr.mxu0 0.0
    %3196 = vmatpush1.xpose.msra.mxu0 0.0
    %3197 = vmatprep.subr.mxu0 0.0
    %3198 = vmatpush1.xpose.msra.mxu0 0.0
    %3199 = vmatprep.subr.mxu0 0.0
    %3200 = vmatpush1.xpose.msra.mxu0 0.0
    %3201 = vmatprep.subr.mxu0 0.0
    %3202 = vmatpush1.xpose.msra.mxu0 0.0
    %3203 = vmatprep.subr.mxu0 0.0
    %3204 = vmatpush1.xpose.msra.mxu0 0.0
    %3205 = vmatprep.subr.mxu0 0.0
    %3206 = vmatpush1.xpose.msra.mxu0 0.0
    %3207 = vmatprep.subr.mxu0 0.0
    %3208 = vmatpush1.xpose.msra.mxu0 0.0
    %3209 = vmatprep.subr.mxu0 0.0
    %3210 = vmatpush1.xpose.msra.mxu0 0.0
    %3211 = vmatprep.subr.mxu0 0.0
    %3212 = vmatpush1.xpose.msra.mxu0 0.0
    %3213 = vmatprep.subr.mxu0 0.0
    %3214 = vmatpush1.xpose.msra.mxu0 0.0
    %3215 = vmatprep.subr.mxu0 0.0
    %3216 = vmatpush1.xpose.msra.mxu0 0.0
    %3217 = vmatprep.subr.mxu0 0.0
    %3218 = vmatpush1.xpose.msra.mxu0 0.0
    %3219 = vmatprep.subr.mxu0 0.0
    %3220 = vmatpush1.xpose.msra.mxu0 0.0
    %3221 = vmatprep.subr.mxu0 0.0
    %3222 = vmatpush1.xpose.msra.mxu0 0.0
    %3223 = vmatprep.subr.mxu0 0.0
    %3224 = vmatpush1.xpose.msra.mxu0 0.0
    %3225 = vmatprep.subr.mxu0 0.0
    %3226 = vmatpush1.xpose.msra.mxu0 0.0
    %3227 = vmatprep.subr.mxu0 0.0
    %3228 = vmatpush1.xpose.msra.mxu0 0.0
    %3229 = vmatprep.subr.mxu0 0.0
    %3230 = vmatpush1.xpose.msra.mxu0 0.0
    %3231 = vmatprep.subr.mxu0 0.0
    %3232 = vmatpush1.xpose.msra.mxu0 0.0
    %3233 = vmatprep.subr.mxu0 0.0
    %3234 = vmatpush1.xpose.msra.mxu0 0.0
    %3235 = vmatprep.subr.mxu0 0.0
    %3236 = vmatpush1.xpose.msra.mxu0 0.0
    %3237 = vmatprep.subr.mxu0 0.0
    %3238 = vmatpush1.xpose.msra.mxu0 0.0
    %3239 = vmatprep.subr.mxu0 0.0
    %3240 = vmatpush1.xpose.msra.mxu0 0.0
    %3241 = vmatprep.subr.mxu0 0.0
    %3242 = vmatpush1.xpose.msra.mxu0 0.0
    %3243 = vmatprep.subr.mxu0 0.0
    %3244 = vmatpush1.xpose.msra.mxu0 0.0
    %3245 = vmatprep.subr.mxu0 0.0
    %3246 = vmatpush1.xpose.msra.mxu0 0.0
    %3247 = vmatprep.subr.mxu0 0.0
    %3248 = vmatpush1.xpose.msra.mxu0 0.0
    %3249 = vmatprep.subr.mxu0 0.0
    %3250 = vmatpush1.xpose.msra.mxu0 0.0
    %3251 = vmatprep.mubr.f32.mxu0 0.0
    %v3252 = vand.u32 %v3029, 4294901760
    %v3253 = vsub.f32 %v3029, %v3252
    %3254 = vmatmul.mubr.f32.gmra.mrb[0].mxu0 %v3253
    %v3255 = vpop.f32.mrb[0].mxu0
    %v3256 = vadd.f32 %v3182, %v3255
    %v3257 = vpop.f32.mrb[0].mxu0
    %3258 = vdwg.mxu0
    %3259 = vmatprep.subr.mxu0 0.0
    %v3260 = vand.u32 %v3031, 4294901760
    %3261 = vmatpush1.xpose.msra.mxu0 %v3260
    %3262 = vmatprep.subr.mxu0 0.0
    %3263 = vmatpush1.xpose.msra.mxu0 0.0
    %3264 = vmatprep.subr.mxu0 0.0
    %3265 = vmatpush1.xpose.msra.mxu0 0.0
    %3266 = vmatprep.subr.mxu0 0.0
    %3267 = vmatpush1.xpose.msra.mxu0 0.0
    %3268 = vmatprep.subr.mxu0 0.0
    %3269 = vmatpush1.xpose.msra.mxu0 0.0
    %3270 = vmatprep.subr.mxu0 0.0
    %3271 = vmatpush1.xpose.msra.mxu0 0.0
    %3272 = vmatprep.subr.mxu0 0.0
    %3273 = vmatpush1.xpose.msra.mxu0 0.0
    %3274 = vmatprep.subr.mxu0 0.0
    %3275 = vmatpush1.xpose.msra.mxu0 0.0
    %3276 = vmatprep.subr.mxu0 0.0
    %3277 = vmatpush1.xpose.msra.mxu0 0.0
    %3278 = vmatprep.subr.mxu0 0.0
    %3279 = vmatpush1.xpose.msra.mxu0 0.0
    %3280 = vmatprep.subr.mxu0 0.0
    %3281 = vmatpush1.xpose.msra.mxu0 0.0
    %3282 = vmatprep.subr.mxu0 0.0
    %3283 = vmatpush1.xpose.msra.mxu0 0.0
    %3284 = vmatprep.subr.mxu0 0.0
    %3285 = vmatpush1.xpose.msra.mxu0 0.0
    %3286 = vmatprep.subr.mxu0 0.0
    %3287 = vmatpush1.xpose.msra.mxu0 0.0
    %3288 = vmatprep.subr.mxu0 0.0
    %3289 = vmatpush1.xpose.msra.mxu0 0.0
    %3290 = vmatprep.subr.mxu0 0.0
    %3291 = vmatpush1.xpose.msra.mxu0 0.0
    %3292 = vmatprep.subr.mxu0 0.0
    %3293 = vmatpush1.xpose.msra.mxu0 0.0
    %3294 = vmatprep.subr.mxu0 0.0
    %3295 = vmatpush1.xpose.msra.mxu0 0.0
    %3296 = vmatprep.subr.mxu0 0.0
    %3297 = vmatpush1.xpose.msra.mxu0 0.0
    %3298 = vmatprep.subr.mxu0 0.0
    %3299 = vmatpush1.xpose.msra.mxu0 0.0
    %3300 = vmatprep.subr.mxu0 0.0
    %3301 = vmatpush1.xpose.msra.mxu0 0.0
    %3302 = vmatprep.subr.mxu0 0.0
    %3303 = vmatpush1.xpose.msra.mxu0 0.0
    %3304 = vmatprep.subr.mxu0 0.0
    %3305 = vmatpush1.xpose.msra.mxu0 0.0
    %3306 = vmatprep.subr.mxu0 0.0
    %3307 = vmatpush1.xpose.msra.mxu0 0.0
    %3308 = vmatprep.subr.mxu0 0.0
    %3309 = vmatpush1.xpose.msra.mxu0 0.0
    %3310 = vmatprep.subr.mxu0 0.0
    %3311 = vmatpush1.xpose.msra.mxu0 0.0
    %3312 = vmatprep.subr.mxu0 0.0
    %3313 = vmatpush1.xpose.msra.mxu0 0.0
    %3314 = vmatprep.subr.mxu0 0.0
    %3315 = vmatpush1.xpose.msra.mxu0 0.0
    %3316 = vmatprep.subr.mxu0 0.0
    %3317 = vmatpush1.xpose.msra.mxu0 0.0
    %3318 = vmatprep.subr.mxu0 0.0
    %3319 = vmatpush1.xpose.msra.mxu0 0.0
    %3320 = vmatprep.subr.mxu0 0.0
    %3321 = vmatpush1.xpose.msra.mxu0 0.0
    %3322 = vmatprep.subr.mxu0 0.0
    %3323 = vmatpush1.xpose.msra.mxu0 0.0
    %3324 = vmatprep.mubr.f32.mxu0 0.0
    %v3325 = vand.u32 %v3029, 4294901760
    %v3326 = vsub.f32 %v3029, %v3325
    %v3327 = vand.u32 %v3326, 4294901760
    %3328 = vmatmul.mubr.f32.gmra.mrb[0].mxu0 %v3327
    %v3329 = vpop.f32.mrb[0].mxu0
    %v3330 = vadd.f32 %v3256, %v3329
    %v3331 = vpop.f32.mrb[0].mxu0
    %3332 = vdwg.mxu0
    %3333 = vmatprep.subr.mxu0 0.0
    %v3334 = vand.u32 %v3031, 4294901760
    %v3335 = vsub.f32 %v3031, %v3334
    %v3336 = vand.u32 %v3335, 4294901760
    %3337 = vmatpush1.xpose.msra.mxu0 %v3336
    %3338 = vmatprep.subr.mxu0 0.0
    %3339 = vmatpush1.xpose.msra.mxu0 0.0
    %3340 = vmatprep.subr.mxu0 0.0
    %3341 = vmatpush1.xpose.msra.mxu0 0.0
    %3342 = vmatprep.subr.mxu0 0.0
    %3343 = vmatpush1.xpose.msra.mxu0 0.0
    %3344 = vmatprep.subr.mxu0 0.0
    %3345 = vmatpush1.xpose.msra.mxu0 0.0
    %3346 = vmatprep.subr.mxu0 0.0
    %3347 = vmatpush1.xpose.msra.mxu0 0.0
    %3348 = vmatprep.subr.mxu0 0.0
    %3349 = vmatpush1.xpose.msra.mxu0 0.0
    %3350 = vmatprep.subr.mxu0 0.0
    %3351 = vmatpush1.xpose.msra.mxu0 0.0
    %3352 = vmatprep.subr.mxu0 0.0
    %3353 = vmatpush1.xpose.msra.mxu0 0.0
    %3354 = vmatprep.subr.mxu0 0.0
    %3355 = vmatpush1.xpose.msra.mxu0 0.0
    %3356 = vmatprep.subr.mxu0 0.0
    %3357 = vmatpush1.xpose.msra.mxu0 0.0
    %3358 = vmatprep.subr.mxu0 0.0
    %3359 = vmatpush1.xpose.msra.mxu0 0.0
    %3360 = vmatprep.subr.mxu0 0.0
    %3361 = vmatpush1.xpose.msra.mxu0 0.0
    %3362 = vmatprep.subr.mxu0 0.0
    %3363 = vmatpush1.xpose.msra.mxu0 0.0
    %3364 = vmatprep.subr.mxu0 0.0
    %3365 = vmatpush1.xpose.msra.mxu0 0.0
    %3366 = vmatprep.subr.mxu0 0.0
    %3367 = vmatpush1.xpose.msra.mxu0 0.0
    %3368 = vmatprep.subr.mxu0 0.0
    %3369 = vmatpush1.xpose.msra.mxu0 0.0
    %3370 = vmatprep.subr.mxu0 0.0
    %3371 = vmatpush1.xpose.msra.mxu0 0.0
    %3372 = vmatprep.subr.mxu0 0.0
    %3373 = vmatpush1.xpose.msra.mxu0 0.0
    %3374 = vmatprep.subr.mxu0 0.0
    %3375 = vmatpush1.xpose.msra.mxu0 0.0
    %3376 = vmatprep.subr.mxu0 0.0
    %3377 = vmatpush1.xpose.msra.mxu0 0.0
    %3378 = vmatprep.subr.mxu0 0.0
    %3379 = vmatpush1.xpose.msra.mxu0 0.0
    %3380 = vmatprep.subr.mxu0 0.0
    %3381 = vmatpush1.xpose.msra.mxu0 0.0
    %3382 = vmatprep.subr.mxu0 0.0
    %3383 = vmatpush1.xpose.msra.mxu0 0.0
    %3384 = vmatprep.subr.mxu0 0.0
    %3385 = vmatpush1.xpose.msra.mxu0 0.0
    %3386 = vmatprep.subr.mxu0 0.0
    %3387 = vmatpush1.xpose.msra.mxu0 0.0
    %3388 = vmatprep.subr.mxu0 0.0
    %3389 = vmatpush1.xpose.msra.mxu0 0.0
    %3390 = vmatprep.subr.mxu0 0.0
    %3391 = vmatpush1.xpose.msra.mxu0 0.0
    %3392 = vmatprep.subr.mxu0 0.0
    %3393 = vmatpush1.xpose.msra.mxu0 0.0
    %3394 = vmatprep.subr.mxu0 0.0
    %3395 = vmatpush1.xpose.msra.mxu0 0.0
    %3396 = vmatprep.subr.mxu0 0.0
    %3397 = vmatpush1.xpose.msra.mxu0 0.0
    %3398 = vmatprep.subr.mxu0 0.0
    %3399 = vmatpush1.xpose.msra.mxu0 0.0
    %3400 = vmatprep.mubr.f32.mxu0 0.0
    %v3401 = vand.u32 %v3029, 4294901760
    %3402 = vmatmul.mubr.f32.gmra.mrb[0].mxu0 %v3401
    %v3403 = vpop.f32.mrb[0].mxu0
    %v3404 = vadd.f32 %v3330, %v3403
    %v3405 = vpop.f32.mrb[0].mxu0
    %3406 = vdwg.mxu0
    %3407 = vmatprep.subr.mxu0 0.0
    %v3408 = vand.u32 %v3031, 4294901760
    %3409 = vmatpush1.xpose.msra.mxu0 %v3408
    %3410 = vmatprep.subr.mxu0 0.0
    %3411 = vmatpush1.xpose.msra.mxu0 0.0
    %3412 = vmatprep.subr.mxu0 0.0
    %3413 = vmatpush1.xpose.msra.mxu0 0.0
    %3414 = vmatprep.subr.mxu0 0.0
    %3415 = vmatpush1.xpose.msra.mxu0 0.0
    %3416 = vmatprep.subr.mxu0 0.0
    %3417 = vmatpush1.xpose.msra.mxu0 0.0
    %3418 = vmatprep.subr.mxu0 0.0
    %3419 = vmatpush1.xpose.msra.mxu0 0.0
    %3420 = vmatprep.subr.mxu0 0.0
    %3421 = vmatpush1.xpose.msra.mxu0 0.0
    %3422 = vmatprep.subr.mxu0 0.0
    %3423 = vmatpush1.xpose.msra.mxu0 0.0
    %3424 = vmatprep.subr.mxu0 0.0
    %3425 = vmatpush1.xpose.msra.mxu0 0.0
    %3426 = vmatprep.subr.mxu0 0.0
    %3427 = vmatpush1.xpose.msra.mxu0 0.0
    %3428 = vmatprep.subr.mxu0 0.0
    %3429 = vmatpush1.xpose.msra.mxu0 0.0
    %3430 = vmatprep.subr.mxu0 0.0
    %3431 = vmatpush1.xpose.msra.mxu0 0.0
    %3432 = vmatprep.subr.mxu0 0.0
    %3433 = vmatpush1.xpose.msra.mxu0 0.0
    %3434 = vmatprep.subr.mxu0 0.0
    %3435 = vmatpush1.xpose.msra.mxu0 0.0
    %3436 = vmatprep.subr.mxu0 0.0
    %3437 = vmatpush1.xpose.msra.mxu0 0.0
    %3438 = vmatprep.subr.mxu0 0.0
    %3439 = vmatpush1.xpose.msra.mxu0 0.0
    %3440 = vmatprep.subr.mxu0 0.0
    %3441 = vmatpush1.xpose.msra.mxu0 0.0
    %3442 = vmatprep.subr.mxu0 0.0
    %3443 = vmatpush1.xpose.msra.mxu0 0.0
    %3444 = vmatprep.subr.mxu0 0.0
    %3445 = vmatpush1.xpose.msra.mxu0 0.0
    %3446 = vmatprep.subr.mxu0 0.0
    %3447 = vmatpush1.xpose.msra.mxu0 0.0
    %3448 = vmatprep.subr.mxu0 0.0
    %3449 = vmatpush1.xpose.msra.mxu0 0.0
    %3450 = vmatprep.subr.mxu0 0.0
    %3451 = vmatpush1.xpose.msra.mxu0 0.0
    %3452 = vmatprep.subr.mxu0 0.0
    %3453 = vmatpush1.xpose.msra.mxu0 0.0
    %3454 = vmatprep.subr.mxu0 0.0
    %3455 = vmatpush1.xpose.msra.mxu0 0.0
    %3456 = vmatprep.subr.mxu0 0.0
    %3457 = vmatpush1.xpose.msra.mxu0 0.0
    %3458 = vmatprep.subr.mxu0 0.0
    %3459 = vmatpush1.xpose.msra.mxu0 0.0
    %3460 = vmatprep.subr.mxu0 0.0
    %3461 = vmatpush1.xpose.msra.mxu0 0.0
    %3462 = vmatprep.subr.mxu0 0.0
    %3463 = vmatpush1.xpose.msra.mxu0 0.0
    %3464 = vmatprep.subr.mxu0 0.0
    %3465 = vmatpush1.xpose.msra.mxu0 0.0
    %3466 = vmatprep.subr.mxu0 0.0
    %3467 = vmatpush1.xpose.msra.mxu0 0.0
    %3468 = vmatprep.subr.mxu0 0.0
    %3469 = vmatpush1.xpose.msra.mxu0 0.0
    %3470 = vmatprep.subr.mxu0 0.0
    %3471 = vmatpush1.xpose.msra.mxu0 0.0
    %3472 = vmatprep.mubr.f32.mxu0 0.0
    %v3473 = vand.u32 %v3029, 4294901760
    %3474 = vmatmul.mubr.f32.gmra.mrb[0].mxu0 %v3473
    %v3475 = vpop.f32.mrb[0].mxu0
    %v3476 = vadd.f32 %v3404, %v3475
    %v3477 = vpop.f32.mrb[0].mxu0
    %3478 = vdwg.mxu0
    %3479 = vrot.lane.b32.xlu0 %v753, 112
    %v3480 = vpop.permute.xlu0 %3479
    %3481 = vrot.lane.b32.xlu0 %v737, 80
    %v3482 = vpop.permute.xlu0 %3481
    %v3483 = vsel %vm757, %v3480, 0
    %v3485 = vsel %vm757, %v3482, 0
    %3487 = vmatprep.subr.mxu0 0.0
    %v3488 = vand.u32 %v3485, 4294901760
    %3489 = vmatpush1.xpose.msra.mxu0 %v3488
    %3490 = vmatprep.subr.mxu0 0.0
    %3491 = vmatpush1.xpose.msra.mxu0 0.0
    %3492 = vmatprep.subr.mxu0 0.0
    %3493 = vmatpush1.xpose.msra.mxu0 0.0
    %3494 = vmatprep.subr.mxu0 0.0
    %3495 = vmatpush1.xpose.msra.mxu0 0.0
    %3496 = vmatprep.subr.mxu0 0.0
    %3497 = vmatpush1.xpose.msra.mxu0 0.0
    %3498 = vmatprep.subr.mxu0 0.0
    %3499 = vmatpush1.xpose.msra.mxu0 0.0
    %3500 = vmatprep.subr.mxu0 0.0
    %3501 = vmatpush1.xpose.msra.mxu0 0.0
    %3502 = vmatprep.subr.mxu0 0.0
    %3503 = vmatpush1.xpose.msra.mxu0 0.0
    %3504 = vmatprep.subr.mxu0 0.0
    %3505 = vmatpush1.xpose.msra.mxu0 0.0
    %3506 = vmatprep.subr.mxu0 0.0
    %3507 = vmatpush1.xpose.msra.mxu0 0.0
    %3508 = vmatprep.subr.mxu0 0.0
    %3509 = vmatpush1.xpose.msra.mxu0 0.0
    %3510 = vmatprep.subr.mxu0 0.0
    %3511 = vmatpush1.xpose.msra.mxu0 0.0
    %3512 = vmatprep.subr.mxu0 0.0
    %3513 = vmatpush1.xpose.msra.mxu0 0.0
    %3514 = vmatprep.subr.mxu0 0.0
    %3515 = vmatpush1.xpose.msra.mxu0 0.0
    %3516 = vmatprep.subr.mxu0 0.0
    %3517 = vmatpush1.xpose.msra.mxu0 0.0
    %3518 = vmatprep.subr.mxu0 0.0
    %3519 = vmatpush1.xpose.msra.mxu0 0.0
    %3520 = vmatprep.subr.mxu0 0.0
    %3521 = vmatpush1.xpose.msra.mxu0 0.0
    %3522 = vmatprep.subr.mxu0 0.0
    %3523 = vmatpush1.xpose.msra.mxu0 0.0
    %3524 = vmatprep.subr.mxu0 0.0
    %3525 = vmatpush1.xpose.msra.mxu0 0.0
    %3526 = vmatprep.subr.mxu0 0.0
    %3527 = vmatpush1.xpose.msra.mxu0 0.0
    %3528 = vmatprep.subr.mxu0 0.0
    %3529 = vmatpush1.xpose.msra.mxu0 0.0
    %3530 = vmatprep.subr.mxu0 0.0
    %3531 = vmatpush1.xpose.msra.mxu0 0.0
    %3532 = vmatprep.subr.mxu0 0.0
    %3533 = vmatpush1.xpose.msra.mxu0 0.0
    %3534 = vmatprep.subr.mxu0 0.0
    %3535 = vmatpush1.xpose.msra.mxu0 0.0
    %3536 = vmatprep.subr.mxu0 0.0
    %3537 = vmatpush1.xpose.msra.mxu0 0.0
    %3538 = vmatprep.subr.mxu0 0.0
    %3539 = vmatpush1.xpose.msra.mxu0 0.0
    %3540 = vmatprep.subr.mxu0 0.0
    %3541 = vmatpush1.xpose.msra.mxu0 0.0
    %3542 = vmatprep.subr.mxu0 0.0
    %3543 = vmatpush1.xpose.msra.mxu0 0.0
    %3544 = vmatprep.subr.mxu0 0.0
    %3545 = vmatpush1.xpose.msra.mxu0 0.0
    %3546 = vmatprep.subr.mxu0 0.0
    %3547 = vmatpush1.xpose.msra.mxu0 0.0
    %3548 = vmatprep.subr.mxu0 0.0
    %3549 = vmatpush1.xpose.msra.mxu0 0.0
    %3550 = vmatprep.subr.mxu0 0.0
    %3551 = vmatpush1.xpose.msra.mxu0 0.0
    %3552 = vmatprep.mubr.f32.mxu0 0.0
    %v3553 = vand.u32 %v3483, 4294901760
    %v3554 = vsub.f32 %v3483, %v3553
    %v3555 = vand.u32 %v3554, 4294901760
    %v3556 = vsub.f32 %v3554, %v3555
    %v3557 = vand.u32 %v3556, 4294901760
    %3558 = vmatmul.mubr.f32.gmra.mrb[0].mxu0 %v3557
    %v3559 = vpop.f32.mrb[0].mxu0
    %v3560 = vadd.f32 0.0, %v3559
    %v3561 = vpop.f32.mrb[0].mxu0
    %3562 = vdwg.mxu0
    %3563 = vmatprep.subr.mxu0 0.0
    %v3564 = vand.u32 %v3485, 4294901760
    %v3565 = vsub.f32 %v3485, %v3564
    %v3566 = vand.u32 %v3565, 4294901760
    %v3567 = vsub.f32 %v3565, %v3566
    %v3568 = vand.u32 %v3567, 4294901760
    %3569 = vmatpush1.xpose.msra.mxu0 %v3568
    %3570 = vmatprep.subr.mxu0 0.0
    %3571 = vmatpush1.xpose.msra.mxu0 0.0
    %3572 = vmatprep.subr.mxu0 0.0
    %3573 = vmatpush1.xpose.msra.mxu0 0.0
    %3574 = vmatprep.subr.mxu0 0.0
    %3575 = vmatpush1.xpose.msra.mxu0 0.0
    %3576 = vmatprep.subr.mxu0 0.0
    %3577 = vmatpush1.xpose.msra.mxu0 0.0
    %3578 = vmatprep.subr.mxu0 0.0
    %3579 = vmatpush1.xpose.msra.mxu0 0.0
    %3580 = vmatprep.subr.mxu0 0.0
    %3581 = vmatpush1.xpose.msra.mxu0 0.0
    %3582 = vmatprep.subr.mxu0 0.0
    %3583 = vmatpush1.xpose.msra.mxu0 0.0
    %3584 = vmatprep.subr.mxu0 0.0
    %3585 = vmatpush1.xpose.msra.mxu0 0.0
    %3586 = vmatprep.subr.mxu0 0.0
    %3587 = vmatpush1.xpose.msra.mxu0 0.0
    %3588 = vmatprep.subr.mxu0 0.0
    %3589 = vmatpush1.xpose.msra.mxu0 0.0
    %3590 = vmatprep.subr.mxu0 0.0
    %3591 = vmatpush1.xpose.msra.mxu0 0.0
    %3592 = vmatprep.subr.mxu0 0.0
    %3593 = vmatpush1.xpose.msra.mxu0 0.0
    %3594 = vmatprep.subr.mxu0 0.0
    %3595 = vmatpush1.xpose.msra.mxu0 0.0
    %3596 = vmatprep.subr.mxu0 0.0
    %3597 = vmatpush1.xpose.msra.mxu0 0.0
    %3598 = vmatprep.subr.mxu0 0.0
    %3599 = vmatpush1.xpose.msra.mxu0 0.0
    %3600 = vmatprep.subr.mxu0 0.0
    %3601 = vmatpush1.xpose.msra.mxu0 0.0
    %3602 = vmatprep.subr.mxu0 0.0
    %3603 = vmatpush1.xpose.msra.mxu0 0.0
    %3604 = vmatprep.subr.mxu0 0.0
    %3605 = vmatpush1.xpose.msra.mxu0 0.0
    %3606 = vmatprep.subr.mxu0 0.0
    %3607 = vmatpush1.xpose.msra.mxu0 0.0
    %3608 = vmatprep.subr.mxu0 0.0
    %3609 = vmatpush1.xpose.msra.mxu0 0.0
    %3610 = vmatprep.subr.mxu0 0.0
    %3611 = vmatpush1.xpose.msra.mxu0 0.0
    %3612 = vmatprep.subr.mxu0 0.0
    %3613 = vmatpush1.xpose.msra.mxu0 0.0
    %3614 = vmatprep.subr.mxu0 0.0
    %3615 = vmatpush1.xpose.msra.mxu0 0.0
    %3616 = vmatprep.subr.mxu0 0.0
    %3617 = vmatpush1.xpose.msra.mxu0 0.0
    %3618 = vmatprep.subr.mxu0 0.0
    %3619 = vmatpush1.xpose.msra.mxu0 0.0
    %3620 = vmatprep.subr.mxu0 0.0
    %3621 = vmatpush1.xpose.msra.mxu0 0.0
    %3622 = vmatprep.subr.mxu0 0.0
    %3623 = vmatpush1.xpose.msra.mxu0 0.0
    %3624 = vmatprep.subr.mxu0 0.0
    %3625 = vmatpush1.xpose.msra.mxu0 0.0
    %3626 = vmatprep.subr.mxu0 0.0
    %3627 = vmatpush1.xpose.msra.mxu0 0.0
    %3628 = vmatprep.subr.mxu0 0.0
    %3629 = vmatpush1.xpose.msra.mxu0 0.0
    %3630 = vmatprep.subr.mxu0 0.0
    %3631 = vmatpush1.xpose.msra.mxu0 0.0
    %3632 = vmatprep.mubr.f32.mxu0 0.0
    %v3633 = vand.u32 %v3483, 4294901760
    %3634 = vmatmul.mubr.f32.gmra.mrb[0].mxu0 %v3633
    %v3635 = vpop.f32.mrb[0].mxu0
    %v3636 = vadd.f32 %v3560, %v3635
    %v3637 = vpop.f32.mrb[0].mxu0
    %3638 = vdwg.mxu0
    %3639 = vmatprep.subr.mxu0 0.0
    %v3640 = vand.u32 %v3485, 4294901760
    %v3641 = vsub.f32 %v3485, %v3640
    %3642 = vmatpush1.xpose.msra.mxu0 %v3641
    %3643 = vmatprep.subr.mxu0 0.0
    %3644 = vmatpush1.xpose.msra.mxu0 0.0
    %3645 = vmatprep.subr.mxu0 0.0
    %3646 = vmatpush1.xpose.msra.mxu0 0.0
    %3647 = vmatprep.subr.mxu0 0.0
    %3648 = vmatpush1.xpose.msra.mxu0 0.0
    %3649 = vmatprep.subr.mxu0 0.0
    %3650 = vmatpush1.xpose.msra.mxu0 0.0
    %3651 = vmatprep.subr.mxu0 0.0
    %3652 = vmatpush1.xpose.msra.mxu0 0.0
    %3653 = vmatprep.subr.mxu0 0.0
    %3654 = vmatpush1.xpose.msra.mxu0 0.0
    %3655 = vmatprep.subr.mxu0 0.0
    %3656 = vmatpush1.xpose.msra.mxu0 0.0
    %3657 = vmatprep.subr.mxu0 0.0
    %3658 = vmatpush1.xpose.msra.mxu0 0.0
    %3659 = vmatprep.subr.mxu0 0.0
    %3660 = vmatpush1.xpose.msra.mxu0 0.0
    %3661 = vmatprep.subr.mxu0 0.0
    %3662 = vmatpush1.xpose.msra.mxu0 0.0
    %3663 = vmatprep.subr.mxu0 0.0
    %3664 = vmatpush1.xpose.msra.mxu0 0.0
    %3665 = vmatprep.subr.mxu0 0.0
    %3666 = vmatpush1.xpose.msra.mxu0 0.0
    %3667 = vmatprep.subr.mxu0 0.0
    %3668 = vmatpush1.xpose.msra.mxu0 0.0
    %3669 = vmatprep.subr.mxu0 0.0
    %3670 = vmatpush1.xpose.msra.mxu0 0.0
    %3671 = vmatprep.subr.mxu0 0.0
    %3672 = vmatpush1.xpose.msra.mxu0 0.0
    %3673 = vmatprep.subr.mxu0 0.0
    %3674 = vmatpush1.xpose.msra.mxu0 0.0
    %3675 = vmatprep.subr.mxu0 0.0
    %3676 = vmatpush1.xpose.msra.mxu0 0.0
    %3677 = vmatprep.subr.mxu0 0.0
    %3678 = vmatpush1.xpose.msra.mxu0 0.0
    %3679 = vmatprep.subr.mxu0 0.0
    %3680 = vmatpush1.xpose.msra.mxu0 0.0
    %3681 = vmatprep.subr.mxu0 0.0
    %3682 = vmatpush1.xpose.msra.mxu0 0.0
    %3683 = vmatprep.subr.mxu0 0.0
    %3684 = vmatpush1.xpose.msra.mxu0 0.0
    %3685 = vmatprep.subr.mxu0 0.0
    %3686 = vmatpush1.xpose.msra.mxu0 0.0
    %3687 = vmatprep.subr.mxu0 0.0
    %3688 = vmatpush1.xpose.msra.mxu0 0.0
    %3689 = vmatprep.subr.mxu0 0.0
    %3690 = vmatpush1.xpose.msra.mxu0 0.0
    %3691 = vmatprep.subr.mxu0 0.0
    %3692 = vmatpush1.xpose.msra.mxu0 0.0
    %3693 = vmatprep.subr.mxu0 0.0
    %3694 = vmatpush1.xpose.msra.mxu0 0.0
    %3695 = vmatprep.subr.mxu0 0.0
    %3696 = vmatpush1.xpose.msra.mxu0 0.0
    %3697 = vmatprep.subr.mxu0 0.0
    %3698 = vmatpush1.xpose.msra.mxu0 0.0
    %3699 = vmatprep.subr.mxu0 0.0
    %3700 = vmatpush1.xpose.msra.mxu0 0.0
    %3701 = vmatprep.subr.mxu0 0.0
    %3702 = vmatpush1.xpose.msra.mxu0 0.0
    %3703 = vmatprep.subr.mxu0 0.0
    %3704 = vmatpush1.xpose.msra.mxu0 0.0
    %3705 = vmatprep.mubr.f32.mxu0 0.0
    %v3706 = vand.u32 %v3483, 4294901760
    %v3707 = vsub.f32 %v3483, %v3706
    %3708 = vmatmul.mubr.f32.gmra.mrb[0].mxu0 %v3707
    %v3709 = vpop.f32.mrb[0].mxu0
    %v3710 = vadd.f32 %v3636, %v3709
    %v3711 = vpop.f32.mrb[0].mxu0
    %3712 = vdwg.mxu0
    %3713 = vmatprep.subr.mxu0 0.0
    %v3714 = vand.u32 %v3485, 4294901760
    %3715 = vmatpush1.xpose.msra.mxu0 %v3714
    %3716 = vmatprep.subr.mxu0 0.0
    %3717 = vmatpush1.xpose.msra.mxu0 0.0
    %3718 = vmatprep.subr.mxu0 0.0
    %3719 = vmatpush1.xpose.msra.mxu0 0.0
    %3720 = vmatprep.subr.mxu0 0.0
    %3721 = vmatpush1.xpose.msra.mxu0 0.0
    %3722 = vmatprep.subr.mxu0 0.0
    %3723 = vmatpush1.xpose.msra.mxu0 0.0
    %3724 = vmatprep.subr.mxu0 0.0
    %3725 = vmatpush1.xpose.msra.mxu0 0.0
    %3726 = vmatprep.subr.mxu0 0.0
    %3727 = vmatpush1.xpose.msra.mxu0 0.0
    %3728 = vmatprep.subr.mxu0 0.0
    %3729 = vmatpush1.xpose.msra.mxu0 0.0
    %3730 = vmatprep.subr.mxu0 0.0
    %3731 = vmatpush1.xpose.msra.mxu0 0.0
    %3732 = vmatprep.subr.mxu0 0.0
    %3733 = vmatpush1.xpose.msra.mxu0 0.0
    %3734 = vmatprep.subr.mxu0 0.0
    %3735 = vmatpush1.xpose.msra.mxu0 0.0
    %3736 = vmatprep.subr.mxu0 0.0
    %3737 = vmatpush1.xpose.msra.mxu0 0.0
    %3738 = vmatprep.subr.mxu0 0.0
    %3739 = vmatpush1.xpose.msra.mxu0 0.0
    %3740 = vmatprep.subr.mxu0 0.0
    %3741 = vmatpush1.xpose.msra.mxu0 0.0
    %3742 = vmatprep.subr.mxu0 0.0
    %3743 = vmatpush1.xpose.msra.mxu0 0.0
    %3744 = vmatprep.subr.mxu0 0.0
    %3745 = vmatpush1.xpose.msra.mxu0 0.0
    %3746 = vmatprep.subr.mxu0 0.0
    %3747 = vmatpush1.xpose.msra.mxu0 0.0
    %3748 = vmatprep.subr.mxu0 0.0
    %3749 = vmatpush1.xpose.msra.mxu0 0.0
    %3750 = vmatprep.subr.mxu0 0.0
    %3751 = vmatpush1.xpose.msra.mxu0 0.0
    %3752 = vmatprep.subr.mxu0 0.0
    %3753 = vmatpush1.xpose.msra.mxu0 0.0
    %3754 = vmatprep.subr.mxu0 0.0
    %3755 = vmatpush1.xpose.msra.mxu0 0.0
    %3756 = vmatprep.subr.mxu0 0.0
    %3757 = vmatpush1.xpose.msra.mxu0 0.0
    %3758 = vmatprep.subr.mxu0 0.0
    %3759 = vmatpush1.xpose.msra.mxu0 0.0
    %3760 = vmatprep.subr.mxu0 0.0
    %3761 = vmatpush1.xpose.msra.mxu0 0.0
    %3762 = vmatprep.subr.mxu0 0.0
    %3763 = vmatpush1.xpose.msra.mxu0 0.0
    %3764 = vmatprep.subr.mxu0 0.0
    %3765 = vmatpush1.xpose.msra.mxu0 0.0
    %3766 = vmatprep.subr.mxu0 0.0
    %3767 = vmatpush1.xpose.msra.mxu0 0.0
    %3768 = vmatprep.subr.mxu0 0.0
    %3769 = vmatpush1.xpose.msra.mxu0 0.0
    %3770 = vmatprep.subr.mxu0 0.0
    %3771 = vmatpush1.xpose.msra.mxu0 0.0
    %3772 = vmatprep.subr.mxu0 0.0
    %3773 = vmatpush1.xpose.msra.mxu0 0.0
    %3774 = vmatprep.subr.mxu0 0.0
    %3775 = vmatpush1.xpose.msra.mxu0 0.0
    %3776 = vmatprep.subr.mxu0 0.0
    %3777 = vmatpush1.xpose.msra.mxu0 0.0
    %3778 = vmatprep.mubr.f32.mxu0 0.0
    %v3779 = vand.u32 %v3483, 4294901760
    %v3780 = vsub.f32 %v3483, %v3779
    %v3781 = vand.u32 %v3780, 4294901760
    %3782 = vmatmul.mubr.f32.gmra.mrb[0].mxu0 %v3781
    %v3783 = vpop.f32.mrb[0].mxu0
    %v3784 = vadd.f32 %v3710, %v3783
    %v3785 = vpop.f32.mrb[0].mxu0
    %3786 = vdwg.mxu0
    %3787 = vmatprep.subr.mxu0 0.0
    %v3788 = vand.u32 %v3485, 4294901760
    %v3789 = vsub.f32 %v3485, %v3788
    %v3790 = vand.u32 %v3789, 4294901760
    %3791 = vmatpush1.xpose.msra.mxu0 %v3790
    %3792 = vmatprep.subr.mxu0 0.0
    %3793 = vmatpush1.xpose.msra.mxu0 0.0
    %3794 = vmatprep.subr.mxu0 0.0
    %3795 = vmatpush1.xpose.msra.mxu0 0.0
    %3796 = vmatprep.subr.mxu0 0.0
    %3797 = vmatpush1.xpose.msra.mxu0 0.0
    %3798 = vmatprep.subr.mxu0 0.0
    %3799 = vmatpush1.xpose.msra.mxu0 0.0
    %3800 = vmatprep.subr.mxu0 0.0
    %3801 = vmatpush1.xpose.msra.mxu0 0.0
    %3802 = vmatprep.subr.mxu0 0.0
    %3803 = vmatpush1.xpose.msra.mxu0 0.0
    %3804 = vmatprep.subr.mxu0 0.0
    %3805 = vmatpush1.xpose.msra.mxu0 0.0
    %3806 = vmatprep.subr.mxu0 0.0
    %3807 = vmatpush1.xpose.msra.mxu0 0.0
    %3808 = vmatprep.subr.mxu0 0.0
    %3809 = vmatpush1.xpose.msra.mxu0 0.0
    %3810 = vmatprep.subr.mxu0 0.0
    %3811 = vmatpush1.xpose.msra.mxu0 0.0
    %3812 = vmatprep.subr.mxu0 0.0
    %3813 = vmatpush1.xpose.msra.mxu0 0.0
    %3814 = vmatprep.subr.mxu0 0.0
    %3815 = vmatpush1.xpose.msra.mxu0 0.0
    %3816 = vmatprep.subr.mxu0 0.0
    %3817 = vmatpush1.xpose.msra.mxu0 0.0
    %3818 = vmatprep.subr.mxu0 0.0
    %3819 = vmatpush1.xpose.msra.mxu0 0.0
    %3820 = vmatprep.subr.mxu0 0.0
    %3821 = vmatpush1.xpose.msra.mxu0 0.0
    %3822 = vmatprep.subr.mxu0 0.0
    %3823 = vmatpush1.xpose.msra.mxu0 0.0
    %3824 = vmatprep.subr.mxu0 0.0
    %3825 = vmatpush1.xpose.msra.mxu0 0.0
    %3826 = vmatprep.subr.mxu0 0.0
    %3827 = vmatpush1.xpose.msra.mxu0 0.0
    %3828 = vmatprep.subr.mxu0 0.0
    %3829 = vmatpush1.xpose.msra.mxu0 0.0
    %3830 = vmatprep.subr.mxu0 0.0
    %3831 = vmatpush1.xpose.msra.mxu0 0.0
    %3832 = vmatprep.subr.mxu0 0.0
    %3833 = vmatpush1.xpose.msra.mxu0 0.0
    %3834 = vmatprep.subr.mxu0 0.0
    %3835 = vmatpush1.xpose.msra.mxu0 0.0
    %3836 = vmatprep.subr.mxu0 0.0
    %3837 = vmatpush1.xpose.msra.mxu0 0.0
    %3838 = vmatprep.subr.mxu0 0.0
    %3839 = vmatpush1.xpose.msra.mxu0 0.0
    %3840 = vmatprep.subr.mxu0 0.0
    %3841 = vmatpush1.xpose.msra.mxu0 0.0
    %3842 = vmatprep.subr.mxu0 0.0
    %3843 = vmatpush1.xpose.msra.mxu0 0.0
    %3844 = vmatprep.subr.mxu0 0.0
    %3845 = vmatpush1.xpose.msra.mxu0 0.0
    %3846 = vmatprep.subr.mxu0 0.0
    %3847 = vmatpush1.xpose.msra.mxu0 0.0
    %3848 = vmatprep.subr.mxu0 0.0
    %3849 = vmatpush1.xpose.msra.mxu0 0.0
    %3850 = vmatprep.subr.mxu0 0.0
    %3851 = vmatpush1.xpose.msra.mxu0 0.0
    %3852 = vmatprep.subr.mxu0 0.0
    %3853 = vmatpush1.xpose.msra.mxu0 0.0
    %3854 = vmatprep.mubr.f32.mxu0 0.0
    %v3855 = vand.u32 %v3483, 4294901760
    %3856 = vmatmul.mubr.f32.gmra.mrb[0].mxu0 %v3855
    %v3857 = vpop.f32.mrb[0].mxu0
    %v3858 = vadd.f32 %v3784, %v3857
    %v3859 = vpop.f32.mrb[0].mxu0
    %3860 = vdwg.mxu0
    %3861 = vmatprep.subr.mxu0 0.0
    %v3862 = vand.u32 %v3485, 4294901760
    %3863 = vmatpush1.xpose.msra.mxu0 %v3862
    %3864 = vmatprep.subr.mxu0 0.0
    %3865 = vmatpush1.xpose.msra.mxu0 0.0
    %3866 = vmatprep.subr.mxu0 0.0
    %3867 = vmatpush1.xpose.msra.mxu0 0.0
    %3868 = vmatprep.subr.mxu0 0.0
    %3869 = vmatpush1.xpose.msra.mxu0 0.0
    %3870 = vmatprep.subr.mxu0 0.0
    %3871 = vmatpush1.xpose.msra.mxu0 0.0
    %3872 = vmatprep.subr.mxu0 0.0
    %3873 = vmatpush1.xpose.msra.mxu0 0.0
    %3874 = vmatprep.subr.mxu0 0.0
    %3875 = vmatpush1.xpose.msra.mxu0 0.0
    %3876 = vmatprep.subr.mxu0 0.0
    %3877 = vmatpush1.xpose.msra.mxu0 0.0
    %3878 = vmatprep.subr.mxu0 0.0
    %3879 = vmatpush1.xpose.msra.mxu0 0.0
    %3880 = vmatprep.subr.mxu0 0.0
    %3881 = vmatpush1.xpose.msra.mxu0 0.0
    %3882 = vmatprep.subr.mxu0 0.0
    %3883 = vmatpush1.xpose.msra.mxu0 0.0
    %3884 = vmatprep.subr.mxu0 0.0
    %3885 = vmatpush1.xpose.msra.mxu0 0.0
    %3886 = vmatprep.subr.mxu0 0.0
    %3887 = vmatpush1.xpose.msra.mxu0 0.0
    %3888 = vmatprep.subr.mxu0 0.0
    %3889 = vmatpush1.xpose.msra.mxu0 0.0
    %3890 = vmatprep.subr.mxu0 0.0
    %3891 = vmatpush1.xpose.msra.mxu0 0.0
    %3892 = vmatprep.subr.mxu0 0.0
    %3893 = vmatpush1.xpose.msra.mxu0 0.0
    %3894 = vmatprep.subr.mxu0 0.0
    %3895 = vmatpush1.xpose.msra.mxu0 0.0
    %3896 = vmatprep.subr.mxu0 0.0
    %3897 = vmatpush1.xpose.msra.mxu0 0.0
    %3898 = vmatprep.subr.mxu0 0.0
    %3899 = vmatpush1.xpose.msra.mxu0 0.0
    %3900 = vmatprep.subr.mxu0 0.0
    %3901 = vmatpush1.xpose.msra.mxu0 0.0
    %3902 = vmatprep.subr.mxu0 0.0
    %3903 = vmatpush1.xpose.msra.mxu0 0.0
    %3904 = vmatprep.subr.mxu0 0.0
    %3905 = vmatpush1.xpose.msra.mxu0 0.0
    %3906 = vmatprep.subr.mxu0 0.0
    %3907 = vmatpush1.xpose.msra.mxu0 0.0
    %3908 = vmatprep.subr.mxu0 0.0
    %3909 = vmatpush1.xpose.msra.mxu0 0.0
    %3910 = vmatprep.subr.mxu0 0.0
    %3911 = vmatpush1.xpose.msra.mxu0 0.0
    %3912 = vmatprep.subr.mxu0 0.0
    %3913 = vmatpush1.xpose.msra.mxu0 0.0
    %3914 = vmatprep.subr.mxu0 0.0
    %3915 = vmatpush1.xpose.msra.mxu0 0.0
    %3916 = vmatprep.subr.mxu0 0.0
    %3917 = vmatpush1.xpose.msra.mxu0 0.0
    %3918 = vmatprep.subr.mxu0 0.0
    %3919 = vmatpush1.xpose.msra.mxu0 0.0
    %3920 = vmatprep.subr.mxu0 0.0
    %3921 = vmatpush1.xpose.msra.mxu0 0.0
    %3922 = vmatprep.subr.mxu0 0.0
    %3923 = vmatpush1.xpose.msra.mxu0 0.0
    %3924 = vmatprep.subr.mxu0 0.0
    %3925 = vmatpush1.xpose.msra.mxu0 0.0
    %3926 = vmatprep.mubr.f32.mxu0 0.0
    %v3927 = vand.u32 %v3483, 4294901760
    %3928 = vmatmul.mubr.f32.gmra.mrb[0].mxu0 %v3927
    %v3929 = vpop.f32.mrb[0].mxu0
    %v3930 = vadd.f32 %v3858, %v3929
    %v3931 = vpop.f32.mrb[0].mxu0
    %3932 = vdwg.mxu0
    %3933 = vrot.lane.b32.xlu0 %v753, 104
    %v3934 = vpop.permute.xlu0 %3933
    %3935 = vrot.lane.b32.xlu0 %v737, 72
    %v3936 = vpop.permute.xlu0 %3935
    %v3937 = vsel %vm757, %v3934, 0
    %v3939 = vsel %vm757, %v3936, 0
    %3941 = vmatprep.subr.mxu0 0.0
    %v3942 = vand.u32 %v3939, 4294901760
    %3943 = vmatpush1.xpose.msra.mxu0 %v3942
    %3944 = vmatprep.subr.mxu0 0.0
    %3945 = vmatpush1.xpose.msra.mxu0 0.0
    %3946 = vmatprep.subr.mxu0 0.0
    %3947 = vmatpush1.xpose.msra.mxu0 0.0
    %3948 = vmatprep.subr.mxu0 0.0
    %3949 = vmatpush1.xpose.msra.mxu0 0.0
    %3950 = vmatprep.subr.mxu0 0.0
    %3951 = vmatpush1.xpose.msra.mxu0 0.0
    %3952 = vmatprep.subr.mxu0 0.0
    %3953 = vmatpush1.xpose.msra.mxu0 0.0
    %3954 = vmatprep.subr.mxu0 0.0
    %3955 = vmatpush1.xpose.msra.mxu0 0.0
    %3956 = vmatprep.subr.mxu0 0.0
    %3957 = vmatpush1.xpose.msra.mxu0 0.0
    %3958 = vmatprep.subr.mxu0 0.0
    %3959 = vmatpush1.xpose.msra.mxu0 0.0
    %3960 = vmatprep.subr.mxu0 0.0
    %3961 = vmatpush1.xpose.msra.mxu0 0.0
    %3962 = vmatprep.subr.mxu0 0.0
    %3963 = vmatpush1.xpose.msra.mxu0 0.0
    %3964 = vmatprep.subr.mxu0 0.0
    %3965 = vmatpush1.xpose.msra.mxu0 0.0
    %3966 = vmatprep.subr.mxu0 0.0
    %3967 = vmatpush1.xpose.msra.mxu0 0.0
    %3968 = vmatprep.subr.mxu0 0.0
    %3969 = vmatpush1.xpose.msra.mxu0 0.0
    %3970 = vmatprep.subr.mxu0 0.0
    %3971 = vmatpush1.xpose.msra.mxu0 0.0
    %3972 = vmatprep.subr.mxu0 0.0
    %3973 = vmatpush1.xpose.msra.mxu0 0.0
    %3974 = vmatprep.subr.mxu0 0.0
    %3975 = vmatpush1.xpose.msra.mxu0 0.0
    %3976 = vmatprep.subr.mxu0 0.0
    %3977 = vmatpush1.xpose.msra.mxu0 0.0
    %3978 = vmatprep.subr.mxu0 0.0
    %3979 = vmatpush1.xpose.msra.mxu0 0.0
    %3980 = vmatprep.subr.mxu0 0.0
    %3981 = vmatpush1.xpose.msra.mxu0 0.0
    %3982 = vmatprep.subr.mxu0 0.0
    %3983 = vmatpush1.xpose.msra.mxu0 0.0
    %3984 = vmatprep.subr.mxu0 0.0
    %3985 = vmatpush1.xpose.msra.mxu0 0.0
    %3986 = vmatprep.subr.mxu0 0.0
    %3987 = vmatpush1.xpose.msra.mxu0 0.0
    %3988 = vmatprep.subr.mxu0 0.0
    %3989 = vmatpush1.xpose.msra.mxu0 0.0
    %3990 = vmatprep.subr.mxu0 0.0
    %3991 = vmatpush1.xpose.msra.mxu0 0.0
    %3992 = vmatprep.subr.mxu0 0.0
    %3993 = vmatpush1.xpose.msra.mxu0 0.0
    %3994 = vmatprep.subr.mxu0 0.0
    %3995 = vmatpush1.xpose.msra.mxu0 0.0
    %3996 = vmatprep.subr.mxu0 0.0
    %3997 = vmatpush1.xpose.msra.mxu0 0.0
    %3998 = vmatprep.subr.mxu0 0.0
    %3999 = vmatpush1.xpose.msra.mxu0 0.0
    %4000 = vmatprep.subr.mxu0 0.0
    %4001 = vmatpush1.xpose.msra.mxu0 0.0
    %4002 = vmatprep.subr.mxu0 0.0
    %4003 = vmatpush1.xpose.msra.mxu0 0.0
    %4004 = vmatprep.subr.mxu0 0.0
    %4005 = vmatpush1.xpose.msra.mxu0 0.0
    %4006 = vmatprep.mubr.f32.mxu0 0.0
    %v4007 = vand.u32 %v3937, 4294901760
    %v4008 = vsub.f32 %v3937, %v4007
    %v4009 = vand.u32 %v4008, 4294901760
    %v4010 = vsub.f32 %v4008, %v4009
    %v4011 = vand.u32 %v4010, 4294901760
    %4012 = vmatmul.mubr.f32.gmra.mrb[0].mxu0 %v4011
    %v4013 = vpop.f32.mrb[0].mxu0
    %v4014 = vadd.f32 0.0, %v4013
    %v4015 = vpop.f32.mrb[0].mxu0
    %4016 = vdwg.mxu0
    %4017 = vmatprep.subr.mxu0 0.0
    %v4018 = vand.u32 %v3939, 4294901760
    %v4019 = vsub.f32 %v3939, %v4018
    %v4020 = vand.u32 %v4019, 4294901760
    %v4021 = vsub.f32 %v4019, %v4020
    %v4022 = vand.u32 %v4021, 4294901760
    %4023 = vmatpush1.xpose.msra.mxu0 %v4022
    %4024 = vmatprep.subr.mxu0 0.0
    %4025 = vmatpush1.xpose.msra.mxu0 0.0
    %4026 = vmatprep.subr.mxu0 0.0
    %4027 = vmatpush1.xpose.msra.mxu0 0.0
    %4028 = vmatprep.subr.mxu0 0.0
    %4029 = vmatpush1.xpose.msra.mxu0 0.0
    %4030 = vmatprep.subr.mxu0 0.0
    %4031 = vmatpush1.xpose.msra.mxu0 0.0
    %4032 = vmatprep.subr.mxu0 0.0
    %4033 = vmatpush1.xpose.msra.mxu0 0.0
    %4034 = vmatprep.subr.mxu0 0.0
    %4035 = vmatpush1.xpose.msra.mxu0 0.0
    %4036 = vmatprep.subr.mxu0 0.0
    %4037 = vmatpush1.xpose.msra.mxu0 0.0
    %4038 = vmatprep.subr.mxu0 0.0
    %4039 = vmatpush1.xpose.msra.mxu0 0.0
    %4040 = vmatprep.subr.mxu0 0.0
    %4041 = vmatpush1.xpose.msra.mxu0 0.0
    %4042 = vmatprep.subr.mxu0 0.0
    %4043 = vmatpush1.xpose.msra.mxu0 0.0
    %4044 = vmatprep.subr.mxu0 0.0
    %4045 = vmatpush1.xpose.msra.mxu0 0.0
    %4046 = vmatprep.subr.mxu0 0.0
    %4047 = vmatpush1.xpose.msra.mxu0 0.0
    %4048 = vmatprep.subr.mxu0 0.0
    %4049 = vmatpush1.xpose.msra.mxu0 0.0
    %4050 = vmatprep.subr.mxu0 0.0
    %4051 = vmatpush1.xpose.msra.mxu0 0.0
    %4052 = vmatprep.subr.mxu0 0.0
    %4053 = vmatpush1.xpose.msra.mxu0 0.0
    %4054 = vmatprep.subr.mxu0 0.0
    %4055 = vmatpush1.xpose.msra.mxu0 0.0
    %4056 = vmatprep.subr.mxu0 0.0
    %4057 = vmatpush1.xpose.msra.mxu0 0.0
    %4058 = vmatprep.subr.mxu0 0.0
    %4059 = vmatpush1.xpose.msra.mxu0 0.0
    %4060 = vmatprep.subr.mxu0 0.0
    %4061 = vmatpush1.xpose.msra.mxu0 0.0
    %4062 = vmatprep.subr.mxu0 0.0
    %4063 = vmatpush1.xpose.msra.mxu0 0.0
    %4064 = vmatprep.subr.mxu0 0.0
    %4065 = vmatpush1.xpose.msra.mxu0 0.0
    %4066 = vmatprep.subr.mxu0 0.0
    %4067 = vmatpush1.xpose.msra.mxu0 0.0
    %4068 = vmatprep.subr.mxu0 0.0
    %4069 = vmatpush1.xpose.msra.mxu0 0.0
    %4070 = vmatprep.subr.mxu0 0.0
    %4071 = vmatpush1.xpose.msra.mxu0 0.0
    %4072 = vmatprep.subr.mxu0 0.0
    %4073 = vmatpush1.xpose.msra.mxu0 0.0
    %4074 = vmatprep.subr.mxu0 0.0
    %4075 = vmatpush1.xpose.msra.mxu0 0.0
    %4076 = vmatprep.subr.mxu0 0.0
    %4077 = vmatpush1.xpose.msra.mxu0 0.0
    %4078 = vmatprep.subr.mxu0 0.0
    %4079 = vmatpush1.xpose.msra.mxu0 0.0
    %4080 = vmatprep.subr.mxu0 0.0
    %4081 = vmatpush1.xpose.msra.mxu0 0.0
    %4082 = vmatprep.subr.mxu0 0.0
    %4083 = vmatpush1.xpose.msra.mxu0 0.0
    %4084 = vmatprep.subr.mxu0 0.0
    %4085 = vmatpush1.xpose.msra.mxu0 0.0
    %4086 = vmatprep.mubr.f32.mxu0 0.0
    %v4087 = vand.u32 %v3937, 4294901760
    %4088 = vmatmul.mubr.f32.gmra.mrb[0].mxu0 %v4087
    %v4089 = vpop.f32.mrb[0].mxu0
    %v4090 = vadd.f32 %v4014, %v4089
    %v4091 = vpop.f32.mrb[0].mxu0
    %4092 = vdwg.mxu0
    %4093 = vmatprep.subr.mxu0 0.0
    %v4094 = vand.u32 %v3939, 4294901760
    %v4095 = vsub.f32 %v3939, %v4094
    %4096 = vmatpush1.xpose.msra.mxu0 %v4095
    %4097 = vmatprep.subr.mxu0 0.0
    %4098 = vmatpush1.xpose.msra.mxu0 0.0
    %4099 = vmatprep.subr.mxu0 0.0
    %4100 = vmatpush1.xpose.msra.mxu0 0.0
    %4101 = vmatprep.subr.mxu0 0.0
    %4102 = vmatpush1.xpose.msra.mxu0 0.0
    %4103 = vmatprep.subr.mxu0 0.0
    %4104 = vmatpush1.xpose.msra.mxu0 0.0
    %4105 = vmatprep.subr.mxu0 0.0
    %4106 = vmatpush1.xpose.msra.mxu0 0.0
    %4107 = vmatprep.subr.mxu0 0.0
    %4108 = vmatpush1.xpose.msra.mxu0 0.0
    %4109 = vmatprep.subr.mxu0 0.0
    %4110 = vmatpush1.xpose.msra.mxu0 0.0
    %4111 = vmatprep.subr.mxu0 0.0
    %4112 = vmatpush1.xpose.msra.mxu0 0.0
    %4113 = vmatprep.subr.mxu0 0.0
    %4114 = vmatpush1.xpose.msra.mxu0 0.0
    %4115 = vmatprep.subr.mxu0 0.0
    %4116 = vmatpush1.xpose.msra.mxu0 0.0
    %4117 = vmatprep.subr.mxu0 0.0
    %4118 = vmatpush1.xpose.msra.mxu0 0.0
    %4119 = vmatprep.subr.mxu0 0.0
    %4120 = vmatpush1.xpose.msra.mxu0 0.0
    %4121 = vmatprep.subr.mxu0 0.0
    %4122 = vmatpush1.xpose.msra.mxu0 0.0
    %4123 = vmatprep.subr.mxu0 0.0
    %4124 = vmatpush1.xpose.msra.mxu0 0.0
    %4125 = vmatprep.subr.mxu0 0.0
    %4126 = vmatpush1.xpose.msra.mxu0 0.0
    %4127 = vmatprep.subr.mxu0 0.0
    %4128 = vmatpush1.xpose.msra.mxu0 0.0
    %4129 = vmatprep.subr.mxu0 0.0
    %4130 = vmatpush1.xpose.msra.mxu0 0.0
    %4131 = vmatprep.subr.mxu0 0.0
    %4132 = vmatpush1.xpose.msra.mxu0 0.0
    %4133 = vmatprep.subr.mxu0 0.0
    %4134 = vmatpush1.xpose.msra.mxu0 0.0
    %4135 = vmatprep.subr.mxu0 0.0
    %4136 = vmatpush1.xpose.msra.mxu0 0.0
    %4137 = vmatprep.subr.mxu0 0.0
    %4138 = vmatpush1.xpose.msra.mxu0 0.0
    %4139 = vmatprep.subr.mxu0 0.0
    %4140 = vmatpush1.xpose.msra.mxu0 0.0
    %4141 = vmatprep.subr.mxu0 0.0
    %4142 = vmatpush1.xpose.msra.mxu0 0.0
    %4143 = vmatprep.subr.mxu0 0.0
    %4144 = vmatpush1.xpose.msra.mxu0 0.0
    %4145 = vmatprep.subr.mxu0 0.0
    %4146 = vmatpush1.xpose.msra.mxu0 0.0
    %4147 = vmatprep.subr.mxu0 0.0
    %4148 = vmatpush1.xpose.msra.mxu0 0.0
    %4149 = vmatprep.subr.mxu0 0.0
    %4150 = vmatpush1.xpose.msra.mxu0 0.0
    %4151 = vmatprep.subr.mxu0 0.0
    %4152 = vmatpush1.xpose.msra.mxu0 0.0
    %4153 = vmatprep.subr.mxu0 0.0
    %4154 = vmatpush1.xpose.msra.mxu0 0.0
    %4155 = vmatprep.subr.mxu0 0.0
    %4156 = vmatpush1.xpose.msra.mxu0 0.0
    %4157 = vmatprep.subr.mxu0 0.0
    %4158 = vmatpush1.xpose.msra.mxu0 0.0
    %4159 = vmatprep.mubr.f32.mxu0 0.0
    %v4160 = vand.u32 %v3937, 4294901760
    %v4161 = vsub.f32 %v3937, %v4160
    %4162 = vmatmul.mubr.f32.gmra.mrb[0].mxu0 %v4161
    %v4163 = vpop.f32.mrb[0].mxu0
    %v4164 = vadd.f32 %v4090, %v4163
    %v4165 = vpop.f32.mrb[0].mxu0
    %4166 = vdwg.mxu0
    %4167 = vmatprep.subr.mxu0 0.0
    %v4168 = vand.u32 %v3939, 4294901760
    %4169 = vmatpush1.xpose.msra.mxu0 %v4168
    %4170 = vmatprep.subr.mxu0 0.0
    %4171 = vmatpush1.xpose.msra.mxu0 0.0
    %4172 = vmatprep.subr.mxu0 0.0
    %4173 = vmatpush1.xpose.msra.mxu0 0.0
    %4174 = vmatprep.subr.mxu0 0.0
    %4175 = vmatpush1.xpose.msra.mxu0 0.0
    %4176 = vmatprep.subr.mxu0 0.0
    %4177 = vmatpush1.xpose.msra.mxu0 0.0
    %4178 = vmatprep.subr.mxu0 0.0
    %4179 = vmatpush1.xpose.msra.mxu0 0.0
    %4180 = vmatprep.subr.mxu0 0.0
    %4181 = vmatpush1.xpose.msra.mxu0 0.0
    %4182 = vmatprep.subr.mxu0 0.0
    %4183 = vmatpush1.xpose.msra.mxu0 0.0
    %4184 = vmatprep.subr.mxu0 0.0
    %4185 = vmatpush1.xpose.msra.mxu0 0.0
    %4186 = vmatprep.subr.mxu0 0.0
    %4187 = vmatpush1.xpose.msra.mxu0 0.0
    %4188 = vmatprep.subr.mxu0 0.0
    %4189 = vmatpush1.xpose.msra.mxu0 0.0
    %4190 = vmatprep.subr.mxu0 0.0
    %4191 = vmatpush1.xpose.msra.mxu0 0.0
    %4192 = vmatprep.subr.mxu0 0.0
    %4193 = vmatpush1.xpose.msra.mxu0 0.0
    %4194 = vmatprep.subr.mxu0 0.0
    %4195 = vmatpush1.xpose.msra.mxu0 0.0
    %4196 = vmatprep.subr.mxu0 0.0
    %4197 = vmatpush1.xpose.msra.mxu0 0.0
    %4198 = vmatprep.subr.mxu0 0.0
    %4199 = vmatpush1.xpose.msra.mxu0 0.0
    %4200 = vmatprep.subr.mxu0 0.0
    %4201 = vmatpush1.xpose.msra.mxu0 0.0
    %4202 = vmatprep.subr.mxu0 0.0
    %4203 = vmatpush1.xpose.msra.mxu0 0.0
    %4204 = vmatprep.subr.mxu0 0.0
    %4205 = vmatpush1.xpose.msra.mxu0 0.0
    %4206 = vmatprep.subr.mxu0 0.0
    %4207 = vmatpush1.xpose.msra.mxu0 0.0
    %4208 = vmatprep.subr.mxu0 0.0
    %4209 = vmatpush1.xpose.msra.mxu0 0.0
    %4210 = vmatprep.subr.mxu0 0.0
    %4211 = vmatpush1.xpose.msra.mxu0 0.0
    %4212 = vmatprep.subr.mxu0 0.0
    %4213 = vmatpush1.xpose.msra.mxu0 0.0
    %4214 = vmatprep.subr.mxu0 0.0
    %4215 = vmatpush1.xpose.msra.mxu0 0.0
    %4216 = vmatprep.subr.mxu0 0.0
    %4217 = vmatpush1.xpose.msra.mxu0 0.0
    %4218 = vmatprep.subr.mxu0 0.0
    %4219 = vmatpush1.xpose.msra.mxu0 0.0
    %4220 = vmatprep.subr.mxu0 0.0
    %4221 = vmatpush1.xpose.msra.mxu0 0.0
    %4222 = vmatprep.subr.mxu0 0.0
    %4223 = vmatpush1.xpose.msra.mxu0 0.0
    %4224 = vmatprep.subr.mxu0 0.0
    %4225 = vmatpush1.xpose.msra.mxu0 0.0
    %4226 = vmatprep.subr.mxu0 0.0
    %4227 = vmatpush1.xpose.msra.mxu0 0.0
    %4228 = vmatprep.subr.mxu0 0.0
    %4229 = vmatpush1.xpose.msra.mxu0 0.0
    %4230 = vmatprep.subr.mxu0 0.0
    %4231 = vmatpush1.xpose.msra.mxu0 0.0
    %4232 = vmatprep.mubr.f32.mxu0 0.0
    %v4233 = vand.u32 %v3937, 4294901760
    %v4234 = vsub.f32 %v3937, %v4233
    %v4235 = vand.u32 %v4234, 4294901760
    %4236 = vmatmul.mubr.f32.gmra.mrb[0].mxu0 %v4235
    %v4237 = vpop.f32.mrb[0].mxu0
    %v4238 = vadd.f32 %v4164, %v4237
    %v4239 = vpop.f32.mrb[0].mxu0
    %4240 = vdwg.mxu0
    %4241 = vmatprep.subr.mxu0 0.0
    %v4242 = vand.u32 %v3939, 4294901760
    %v4243 = vsub.f32 %v3939, %v4242
    %v4244 = vand.u32 %v4243, 4294901760
    %4245 = vmatpush1.xpose.msra.mxu0 %v4244
    %4246 = vmatprep.subr.mxu0 0.0
    %4247 = vmatpush1.xpose.msra.mxu0 0.0
    %4248 = vmatprep.subr.mxu0 0.0
    %4249 = vmatpush1.xpose.msra.mxu0 0.0
    %4250 = vmatprep.subr.mxu0 0.0
    %4251 = vmatpush1.xpose.msra.mxu0 0.0
    %4252 = vmatprep.subr.mxu0 0.0
    %4253 = vmatpush1.xpose.msra.mxu0 0.0
    %4254 = vmatprep.subr.mxu0 0.0
    %4255 = vmatpush1.xpose.msra.mxu0 0.0
    %4256 = vmatprep.subr.mxu0 0.0
    %4257 = vmatpush1.xpose.msra.mxu0 0.0
    %4258 = vmatprep.subr.mxu0 0.0
    %4259 = vmatpush1.xpose.msra.mxu0 0.0
    %4260 = vmatprep.subr.mxu0 0.0
    %4261 = vmatpush1.xpose.msra.mxu0 0.0
    %4262 = vmatprep.subr.mxu0 0.0
    %4263 = vmatpush1.xpose.msra.mxu0 0.0
    %4264 = vmatprep.subr.mxu0 0.0
    %4265 = vmatpush1.xpose.msra.mxu0 0.0
    %4266 = vmatprep.subr.mxu0 0.0
    %4267 = vmatpush1.xpose.msra.mxu0 0.0
    %4268 = vmatprep.subr.mxu0 0.0
    %4269 = vmatpush1.xpose.msra.mxu0 0.0
    %4270 = vmatprep.subr.mxu0 0.0
    %4271 = vmatpush1.xpose.msra.mxu0 0.0
    %4272 = vmatprep.subr.mxu0 0.0
    %4273 = vmatpush1.xpose.msra.mxu0 0.0
    %4274 = vmatprep.subr.mxu0 0.0
    %4275 = vmatpush1.xpose.msra.mxu0 0.0
    %4276 = vmatprep.subr.mxu0 0.0
    %4277 = vmatpush1.xpose.msra.mxu0 0.0
    %4278 = vmatprep.subr.mxu0 0.0
    %4279 = vmatpush1.xpose.msra.mxu0 0.0
    %4280 = vmatprep.subr.mxu0 0.0
    %4281 = vmatpush1.xpose.msra.mxu0 0.0
    %4282 = vmatprep.subr.mxu0 0.0
    %4283 = vmatpush1.xpose.msra.mxu0 0.0
    %4284 = vmatprep.subr.mxu0 0.0
    %4285 = vmatpush1.xpose.msra.mxu0 0.0
    %4286 = vmatprep.subr.mxu0 0.0
    %4287 = vmatpush1.xpose.msra.mxu0 0.0
    %4288 = vmatprep.subr.mxu0 0.0
    %4289 = vmatpush1.xpose.msra.mxu0 0.0
    %4290 = vmatprep.subr.mxu0 0.0
    %4291 = vmatpush1.xpose.msra.mxu0 0.0
    %4292 = vmatprep.subr.mxu0 0.0
    %4293 = vmatpush1.xpose.msra.mxu0 0.0
    %4294 = vmatprep.subr.mxu0 0.0
    %4295 = vmatpush1.xpose.msra.mxu0 0.0
    %4296 = vmatprep.subr.mxu0 0.0
    %4297 = vmatpush1.xpose.msra.mxu0 0.0
    %4298 = vmatprep.subr.mxu0 0.0
    %4299 = vmatpush1.xpose.msra.mxu0 0.0
    %4300 = vmatprep.subr.mxu0 0.0
    %4301 = vmatpush1.xpose.msra.mxu0 0.0
    %4302 = vmatprep.subr.mxu0 0.0
    %4303 = vmatpush1.xpose.msra.mxu0 0.0
    %4304 = vmatprep.subr.mxu0 0.0
    %4305 = vmatpush1.xpose.msra.mxu0 0.0
    %4306 = vmatprep.subr.mxu0 0.0
    %4307 = vmatpush1.xpose.msra.mxu0 0.0
    %4308 = vmatprep.mubr.f32.mxu0 0.0
    %v4309 = vand.u32 %v3937, 4294901760
    %4310 = vmatmul.mubr.f32.gmra.mrb[0].mxu0 %v4309
    %v4311 = vpop.f32.mrb[0].mxu0
    %v4312 = vadd.f32 %v4238, %v4311
    %v4313 = vpop.f32.mrb[0].mxu0
    %4314 = vdwg.mxu0
    %4315 = vmatprep.subr.mxu0 0.0
    %v4316 = vand.u32 %v3939, 4294901760
    %4317 = vmatpush1.xpose.msra.mxu0 %v4316
    %4318 = vmatprep.subr.mxu0 0.0
    %4319 = vmatpush1.xpose.msra.mxu0 0.0
    %4320 = vmatprep.subr.mxu0 0.0
    %4321 = vmatpush1.xpose.msra.mxu0 0.0
    %4322 = vmatprep.subr.mxu0 0.0
    %4323 = vmatpush1.xpose.msra.mxu0 0.0
    %4324 = vmatprep.subr.mxu0 0.0
    %4325 = vmatpush1.xpose.msra.mxu0 0.0
    %4326 = vmatprep.subr.mxu0 0.0
    %4327 = vmatpush1.xpose.msra.mxu0 0.0
    %4328 = vmatprep.subr.mxu0 0.0
    %4329 = vmatpush1.xpose.msra.mxu0 0.0
    %4330 = vmatprep.subr.mxu0 0.0
    %4331 = vmatpush1.xpose.msra.mxu0 0.0
    %4332 = vmatprep.subr.mxu0 0.0
    %4333 = vmatpush1.xpose.msra.mxu0 0.0
    %4334 = vmatprep.subr.mxu0 0.0
    %4335 = vmatpush1.xpose.msra.mxu0 0.0
    %4336 = vmatprep.subr.mxu0 0.0
    %4337 = vmatpush1.xpose.msra.mxu0 0.0
    %4338 = vmatprep.subr.mxu0 0.0
    %4339 = vmatpush1.xpose.msra.mxu0 0.0
    %4340 = vmatprep.subr.mxu0 0.0
    %4341 = vmatpush1.xpose.msra.mxu0 0.0
    %4342 = vmatprep.subr.mxu0 0.0
    %4343 = vmatpush1.xpose.msra.mxu0 0.0
    %4344 = vmatprep.subr.mxu0 0.0
    %4345 = vmatpush1.xpose.msra.mxu0 0.0
    %4346 = vmatprep.subr.mxu0 0.0
    %4347 = vmatpush1.xpose.msra.mxu0 0.0
    %4348 = vmatprep.subr.mxu0 0.0
    %4349 = vmatpush1.xpose.msra.mxu0 0.0
    %4350 = vmatprep.subr.mxu0 0.0
    %4351 = vmatpush1.xpose.msra.mxu0 0.0
    %4352 = vmatprep.subr.mxu0 0.0
    %4353 = vmatpush1.xpose.msra.mxu0 0.0
    %4354 = vmatprep.subr.mxu0 0.0
    %4355 = vmatpush1.xpose.msra.mxu0 0.0
    %4356 = vmatprep.subr.mxu0 0.0
    %4357 = vmatpush1.xpose.msra.mxu0 0.0
    %4358 = vmatprep.subr.mxu0 0.0
    %4359 = vmatpush1.xpose.msra.mxu0 0.0
    %4360 = vmatprep.subr.mxu0 0.0
    %4361 = vmatpush1.xpose.msra.mxu0 0.0
    %4362 = vmatprep.subr.mxu0 0.0
    %4363 = vmatpush1.xpose.msra.mxu0 0.0
    %4364 = vmatprep.subr.mxu0 0.0
    %4365 = vmatpush1.xpose.msra.mxu0 0.0
    %4366 = vmatprep.subr.mxu0 0.0
    %4367 = vmatpush1.xpose.msra.mxu0 0.0
    %4368 = vmatprep.subr.mxu0 0.0
    %4369 = vmatpush1.xpose.msra.mxu0 0.0
    %4370 = vmatprep.subr.mxu0 0.0
    %4371 = vmatpush1.xpose.msra.mxu0 0.0
    %4372 = vmatprep.subr.mxu0 0.0
    %4373 = vmatpush1.xpose.msra.mxu0 0.0
    %4374 = vmatprep.subr.mxu0 0.0
    %4375 = vmatpush1.xpose.msra.mxu0 0.0
    %4376 = vmatprep.subr.mxu0 0.0
    %4377 = vmatpush1.xpose.msra.mxu0 0.0
    %4378 = vmatprep.subr.mxu0 0.0
    %4379 = vmatpush1.xpose.msra.mxu0 0.0
    %4380 = vmatprep.mubr.f32.mxu0 0.0
    %v4381 = vand.u32 %v3937, 4294901760
    %4382 = vmatmul.mubr.f32.gmra.mrb[0].mxu0 %v4381
    %v4383 = vpop.f32.mrb[0].mxu0
    %v4384 = vadd.f32 %v4312, %v4383
    %v4385 = vpop.f32.mrb[0].mxu0
    %4386 = vdwg.mxu0
    %v4387 = vsel %vm757, %v1206, -inf
    %4388 = vmax.xlane.f32.xlu0 %v4387
    %v4389 = vpop.xlane.xlu0 %4388
    %v4390 = vsel %vm757, %v1660, -inf
    %4391 = vmax.xlane.f32.xlu0 %v4390
    %v4392 = vpop.xlane.xlu0 %4391
    %v4393 = vsel %vm757, %v2114, -inf
    %4394 = vmax.xlane.f32.xlu0 %v4393
    %v4395 = vpop.xlane.xlu0 %4394
    %v4396 = vsel %vm757, %v2568, -inf
    %4397 = vmax.xlane.f32.xlu0 %v4396
    %v4398 = vpop.xlane.xlu0 %4397
    %v4399 = vsel %vm757, %v3022, -inf
    %4400 = vmax.xlane.f32.xlu0 %v4399
    %v4401 = vpop.xlane.xlu0 %4400
    %v4402 = vsel %vm757, %v3476, -inf
    %4403 = vmax.xlane.f32.xlu0 %v4402
    %v4404 = vpop.xlane.xlu0 %4403
    %v4405 = vsel %vm757, %v3930, -inf
    %4406 = vmax.xlane.f32.xlu0 %v4405
    %v4407 = vpop.xlane.xlu0 %4406
    %v4408 = vsel %vm757, %v4384, -inf
    %4409 = vmax.xlane.f32.xlu0 %v4408
    %v4410 = vpop.xlane.xlu0 %4409
    %v4411 = vsub.f32 %v1206, %v4389
    %v4412 = vsub.f32 %v1660, %v4392
    %v4413 = vsub.f32 %v2114, %v4395
    %v4414 = vsub.f32 %v2568, %v4398
    %v4415 = vsub.f32 %v3022, %v4401
    %v4416 = vsub.f32 %v3476, %v4404
    %v4417 = vsub.f32 %v3930, %v4407
    %v4418 = vsub.f32 %v4384, %v4410
    %v4419 = vmul.f32 %v4411, 1.442695
    %v4420 = vpow.pop %v4419
    %v4421 = vmul.f32 %v4412, 1.442695
    %v4422 = vpow.pop %v4421
    %v4423 = vmul.f32 %v4413, 1.442695
    %v4424 = vpow.pop %v4423
    %v4425 = vmul.f32 %v4414, 1.442695
    %v4426 = vpow.pop %v4425
    %v4427 = vmul.f32 %v4415, 1.442695
    %v4428 = vpow.pop %v4427
    %v4429 = vmul.f32 %v4416, 1.442695
    %v4430 = vpow.pop %v4429
    %v4431 = vmul.f32 %v4417, 1.442695
    %v4432 = vpow.pop %v4431
    %v4433 = vmul.f32 %v4418, 1.442695
    %v4434 = vpow.pop %v4433
    %v4435 = vsel %vm757, %v4420, 0.0
    %4436 = vadd.xlane.f32.xlu0 %v4435
    %v4437 = vpop.xlane.xlu0 %4436
    %v4438 = vsel %vm757, %v4422, 0.0
    %4439 = vadd.xlane.f32.xlu0 %v4438
    %v4440 = vpop.xlane.xlu0 %4439
    %v4441 = vsel %vm757, %v4424, 0.0
    %4442 = vadd.xlane.f32.xlu0 %v4441
    %v4443 = vpop.xlane.xlu0 %4442
    %v4444 = vsel %vm757, %v4426, 0.0
    %4445 = vadd.xlane.f32.xlu0 %v4444
    %v4446 = vpop.xlane.xlu0 %4445
    %v4447 = vsel %vm757, %v4428, 0.0
    %4448 = vadd.xlane.f32.xlu0 %v4447
    %v4449 = vpop.xlane.xlu0 %4448
    %v4450 = vsel %vm757, %v4430, 0.0
    %4451 = vadd.xlane.f32.xlu0 %v4450
    %v4452 = vpop.xlane.xlu0 %4451
    %v4453 = vsel %vm757, %v4432, 0.0
    %4454 = vadd.xlane.f32.xlu0 %v4453
    %v4455 = vpop.xlane.xlu0 %4454
    %v4456 = vsel %vm757, %v4434, 0.0
    %4457 = vadd.xlane.f32.xlu0 %v4456
    %v4458 = vpop.xlane.xlu0 %4457
    %v4459 = vrcp.pop %v4437
    %v4460 = vmul.f32 %v4420, %v4459
    %v4461 = vrcp.pop %v4440
    %v4462 = vmul.f32 %v4422, %v4461
    %v4463 = vrcp.pop %v4443
    %v4464 = vmul.f32 %v4424, %v4463
    %v4465 = vrcp.pop %v4446
    %v4466 = vmul.f32 %v4426, %v4465
    %v4467 = vrcp.pop %v4449
    %v4468 = vmul.f32 %v4428, %v4467
    %v4469 = vrcp.pop %v4452
    %v4470 = vmul.f32 %v4430, %v4469
    %v4471 = vrcp.pop %v4455
    %v4472 = vmul.f32 %v4432, %v4471
    %v4473 = vrcp.pop %v4458
    %v4474 = vmul.f32 %v4434, %v4473
    %4476 = vrot.lane.b32.xlu0 %v743, 64
    %v4477 = vpop.permute.xlu0 %4476
    %v4480 = vsel %vm757, %v4460, 0
    %4482 = vmatprep.subr.mxu0 0.0
    %v4483 = vand.u32 %v4477, 4294901760
    %4484 = vmatpush1.msra.mxu0 %v4483
    %4485 = vmatprep.subr.mxu0 0.0
    %4486 = vmatpush1.msra.mxu0 0.0
    %4487 = vmatprep.subr.mxu0 0.0
    %4488 = vmatpush1.msra.mxu0 0.0
    %4489 = vmatprep.subr.mxu0 0.0
    %4490 = vmatpush1.msra.mxu0 0.0
    %4491 = vmatprep.subr.mxu0 0.0
    %4492 = vmatpush1.msra.mxu0 0.0
    %4493 = vmatprep.subr.mxu0 0.0
    %4494 = vmatpush1.msra.mxu0 0.0
    %4495 = vmatprep.subr.mxu0 0.0
    %4496 = vmatpush1.msra.mxu0 0.0
    %4497 = vmatprep.subr.mxu0 0.0
    %4498 = vmatpush1.msra.mxu0 0.0
    %4499 = vmatprep.subr.mxu0 0.0
    %4500 = vmatpush1.msra.mxu0 0.0
    %4501 = vmatprep.subr.mxu0 0.0
    %4502 = vmatpush1.msra.mxu0 0.0
    %4503 = vmatprep.subr.mxu0 0.0
    %4504 = vmatpush1.msra.mxu0 0.0
    %4505 = vmatprep.subr.mxu0 0.0
    %4506 = vmatpush1.msra.mxu0 0.0
    %4507 = vmatprep.subr.mxu0 0.0
    %4508 = vmatpush1.msra.mxu0 0.0
    %4509 = vmatprep.subr.mxu0 0.0
    %4510 = vmatpush1.msra.mxu0 0.0
    %4511 = vmatprep.subr.mxu0 0.0
    %4512 = vmatpush1.msra.mxu0 0.0
    %4513 = vmatprep.subr.mxu0 0.0
    %4514 = vmatpush1.msra.mxu0 0.0
    %4515 = vmatprep.subr.mxu0 0.0
    %4516 = vmatpush1.msra.mxu0 0.0
    %4517 = vmatprep.subr.mxu0 0.0
    %4518 = vmatpush1.msra.mxu0 0.0
    %4519 = vmatprep.subr.mxu0 0.0
    %4520 = vmatpush1.msra.mxu0 0.0
    %4521 = vmatprep.subr.mxu0 0.0
    %4522 = vmatpush1.msra.mxu0 0.0
    %4523 = vmatprep.subr.mxu0 0.0
    %4524 = vmatpush1.msra.mxu0 0.0
    %4525 = vmatprep.subr.mxu0 0.0
    %4526 = vmatpush1.msra.mxu0 0.0
    %4527 = vmatprep.subr.mxu0 0.0
    %4528 = vmatpush1.msra.mxu0 0.0
    %4529 = vmatprep.subr.mxu0 0.0
    %4530 = vmatpush1.msra.mxu0 0.0
    %4531 = vmatprep.subr.mxu0 0.0
    %4532 = vmatpush1.msra.mxu0 0.0
    %4533 = vmatprep.subr.mxu0 0.0
    %4534 = vmatpush1.msra.mxu0 0.0
    %4535 = vmatprep.subr.mxu0 0.0
    %4536 = vmatpush1.msra.mxu0 0.0
    %4537 = vmatprep.subr.mxu0 0.0
    %4538 = vmatpush1.msra.mxu0 0.0
    %4539 = vmatprep.subr.mxu0 0.0
    %4540 = vmatpush1.msra.mxu0 0.0
    %4541 = vmatprep.subr.mxu0 0.0
    %4542 = vmatpush1.msra.mxu0 0.0
    %4543 = vmatprep.subr.mxu0 0.0
    %4544 = vmatpush1.msra.mxu0 0.0
    %4545 = vmatprep.subr.mxu0 0.0
    %4546 = vmatpush1.msra.mxu0 0.0
    %4547 = vmatprep.mubr.f32.mxu0 0.0
    %v4548 = vand.u32 %v4480, 4294901760
    %v4549 = vsub.f32 %v4480, %v4548
    %v4550 = vand.u32 %v4549, 4294901760
    %v4551 = vsub.f32 %v4549, %v4550
    %v4552 = vand.u32 %v4551, 4294901760
    %4553 = vmatmul.mubr.f32.gmra.mrb[0].mxu0 %v4552
    %v4554 = vpop.f32.mrb[0].mxu0
    %v4555 = vadd.f32 0.0, %v4554
    %v4556 = vpop.f32.mrb[0].mxu0
    %4557 = vdwg.mxu0
    %4558 = vmatprep.subr.mxu0 0.0
    %v4559 = vand.u32 %v4477, 4294901760
    %v4560 = vsub.f32 %v4477, %v4559
    %v4561 = vand.u32 %v4560, 4294901760
    %v4562 = vsub.f32 %v4560, %v4561
    %v4563 = vand.u32 %v4562, 4294901760
    %4564 = vmatpush1.msra.mxu0 %v4563
    %4565 = vmatprep.subr.mxu0 0.0
    %4566 = vmatpush1.msra.mxu0 0.0
    %4567 = vmatprep.subr.mxu0 0.0
    %4568 = vmatpush1.msra.mxu0 0.0
    %4569 = vmatprep.subr.mxu0 0.0
    %4570 = vmatpush1.msra.mxu0 0.0
    %4571 = vmatprep.subr.mxu0 0.0
    %4572 = vmatpush1.msra.mxu0 0.0
    %4573 = vmatprep.subr.mxu0 0.0
    %4574 = vmatpush1.msra.mxu0 0.0
    %4575 = vmatprep.subr.mxu0 0.0
    %4576 = vmatpush1.msra.mxu0 0.0
    %4577 = vmatprep.subr.mxu0 0.0
    %4578 = vmatpush1.msra.mxu0 0.0
    %4579 = vmatprep.subr.mxu0 0.0
    %4580 = vmatpush1.msra.mxu0 0.0
    %4581 = vmatprep.subr.mxu0 0.0
    %4582 = vmatpush1.msra.mxu0 0.0
    %4583 = vmatprep.subr.mxu0 0.0
    %4584 = vmatpush1.msra.mxu0 0.0
    %4585 = vmatprep.subr.mxu0 0.0
    %4586 = vmatpush1.msra.mxu0 0.0
    %4587 = vmatprep.subr.mxu0 0.0
    %4588 = vmatpush1.msra.mxu0 0.0
    %4589 = vmatprep.subr.mxu0 0.0
    %4590 = vmatpush1.msra.mxu0 0.0
    %4591 = vmatprep.subr.mxu0 0.0
    %4592 = vmatpush1.msra.mxu0 0.0
    %4593 = vmatprep.subr.mxu0 0.0
    %4594 = vmatpush1.msra.mxu0 0.0
    %4595 = vmatprep.subr.mxu0 0.0
    %4596 = vmatpush1.msra.mxu0 0.0
    %4597 = vmatprep.subr.mxu0 0.0
    %4598 = vmatpush1.msra.mxu0 0.0
    %4599 = vmatprep.subr.mxu0 0.0
    %4600 = vmatpush1.msra.mxu0 0.0
    %4601 = vmatprep.subr.mxu0 0.0
    %4602 = vmatpush1.msra.mxu0 0.0
    %4603 = vmatprep.subr.mxu0 0.0
    %4604 = vmatpush1.msra.mxu0 0.0
    %4605 = vmatprep.subr.mxu0 0.0
    %4606 = vmatpush1.msra.mxu0 0.0
    %4607 = vmatprep.subr.mxu0 0.0
    %4608 = vmatpush1.msra.mxu0 0.0
    %4609 = vmatprep.subr.mxu0 0.0
    %4610 = vmatpush1.msra.mxu0 0.0
    %4611 = vmatprep.subr.mxu0 0.0
    %4612 = vmatpush1.msra.mxu0 0.0
    %4613 = vmatprep.subr.mxu0 0.0
    %4614 = vmatpush1.msra.mxu0 0.0
    %4615 = vmatprep.subr.mxu0 0.0
    %4616 = vmatpush1.msra.mxu0 0.0
    %4617 = vmatprep.subr.mxu0 0.0
    %4618 = vmatpush1.msra.mxu0 0.0
    %4619 = vmatprep.subr.mxu0 0.0
    %4620 = vmatpush1.msra.mxu0 0.0
    %4621 = vmatprep.subr.mxu0 0.0
    %4622 = vmatpush1.msra.mxu0 0.0
    %4623 = vmatprep.subr.mxu0 0.0
    %4624 = vmatpush1.msra.mxu0 0.0
    %4625 = vmatprep.subr.mxu0 0.0
    %4626 = vmatpush1.msra.mxu0 0.0
    %4627 = vmatprep.mubr.f32.mxu0 0.0
    %v4628 = vand.u32 %v4480, 4294901760
    %4629 = vmatmul.mubr.f32.gmra.mrb[0].mxu0 %v4628
    %v4630 = vpop.f32.mrb[0].mxu0
    %v4631 = vadd.f32 %v4555, %v4630
    %v4632 = vpop.f32.mrb[0].mxu0
    %4633 = vdwg.mxu0
    %4634 = vmatprep.subr.mxu0 0.0
    %v4635 = vand.u32 %v4477, 4294901760
    %v4636 = vsub.f32 %v4477, %v4635
    %4637 = vmatpush1.msra.mxu0 %v4636
    %4638 = vmatprep.subr.mxu0 0.0
    %4639 = vmatpush1.msra.mxu0 0.0
    %4640 = vmatprep.subr.mxu0 0.0
    %4641 = vmatpush1.msra.mxu0 0.0
    %4642 = vmatprep.subr.mxu0 0.0
    %4643 = vmatpush1.msra.mxu0 0.0
    %4644 = vmatprep.subr.mxu0 0.0
    %4645 = vmatpush1.msra.mxu0 0.0
    %4646 = vmatprep.subr.mxu0 0.0
    %4647 = vmatpush1.msra.mxu0 0.0
    %4648 = vmatprep.subr.mxu0 0.0
    %4649 = vmatpush1.msra.mxu0 0.0
    %4650 = vmatprep.subr.mxu0 0.0
    %4651 = vmatpush1.msra.mxu0 0.0
    %4652 = vmatprep.subr.mxu0 0.0
    %4653 = vmatpush1.msra.mxu0 0.0
    %4654 = vmatprep.subr.mxu0 0.0
    %4655 = vmatpush1.msra.mxu0 0.0
    %4656 = vmatprep.subr.mxu0 0.0
    %4657 = vmatpush1.msra.mxu0 0.0
    %4658 = vmatprep.subr.mxu0 0.0
    %4659 = vmatpush1.msra.mxu0 0.0
    %4660 = vmatprep.subr.mxu0 0.0
    %4661 = vmatpush1.msra.mxu0 0.0
    %4662 = vmatprep.subr.mxu0 0.0
    %4663 = vmatpush1.msra.mxu0 0.0
    %4664 = vmatprep.subr.mxu0 0.0
    %4665 = vmatpush1.msra.mxu0 0.0
    %4666 = vmatprep.subr.mxu0 0.0
    %4667 = vmatpush1.msra.mxu0 0.0
    %4668 = vmatprep.subr.mxu0 0.0
    %4669 = vmatpush1.msra.mxu0 0.0
    %4670 = vmatprep.subr.mxu0 0.0
    %4671 = vmatpush1.msra.mxu0 0.0
    %4672 = vmatprep.subr.mxu0 0.0
    %4673 = vmatpush1.msra.mxu0 0.0
    %4674 = vmatprep.subr.mxu0 0.0
    %4675 = vmatpush1.msra.mxu0 0.0
    %4676 = vmatprep.subr.mxu0 0.0
    %4677 = vmatpush1.msra.mxu0 0.0
    %4678 = vmatprep.subr.mxu0 0.0
    %4679 = vmatpush1.msra.mxu0 0.0
    %4680 = vmatprep.subr.mxu0 0.0
    %4681 = vmatpush1.msra.mxu0 0.0
    %4682 = vmatprep.subr.mxu0 0.0
    %4683 = vmatpush1.msra.mxu0 0.0
    %4684 = vmatprep.subr.mxu0 0.0
    %4685 = vmatpush1.msra.mxu0 0.0
    %4686 = vmatprep.subr.mxu0 0.0
    %4687 = vmatpush1.msra.mxu0 0.0
    %4688 = vmatprep.subr.mxu0 0.0
    %4689 = vmatpush1.msra.mxu0 0.0
    %4690 = vmatprep.subr.mxu0 0.0
    %4691 = vmatpush1.msra.mxu0 0.0
    %4692 = vmatprep.subr.mxu0 0.0
    %4693 = vmatpush1.msra.mxu0 0.0
    %4694 = vmatprep.subr.mxu0 0.0
    %4695 = vmatpush1.msra.mxu0 0.0
    %4696 = vmatprep.subr.mxu0 0.0
    %4697 = vmatpush1.msra.mxu0 0.0
    %4698 = vmatprep.subr.mxu0 0.0
    %4699 = vmatpush1.msra.mxu0 0.0
    %4700 = vmatprep.mubr.f32.mxu0 0.0
    %v4701 = vand.u32 %v4480, 4294901760
    %v4702 = vsub.f32 %v4480, %v4701
    %4703 = vmatmul.mubr.f32.gmra.mrb[0].mxu0 %v4702
    %v4704 = vpop.f32.mrb[0].mxu0
    %v4705 = vadd.f32 %v4631, %v4704
    %v4706 = vpop.f32.mrb[0].mxu0
    %4707 = vdwg.mxu0
    %4708 = vmatprep.subr.mxu0 0.0
    %v4709 = vand.u32 %v4477, 4294901760
    %4710 = vmatpush1.msra.mxu0 %v4709
    %4711 = vmatprep.subr.mxu0 0.0
    %4712 = vmatpush1.msra.mxu0 0.0
    %4713 = vmatprep.subr.mxu0 0.0
    %4714 = vmatpush1.msra.mxu0 0.0
    %4715 = vmatprep.subr.mxu0 0.0
    %4716 = vmatpush1.msra.mxu0 0.0
    %4717 = vmatprep.subr.mxu0 0.0
    %4718 = vmatpush1.msra.mxu0 0.0
    %4719 = vmatprep.subr.mxu0 0.0
    %4720 = vmatpush1.msra.mxu0 0.0
    %4721 = vmatprep.subr.mxu0 0.0
    %4722 = vmatpush1.msra.mxu0 0.0
    %4723 = vmatprep.subr.mxu0 0.0
    %4724 = vmatpush1.msra.mxu0 0.0
    %4725 = vmatprep.subr.mxu0 0.0
    %4726 = vmatpush1.msra.mxu0 0.0
    %4727 = vmatprep.subr.mxu0 0.0
    %4728 = vmatpush1.msra.mxu0 0.0
    %4729 = vmatprep.subr.mxu0 0.0
    %4730 = vmatpush1.msra.mxu0 0.0
    %4731 = vmatprep.subr.mxu0 0.0
    %4732 = vmatpush1.msra.mxu0 0.0
    %4733 = vmatprep.subr.mxu0 0.0
    %4734 = vmatpush1.msra.mxu0 0.0
    %4735 = vmatprep.subr.mxu0 0.0
    %4736 = vmatpush1.msra.mxu0 0.0
    %4737 = vmatprep.subr.mxu0 0.0
    %4738 = vmatpush1.msra.mxu0 0.0
    %4739 = vmatprep.subr.mxu0 0.0
    %4740 = vmatpush1.msra.mxu0 0.0
    %4741 = vmatprep.subr.mxu0 0.0
    %4742 = vmatpush1.msra.mxu0 0.0
    %4743 = vmatprep.subr.mxu0 0.0
    %4744 = vmatpush1.msra.mxu0 0.0
    %4745 = vmatprep.subr.mxu0 0.0
    %4746 = vmatpush1.msra.mxu0 0.0
    %4747 = vmatprep.subr.mxu0 0.0
    %4748 = vmatpush1.msra.mxu0 0.0
    %4749 = vmatprep.subr.mxu0 0.0
    %4750 = vmatpush1.msra.mxu0 0.0
    %4751 = vmatprep.subr.mxu0 0.0
    %4752 = vmatpush1.msra.mxu0 0.0
    %4753 = vmatprep.subr.mxu0 0.0
    %4754 = vmatpush1.msra.mxu0 0.0
    %4755 = vmatprep.subr.mxu0 0.0
    %4756 = vmatpush1.msra.mxu0 0.0
    %4757 = vmatprep.subr.mxu0 0.0
    %4758 = vmatpush1.msra.mxu0 0.0
    %4759 = vmatprep.subr.mxu0 0.0
    %4760 = vmatpush1.msra.mxu0 0.0
    %4761 = vmatprep.subr.mxu0 0.0
    %4762 = vmatpush1.msra.mxu0 0.0
    %4763 = vmatprep.subr.mxu0 0.0
    %4764 = vmatpush1.msra.mxu0 0.0
    %4765 = vmatprep.subr.mxu0 0.0
    %4766 = vmatpush1.msra.mxu0 0.0
    %4767 = vmatprep.subr.mxu0 0.0
    %4768 = vmatpush1.msra.mxu0 0.0
    %4769 = vmatprep.subr.mxu0 0.0
    %4770 = vmatpush1.msra.mxu0 0.0
    %4771 = vmatprep.subr.mxu0 0.0
    %4772 = vmatpush1.msra.mxu0 0.0
    %4773 = vmatprep.mubr.f32.mxu0 0.0
    %v4774 = vand.u32 %v4480, 4294901760
    %v4775 = vsub.f32 %v4480, %v4774
    %v4776 = vand.u32 %v4775, 4294901760
    %4777 = vmatmul.mubr.f32.gmra.mrb[0].mxu0 %v4776
    %v4778 = vpop.f32.mrb[0].mxu0
    %v4779 = vadd.f32 %v4705, %v4778
    %v4780 = vpop.f32.mrb[0].mxu0
    %4781 = vdwg.mxu0
    %4782 = vmatprep.subr.mxu0 0.0
    %v4783 = vand.u32 %v4477, 4294901760
    %v4784 = vsub.f32 %v4477, %v4783
    %v4785 = vand.u32 %v4784, 4294901760
    %4786 = vmatpush1.msra.mxu0 %v4785
    %4787 = vmatprep.subr.mxu0 0.0
    %4788 = vmatpush1.msra.mxu0 0.0
    %4789 = vmatprep.subr.mxu0 0.0
    %4790 = vmatpush1.msra.mxu0 0.0
    %4791 = vmatprep.subr.mxu0 0.0
    %4792 = vmatpush1.msra.mxu0 0.0
    %4793 = vmatprep.subr.mxu0 0.0
    %4794 = vmatpush1.msra.mxu0 0.0
    %4795 = vmatprep.subr.mxu0 0.0
    %4796 = vmatpush1.msra.mxu0 0.0
    %4797 = vmatprep.subr.mxu0 0.0
    %4798 = vmatpush1.msra.mxu0 0.0
    %4799 = vmatprep.subr.mxu0 0.0
    %4800 = vmatpush1.msra.mxu0 0.0
    %4801 = vmatprep.subr.mxu0 0.0
    %4802 = vmatpush1.msra.mxu0 0.0
    %4803 = vmatprep.subr.mxu0 0.0
    %4804 = vmatpush1.msra.mxu0 0.0
    %4805 = vmatprep.subr.mxu0 0.0
    %4806 = vmatpush1.msra.mxu0 0.0
    %4807 = vmatprep.subr.mxu0 0.0
    %4808 = vmatpush1.msra.mxu0 0.0
    %4809 = vmatprep.subr.mxu0 0.0
    %4810 = vmatpush1.msra.mxu0 0.0
    %4811 = vmatprep.subr.mxu0 0.0
    %4812 = vmatpush1.msra.mxu0 0.0
    %4813 = vmatprep.subr.mxu0 0.0
    %4814 = vmatpush1.msra.mxu0 0.0
    %4815 = vmatprep.subr.mxu0 0.0
    %4816 = vmatpush1.msra.mxu0 0.0
    %4817 = vmatprep.subr.mxu0 0.0
    %4818 = vmatpush1.msra.mxu0 0.0
    %4819 = vmatprep.subr.mxu0 0.0
    %4820 = vmatpush1.msra.mxu0 0.0
    %4821 = vmatprep.subr.mxu0 0.0
    %4822 = vmatpush1.msra.mxu0 0.0
    %4823 = vmatprep.subr.mxu0 0.0
    %4824 = vmatpush1.msra.mxu0 0.0
    %4825 = vmatprep.subr.mxu0 0.0
    %4826 = vmatpush1.msra.mxu0 0.0
    %4827 = vmatprep.subr.mxu0 0.0
    %4828 = vmatpush1.msra.mxu0 0.0
    %4829 = vmatprep.subr.mxu0 0.0
    %4830 = vmatpush1.msra.mxu0 0.0
    %4831 = vmatprep.subr.mxu0 0.0
    %4832 = vmatpush1.msra.mxu0 0.0
    %4833 = vmatprep.subr.mxu0 0.0
    %4834 = vmatpush1.msra.mxu0 0.0
    %4835 = vmatprep.subr.mxu0 0.0
    %4836 = vmatpush1.msra.mxu0 0.0
    %4837 = vmatprep.subr.mxu0 0.0
    %4838 = vmatpush1.msra.mxu0 0.0
    %4839 = vmatprep.subr.mxu0 0.0
    %4840 = vmatpush1.msra.mxu0 0.0
    %4841 = vmatprep.subr.mxu0 0.0
    %4842 = vmatpush1.msra.mxu0 0.0
    %4843 = vmatprep.subr.mxu0 0.0
    %4844 = vmatpush1.msra.mxu0 0.0
    %4845 = vmatprep.subr.mxu0 0.0
    %4846 = vmatpush1.msra.mxu0 0.0
    %4847 = vmatprep.subr.mxu0 0.0
    %4848 = vmatpush1.msra.mxu0 0.0
    %4849 = vmatprep.mubr.f32.mxu0 0.0
    %v4850 = vand.u32 %v4480, 4294901760
    %4851 = vmatmul.mubr.f32.gmra.mrb[0].mxu0 %v4850
    %v4852 = vpop.f32.mrb[0].mxu0
    %v4853 = vadd.f32 %v4779, %v4852
    %v4854 = vpop.f32.mrb[0].mxu0
    %4855 = vdwg.mxu0
    %4856 = vmatprep.subr.mxu0 0.0
    %v4857 = vand.u32 %v4477, 4294901760
    %4858 = vmatpush1.msra.mxu0 %v4857
    %4859 = vmatprep.subr.mxu0 0.0
    %4860 = vmatpush1.msra.mxu0 0.0
    %4861 = vmatprep.subr.mxu0 0.0
    %4862 = vmatpush1.msra.mxu0 0.0
    %4863 = vmatprep.subr.mxu0 0.0
    %4864 = vmatpush1.msra.mxu0 0.0
    %4865 = vmatprep.subr.mxu0 0.0
    %4866 = vmatpush1.msra.mxu0 0.0
    %4867 = vmatprep.subr.mxu0 0.0
    %4868 = vmatpush1.msra.mxu0 0.0
    %4869 = vmatprep.subr.mxu0 0.0
    %4870 = vmatpush1.msra.mxu0 0.0
    %4871 = vmatprep.subr.mxu0 0.0
    %4872 = vmatpush1.msra.mxu0 0.0
    %4873 = vmatprep.subr.mxu0 0.0
    %4874 = vmatpush1.msra.mxu0 0.0
    %4875 = vmatprep.subr.mxu0 0.0
    %4876 = vmatpush1.msra.mxu0 0.0
    %4877 = vmatprep.subr.mxu0 0.0
    %4878 = vmatpush1.msra.mxu0 0.0
    %4879 = vmatprep.subr.mxu0 0.0
    %4880 = vmatpush1.msra.mxu0 0.0
    %4881 = vmatprep.subr.mxu0 0.0
    %4882 = vmatpush1.msra.mxu0 0.0
    %4883 = vmatprep.subr.mxu0 0.0
    %4884 = vmatpush1.msra.mxu0 0.0
    %4885 = vmatprep.subr.mxu0 0.0
    %4886 = vmatpush1.msra.mxu0 0.0
    %4887 = vmatprep.subr.mxu0 0.0
    %4888 = vmatpush1.msra.mxu0 0.0
    %4889 = vmatprep.subr.mxu0 0.0
    %4890 = vmatpush1.msra.mxu0 0.0
    %4891 = vmatprep.subr.mxu0 0.0
    %4892 = vmatpush1.msra.mxu0 0.0
    %4893 = vmatprep.subr.mxu0 0.0
    %4894 = vmatpush1.msra.mxu0 0.0
    %4895 = vmatprep.subr.mxu0 0.0
    %4896 = vmatpush1.msra.mxu0 0.0
    %4897 = vmatprep.subr.mxu0 0.0
    %4898 = vmatpush1.msra.mxu0 0.0
    %4899 = vmatprep.subr.mxu0 0.0
    %4900 = vmatpush1.msra.mxu0 0.0
    %4901 = vmatprep.subr.mxu0 0.0
    %4902 = vmatpush1.msra.mxu0 0.0
    %4903 = vmatprep.subr.mxu0 0.0
    %4904 = vmatpush1.msra.mxu0 0.0
    %4905 = vmatprep.subr.mxu0 0.0
    %4906 = vmatpush1.msra.mxu0 0.0
    %4907 = vmatprep.subr.mxu0 0.0
    %4908 = vmatpush1.msra.mxu0 0.0
    %4909 = vmatprep.subr.mxu0 0.0
    %4910 = vmatpush1.msra.mxu0 0.0
    %4911 = vmatprep.subr.mxu0 0.0
    %4912 = vmatpush1.msra.mxu0 0.0
    %4913 = vmatprep.subr.mxu0 0.0
    %4914 = vmatpush1.msra.mxu0 0.0
    %4915 = vmatprep.subr.mxu0 0.0
    %4916 = vmatpush1.msra.mxu0 0.0
    %4917 = vmatprep.subr.mxu0 0.0
    %4918 = vmatpush1.msra.mxu0 0.0
    %4919 = vmatprep.subr.mxu0 0.0
    %4920 = vmatpush1.msra.mxu0 0.0
    %4921 = vmatprep.mubr.f32.mxu0 0.0
    %v4922 = vand.u32 %v4480, 4294901760
    %4923 = vmatmul.mubr.f32.gmra.mrb[0].mxu0 %v4922
    %v4924 = vpop.f32.mrb[0].mxu0
    %v4925 = vadd.f32 %v4853, %v4924
    %v4926 = vpop.f32.mrb[0].mxu0
    %4927 = vdwg.mxu0
    %4928 = vst.msk [vmem:[#allocation2] sm:$0xff] %vm757, %v4925
    %4929 = vrot.lane.b32.xlu0 %v743, 56
    %v4930 = vpop.permute.xlu0 %4929
    %v4933 = vsel %vm757, %v4462, 0
    %4935 = vmatprep.subr.mxu0 0.0
    %v4936 = vand.u32 %v4930, 4294901760
    %4937 = vmatpush1.msra.mxu0 %v4936
    %4938 = vmatprep.subr.mxu0 0.0
    %4939 = vmatpush1.msra.mxu0 0.0
    %4940 = vmatprep.subr.mxu0 0.0
    %4941 = vmatpush1.msra.mxu0 0.0
    %4942 = vmatprep.subr.mxu0 0.0
    %4943 = vmatpush1.msra.mxu0 0.0
    %4944 = vmatprep.subr.mxu0 0.0
    %4945 = vmatpush1.msra.mxu0 0.0
    %4946 = vmatprep.subr.mxu0 0.0
    %4947 = vmatpush1.msra.mxu0 0.0
    %4948 = vmatprep.subr.mxu0 0.0
    %4949 = vmatpush1.msra.mxu0 0.0
    %4950 = vmatprep.subr.mxu0 0.0
    %4951 = vmatpush1.msra.mxu0 0.0
    %4952 = vmatprep.subr.mxu0 0.0
    %4953 = vmatpush1.msra.mxu0 0.0
    %4954 = vmatprep.subr.mxu0 0.0
    %4955 = vmatpush1.msra.mxu0 0.0
    %4956 = vmatprep.subr.mxu0 0.0
    %4957 = vmatpush1.msra.mxu0 0.0
    %4958 = vmatprep.subr.mxu0 0.0
    %4959 = vmatpush1.msra.mxu0 0.0
    %4960 = vmatprep.subr.mxu0 0.0
    %4961 = vmatpush1.msra.mxu0 0.0
    %4962 = vmatprep.subr.mxu0 0.0
    %4963 = vmatpush1.msra.mxu0 0.0
    %4964 = vmatprep.subr.mxu0 0.0
    %4965 = vmatpush1.msra.mxu0 0.0
    %4966 = vmatprep.subr.mxu0 0.0
    %4967 = vmatpush1.msra.mxu0 0.0
    %4968 = vmatprep.subr.mxu0 0.0
    %4969 = vmatpush1.msra.mxu0 0.0
    %4970 = vmatprep.subr.mxu0 0.0
    %4971 = vmatpush1.msra.mxu0 0.0
    %4972 = vmatprep.subr.mxu0 0.0
    %4973 = vmatpush1.msra.mxu0 0.0
    %4974 = vmatprep.subr.mxu0 0.0
    %4975 = vmatpush1.msra.mxu0 0.0
    %4976 = vmatprep.subr.mxu0 0.0
    %4977 = vmatpush1.msra.mxu0 0.0
    %4978 = vmatprep.subr.mxu0 0.0
    %4979 = vmatpush1.msra.mxu0 0.0
    %4980 = vmatprep.subr.mxu0 0.0
    %4981 = vmatpush1.msra.mxu0 0.0
    %4982 = vmatprep.subr.mxu0 0.0
    %4983 = vmatpush1.msra.mxu0 0.0
    %4984 = vmatprep.subr.mxu0 0.0
    %4985 = vmatpush1.msra.mxu0 0.0
    %4986 = vmatprep.subr.mxu0 0.0
    %4987 = vmatpush1.msra.mxu0 0.0
    %4988 = vmatprep.subr.mxu0 0.0
    %4989 = vmatpush1.msra.mxu0 0.0
    %4990 = vmatprep.subr.mxu0 0.0
    %4991 = vmatpush1.msra.mxu0 0.0
    %4992 = vmatprep.subr.mxu0 0.0
    %4993 = vmatpush1.msra.mxu0 0.0
    %4994 = vmatprep.subr.mxu0 0.0
    %4995 = vmatpush1.msra.mxu0 0.0
    %4996 = vmatprep.subr.mxu0 0.0
    %4997 = vmatpush1.msra.mxu0 0.0
    %4998 = vmatprep.subr.mxu0 0.0
    %4999 = vmatpush1.msra.mxu0 0.0
    %5000 = vmatprep.mubr.f32.mxu0 0.0
    %v5001 = vand.u32 %v4933, 4294901760
    %v5002 = vsub.f32 %v4933, %v5001
    %v5003 = vand.u32 %v5002, 4294901760
    %v5004 = vsub.f32 %v5002, %v5003
    %v5005 = vand.u32 %v5004, 4294901760
    %5006 = vmatmul.mubr.f32.gmra.mrb[0].mxu0 %v5005
    %v5007 = vpop.f32.mrb[0].mxu0
    %v5008 = vadd.f32 0.0, %v5007
    %v5009 = vpop.f32.mrb[0].mxu0
    %5010 = vdwg.mxu0
    %5011 = vmatprep.subr.mxu0 0.0
    %v5012 = vand.u32 %v4930, 4294901760
    %v5013 = vsub.f32 %v4930, %v5012
    %v5014 = vand.u32 %v5013, 4294901760
    %v5015 = vsub.f32 %v5013, %v5014
    %v5016 = vand.u32 %v5015, 4294901760
    %5017 = vmatpush1.msra.mxu0 %v5016
    %5018 = vmatprep.subr.mxu0 0.0
    %5019 = vmatpush1.msra.mxu0 0.0
    %5020 = vmatprep.subr.mxu0 0.0
    %5021 = vmatpush1.msra.mxu0 0.0
    %5022 = vmatprep.subr.mxu0 0.0
    %5023 = vmatpush1.msra.mxu0 0.0
    %5024 = vmatprep.subr.mxu0 0.0
    %5025 = vmatpush1.msra.mxu0 0.0
    %5026 = vmatprep.subr.mxu0 0.0
    %5027 = vmatpush1.msra.mxu0 0.0
    %5028 = vmatprep.subr.mxu0 0.0
    %5029 = vmatpush1.msra.mxu0 0.0
    %5030 = vmatprep.subr.mxu0 0.0
    %5031 = vmatpush1.msra.mxu0 0.0
    %5032 = vmatprep.subr.mxu0 0.0
    %5033 = vmatpush1.msra.mxu0 0.0
    %5034 = vmatprep.subr.mxu0 0.0
    %5035 = vmatpush1.msra.mxu0 0.0
    %5036 = vmatprep.subr.mxu0 0.0
    %5037 = vmatpush1.msra.mxu0 0.0
    %5038 = vmatprep.subr.mxu0 0.0
    %5039 = vmatpush1.msra.mxu0 0.0
    %5040 = vmatprep.subr.mxu0 0.0
    %5041 = vmatpush1.msra.mxu0 0.0
    %5042 = vmatprep.subr.mxu0 0.0
    %5043 = vmatpush1.msra.mxu0 0.0
    %5044 = vmatprep.subr.mxu0 0.0
    %5045 = vmatpush1.msra.mxu0 0.0
    %5046 = vmatprep.subr.mxu0 0.0
    %5047 = vmatpush1.msra.mxu0 0.0
    %5048 = vmatprep.subr.mxu0 0.0
    %5049 = vmatpush1.msra.mxu0 0.0
    %5050 = vmatprep.subr.mxu0 0.0
    %5051 = vmatpush1.msra.mxu0 0.0
    %5052 = vmatprep.subr.mxu0 0.0
    %5053 = vmatpush1.msra.mxu0 0.0
    %5054 = vmatprep.subr.mxu0 0.0
    %5055 = vmatpush1.msra.mxu0 0.0
    %5056 = vmatprep.subr.mxu0 0.0
    %5057 = vmatpush1.msra.mxu0 0.0
    %5058 = vmatprep.subr.mxu0 0.0
    %5059 = vmatpush1.msra.mxu0 0.0
    %5060 = vmatprep.subr.mxu0 0.0
    %5061 = vmatpush1.msra.mxu0 0.0
    %5062 = vmatprep.subr.mxu0 0.0
    %5063 = vmatpush1.msra.mxu0 0.0
    %5064 = vmatprep.subr.mxu0 0.0
    %5065 = vmatpush1.msra.mxu0 0.0
    %5066 = vmatprep.subr.mxu0 0.0
    %5067 = vmatpush1.msra.mxu0 0.0
    %5068 = vmatprep.subr.mxu0 0.0
    %5069 = vmatpush1.msra.mxu0 0.0
    %5070 = vmatprep.subr.mxu0 0.0
    %5071 = vmatpush1.msra.mxu0 0.0
    %5072 = vmatprep.subr.mxu0 0.0
    %5073 = vmatpush1.msra.mxu0 0.0
    %5074 = vmatprep.subr.mxu0 0.0
    %5075 = vmatpush1.msra.mxu0 0.0
    %5076 = vmatprep.subr.mxu0 0.0
    %5077 = vmatpush1.msra.mxu0 0.0
    %5078 = vmatprep.subr.mxu0 0.0
    %5079 = vmatpush1.msra.mxu0 0.0
    %5080 = vmatprep.mubr.f32.mxu0 0.0
    %v5081 = vand.u32 %v4933, 4294901760
    %5082 = vmatmul.mubr.f32.gmra.mrb[0].mxu0 %v5081
    %v5083 = vpop.f32.mrb[0].mxu0
    %v5084 = vadd.f32 %v5008, %v5083
    %v5085 = vpop.f32.mrb[0].mxu0
    %5086 = vdwg.mxu0
    %5087 = vmatprep.subr.mxu0 0.0
    %v5088 = vand.u32 %v4930, 4294901760
    %v5089 = vsub.f32 %v4930, %v5088
    %5090 = vmatpush1.msra.mxu0 %v5089
    %5091 = vmatprep.subr.mxu0 0.0
    %5092 = vmatpush1.msra.mxu0 0.0
    %5093 = vmatprep.subr.mxu0 0.0
    %5094 = vmatpush1.msra.mxu0 0.0
    %5095 = vmatprep.subr.mxu0 0.0
    %5096 = vmatpush1.msra.mxu0 0.0
    %5097 = vmatprep.subr.mxu0 0.0
    %5098 = vmatpush1.msra.mxu0 0.0
    %5099 = vmatprep.subr.mxu0 0.0
    %5100 = vmatpush1.msra.mxu0 0.0
    %5101 = vmatprep.subr.mxu0 0.0
    %5102 = vmatpush1.msra.mxu0 0.0
    %5103 = vmatprep.subr.mxu0 0.0
    %5104 = vmatpush1.msra.mxu0 0.0
    %5105 = vmatprep.subr.mxu0 0.0
    %5106 = vmatpush1.msra.mxu0 0.0
    %5107 = vmatprep.subr.mxu0 0.0
    %5108 = vmatpush1.msra.mxu0 0.0
    %5109 = vmatprep.subr.mxu0 0.0
    %5110 = vmatpush1.msra.mxu0 0.0
    %5111 = vmatprep.subr.mxu0 0.0
    %5112 = vmatpush1.msra.mxu0 0.0
    %5113 = vmatprep.subr.mxu0 0.0
    %5114 = vmatpush1.msra.mxu0 0.0
    %5115 = vmatprep.subr.mxu0 0.0
    %5116 = vmatpush1.msra.mxu0 0.0
    %5117 = vmatprep.subr.mxu0 0.0
    %5118 = vmatpush1.msra.mxu0 0.0
    %5119 = vmatprep.subr.mxu0 0.0
    %5120 = vmatpush1.msra.mxu0 0.0
    %5121 = vmatprep.subr.mxu0 0.0
    %5122 = vmatpush1.msra.mxu0 0.0
    %5123 = vmatprep.subr.mxu0 0.0
    %5124 = vmatpush1.msra.mxu0 0.0
    %5125 = vmatprep.subr.mxu0 0.0
    %5126 = vmatpush1.msra.mxu0 0.0
    %5127 = vmatprep.subr.mxu0 0.0
    %5128 = vmatpush1.msra.mxu0 0.0
    %5129 = vmatprep.subr.mxu0 0.0
    %5130 = vmatpush1.msra.mxu0 0.0
    %5131 = vmatprep.subr.mxu0 0.0
    %5132 = vmatpush1.msra.mxu0 0.0
    %5133 = vmatprep.subr.mxu0 0.0
    %5134 = vmatpush1.msra.mxu0 0.0
    %5135 = vmatprep.subr.mxu0 0.0
    %5136 = vmatpush1.msra.mxu0 0.0
    %5137 = vmatprep.subr.mxu0 0.0
    %5138 = vmatpush1.msra.mxu0 0.0
    %5139 = vmatprep.subr.mxu0 0.0
    %5140 = vmatpush1.msra.mxu0 0.0
    %5141 = vmatprep.subr.mxu0 0.0
    %5142 = vmatpush1.msra.mxu0 0.0
    %5143 = vmatprep.subr.mxu0 0.0
    %5144 = vmatpush1.msra.mxu0 0.0
    %5145 = vmatprep.subr.mxu0 0.0
    %5146 = vmatpush1.msra.mxu0 0.0
    %5147 = vmatprep.subr.mxu0 0.0
    %5148 = vmatpush1.msra.mxu0 0.0
    %5149 = vmatprep.subr.mxu0 0.0
    %5150 = vmatpush1.msra.mxu0 0.0
    %5151 = vmatprep.subr.mxu0 0.0
    %5152 = vmatpush1.msra.mxu0 0.0
    %5153 = vmatprep.mubr.f32.mxu0 0.0
    %v5154 = vand.u32 %v4933, 4294901760
    %v5155 = vsub.f32 %v4933, %v5154
    %5156 = vmatmul.mubr.f32.gmra.mrb[0].mxu0 %v5155
    %v5157 = vpop.f32.mrb[0].mxu0
    %v5158 = vadd.f32 %v5084, %v5157
    %v5159 = vpop.f32.mrb[0].mxu0
    %5160 = vdwg.mxu0
    %5161 = vmatprep.subr.mxu0 0.0
    %v5162 = vand.u32 %v4930, 4294901760
    %5163 = vmatpush1.msra.mxu0 %v5162
    %5164 = vmatprep.subr.mxu0 0.0
    %5165 = vmatpush1.msra.mxu0 0.0
    %5166 = vmatprep.subr.mxu0 0.0
    %5167 = vmatpush1.msra.mxu0 0.0
    %5168 = vmatprep.subr.mxu0 0.0
    %5169 = vmatpush1.msra.mxu0 0.0
    %5170 = vmatprep.subr.mxu0 0.0
    %5171 = vmatpush1.msra.mxu0 0.0
    %5172 = vmatprep.subr.mxu0 0.0
    %5173 = vmatpush1.msra.mxu0 0.0
    %5174 = vmatprep.subr.mxu0 0.0
    %5175 = vmatpush1.msra.mxu0 0.0
    %5176 = vmatprep.subr.mxu0 0.0
    %5177 = vmatpush1.msra.mxu0 0.0
    %5178 = vmatprep.subr.mxu0 0.0
    %5179 = vmatpush1.msra.mxu0 0.0
    %5180 = vmatprep.subr.mxu0 0.0
    %5181 = vmatpush1.msra.mxu0 0.0
    %5182 = vmatprep.subr.mxu0 0.0
    %5183 = vmatpush1.msra.mxu0 0.0
    %5184 = vmatprep.subr.mxu0 0.0
    %5185 = vmatpush1.msra.mxu0 0.0
    %5186 = vmatprep.subr.mxu0 0.0
    %5187 = vmatpush1.msra.mxu0 0.0
    %5188 = vmatprep.subr.mxu0 0.0
    %5189 = vmatpush1.msra.mxu0 0.0
    %5190 = vmatprep.subr.mxu0 0.0
    %5191 = vmatpush1.msra.mxu0 0.0
    %5192 = vmatprep.subr.mxu0 0.0
    %5193 = vmatpush1.msra.mxu0 0.0
    %5194 = vmatprep.subr.mxu0 0.0
    %5195 = vmatpush1.msra.mxu0 0.0
    %5196 = vmatprep.subr.mxu0 0.0
    %5197 = vmatpush1.msra.mxu0 0.0
    %5198 = vmatprep.subr.mxu0 0.0
    %5199 = vmatpush1.msra.mxu0 0.0
    %5200 = vmatprep.subr.mxu0 0.0
    %5201 = vmatpush1.msra.mxu0 0.0
    %5202 = vmatprep.subr.mxu0 0.0
    %5203 = vmatpush1.msra.mxu0 0.0
    %5204 = vmatprep.subr.mxu0 0.0
    %5205 = vmatpush1.msra.mxu0 0.0
    %5206 = vmatprep.subr.mxu0 0.0
    %5207 = vmatpush1.msra.mxu0 0.0
    %5208 = vmatprep.subr.mxu0 0.0
    %5209 = vmatpush1.msra.mxu0 0.0
    %5210 = vmatprep.subr.mxu0 0.0
    %5211 = vmatpush1.msra.mxu0 0.0
    %5212 = vmatprep.subr.mxu0 0.0
    %5213 = vmatpush1.msra.mxu0 0.0
    %5214 = vmatprep.subr.mxu0 0.0
    %5215 = vmatpush1.msra.mxu0 0.0
    %5216 = vmatprep.subr.mxu0 0.0
    %5217 = vmatpush1.msra.mxu0 0.0
    %5218 = vmatprep.subr.mxu0 0.0
    %5219 = vmatpush1.msra.mxu0 0.0
    %5220 = vmatprep.subr.mxu0 0.0
    %5221 = vmatpush1.msra.mxu0 0.0
    %5222 = vmatprep.subr.mxu0 0.0
    %5223 = vmatpush1.msra.mxu0 0.0
    %5224 = vmatprep.subr.mxu0 0.0
    %5225 = vmatpush1.msra.mxu0 0.0
    %5226 = vmatprep.mubr.f32.mxu0 0.0
    %v5227 = vand.u32 %v4933, 4294901760
    %v5228 = vsub.f32 %v4933, %v5227
    %v5229 = vand.u32 %v5228, 4294901760
    %5230 = vmatmul.mubr.f32.gmra.mrb[0].mxu0 %v5229
    %v5231 = vpop.f32.mrb[0].mxu0
    %v5232 = vadd.f32 %v5158, %v5231
    %v5233 = vpop.f32.mrb[0].mxu0
    %5234 = vdwg.mxu0
    %5235 = vmatprep.subr.mxu0 0.0
    %v5236 = vand.u32 %v4930, 4294901760
    %v5237 = vsub.f32 %v4930, %v5236
    %v5238 = vand.u32 %v5237, 4294901760
    %5239 = vmatpush1.msra.mxu0 %v5238
    %5240 = vmatprep.subr.mxu0 0.0
    %5241 = vmatpush1.msra.mxu0 0.0
    %5242 = vmatprep.subr.mxu0 0.0
    %5243 = vmatpush1.msra.mxu0 0.0
    %5244 = vmatprep.subr.mxu0 0.0
    %5245 = vmatpush1.msra.mxu0 0.0
    %5246 = vmatprep.subr.mxu0 0.0
    %5247 = vmatpush1.msra.mxu0 0.0
    %5248 = vmatprep.subr.mxu0 0.0
    %5249 = vmatpush1.msra.mxu0 0.0
    %5250 = vmatprep.subr.mxu0 0.0
    %5251 = vmatpush1.msra.mxu0 0.0
    %5252 = vmatprep.subr.mxu0 0.0
    %5253 = vmatpush1.msra.mxu0 0.0
    %5254 = vmatprep.subr.mxu0 0.0
    %5255 = vmatpush1.msra.mxu0 0.0
    %5256 = vmatprep.subr.mxu0 0.0
    %5257 = vmatpush1.msra.mxu0 0.0
    %5258 = vmatprep.subr.mxu0 0.0
    %5259 = vmatpush1.msra.mxu0 0.0
    %5260 = vmatprep.subr.mxu0 0.0
    %5261 = vmatpush1.msra.mxu0 0.0
    %5262 = vmatprep.subr.mxu0 0.0
    %5263 = vmatpush1.msra.mxu0 0.0
    %5264 = vmatprep.subr.mxu0 0.0
    %5265 = vmatpush1.msra.mxu0 0.0
    %5266 = vmatprep.subr.mxu0 0.0
    %5267 = vmatpush1.msra.mxu0 0.0
    %5268 = vmatprep.subr.mxu0 0.0
    %5269 = vmatpush1.msra.mxu0 0.0
    %5270 = vmatprep.subr.mxu0 0.0
    %5271 = vmatpush1.msra.mxu0 0.0
    %5272 = vmatprep.subr.mxu0 0.0
    %5273 = vmatpush1.msra.mxu0 0.0
    %5274 = vmatprep.subr.mxu0 0.0
    %5275 = vmatpush1.msra.mxu0 0.0
    %5276 = vmatprep.subr.mxu0 0.0
    %5277 = vmatpush1.msra.mxu0 0.0
    %5278 = vmatprep.subr.mxu0 0.0
    %5279 = vmatpush1.msra.mxu0 0.0
    %5280 = vmatprep.subr.mxu0 0.0
    %5281 = vmatpush1.msra.mxu0 0.0
    %5282 = vmatprep.subr.mxu0 0.0
    %5283 = vmatpush1.msra.mxu0 0.0
    %5284 = vmatprep.subr.mxu0 0.0
    %5285 = vmatpush1.msra.mxu0 0.0
    %5286 = vmatprep.subr.mxu0 0.0
    %5287 = vmatpush1.msra.mxu0 0.0
    %5288 = vmatprep.subr.mxu0 0.0
    %5289 = vmatpush1.msra.mxu0 0.0
    %5290 = vmatprep.subr.mxu0 0.0
    %5291 = vmatpush1.msra.mxu0 0.0
    %5292 = vmatprep.subr.mxu0 0.0
    %5293 = vmatpush1.msra.mxu0 0.0
    %5294 = vmatprep.subr.mxu0 0.0
    %5295 = vmatpush1.msra.mxu0 0.0
    %5296 = vmatprep.subr.mxu0 0.0
    %5297 = vmatpush1.msra.mxu0 0.0
    %5298 = vmatprep.subr.mxu0 0.0
    %5299 = vmatpush1.msra.mxu0 0.0
    %5300 = vmatprep.subr.mxu0 0.0
    %5301 = vmatpush1.msra.mxu0 0.0
    %5302 = vmatprep.mubr.f32.mxu0 0.0
    %v5303 = vand.u32 %v4933, 4294901760
    %5304 = vmatmul.mubr.f32.gmra.mrb[0].mxu0 %v5303
    %v5305 = vpop.f32.mrb[0].mxu0
    %v5306 = vadd.f32 %v5232, %v5305
    %v5307 = vpop.f32.mrb[0].mxu0
    %5308 = vdwg.mxu0
    %5309 = vmatprep.subr.mxu0 0.0
    %v5310 = vand.u32 %v4930, 4294901760
    %5311 = vmatpush1.msra.mxu0 %v5310
    %5312 = vmatprep.subr.mxu0 0.0
    %5313 = vmatpush1.msra.mxu0 0.0
    %5314 = vmatprep.subr.mxu0 0.0
    %5315 = vmatpush1.msra.mxu0 0.0
    %5316 = vmatprep.subr.mxu0 0.0
    %5317 = vmatpush1.msra.mxu0 0.0
    %5318 = vmatprep.subr.mxu0 0.0
    %5319 = vmatpush1.msra.mxu0 0.0
    %5320 = vmatprep.subr.mxu0 0.0
    %5321 = vmatpush1.msra.mxu0 0.0
    %5322 = vmatprep.subr.mxu0 0.0
    %5323 = vmatpush1.msra.mxu0 0.0
    %5324 = vmatprep.subr.mxu0 0.0
    %5325 = vmatpush1.msra.mxu0 0.0
    %5326 = vmatprep.subr.mxu0 0.0
    %5327 = vmatpush1.msra.mxu0 0.0
    %5328 = vmatprep.subr.mxu0 0.0
    %5329 = vmatpush1.msra.mxu0 0.0
    %5330 = vmatprep.subr.mxu0 0.0
    %5331 = vmatpush1.msra.mxu0 0.0
    %5332 = vmatprep.subr.mxu0 0.0
    %5333 = vmatpush1.msra.mxu0 0.0
    %5334 = vmatprep.subr.mxu0 0.0
    %5335 = vmatpush1.msra.mxu0 0.0
    %5336 = vmatprep.subr.mxu0 0.0
    %5337 = vmatpush1.msra.mxu0 0.0
    %5338 = vmatprep.subr.mxu0 0.0
    %5339 = vmatpush1.msra.mxu0 0.0
    %5340 = vmatprep.subr.mxu0 0.0
    %5341 = vmatpush1.msra.mxu0 0.0
    %5342 = vmatprep.subr.mxu0 0.0
    %5343 = vmatpush1.msra.mxu0 0.0
    %5344 = vmatprep.subr.mxu0 0.0
    %5345 = vmatpush1.msra.mxu0 0.0
    %5346 = vmatprep.subr.mxu0 0.0
    %5347 = vmatpush1.msra.mxu0 0.0
    %5348 = vmatprep.subr.mxu0 0.0
    %5349 = vmatpush1.msra.mxu0 0.0
    %5350 = vmatprep.subr.mxu0 0.0
    %5351 = vmatpush1.msra.mxu0 0.0
    %5352 = vmatprep.subr.mxu0 0.0
    %5353 = vmatpush1.msra.mxu0 0.0
    %5354 = vmatprep.subr.mxu0 0.0
    %5355 = vmatpush1.msra.mxu0 0.0
    %5356 = vmatprep.subr.mxu0 0.0
    %5357 = vmatpush1.msra.mxu0 0.0
    %5358 = vmatprep.subr.mxu0 0.0
    %5359 = vmatpush1.msra.mxu0 0.0
    %5360 = vmatprep.subr.mxu0 0.0
    %5361 = vmatpush1.msra.mxu0 0.0
    %5362 = vmatprep.subr.mxu0 0.0
    %5363 = vmatpush1.msra.mxu0 0.0
    %5364 = vmatprep.subr.mxu0 0.0
    %5365 = vmatpush1.msra.mxu0 0.0
    %5366 = vmatprep.subr.mxu0 0.0
    %5367 = vmatpush1.msra.mxu0 0.0
    %5368 = vmatprep.subr.mxu0 0.0
    %5369 = vmatpush1.msra.mxu0 0.0
    %5370 = vmatprep.subr.mxu0 0.0
    %5371 = vmatpush1.msra.mxu0 0.0
    %5372 = vmatprep.subr.mxu0 0.0
    %5373 = vmatpush1.msra.mxu0 0.0
    %5374 = vmatprep.mubr.f32.mxu0 0.0
    %v5375 = vand.u32 %v4933, 4294901760
    %5376 = vmatmul.mubr.f32.gmra.mrb[0].mxu0 %v5375
    %v5377 = vpop.f32.mrb[0].mxu0
    %v5378 = vadd.f32 %v5306, %v5377
    %v5379 = vpop.f32.mrb[0].mxu0
    %5380 = vdwg.mxu0
    %5382 = vrot.lane.b32.xlu0 %v5378, 8
    %v5383 = vpop.permute.xlu0 %5382
    %vm5385 = vcmask 130112
    %5386 = vst.msk [vmem:[#allocation2] sm:$0xff] %vm5385, %v5383
    %5387 = vrot.lane.b32.xlu0 %v743, 48
    %v5388 = vpop.permute.xlu0 %5387
    %v5391 = vsel %vm757, %v4464, 0
    %5393 = vmatprep.subr.mxu0 0.0
    %v5394 = vand.u32 %v5388, 4294901760
    %5395 = vmatpush1.msra.mxu0 %v5394
    %5396 = vmatprep.subr.mxu0 0.0
    %5397 = vmatpush1.msra.mxu0 0.0
    %5398 = vmatprep.subr.mxu0 0.0
    %5399 = vmatpush1.msra.mxu0 0.0
    %5400 = vmatprep.subr.mxu0 0.0
    %5401 = vmatpush1.msra.mxu0 0.0
    %5402 = vmatprep.subr.mxu0 0.0
    %5403 = vmatpush1.msra.mxu0 0.0
    %5404 = vmatprep.subr.mxu0 0.0
    %5405 = vmatpush1.msra.mxu0 0.0
    %5406 = vmatprep.subr.mxu0 0.0
    %5407 = vmatpush1.msra.mxu0 0.0
    %5408 = vmatprep.subr.mxu0 0.0
    %5409 = vmatpush1.msra.mxu0 0.0
    %5410 = vmatprep.subr.mxu0 0.0
    %5411 = vmatpush1.msra.mxu0 0.0
    %5412 = vmatprep.subr.mxu0 0.0
    %5413 = vmatpush1.msra.mxu0 0.0
    %5414 = vmatprep.subr.mxu0 0.0
    %5415 = vmatpush1.msra.mxu0 0.0
    %5416 = vmatprep.subr.mxu0 0.0
    %5417 = vmatpush1.msra.mxu0 0.0
    %5418 = vmatprep.subr.mxu0 0.0
    %5419 = vmatpush1.msra.mxu0 0.0
    %5420 = vmatprep.subr.mxu0 0.0
    %5421 = vmatpush1.msra.mxu0 0.0
    %5422 = vmatprep.subr.mxu0 0.0
    %5423 = vmatpush1.msra.mxu0 0.0
    %5424 = vmatprep.subr.mxu0 0.0
    %5425 = vmatpush1.msra.mxu0 0.0
    %5426 = vmatprep.subr.mxu0 0.0
    %5427 = vmatpush1.msra.mxu0 0.0
    %5428 = vmatprep.subr.mxu0 0.0
    %5429 = vmatpush1.msra.mxu0 0.0
    %5430 = vmatprep.subr.mxu0 0.0
    %5431 = vmatpush1.msra.mxu0 0.0
    %5432 = vmatprep.subr.mxu0 0.0
    %5433 = vmatpush1.msra.mxu0 0.0
    %5434 = vmatprep.subr.mxu0 0.0
    %5435 = vmatpush1.msra.mxu0 0.0
    %5436 = vmatprep.subr.mxu0 0.0
    %5437 = vmatpush1.msra.mxu0 0.0
    %5438 = vmatprep.subr.mxu0 0.0
    %5439 = vmatpush1.msra.mxu0 0.0
    %5440 = vmatprep.subr.mxu0 0.0
    %5441 = vmatpush1.msra.mxu0 0.0
    %5442 = vmatprep.subr.mxu0 0.0
    %5443 = vmatpush1.msra.mxu0 0.0
    %5444 = vmatprep.subr.mxu0 0.0
    %5445 = vmatpush1.msra.mxu0 0.0
    %5446 = vmatprep.subr.mxu0 0.0
    %5447 = vmatpush1.msra.mxu0 0.0
    %5448 = vmatprep.subr.mxu0 0.0
    %5449 = vmatpush1.msra.mxu0 0.0
    %5450 = vmatprep.subr.mxu0 0.0
    %5451 = vmatpush1.msra.mxu0 0.0
    %5452 = vmatprep.subr.mxu0 0.0
    %5453 = vmatpush1.msra.mxu0 0.0
    %5454 = vmatprep.subr.mxu0 0.0
    %5455 = vmatpush1.msra.mxu0 0.0
    %5456 = vmatprep.subr.mxu0 0.0
    %5457 = vmatpush1.msra.mxu0 0.0
    %5458 = vmatprep.mubr.f32.mxu0 0.0
    %v5459 = vand.u32 %v5391, 4294901760
    %v5460 = vsub.f32 %v5391, %v5459
    %v5461 = vand.u32 %v5460, 4294901760
    %v5462 = vsub.f32 %v5460, %v5461
    %v5463 = vand.u32 %v5462, 4294901760
    %5464 = vmatmul.mubr.f32.gmra.mrb[0].mxu0 %v5463
    %v5465 = vpop.f32.mrb[0].mxu0
    %v5466 = vadd.f32 0.0, %v5465
    %v5467 = vpop.f32.mrb[0].mxu0
    %5468 = vdwg.mxu0
    %5469 = vmatprep.subr.mxu0 0.0
    %v5470 = vand.u32 %v5388, 4294901760
    %v5471 = vsub.f32 %v5388, %v5470
    %v5472 = vand.u32 %v5471, 4294901760
    %v5473 = vsub.f32 %v5471, %v5472
    %v5474 = vand.u32 %v5473, 4294901760
    %5475 = vmatpush1.msra.mxu0 %v5474
    %5476 = vmatprep.subr.mxu0 0.0
    %5477 = vmatpush1.msra.mxu0 0.0
    %5478 = vmatprep.subr.mxu0 0.0
    %5479 = vmatpush1.msra.mxu0 0.0
    %5480 = vmatprep.subr.mxu0 0.0
    %5481 = vmatpush1.msra.mxu0 0.0
    %5482 = vmatprep.subr.mxu0 0.0
    %5483 = vmatpush1.msra.mxu0 0.0
    %5484 = vmatprep.subr.mxu0 0.0
    %5485 = vmatpush1.msra.mxu0 0.0
    %5486 = vmatprep.subr.mxu0 0.0
    %5487 = vmatpush1.msra.mxu0 0.0
    %5488 = vmatprep.subr.mxu0 0.0
    %5489 = vmatpush1.msra.mxu0 0.0
    %5490 = vmatprep.subr.mxu0 0.0
    %5491 = vmatpush1.msra.mxu0 0.0
    %5492 = vmatprep.subr.mxu0 0.0
    %5493 = vmatpush1.msra.mxu0 0.0
    %5494 = vmatprep.subr.mxu0 0.0
    %5495 = vmatpush1.msra.mxu0 0.0
    %5496 = vmatprep.subr.mxu0 0.0
    %5497 = vmatpush1.msra.mxu0 0.0
    %5498 = vmatprep.subr.mxu0 0.0
    %5499 = vmatpush1.msra.mxu0 0.0
    %5500 = vmatprep.subr.mxu0 0.0
    %5501 = vmatpush1.msra.mxu0 0.0
    %5502 = vmatprep.subr.mxu0 0.0
    %5503 = vmatpush1.msra.mxu0 0.0
    %5504 = vmatprep.subr.mxu0 0.0
    %5505 = vmatpush1.msra.mxu0 0.0
    %5506 = vmatprep.subr.mxu0 0.0
    %5507 = vmatpush1.msra.mxu0 0.0
    %5508 = vmatprep.subr.mxu0 0.0
    %5509 = vmatpush1.msra.mxu0 0.0
    %5510 = vmatprep.subr.mxu0 0.0
    %5511 = vmatpush1.msra.mxu0 0.0
    %5512 = vmatprep.subr.mxu0 0.0
    %5513 = vmatpush1.msra.mxu0 0.0
    %5514 = vmatprep.subr.mxu0 0.0
    %5515 = vmatpush1.msra.mxu0 0.0
    %5516 = vmatprep.subr.mxu0 0.0
    %5517 = vmatpush1.msra.mxu0 0.0
    %5518 = vmatprep.subr.mxu0 0.0
    %5519 = vmatpush1.msra.mxu0 0.0
    %5520 = vmatprep.subr.mxu0 0.0
    %5521 = vmatpush1.msra.mxu0 0.0
    %5522 = vmatprep.subr.mxu0 0.0
    %5523 = vmatpush1.msra.mxu0 0.0
    %5524 = vmatprep.subr.mxu0 0.0
    %5525 = vmatpush1.msra.mxu0 0.0
    %5526 = vmatprep.subr.mxu0 0.0
    %5527 = vmatpush1.msra.mxu0 0.0
    %5528 = vmatprep.subr.mxu0 0.0
    %5529 = vmatpush1.msra.mxu0 0.0
    %5530 = vmatprep.subr.mxu0 0.0
    %5531 = vmatpush1.msra.mxu0 0.0
    %5532 = vmatprep.subr.mxu0 0.0
    %5533 = vmatpush1.msra.mxu0 0.0
    %5534 = vmatprep.subr.mxu0 0.0
    %5535 = vmatpush1.msra.mxu0 0.0
    %5536 = vmatprep.subr.mxu0 0.0
    %5537 = vmatpush1.msra.mxu0 0.0
    %5538 = vmatprep.mubr.f32.mxu0 0.0
    %v5539 = vand.u32 %v5391, 4294901760
    %5540 = vmatmul.mubr.f32.gmra.mrb[0].mxu0 %v5539
    %v5541 = vpop.f32.mrb[0].mxu0
    %v5542 = vadd.f32 %v5466, %v5541
    %v5543 = vpop.f32.mrb[0].mxu0
    %5544 = vdwg.mxu0
    %5545 = vmatprep.subr.mxu0 0.0
    %v5546 = vand.u32 %v5388, 4294901760
    %v5547 = vsub.f32 %v5388, %v5546
    %5548 = vmatpush1.msra.mxu0 %v5547
    %5549 = vmatprep.subr.mxu0 0.0
    %5550 = vmatpush1.msra.mxu0 0.0
    %5551 = vmatprep.subr.mxu0 0.0
    %5552 = vmatpush1.msra.mxu0 0.0
    %5553 = vmatprep.subr.mxu0 0.0
    %5554 = vmatpush1.msra.mxu0 0.0
    %5555 = vmatprep.subr.mxu0 0.0
    %5556 = vmatpush1.msra.mxu0 0.0
    %5557 = vmatprep.subr.mxu0 0.0
    %5558 = vmatpush1.msra.mxu0 0.0
    %5559 = vmatprep.subr.mxu0 0.0
    %5560 = vmatpush1.msra.mxu0 0.0
    %5561 = vmatprep.subr.mxu0 0.0
    %5562 = vmatpush1.msra.mxu0 0.0
    %5563 = vmatprep.subr.mxu0 0.0
    %5564 = vmatpush1.msra.mxu0 0.0
    %5565 = vmatprep.subr.mxu0 0.0
    %5566 = vmatpush1.msra.mxu0 0.0
    %5567 = vmatprep.subr.mxu0 0.0
    %5568 = vmatpush1.msra.mxu0 0.0
    %5569 = vmatprep.subr.mxu0 0.0
    %5570 = vmatpush1.msra.mxu0 0.0
    %5571 = vmatprep.subr.mxu0 0.0
    %5572 = vmatpush1.msra.mxu0 0.0
    %5573 = vmatprep.subr.mxu0 0.0
    %5574 = vmatpush1.msra.mxu0 0.0
    %5575 = vmatprep.subr.mxu0 0.0
    %5576 = vmatpush1.msra.mxu0 0.0
    %5577 = vmatprep.subr.mxu0 0.0
    %5578 = vmatpush1.msra.mxu0 0.0
    %5579 = vmatprep.subr.mxu0 0.0
    %5580 = vmatpush1.msra.mxu0 0.0
    %5581 = vmatprep.subr.mxu0 0.0
    %5582 = vmatpush1.msra.mxu0 0.0
    %5583 = vmatprep.subr.mxu0 0.0
    %5584 = vmatpush1.msra.mxu0 0.0
    %5585 = vmatprep.subr.mxu0 0.0
    %5586 = vmatpush1.msra.mxu0 0.0
    %5587 = vmatprep.subr.mxu0 0.0
    %5588 = vmatpush1.msra.mxu0 0.0
    %5589 = vmatprep.subr.mxu0 0.0
    %5590 = vmatpush1.msra.mxu0 0.0
    %5591 = vmatprep.subr.mxu0 0.0
    %5592 = vmatpush1.msra.mxu0 0.0
    %5593 = vmatprep.subr.mxu0 0.0
    %5594 = vmatpush1.msra.mxu0 0.0
    %5595 = vmatprep.subr.mxu0 0.0
    %5596 = vmatpush1.msra.mxu0 0.0
    %5597 = vmatprep.subr.mxu0 0.0
    %5598 = vmatpush1.msra.mxu0 0.0
    %5599 = vmatprep.subr.mxu0 0.0
    %5600 = vmatpush1.msra.mxu0 0.0
    %5601 = vmatprep.subr.mxu0 0.0
    %5602 = vmatpush1.msra.mxu0 0.0
    %5603 = vmatprep.subr.mxu0 0.0
    %5604 = vmatpush1.msra.mxu0 0.0
    %5605 = vmatprep.subr.mxu0 0.0
    %5606 = vmatpush1.msra.mxu0 0.0
    %5607 = vmatprep.subr.mxu0 0.0
    %5608 = vmatpush1.msra.mxu0 0.0
    %5609 = vmatprep.subr.mxu0 0.0
    %5610 = vmatpush1.msra.mxu0 0.0
    %5611 = vmatprep.mubr.f32.mxu0 0.0
    %v5612 = vand.u32 %v5391, 4294901760
    %v5613 = vsub.f32 %v5391, %v5612
    %5614 = vmatmul.mubr.f32.gmra.mrb[0].mxu0 %v5613
    %v5615 = vpop.f32.mrb[0].mxu0
    %v5616 = vadd.f32 %v5542, %v5615
    %v5617 = vpop.f32.mrb[0].mxu0
    %5618 = vdwg.mxu0
    %5619 = vmatprep.subr.mxu0 0.0
    %v5620 = vand.u32 %v5388, 4294901760
    %5621 = vmatpush1.msra.mxu0 %v5620
    %5622 = vmatprep.subr.mxu0 0.0
    %5623 = vmatpush1.msra.mxu0 0.0
    %5624 = vmatprep.subr.mxu0 0.0
    %5625 = vmatpush1.msra.mxu0 0.0
    %5626 = vmatprep.subr.mxu0 0.0
    %5627 = vmatpush1.msra.mxu0 0.0
    %5628 = vmatprep.subr.mxu0 0.0
    %5629 = vmatpush1.msra.mxu0 0.0
    %5630 = vmatprep.subr.mxu0 0.0
    %5631 = vmatpush1.msra.mxu0 0.0
    %5632 = vmatprep.subr.mxu0 0.0
    %5633 = vmatpush1.msra.mxu0 0.0
    %5634 = vmatprep.subr.mxu0 0.0
    %5635 = vmatpush1.msra.mxu0 0.0
    %5636 = vmatprep.subr.mxu0 0.0
    %5637 = vmatpush1.msra.mxu0 0.0
    %5638 = vmatprep.subr.mxu0 0.0
    %5639 = vmatpush1.msra.mxu0 0.0
    %5640 = vmatprep.subr.mxu0 0.0
    %5641 = vmatpush1.msra.mxu0 0.0
    %5642 = vmatprep.subr.mxu0 0.0
    %5643 = vmatpush1.msra.mxu0 0.0
    %5644 = vmatprep.subr.mxu0 0.0
    %5645 = vmatpush1.msra.mxu0 0.0
    %5646 = vmatprep.subr.mxu0 0.0
    %5647 = vmatpush1.msra.mxu0 0.0
    %5648 = vmatprep.subr.mxu0 0.0
    %5649 = vmatpush1.msra.mxu0 0.0
    %5650 = vmatprep.subr.mxu0 0.0
    %5651 = vmatpush1.msra.mxu0 0.0
    %5652 = vmatprep.subr.mxu0 0.0
    %5653 = vmatpush1.msra.mxu0 0.0
    %5654 = vmatprep.subr.mxu0 0.0
    %5655 = vmatpush1.msra.mxu0 0.0
    %5656 = vmatprep.subr.mxu0 0.0
    %5657 = vmatpush1.msra.mxu0 0.0
    %5658 = vmatprep.subr.mxu0 0.0
    %5659 = vmatpush1.msra.mxu0 0.0
    %5660 = vmatprep.subr.mxu0 0.0
    %5661 = vmatpush1.msra.mxu0 0.0
    %5662 = vmatprep.subr.mxu0 0.0
    %5663 = vmatpush1.msra.mxu0 0.0
    %5664 = vmatprep.subr.mxu0 0.0
    %5665 = vmatpush1.msra.mxu0 0.0
    %5666 = vmatprep.subr.mxu0 0.0
    %5667 = vmatpush1.msra.mxu0 0.0
    %5668 = vmatprep.subr.mxu0 0.0
    %5669 = vmatpush1.msra.mxu0 0.0
    %5670 = vmatprep.subr.mxu0 0.0
    %5671 = vmatpush1.msra.mxu0 0.0
    %5672 = vmatprep.subr.mxu0 0.0
    %5673 = vmatpush1.msra.mxu0 0.0
    %5674 = vmatprep.subr.mxu0 0.0
    %5675 = vmatpush1.msra.mxu0 0.0
    %5676 = vmatprep.subr.mxu0 0.0
    %5677 = vmatpush1.msra.mxu0 0.0
    %5678 = vmatprep.subr.mxu0 0.0
    %5679 = vmatpush1.msra.mxu0 0.0
    %5680 = vmatprep.subr.mxu0 0.0
    %5681 = vmatpush1.msra.mxu0 0.0
    %5682 = vmatprep.subr.mxu0 0.0
    %5683 = vmatpush1.msra.mxu0 0.0
    %5684 = vmatprep.mubr.f32.mxu0 0.0
    %v5685 = vand.u32 %v5391, 4294901760
    %v5686 = vsub.f32 %v5391, %v5685
    %v5687 = vand.u32 %v5686, 4294901760
    %5688 = vmatmul.mubr.f32.gmra.mrb[0].mxu0 %v5687
    %v5689 = vpop.f32.mrb[0].mxu0
    %v5690 = vadd.f32 %v5616, %v5689
    %v5691 = vpop.f32.mrb[0].mxu0
    %5692 = vdwg.mxu0
    %5693 = vmatprep.subr.mxu0 0.0
    %v5694 = vand.u32 %v5388, 4294901760
    %v5695 = vsub.f32 %v5388, %v5694
    %v5696 = vand.u32 %v5695, 4294901760
    %5697 = vmatpush1.msra.mxu0 %v5696
    %5698 = vmatprep.subr.mxu0 0.0
    %5699 = vmatpush1.msra.mxu0 0.0
    %5700 = vmatprep.subr.mxu0 0.0
    %5701 = vmatpush1.msra.mxu0 0.0
    %5702 = vmatprep.subr.mxu0 0.0
    %5703 = vmatpush1.msra.mxu0 0.0
    %5704 = vmatprep.subr.mxu0 0.0
    %5705 = vmatpush1.msra.mxu0 0.0
    %5706 = vmatprep.subr.mxu0 0.0
    %5707 = vmatpush1.msra.mxu0 0.0
    %5708 = vmatprep.subr.mxu0 0.0
    %5709 = vmatpush1.msra.mxu0 0.0
    %5710 = vmatprep.subr.mxu0 0.0
    %5711 = vmatpush1.msra.mxu0 0.0
    %5712 = vmatprep.subr.mxu0 0.0
    %5713 = vmatpush1.msra.mxu0 0.0
    %5714 = vmatprep.subr.mxu0 0.0
    %5715 = vmatpush1.msra.mxu0 0.0
    %5716 = vmatprep.subr.mxu0 0.0
    %5717 = vmatpush1.msra.mxu0 0.0
    %5718 = vmatprep.subr.mxu0 0.0
    %5719 = vmatpush1.msra.mxu0 0.0
    %5720 = vmatprep.subr.mxu0 0.0
    %5721 = vmatpush1.msra.mxu0 0.0
    %5722 = vmatprep.subr.mxu0 0.0
    %5723 = vmatpush1.msra.mxu0 0.0
    %5724 = vmatprep.subr.mxu0 0.0
    %5725 = vmatpush1.msra.mxu0 0.0
    %5726 = vmatprep.subr.mxu0 0.0
    %5727 = vmatpush1.msra.mxu0 0.0
    %5728 = vmatprep.subr.mxu0 0.0
    %5729 = vmatpush1.msra.mxu0 0.0
    %5730 = vmatprep.subr.mxu0 0.0
    %5731 = vmatpush1.msra.mxu0 0.0
    %5732 = vmatprep.subr.mxu0 0.0
    %5733 = vmatpush1.msra.mxu0 0.0
    %5734 = vmatprep.subr.mxu0 0.0
    %5735 = vmatpush1.msra.mxu0 0.0
    %5736 = vmatprep.subr.mxu0 0.0
    %5737 = vmatpush1.msra.mxu0 0.0
    %5738 = vmatprep.subr.mxu0 0.0
    %5739 = vmatpush1.msra.mxu0 0.0
    %5740 = vmatprep.subr.mxu0 0.0
    %5741 = vmatpush1.msra.mxu0 0.0
    %5742 = vmatprep.subr.mxu0 0.0
    %5743 = vmatpush1.msra.mxu0 0.0
    %5744 = vmatprep.subr.mxu0 0.0
    %5745 = vmatpush1.msra.mxu0 0.0
    %5746 = vmatprep.subr.mxu0 0.0
    %5747 = vmatpush1.msra.mxu0 0.0
    %5748 = vmatprep.subr.mxu0 0.0
    %5749 = vmatpush1.msra.mxu0 0.0
    %5750 = vmatprep.subr.mxu0 0.0
    %5751 = vmatpush1.msra.mxu0 0.0
    %5752 = vmatprep.subr.mxu0 0.0
    %5753 = vmatpush1.msra.mxu0 0.0
    %5754 = vmatprep.subr.mxu0 0.0
    %5755 = vmatpush1.msra.mxu0 0.0
    %5756 = vmatprep.subr.mxu0 0.0
    %5757 = vmatpush1.msra.mxu0 0.0
    %5758 = vmatprep.subr.mxu0 0.0
    %5759 = vmatpush1.msra.mxu0 0.0
    %5760 = vmatprep.mubr.f32.mxu0 0.0
    %v5761 = vand.u32 %v5391, 4294901760
    %5762 = vmatmul.mubr.f32.gmra.mrb[0].mxu0 %v5761
    %v5763 = vpop.f32.mrb[0].mxu0
    %v5764 = vadd.f32 %v5690, %v5763
    %v5765 = vpop.f32.mrb[0].mxu0
    %5766 = vdwg.mxu0
    %5767 = vmatprep.subr.mxu0 0.0
    %v5768 = vand.u32 %v5388, 4294901760
    %5769 = vmatpush1.msra.mxu0 %v5768
    %5770 = vmatprep.subr.mxu0 0.0
    %5771 = vmatpush1.msra.mxu0 0.0
    %5772 = vmatprep.subr.mxu0 0.0
    %5773 = vmatpush1.msra.mxu0 0.0
    %5774 = vmatprep.subr.mxu0 0.0
    %5775 = vmatpush1.msra.mxu0 0.0
    %5776 = vmatprep.subr.mxu0 0.0
    %5777 = vmatpush1.msra.mxu0 0.0
    %5778 = vmatprep.subr.mxu0 0.0
    %5779 = vmatpush1.msra.mxu0 0.0
    %5780 = vmatprep.subr.mxu0 0.0
    %5781 = vmatpush1.msra.mxu0 0.0
    %5782 = vmatprep.subr.mxu0 0.0
    %5783 = vmatpush1.msra.mxu0 0.0
    %5784 = vmatprep.subr.mxu0 0.0
    %5785 = vmatpush1.msra.mxu0 0.0
    %5786 = vmatprep.subr.mxu0 0.0
    %5787 = vmatpush1.msra.mxu0 0.0
    %5788 = vmatprep.subr.mxu0 0.0
    %5789 = vmatpush1.msra.mxu0 0.0
    %5790 = vmatprep.subr.mxu0 0.0
    %5791 = vmatpush1.msra.mxu0 0.0
    %5792 = vmatprep.subr.mxu0 0.0
    %5793 = vmatpush1.msra.mxu0 0.0
    %5794 = vmatprep.subr.mxu0 0.0
    %5795 = vmatpush1.msra.mxu0 0.0
    %5796 = vmatprep.subr.mxu0 0.0
    %5797 = vmatpush1.msra.mxu0 0.0
    %5798 = vmatprep.subr.mxu0 0.0
    %5799 = vmatpush1.msra.mxu0 0.0
    %5800 = vmatprep.subr.mxu0 0.0
    %5801 = vmatpush1.msra.mxu0 0.0
    %5802 = vmatprep.subr.mxu0 0.0
    %5803 = vmatpush1.msra.mxu0 0.0
    %5804 = vmatprep.subr.mxu0 0.0
    %5805 = vmatpush1.msra.mxu0 0.0
    %5806 = vmatprep.subr.mxu0 0.0
    %5807 = vmatpush1.msra.mxu0 0.0
    %5808 = vmatprep.subr.mxu0 0.0
    %5809 = vmatpush1.msra.mxu0 0.0
    %5810 = vmatprep.subr.mxu0 0.0
    %5811 = vmatpush1.msra.mxu0 0.0
    %5812 = vmatprep.subr.mxu0 0.0
    %5813 = vmatpush1.msra.mxu0 0.0
    %5814 = vmatprep.subr.mxu0 0.0
    %5815 = vmatpush1.msra.mxu0 0.0
    %5816 = vmatprep.subr.mxu0 0.0
    %5817 = vmatpush1.msra.mxu0 0.0
    %5818 = vmatprep.subr.mxu0 0.0
    %5819 = vmatpush1.msra.mxu0 0.0
    %5820 = vmatprep.subr.mxu0 0.0
    %5821 = vmatpush1.msra.mxu0 0.0
    %5822 = vmatprep.subr.mxu0 0.0
    %5823 = vmatpush1.msra.mxu0 0.0
    %5824 = vmatprep.subr.mxu0 0.0
    %5825 = vmatpush1.msra.mxu0 0.0
    %5826 = vmatprep.subr.mxu0 0.0
    %5827 = vmatpush1.msra.mxu0 0.0
    %5828 = vmatprep.subr.mxu0 0.0
    %5829 = vmatpush1.msra.mxu0 0.0
    %5830 = vmatprep.subr.mxu0 0.0
    %5831 = vmatpush1.msra.mxu0 0.0
    %5832 = vmatprep.mubr.f32.mxu0 0.0
    %v5833 = vand.u32 %v5391, 4294901760
    %5834 = vmatmul.mubr.f32.gmra.mrb[0].mxu0 %v5833
    %v5835 = vpop.f32.mrb[0].mxu0
    %v5836 = vadd.f32 %v5764, %v5835
    %v5837 = vpop.f32.mrb[0].mxu0
    %5838 = vdwg.mxu0
    %5840 = vrot.lane.b32.xlu0 %v5836, 16
    %v5841 = vpop.permute.xlu0 %5840
    %vm5843 = vcmask 195712
    %5844 = vst.msk [vmem:[#allocation2] sm:$0xff] %vm5843, %v5841
    %5845 = vrot.lane.b32.xlu0 %v743, 40
    %v5846 = vpop.permute.xlu0 %5845
    %v5849 = vsel %vm757, %v4466, 0
    %5851 = vmatprep.subr.mxu0 0.0
    %v5852 = vand.u32 %v5846, 4294901760
    %5853 = vmatpush1.msra.mxu0 %v5852
    %5854 = vmatprep.subr.mxu0 0.0
    %5855 = vmatpush1.msra.mxu0 0.0
    %5856 = vmatprep.subr.mxu0 0.0
    %5857 = vmatpush1.msra.mxu0 0.0
    %5858 = vmatprep.subr.mxu0 0.0
    %5859 = vmatpush1.msra.mxu0 0.0
    %5860 = vmatprep.subr.mxu0 0.0
    %5861 = vmatpush1.msra.mxu0 0.0
    %5862 = vmatprep.subr.mxu0 0.0
    %5863 = vmatpush1.msra.mxu0 0.0
    %5864 = vmatprep.subr.mxu0 0.0
    %5865 = vmatpush1.msra.mxu0 0.0
    %5866 = vmatprep.subr.mxu0 0.0
    %5867 = vmatpush1.msra.mxu0 0.0
    %5868 = vmatprep.subr.mxu0 0.0
    %5869 = vmatpush1.msra.mxu0 0.0
    %5870 = vmatprep.subr.mxu0 0.0
    %5871 = vmatpush1.msra.mxu0 0.0
    %5872 = vmatprep.subr.mxu0 0.0
    %5873 = vmatpush1.msra.mxu0 0.0
    %5874 = vmatprep.subr.mxu0 0.0
    %5875 = vmatpush1.msra.mxu0 0.0
    %5876 = vmatprep.subr.mxu0 0.0
    %5877 = vmatpush1.msra.mxu0 0.0
    %5878 = vmatprep.subr.mxu0 0.0
    %5879 = vmatpush1.msra.mxu0 0.0
    %5880 = vmatprep.subr.mxu0 0.0
    %5881 = vmatpush1.msra.mxu0 0.0
    %5882 = vmatprep.subr.mxu0 0.0
    %5883 = vmatpush1.msra.mxu0 0.0
    %5884 = vmatprep.subr.mxu0 0.0
    %5885 = vmatpush1.msra.mxu0 0.0
    %5886 = vmatprep.subr.mxu0 0.0
    %5887 = vmatpush1.msra.mxu0 0.0
    %5888 = vmatprep.subr.mxu0 0.0
    %5889 = vmatpush1.msra.mxu0 0.0
    %5890 = vmatprep.subr.mxu0 0.0
    %5891 = vmatpush1.msra.mxu0 0.0
    %5892 = vmatprep.subr.mxu0 0.0
    %5893 = vmatpush1.msra.mxu0 0.0
    %5894 = vmatprep.subr.mxu0 0.0
    %5895 = vmatpush1.msra.mxu0 0.0
    %5896 = vmatprep.subr.mxu0 0.0
    %5897 = vmatpush1.msra.mxu0 0.0
    %5898 = vmatprep.subr.mxu0 0.0
    %5899 = vmatpush1.msra.mxu0 0.0
    %5900 = vmatprep.subr.mxu0 0.0
    %5901 = vmatpush1.msra.mxu0 0.0
    %5902 = vmatprep.subr.mxu0 0.0
    %5903 = vmatpush1.msra.mxu0 0.0
    %5904 = vmatprep.subr.mxu0 0.0
    %5905 = vmatpush1.msra.mxu0 0.0
    %5906 = vmatprep.subr.mxu0 0.0
    %5907 = vmatpush1.msra.mxu0 0.0
    %5908 = vmatprep.subr.mxu0 0.0
    %5909 = vmatpush1.msra.mxu0 0.0
    %5910 = vmatprep.subr.mxu0 0.0
    %5911 = vmatpush1.msra.mxu0 0.0
    %5912 = vmatprep.subr.mxu0 0.0
    %5913 = vmatpush1.msra.mxu0 0.0
    %5914 = vmatprep.subr.mxu0 0.0
    %5915 = vmatpush1.msra.mxu0 0.0
    %5916 = vmatprep.mubr.f32.mxu0 0.0
    %v5917 = vand.u32 %v5849, 4294901760
    %v5918 = vsub.f32 %v5849, %v5917
    %v5919 = vand.u32 %v5918, 4294901760
    %v5920 = vsub.f32 %v5918, %v5919
    %v5921 = vand.u32 %v5920, 4294901760
    %5922 = vmatmul.mubr.f32.gmra.mrb[0].mxu0 %v5921
    %v5923 = vpop.f32.mrb[0].mxu0
    %v5924 = vadd.f32 0.0, %v5923
    %v5925 = vpop.f32.mrb[0].mxu0
    %5926 = vdwg.mxu0
    %5927 = vmatprep.subr.mxu0 0.0
    %v5928 = vand.u32 %v5846, 4294901760
    %v5929 = vsub.f32 %v5846, %v5928
    %v5930 = vand.u32 %v5929, 4294901760
    %v5931 = vsub.f32 %v5929, %v5930
    %v5932 = vand.u32 %v5931, 4294901760
    %5933 = vmatpush1.msra.mxu0 %v5932
    %5934 = vmatprep.subr.mxu0 0.0
    %5935 = vmatpush1.msra.mxu0 0.0
    %5936 = vmatprep.subr.mxu0 0.0
    %5937 = vmatpush1.msra.mxu0 0.0
    %5938 = vmatprep.subr.mxu0 0.0
    %5939 = vmatpush1.msra.mxu0 0.0
    %5940 = vmatprep.subr.mxu0 0.0
    %5941 = vmatpush1.msra.mxu0 0.0
    %5942 = vmatprep.subr.mxu0 0.0
    %5943 = vmatpush1.msra.mxu0 0.0
    %5944 = vmatprep.subr.mxu0 0.0
    %5945 = vmatpush1.msra.mxu0 0.0
    %5946 = vmatprep.subr.mxu0 0.0
    %5947 = vmatpush1.msra.mxu0 0.0
    %5948 = vmatprep.subr.mxu0 0.0
    %5949 = vmatpush1.msra.mxu0 0.0
    %5950 = vmatprep.subr.mxu0 0.0
    %5951 = vmatpush1.msra.mxu0 0.0
    %5952 = vmatprep.subr.mxu0 0.0
    %5953 = vmatpush1.msra.mxu0 0.0
    %5954 = vmatprep.subr.mxu0 0.0
    %5955 = vmatpush1.msra.mxu0 0.0
    %5956 = vmatprep.subr.mxu0 0.0
    %5957 = vmatpush1.msra.mxu0 0.0
    %5958 = vmatprep.subr.mxu0 0.0
    %5959 = vmatpush1.msra.mxu0 0.0
    %5960 = vmatprep.subr.mxu0 0.0
    %5961 = vmatpush1.msra.mxu0 0.0
    %5962 = vmatprep.subr.mxu0 0.0
    %5963 = vmatpush1.msra.mxu0 0.0
    %5964 = vmatprep.subr.mxu0 0.0
    %5965 = vmatpush1.msra.mxu0 0.0
    %5966 = vmatprep.subr.mxu0 0.0
    %5967 = vmatpush1.msra.mxu0 0.0
    %5968 = vmatprep.subr.mxu0 0.0
    %5969 = vmatpush1.msra.mxu0 0.0
    %5970 = vmatprep.subr.mxu0 0.0
    %5971 = vmatpush1.msra.mxu0 0.0
    %5972 = vmatprep.subr.mxu0 0.0
    %5973 = vmatpush1.msra.mxu0 0.0
    %5974 = vmatprep.subr.mxu0 0.0
    %5975 = vmatpush1.msra.mxu0 0.0
    %5976 = vmatprep.subr.mxu0 0.0
    %5977 = vmatpush1.msra.mxu0 0.0
    %5978 = vmatprep.subr.mxu0 0.0
    %5979 = vmatpush1.msra.mxu0 0.0
    %5980 = vmatprep.subr.mxu0 0.0
    %5981 = vmatpush1.msra.mxu0 0.0
    %5982 = vmatprep.subr.mxu0 0.0
    %5983 = vmatpush1.msra.mxu0 0.0
    %5984 = vmatprep.subr.mxu0 0.0
    %5985 = vmatpush1.msra.mxu0 0.0
    %5986 = vmatprep.subr.mxu0 0.0
    %5987 = vmatpush1.msra.mxu0 0.0
    %5988 = vmatprep.subr.mxu0 0.0
    %5989 = vmatpush1.msra.mxu0 0.0
    %5990 = vmatprep.subr.mxu0 0.0
    %5991 = vmatpush1.msra.mxu0 0.0
    %5992 = vmatprep.subr.mxu0 0.0
    %5993 = vmatpush1.msra.mxu0 0.0
    %5994 = vmatprep.subr.mxu0 0.0
    %5995 = vmatpush1.msra.mxu0 0.0
    %5996 = vmatprep.mubr.f32.mxu0 0.0
    %v5997 = vand.u32 %v5849, 4294901760
    %5998 = vmatmul.mubr.f32.gmra.mrb[0].mxu0 %v5997
    %v5999 = vpop.f32.mrb[0].mxu0
    %v6000 = vadd.f32 %v5924, %v5999
    %v6001 = vpop.f32.mrb[0].mxu0
    %6002 = vdwg.mxu0
    %6003 = vmatprep.subr.mxu0 0.0
    %v6004 = vand.u32 %v5846, 4294901760
    %v6005 = vsub.f32 %v5846, %v6004
    %6006 = vmatpush1.msra.mxu0 %v6005
    %6007 = vmatprep.subr.mxu0 0.0
    %6008 = vmatpush1.msra.mxu0 0.0
    %6009 = vmatprep.subr.mxu0 0.0
    %6010 = vmatpush1.msra.mxu0 0.0
    %6011 = vmatprep.subr.mxu0 0.0
    %6012 = vmatpush1.msra.mxu0 0.0
    %6013 = vmatprep.subr.mxu0 0.0
    %6014 = vmatpush1.msra.mxu0 0.0
    %6015 = vmatprep.subr.mxu0 0.0
    %6016 = vmatpush1.msra.mxu0 0.0
    %6017 = vmatprep.subr.mxu0 0.0
    %6018 = vmatpush1.msra.mxu0 0.0
    %6019 = vmatprep.subr.mxu0 0.0
    %6020 = vmatpush1.msra.mxu0 0.0
    %6021 = vmatprep.subr.mxu0 0.0
    %6022 = vmatpush1.msra.mxu0 0.0
    %6023 = vmatprep.subr.mxu0 0.0
    %6024 = vmatpush1.msra.mxu0 0.0
    %6025 = vmatprep.subr.mxu0 0.0
    %6026 = vmatpush1.msra.mxu0 0.0
    %6027 = vmatprep.subr.mxu0 0.0
    %6028 = vmatpush1.msra.mxu0 0.0
    %6029 = vmatprep.subr.mxu0 0.0
    %6030 = vmatpush1.msra.mxu0 0.0
    %6031 = vmatprep.subr.mxu0 0.0
    %6032 = vmatpush1.msra.mxu0 0.0
    %6033 = vmatprep.subr.mxu0 0.0
    %6034 = vmatpush1.msra.mxu0 0.0
    %6035 = vmatprep.subr.mxu0 0.0
    %6036 = vmatpush1.msra.mxu0 0.0
    %6037 = vmatprep.subr.mxu0 0.0
    %6038 = vmatpush1.msra.mxu0 0.0
    %6039 = vmatprep.subr.mxu0 0.0
    %6040 = vmatpush1.msra.mxu0 0.0
    %6041 = vmatprep.subr.mxu0 0.0
    %6042 = vmatpush1.msra.mxu0 0.0
    %6043 = vmatprep.subr.mxu0 0.0
    %6044 = vmatpush1.msra.mxu0 0.0
    %6045 = vmatprep.subr.mxu0 0.0
    %6046 = vmatpush1.msra.mxu0 0.0
    %6047 = vmatprep.subr.mxu0 0.0
    %6048 = vmatpush1.msra.mxu0 0.0
    %6049 = vmatprep.subr.mxu0 0.0
    %6050 = vmatpush1.msra.mxu0 0.0
    %6051 = vmatprep.subr.mxu0 0.0
    %6052 = vmatpush1.msra.mxu0 0.0
    %6053 = vmatprep.subr.mxu0 0.0
    %6054 = vmatpush1.msra.mxu0 0.0
    %6055 = vmatprep.subr.mxu0 0.0
    %6056 = vmatpush1.msra.mxu0 0.0
    %6057 = vmatprep.subr.mxu0 0.0
    %6058 = vmatpush1.msra.mxu0 0.0
    %6059 = vmatprep.subr.mxu0 0.0
    %6060 = vmatpush1.msra.mxu0 0.0
    %6061 = vmatprep.subr.mxu0 0.0
    %6062 = vmatpush1.msra.mxu0 0.0
    %6063 = vmatprep.subr.mxu0 0.0
    %6064 = vmatpush1.msra.mxu0 0.0
    %6065 = vmatprep.subr.mxu0 0.0
    %6066 = vmatpush1.msra.mxu0 0.0
    %6067 = vmatprep.subr.mxu0 0.0
    %6068 = vmatpush1.msra.mxu0 0.0
    %6069 = vmatprep.mubr.f32.mxu0 0.0
    %v6070 = vand.u32 %v5849, 4294901760
    %v6071 = vsub.f32 %v5849, %v6070
    %6072 = vmatmul.mubr.f32.gmra.mrb[0].mxu0 %v6071
    %v6073 = vpop.f32.mrb[0].mxu0
    %v6074 = vadd.f32 %v6000, %v6073
    %v6075 = vpop.f32.mrb[0].mxu0
    %6076 = vdwg.mxu0
    %6077 = vmatprep.subr.mxu0 0.0
    %v6078 = vand.u32 %v5846, 4294901760
    %6079 = vmatpush1.msra.mxu0 %v6078
    %6080 = vmatprep.subr.mxu0 0.0
    %6081 = vmatpush1.msra.mxu0 0.0
    %6082 = vmatprep.subr.mxu0 0.0
    %6083 = vmatpush1.msra.mxu0 0.0
    %6084 = vmatprep.subr.mxu0 0.0
    %6085 = vmatpush1.msra.mxu0 0.0
    %6086 = vmatprep.subr.mxu0 0.0
    %6087 = vmatpush1.msra.mxu0 0.0
    %6088 = vmatprep.subr.mxu0 0.0
    %6089 = vmatpush1.msra.mxu0 0.0
    %6090 = vmatprep.subr.mxu0 0.0
    %6091 = vmatpush1.msra.mxu0 0.0
    %6092 = vmatprep.subr.mxu0 0.0
    %6093 = vmatpush1.msra.mxu0 0.0
    %6094 = vmatprep.subr.mxu0 0.0
    %6095 = vmatpush1.msra.mxu0 0.0
    %6096 = vmatprep.subr.mxu0 0.0
    %6097 = vmatpush1.msra.mxu0 0.0
    %6098 = vmatprep.subr.mxu0 0.0
    %6099 = vmatpush1.msra.mxu0 0.0
    %6100 = vmatprep.subr.mxu0 0.0
    %6101 = vmatpush1.msra.mxu0 0.0
    %6102 = vmatprep.subr.mxu0 0.0
    %6103 = vmatpush1.msra.mxu0 0.0
    %6104 = vmatprep.subr.mxu0 0.0
    %6105 = vmatpush1.msra.mxu0 0.0
    %6106 = vmatprep.subr.mxu0 0.0
    %6107 = vmatpush1.msra.mxu0 0.0
    %6108 = vmatprep.subr.mxu0 0.0
    %6109 = vmatpush1.msra.mxu0 0.0
    %6110 = vmatprep.subr.mxu0 0.0
    %6111 = vmatpush1.msra.mxu0 0.0
    %6112 = vmatprep.subr.mxu0 0.0
    %6113 = vmatpush1.msra.mxu0 0.0
    %6114 = vmatprep.subr.mxu0 0.0
    %6115 = vmatpush1.msra.mxu0 0.0
    %6116 = vmatprep.subr.mxu0 0.0
    %6117 = vmatpush1.msra.mxu0 0.0
    %6118 = vmatprep.subr.mxu0 0.0
    %6119 = vmatpush1.msra.mxu0 0.0
    %6120 = vmatprep.subr.mxu0 0.0
    %6121 = vmatpush1.msra.mxu0 0.0
    %6122 = vmatprep.subr.mxu0 0.0
    %6123 = vmatpush1.msra.mxu0 0.0
    %6124 = vmatprep.subr.mxu0 0.0
    %6125 = vmatpush1.msra.mxu0 0.0
    %6126 = vmatprep.subr.mxu0 0.0
    %6127 = vmatpush1.msra.mxu0 0.0
    %6128 = vmatprep.subr.mxu0 0.0
    %6129 = vmatpush1.msra.mxu0 0.0
    %6130 = vmatprep.subr.mxu0 0.0
    %6131 = vmatpush1.msra.mxu0 0.0
    %6132 = vmatprep.subr.mxu0 0.0
    %6133 = vmatpush1.msra.mxu0 0.0
    %6134 = vmatprep.subr.mxu0 0.0
    %6135 = vmatpush1.msra.mxu0 0.0
    %6136 = vmatprep.subr.mxu0 0.0
    %6137 = vmatpush1.msra.mxu0 0.0
    %6138 = vmatprep.subr.mxu0 0.0
    %6139 = vmatpush1.msra.mxu0 0.0
    %6140 = vmatprep.subr.mxu0 0.0
    %6141 = vmatpush1.msra.mxu0 0.0
    %6142 = vmatprep.mubr.f32.mxu0 0.0
    %v6143 = vand.u32 %v5849, 4294901760
    %v6144 = vsub.f32 %v5849, %v6143
    %v6145 = vand.u32 %v6144, 4294901760
    %6146 = vmatmul.mubr.f32.gmra.mrb[0].mxu0 %v6145
    %v6147 = vpop.f32.mrb[0].mxu0
    %v6148 = vadd.f32 %v6074, %v6147
    %v6149 = vpop.f32.mrb[0].mxu0
    %6150 = vdwg.mxu0
    %6151 = vmatprep.subr.mxu0 0.0
    %v6152 = vand.u32 %v5846, 4294901760
    %v6153 = vsub.f32 %v5846, %v6152
    %v6154 = vand.u32 %v6153, 4294901760
    %6155 = vmatpush1.msra.mxu0 %v6154
    %6156 = vmatprep.subr.mxu0 0.0
    %6157 = vmatpush1.msra.mxu0 0.0
    %6158 = vmatprep.subr.mxu0 0.0
    %6159 = vmatpush1.msra.mxu0 0.0
    %6160 = vmatprep.subr.mxu0 0.0
    %6161 = vmatpush1.msra.mxu0 0.0
    %6162 = vmatprep.subr.mxu0 0.0
    %6163 = vmatpush1.msra.mxu0 0.0
    %6164 = vmatprep.subr.mxu0 0.0
    %6165 = vmatpush1.msra.mxu0 0.0
    %6166 = vmatprep.subr.mxu0 0.0
    %6167 = vmatpush1.msra.mxu0 0.0
    %6168 = vmatprep.subr.mxu0 0.0
    %6169 = vmatpush1.msra.mxu0 0.0
    %6170 = vmatprep.subr.mxu0 0.0
    %6171 = vmatpush1.msra.mxu0 0.0
    %6172 = vmatprep.subr.mxu0 0.0
    %6173 = vmatpush1.msra.mxu0 0.0
    %6174 = vmatprep.subr.mxu0 0.0
    %6175 = vmatpush1.msra.mxu0 0.0
    %6176 = vmatprep.subr.mxu0 0.0
    %6177 = vmatpush1.msra.mxu0 0.0
    %6178 = vmatprep.subr.mxu0 0.0
    %6179 = vmatpush1.msra.mxu0 0.0
    %6180 = vmatprep.subr.mxu0 0.0
    %6181 = vmatpush1.msra.mxu0 0.0
    %6182 = vmatprep.subr.mxu0 0.0
    %6183 = vmatpush1.msra.mxu0 0.0
    %6184 = vmatprep.subr.mxu0 0.0
    %6185 = vmatpush1.msra.mxu0 0.0
    %6186 = vmatprep.subr.mxu0 0.0
    %6187 = vmatpush1.msra.mxu0 0.0
    %6188 = vmatprep.subr.mxu0 0.0
    %6189 = vmatpush1.msra.mxu0 0.0
    %6190 = vmatprep.subr.mxu0 0.0
    %6191 = vmatpush1.msra.mxu0 0.0
    %6192 = vmatprep.subr.mxu0 0.0
    %6193 = vmatpush1.msra.mxu0 0.0
    %6194 = vmatprep.subr.mxu0 0.0
    %6195 = vmatpush1.msra.mxu0 0.0
    %6196 = vmatprep.subr.mxu0 0.0
    %6197 = vmatpush1.msra.mxu0 0.0
    %6198 = vmatprep.subr.mxu0 0.0
    %6199 = vmatpush1.msra.mxu0 0.0
    %6200 = vmatprep.subr.mxu0 0.0
    %6201 = vmatpush1.msra.mxu0 0.0
    %6202 = vmatprep.subr.mxu0 0.0
    %6203 = vmatpush1.msra.mxu0 0.0
    %6204 = vmatprep.subr.mxu0 0.0
    %6205 = vmatpush1.msra.mxu0 0.0
    %6206 = vmatprep.subr.mxu0 0.0
    %6207 = vmatpush1.msra.mxu0 0.0
    %6208 = vmatprep.subr.mxu0 0.0
    %6209 = vmatpush1.msra.mxu0 0.0
    %6210 = vmatprep.subr.mxu0 0.0
    %6211 = vmatpush1.msra.mxu0 0.0
    %6212 = vmatprep.subr.mxu0 0.0
    %6213 = vmatpush1.msra.mxu0 0.0
    %6214 = vmatprep.subr.mxu0 0.0
    %6215 = vmatpush1.msra.mxu0 0.0
    %6216 = vmatprep.subr.mxu0 0.0
    %6217 = vmatpush1.msra.mxu0 0.0
    %6218 = vmatprep.mubr.f32.mxu0 0.0
    %v6219 = vand.u32 %v5849, 4294901760
    %6220 = vmatmul.mubr.f32.gmra.mrb[0].mxu0 %v6219
    %v6221 = vpop.f32.mrb[0].mxu0
    %v6222 = vadd.f32 %v6148, %v6221
    %v6223 = vpop.f32.mrb[0].mxu0
    %6224 = vdwg.mxu0
    %6225 = vmatprep.subr.mxu0 0.0
    %v6226 = vand.u32 %v5846, 4294901760
    %6227 = vmatpush1.msra.mxu0 %v6226
    %6228 = vmatprep.subr.mxu0 0.0
    %6229 = vmatpush1.msra.mxu0 0.0
    %6230 = vmatprep.subr.mxu0 0.0
    %6231 = vmatpush1.msra.mxu0 0.0
    %6232 = vmatprep.subr.mxu0 0.0
    %6233 = vmatpush1.msra.mxu0 0.0
    %6234 = vmatprep.subr.mxu0 0.0
    %6235 = vmatpush1.msra.mxu0 0.0
    %6236 = vmatprep.subr.mxu0 0.0
    %6237 = vmatpush1.msra.mxu0 0.0
    %6238 = vmatprep.subr.mxu0 0.0
    %6239 = vmatpush1.msra.mxu0 0.0
    %6240 = vmatprep.subr.mxu0 0.0
    %6241 = vmatpush1.msra.mxu0 0.0
    %6242 = vmatprep.subr.mxu0 0.0
    %6243 = vmatpush1.msra.mxu0 0.0
    %6244 = vmatprep.subr.mxu0 0.0
    %6245 = vmatpush1.msra.mxu0 0.0
    %6246 = vmatprep.subr.mxu0 0.0
    %6247 = vmatpush1.msra.mxu0 0.0
    %6248 = vmatprep.subr.mxu0 0.0
    %6249 = vmatpush1.msra.mxu0 0.0
    %6250 = vmatprep.subr.mxu0 0.0
    %6251 = vmatpush1.msra.mxu0 0.0
    %6252 = vmatprep.subr.mxu0 0.0
    %6253 = vmatpush1.msra.mxu0 0.0
    %6254 = vmatprep.subr.mxu0 0.0
    %6255 = vmatpush1.msra.mxu0 0.0
    %6256 = vmatprep.subr.mxu0 0.0
    %6257 = vmatpush1.msra.mxu0 0.0
    %6258 = vmatprep.subr.mxu0 0.0
    %6259 = vmatpush1.msra.mxu0 0.0
    %6260 = vmatprep.subr.mxu0 0.0
    %6261 = vmatpush1.msra.mxu0 0.0
    %6262 = vmatprep.subr.mxu0 0.0
    %6263 = vmatpush1.msra.mxu0 0.0
    %6264 = vmatprep.subr.mxu0 0.0
    %6265 = vmatpush1.msra.mxu0 0.0
    %6266 = vmatprep.subr.mxu0 0.0
    %6267 = vmatpush1.msra.mxu0 0.0
    %6268 = vmatprep.subr.mxu0 0.0
    %6269 = vmatpush1.msra.mxu0 0.0
    %6270 = vmatprep.subr.mxu0 0.0
    %6271 = vmatpush1.msra.mxu0 0.0
    %6272 = vmatprep.subr.mxu0 0.0
    %6273 = vmatpush1.msra.mxu0 0.0
    %6274 = vmatprep.subr.mxu0 0.0
    %6275 = vmatpush1.msra.mxu0 0.0
    %6276 = vmatprep.subr.mxu0 0.0
    %6277 = vmatpush1.msra.mxu0 0.0
    %6278 = vmatprep.subr.mxu0 0.0
    %6279 = vmatpush1.msra.mxu0 0.0
    %6280 = vmatprep.subr.mxu0 0.0
    %6281 = vmatpush1.msra.mxu0 0.0
    %6282 = vmatprep.subr.mxu0 0.0
    %6283 = vmatpush1.msra.mxu0 0.0
    %6284 = vmatprep.subr.mxu0 0.0
    %6285 = vmatpush1.msra.mxu0 0.0
    %6286 = vmatprep.subr.mxu0 0.0
    %6287 = vmatpush1.msra.mxu0 0.0
    %6288 = vmatprep.subr.mxu0 0.0
    %6289 = vmatpush1.msra.mxu0 0.0
    %6290 = vmatprep.mubr.f32.mxu0 0.0
    %v6291 = vand.u32 %v5849, 4294901760
    %6292 = vmatmul.mubr.f32.gmra.mrb[0].mxu0 %v6291
    %v6293 = vpop.f32.mrb[0].mxu0
    %v6294 = vadd.f32 %v6222, %v6293
    %v6295 = vpop.f32.mrb[0].mxu0
    %6296 = vdwg.mxu0
    %6298 = vrot.lane.b32.xlu0 %v6294, 24
    %v6299 = vpop.permute.xlu0 %6298
    %vm6301 = vcmask 261312
    %6302 = vst.msk [vmem:[#allocation2] sm:$0xff] %vm6301, %v6299
    %6304 = vrot.lane.b32.xlu0 %v749, 64
    %v6305 = vpop.permute.xlu0 %6304
    %v6308 = vsel %vm757, %v4468, 0
    %6310 = vmatprep.subr.mxu0 0.0
    %v6311 = vand.u32 %v6305, 4294901760
    %6312 = vmatpush1.msra.mxu0 %v6311
    %6313 = vmatprep.subr.mxu0 0.0
    %6314 = vmatpush1.msra.mxu0 0.0
    %6315 = vmatprep.subr.mxu0 0.0
    %6316 = vmatpush1.msra.mxu0 0.0
    %6317 = vmatprep.subr.mxu0 0.0
    %6318 = vmatpush1.msra.mxu0 0.0
    %6319 = vmatprep.subr.mxu0 0.0
    %6320 = vmatpush1.msra.mxu0 0.0
    %6321 = vmatprep.subr.mxu0 0.0
    %6322 = vmatpush1.msra.mxu0 0.0
    %6323 = vmatprep.subr.mxu0 0.0
    %6324 = vmatpush1.msra.mxu0 0.0
    %6325 = vmatprep.subr.mxu0 0.0
    %6326 = vmatpush1.msra.mxu0 0.0
    %6327 = vmatprep.subr.mxu0 0.0
    %6328 = vmatpush1.msra.mxu0 0.0
    %6329 = vmatprep.subr.mxu0 0.0
    %6330 = vmatpush1.msra.mxu0 0.0
    %6331 = vmatprep.subr.mxu0 0.0
    %6332 = vmatpush1.msra.mxu0 0.0
    %6333 = vmatprep.subr.mxu0 0.0
    %6334 = vmatpush1.msra.mxu0 0.0
    %6335 = vmatprep.subr.mxu0 0.0
    %6336 = vmatpush1.msra.mxu0 0.0
    %6337 = vmatprep.subr.mxu0 0.0
    %6338 = vmatpush1.msra.mxu0 0.0
    %6339 = vmatprep.subr.mxu0 0.0
    %6340 = vmatpush1.msra.mxu0 0.0
    %6341 = vmatprep.subr.mxu0 0.0
    %6342 = vmatpush1.msra.mxu0 0.0
    %6343 = vmatprep.subr.mxu0 0.0
    %6344 = vmatpush1.msra.mxu0 0.0
    %6345 = vmatprep.subr.mxu0 0.0
    %6346 = vmatpush1.msra.mxu0 0.0
    %6347 = vmatprep.subr.mxu0 0.0
    %6348 = vmatpush1.msra.mxu0 0.0
    %6349 = vmatprep.subr.mxu0 0.0
    %6350 = vmatpush1.msra.mxu0 0.0
    %6351 = vmatprep.subr.mxu0 0.0
    %6352 = vmatpush1.msra.mxu0 0.0
    %6353 = vmatprep.subr.mxu0 0.0
    %6354 = vmatpush1.msra.mxu0 0.0
    %6355 = vmatprep.subr.mxu0 0.0
    %6356 = vmatpush1.msra.mxu0 0.0
    %6357 = vmatprep.subr.mxu0 0.0
    %6358 = vmatpush1.msra.mxu0 0.0
    %6359 = vmatprep.subr.mxu0 0.0
    %6360 = vmatpush1.msra.mxu0 0.0
    %6361 = vmatprep.subr.mxu0 0.0
    %6362 = vmatpush1.msra.mxu0 0.0
    %6363 = vmatprep.subr.mxu0 0.0
    %6364 = vmatpush1.msra.mxu0 0.0
    %6365 = vmatprep.subr.mxu0 0.0
    %6366 = vmatpush1.msra.mxu0 0.0
    %6367 = vmatprep.subr.mxu0 0.0
    %6368 = vmatpush1.msra.mxu0 0.0
    %6369 = vmatprep.subr.mxu0 0.0
    %6370 = vmatpush1.msra.mxu0 0.0
    %6371 = vmatprep.subr.mxu0 0.0
    %6372 = vmatpush1.msra.mxu0 0.0
    %6373 = vmatprep.subr.mxu0 0.0
    %6374 = vmatpush1.msra.mxu0 0.0
    %6375 = vmatprep.mubr.f32.mxu0 0.0
    %v6376 = vand.u32 %v6308, 4294901760
    %v6377 = vsub.f32 %v6308, %v6376
    %v6378 = vand.u32 %v6377, 4294901760
    %v6379 = vsub.f32 %v6377, %v6378
    %v6380 = vand.u32 %v6379, 4294901760
    %6381 = vmatmul.mubr.f32.gmra.mrb[0].mxu0 %v6380
    %v6382 = vpop.f32.mrb[0].mxu0
    %v6383 = vadd.f32 0.0, %v6382
    %v6384 = vpop.f32.mrb[0].mxu0
    %6385 = vdwg.mxu0
    %6386 = vmatprep.subr.mxu0 0.0
    %v6387 = vand.u32 %v6305, 4294901760
    %v6388 = vsub.f32 %v6305, %v6387
    %v6389 = vand.u32 %v6388, 4294901760
    %v6390 = vsub.f32 %v6388, %v6389
    %v6391 = vand.u32 %v6390, 4294901760
    %6392 = vmatpush1.msra.mxu0 %v6391
    %6393 = vmatprep.subr.mxu0 0.0
    %6394 = vmatpush1.msra.mxu0 0.0
    %6395 = vmatprep.subr.mxu0 0.0
    %6396 = vmatpush1.msra.mxu0 0.0
    %6397 = vmatprep.subr.mxu0 0.0
    %6398 = vmatpush1.msra.mxu0 0.0
    %6399 = vmatprep.subr.mxu0 0.0
    %6400 = vmatpush1.msra.mxu0 0.0
    %6401 = vmatprep.subr.mxu0 0.0
    %6402 = vmatpush1.msra.mxu0 0.0
    %6403 = vmatprep.subr.mxu0 0.0
    %6404 = vmatpush1.msra.mxu0 0.0
    %6405 = vmatprep.subr.mxu0 0.0
    %6406 = vmatpush1.msra.mxu0 0.0
    %6407 = vmatprep.subr.mxu0 0.0
    %6408 = vmatpush1.msra.mxu0 0.0
    %6409 = vmatprep.subr.mxu0 0.0
    %6410 = vmatpush1.msra.mxu0 0.0
    %6411 = vmatprep.subr.mxu0 0.0
    %6412 = vmatpush1.msra.mxu0 0.0
    %6413 = vmatprep.subr.mxu0 0.0
    %6414 = vmatpush1.msra.mxu0 0.0
    %6415 = vmatprep.subr.mxu0 0.0
    %6416 = vmatpush1.msra.mxu0 0.0
    %6417 = vmatprep.subr.mxu0 0.0
    %6418 = vmatpush1.msra.mxu0 0.0
    %6419 = vmatprep.subr.mxu0 0.0
    %6420 = vmatpush1.msra.mxu0 0.0
    %6421 = vmatprep.subr.mxu0 0.0
    %6422 = vmatpush1.msra.mxu0 0.0
    %6423 = vmatprep.subr.mxu0 0.0
    %6424 = vmatpush1.msra.mxu0 0.0
    %6425 = vmatprep.subr.mxu0 0.0
    %6426 = vmatpush1.msra.mxu0 0.0
    %6427 = vmatprep.subr.mxu0 0.0
    %6428 = vmatpush1.msra.mxu0 0.0
    %6429 = vmatprep.subr.mxu0 0.0
    %6430 = vmatpush1.msra.mxu0 0.0
    %6431 = vmatprep.subr.mxu0 0.0
    %6432 = vmatpush1.msra.mxu0 0.0
    %6433 = vmatprep.subr.mxu0 0.0
    %6434 = vmatpush1.msra.mxu0 0.0
    %6435 = vmatprep.subr.mxu0 0.0
    %6436 = vmatpush1.msra.mxu0 0.0
    %6437 = vmatprep.subr.mxu0 0.0
    %6438 = vmatpush1.msra.mxu0 0.0
    %6439 = vmatprep.subr.mxu0 0.0
    %6440 = vmatpush1.msra.mxu0 0.0
    %6441 = vmatprep.subr.mxu0 0.0
    %6442 = vmatpush1.msra.mxu0 0.0
    %6443 = vmatprep.subr.mxu0 0.0
    %6444 = vmatpush1.msra.mxu0 0.0
    %6445 = vmatprep.subr.mxu0 0.0
    %6446 = vmatpush1.msra.mxu0 0.0
    %6447 = vmatprep.subr.mxu0 0.0
    %6448 = vmatpush1.msra.mxu0 0.0
    %6449 = vmatprep.subr.mxu0 0.0
    %6450 = vmatpush1.msra.mxu0 0.0
    %6451 = vmatprep.subr.mxu0 0.0
    %6452 = vmatpush1.msra.mxu0 0.0
    %6453 = vmatprep.subr.mxu0 0.0
    %6454 = vmatpush1.msra.mxu0 0.0
    %6455 = vmatprep.mubr.f32.mxu0 0.0
    %v6456 = vand.u32 %v6308, 4294901760
    %6457 = vmatmul.mubr.f32.gmra.mrb[0].mxu0 %v6456
    %v6458 = vpop.f32.mrb[0].mxu0
    %v6459 = vadd.f32 %v6383, %v6458
    %v6460 = vpop.f32.mrb[0].mxu0
    %6461 = vdwg.mxu0
    %6462 = vmatprep.subr.mxu0 0.0
    %v6463 = vand.u32 %v6305, 4294901760
    %v6464 = vsub.f32 %v6305, %v6463
    %6465 = vmatpush1.msra.mxu0 %v6464
    %6466 = vmatprep.subr.mxu0 0.0
    %6467 = vmatpush1.msra.mxu0 0.0
    %6468 = vmatprep.subr.mxu0 0.0
    %6469 = vmatpush1.msra.mxu0 0.0
    %6470 = vmatprep.subr.mxu0 0.0
    %6471 = vmatpush1.msra.mxu0 0.0
    %6472 = vmatprep.subr.mxu0 0.0
    %6473 = vmatpush1.msra.mxu0 0.0
    %6474 = vmatprep.subr.mxu0 0.0
    %6475 = vmatpush1.msra.mxu0 0.0
    %6476 = vmatprep.subr.mxu0 0.0
    %6477 = vmatpush1.msra.mxu0 0.0
    %6478 = vmatprep.subr.mxu0 0.0
    %6479 = vmatpush1.msra.mxu0 0.0
    %6480 = vmatprep.subr.mxu0 0.0
    %6481 = vmatpush1.msra.mxu0 0.0
    %6482 = vmatprep.subr.mxu0 0.0
    %6483 = vmatpush1.msra.mxu0 0.0
    %6484 = vmatprep.subr.mxu0 0.0
    %6485 = vmatpush1.msra.mxu0 0.0
    %6486 = vmatprep.subr.mxu0 0.0
    %6487 = vmatpush1.msra.mxu0 0.0
    %6488 = vmatprep.subr.mxu0 0.0
    %6489 = vmatpush1.msra.mxu0 0.0
    %6490 = vmatprep.subr.mxu0 0.0
    %6491 = vmatpush1.msra.mxu0 0.0
    %6492 = vmatprep.subr.mxu0 0.0
    %6493 = vmatpush1.msra.mxu0 0.0
    %6494 = vmatprep.subr.mxu0 0.0
    %6495 = vmatpush1.msra.mxu0 0.0
    %6496 = vmatprep.subr.mxu0 0.0
    %6497 = vmatpush1.msra.mxu0 0.0
    %6498 = vmatprep.subr.mxu0 0.0
    %6499 = vmatpush1.msra.mxu0 0.0
    %6500 = vmatprep.subr.mxu0 0.0
    %6501 = vmatpush1.msra.mxu0 0.0
    %6502 = vmatprep.subr.mxu0 0.0
    %6503 = vmatpush1.msra.mxu0 0.0
    %6504 = vmatprep.subr.mxu0 0.0
    %6505 = vmatpush1.msra.mxu0 0.0
    %6506 = vmatprep.subr.mxu0 0.0
    %6507 = vmatpush1.msra.mxu0 0.0
    %6508 = vmatprep.subr.mxu0 0.0
    %6509 = vmatpush1.msra.mxu0 0.0
    %6510 = vmatprep.subr.mxu0 0.0
    %6511 = vmatpush1.msra.mxu0 0.0
    %6512 = vmatprep.subr.mxu0 0.0
    %6513 = vmatpush1.msra.mxu0 0.0
    %6514 = vmatprep.subr.mxu0 0.0
    %6515 = vmatpush1.msra.mxu0 0.0
    %6516 = vmatprep.subr.mxu0 0.0
    %6517 = vmatpush1.msra.mxu0 0.0
    %6518 = vmatprep.subr.mxu0 0.0
    %6519 = vmatpush1.msra.mxu0 0.0
    %6520 = vmatprep.subr.mxu0 0.0
    %6521 = vmatpush1.msra.mxu0 0.0
    %6522 = vmatprep.subr.mxu0 0.0
    %6523 = vmatpush1.msra.mxu0 0.0
    %6524 = vmatprep.subr.mxu0 0.0
    %6525 = vmatpush1.msra.mxu0 0.0
    %6526 = vmatprep.subr.mxu0 0.0
    %6527 = vmatpush1.msra.mxu0 0.0
    %6528 = vmatprep.mubr.f32.mxu0 0.0
    %v6529 = vand.u32 %v6308, 4294901760
    %v6530 = vsub.f32 %v6308, %v6529
    %6531 = vmatmul.mubr.f32.gmra.mrb[0].mxu0 %v6530
    %v6532 = vpop.f32.mrb[0].mxu0
    %v6533 = vadd.f32 %v6459, %v6532
    %v6534 = vpop.f32.mrb[0].mxu0
    %6535 = vdwg.mxu0
    %6536 = vmatprep.subr.mxu0 0.0
    %v6537 = vand.u32 %v6305, 4294901760
    %6538 = vmatpush1.msra.mxu0 %v6537
    %6539 = vmatprep.subr.mxu0 0.0
    %6540 = vmatpush1.msra.mxu0 0.0
    %6541 = vmatprep.subr.mxu0 0.0
    %6542 = vmatpush1.msra.mxu0 0.0
    %6543 = vmatprep.subr.mxu0 0.0
    %6544 = vmatpush1.msra.mxu0 0.0
    %6545 = vmatprep.subr.mxu0 0.0
    %6546 = vmatpush1.msra.mxu0 0.0
    %6547 = vmatprep.subr.mxu0 0.0
    %6548 = vmatpush1.msra.mxu0 0.0
    %6549 = vmatprep.subr.mxu0 0.0
    %6550 = vmatpush1.msra.mxu0 0.0
    %6551 = vmatprep.subr.mxu0 0.0
    %6552 = vmatpush1.msra.mxu0 0.0
    %6553 = vmatprep.subr.mxu0 0.0
    %6554 = vmatpush1.msra.mxu0 0.0
    %6555 = vmatprep.subr.mxu0 0.0
    %6556 = vmatpush1.msra.mxu0 0.0
    %6557 = vmatprep.subr.mxu0 0.0
    %6558 = vmatpush1.msra.mxu0 0.0
    %6559 = vmatprep.subr.mxu0 0.0
    %6560 = vmatpush1.msra.mxu0 0.0
    %6561 = vmatprep.subr.mxu0 0.0
    %6562 = vmatpush1.msra.mxu0 0.0
    %6563 = vmatprep.subr.mxu0 0.0
    %6564 = vmatpush1.msra.mxu0 0.0
    %6565 = vmatprep.subr.mxu0 0.0
    %6566 = vmatpush1.msra.mxu0 0.0
    %6567 = vmatprep.subr.mxu0 0.0
    %6568 = vmatpush1.msra.mxu0 0.0
    %6569 = vmatprep.subr.mxu0 0.0
    %6570 = vmatpush1.msra.mxu0 0.0
    %6571 = vmatprep.subr.mxu0 0.0
    %6572 = vmatpush1.msra.mxu0 0.0
    %6573 = vmatprep.subr.mxu0 0.0
    %6574 = vmatpush1.msra.mxu0 0.0
    %6575 = vmatprep.subr.mxu0 0.0
    %6576 = vmatpush1.msra.mxu0 0.0
    %6577 = vmatprep.subr.mxu0 0.0
    %6578 = vmatpush1.msra.mxu0 0.0
    %6579 = vmatprep.subr.mxu0 0.0
    %6580 = vmatpush1.msra.mxu0 0.0
    %6581 = vmatprep.subr.mxu0 0.0
    %6582 = vmatpush1.msra.mxu0 0.0
    %6583 = vmatprep.subr.mxu0 0.0
    %6584 = vmatpush1.msra.mxu0 0.0
    %6585 = vmatprep.subr.mxu0 0.0
    %6586 = vmatpush1.msra.mxu0 0.0
    %6587 = vmatprep.subr.mxu0 0.0
    %6588 = vmatpush1.msra.mxu0 0.0
    %6589 = vmatprep.subr.mxu0 0.0
    %6590 = vmatpush1.msra.mxu0 0.0
    %6591 = vmatprep.subr.mxu0 0.0
    %6592 = vmatpush1.msra.mxu0 0.0
    %6593 = vmatprep.subr.mxu0 0.0
    %6594 = vmatpush1.msra.mxu0 0.0
    %6595 = vmatprep.subr.mxu0 0.0
    %6596 = vmatpush1.msra.mxu0 0.0
    %6597 = vmatprep.subr.mxu0 0.0
    %6598 = vmatpush1.msra.mxu0 0.0
    %6599 = vmatprep.subr.mxu0 0.0
    %6600 = vmatpush1.msra.mxu0 0.0
    %6601 = vmatprep.mubr.f32.mxu0 0.0
    %v6602 = vand.u32 %v6308, 4294901760
    %v6603 = vsub.f32 %v6308, %v6602
    %v6604 = vand.u32 %v6603, 4294901760
    %6605 = vmatmul.mubr.f32.gmra.mrb[0].mxu0 %v6604
    %v6606 = vpop.f32.mrb[0].mxu0
    %v6607 = vadd.f32 %v6533, %v6606
    %v6608 = vpop.f32.mrb[0].mxu0
    %6609 = vdwg.mxu0
    %6610 = vmatprep.subr.mxu0 0.0
    %v6611 = vand.u32 %v6305, 4294901760
    %v6612 = vsub.f32 %v6305, %v6611
    %v6613 = vand.u32 %v6612, 4294901760
    %6614 = vmatpush1.msra.mxu0 %v6613
    %6615 = vmatprep.subr.mxu0 0.0
    %6616 = vmatpush1.msra.mxu0 0.0
    %6617 = vmatprep.subr.mxu0 0.0
    %6618 = vmatpush1.msra.mxu0 0.0
    %6619 = vmatprep.subr.mxu0 0.0
    %6620 = vmatpush1.msra.mxu0 0.0
    %6621 = vmatprep.subr.mxu0 0.0
    %6622 = vmatpush1.msra.mxu0 0.0
    %6623 = vmatprep.subr.mxu0 0.0
    %6624 = vmatpush1.msra.mxu0 0.0
    %6625 = vmatprep.subr.mxu0 0.0
    %6626 = vmatpush1.msra.mxu0 0.0
    %6627 = vmatprep.subr.mxu0 0.0
    %6628 = vmatpush1.msra.mxu0 0.0
    %6629 = vmatprep.subr.mxu0 0.0
    %6630 = vmatpush1.msra.mxu0 0.0
    %6631 = vmatprep.subr.mxu0 0.0
    %6632 = vmatpush1.msra.mxu0 0.0
    %6633 = vmatprep.subr.mxu0 0.0
    %6634 = vmatpush1.msra.mxu0 0.0
    %6635 = vmatprep.subr.mxu0 0.0
    %6636 = vmatpush1.msra.mxu0 0.0
    %6637 = vmatprep.subr.mxu0 0.0
    %6638 = vmatpush1.msra.mxu0 0.0
    %6639 = vmatprep.subr.mxu0 0.0
    %6640 = vmatpush1.msra.mxu0 0.0
    %6641 = vmatprep.subr.mxu0 0.0
    %6642 = vmatpush1.msra.mxu0 0.0
    %6643 = vmatprep.subr.mxu0 0.0
    %6644 = vmatpush1.msra.mxu0 0.0
    %6645 = vmatprep.subr.mxu0 0.0
    %6646 = vmatpush1.msra.mxu0 0.0
    %6647 = vmatprep.subr.mxu0 0.0
    %6648 = vmatpush1.msra.mxu0 0.0
    %6649 = vmatprep.subr.mxu0 0.0
    %6650 = vmatpush1.msra.mxu0 0.0
    %6651 = vmatprep.subr.mxu0 0.0
    %6652 = vmatpush1.msra.mxu0 0.0
    %6653 = vmatprep.subr.mxu0 0.0
    %6654 = vmatpush1.msra.mxu0 0.0
    %6655 = vmatprep.subr.mxu0 0.0
    %6656 = vmatpush1.msra.mxu0 0.0
    %6657 = vmatprep.subr.mxu0 0.0
    %6658 = vmatpush1.msra.mxu0 0.0
    %6659 = vmatprep.subr.mxu0 0.0
    %6660 = vmatpush1.msra.mxu0 0.0
    %6661 = vmatprep.subr.mxu0 0.0
    %6662 = vmatpush1.msra.mxu0 0.0
    %6663 = vmatprep.subr.mxu0 0.0
    %6664 = vmatpush1.msra.mxu0 0.0
    %6665 = vmatprep.subr.mxu0 0.0
    %6666 = vmatpush1.msra.mxu0 0.0
    %6667 = vmatprep.subr.mxu0 0.0
    %6668 = vmatpush1.msra.mxu0 0.0
    %6669 = vmatprep.subr.mxu0 0.0
    %6670 = vmatpush1.msra.mxu0 0.0
    %6671 = vmatprep.subr.mxu0 0.0
    %6672 = vmatpush1.msra.mxu0 0.0
    %6673 = vmatprep.subr.mxu0 0.0
    %6674 = vmatpush1.msra.mxu0 0.0
    %6675 = vmatprep.subr.mxu0 0.0
    %6676 = vmatpush1.msra.mxu0 0.0
    %6677 = vmatprep.mubr.f32.mxu0 0.0
    %v6678 = vand.u32 %v6308, 4294901760
    %6679 = vmatmul.mubr.f32.gmra.mrb[0].mxu0 %v6678
    %v6680 = vpop.f32.mrb[0].mxu0
    %v6681 = vadd.f32 %v6607, %v6680
    %v6682 = vpop.f32.mrb[0].mxu0
    %6683 = vdwg.mxu0
    %6684 = vmatprep.subr.mxu0 0.0
    %v6685 = vand.u32 %v6305, 4294901760
    %6686 = vmatpush1.msra.mxu0 %v6685
    %6687 = vmatprep.subr.mxu0 0.0
    %6688 = vmatpush1.msra.mxu0 0.0
    %6689 = vmatprep.subr.mxu0 0.0
    %6690 = vmatpush1.msra.mxu0 0.0
    %6691 = vmatprep.subr.mxu0 0.0
    %6692 = vmatpush1.msra.mxu0 0.0
    %6693 = vmatprep.subr.mxu0 0.0
    %6694 = vmatpush1.msra.mxu0 0.0
    %6695 = vmatprep.subr.mxu0 0.0
    %6696 = vmatpush1.msra.mxu0 0.0
    %6697 = vmatprep.subr.mxu0 0.0
    %6698 = vmatpush1.msra.mxu0 0.0
    %6699 = vmatprep.subr.mxu0 0.0
    %6700 = vmatpush1.msra.mxu0 0.0
    %6701 = vmatprep.subr.mxu0 0.0
    %6702 = vmatpush1.msra.mxu0 0.0
    %6703 = vmatprep.subr.mxu0 0.0
    %6704 = vmatpush1.msra.mxu0 0.0
    %6705 = vmatprep.subr.mxu0 0.0
    %6706 = vmatpush1.msra.mxu0 0.0
    %6707 = vmatprep.subr.mxu0 0.0
    %6708 = vmatpush1.msra.mxu0 0.0
    %6709 = vmatprep.subr.mxu0 0.0
    %6710 = vmatpush1.msra.mxu0 0.0
    %6711 = vmatprep.subr.mxu0 0.0
    %6712 = vmatpush1.msra.mxu0 0.0
    %6713 = vmatprep.subr.mxu0 0.0
    %6714 = vmatpush1.msra.mxu0 0.0
    %6715 = vmatprep.subr.mxu0 0.0
    %6716 = vmatpush1.msra.mxu0 0.0
    %6717 = vmatprep.subr.mxu0 0.0
    %6718 = vmatpush1.msra.mxu0 0.0
    %6719 = vmatprep.subr.mxu0 0.0
    %6720 = vmatpush1.msra.mxu0 0.0
    %6721 = vmatprep.subr.mxu0 0.0
    %6722 = vmatpush1.msra.mxu0 0.0
    %6723 = vmatprep.subr.mxu0 0.0
    %6724 = vmatpush1.msra.mxu0 0.0
    %6725 = vmatprep.subr.mxu0 0.0
    %6726 = vmatpush1.msra.mxu0 0.0
    %6727 = vmatprep.subr.mxu0 0.0
    %6728 = vmatpush1.msra.mxu0 0.0
    %6729 = vmatprep.subr.mxu0 0.0
    %6730 = vmatpush1.msra.mxu0 0.0
    %6731 = vmatprep.subr.mxu0 0.0
    %6732 = vmatpush1.msra.mxu0 0.0
    %6733 = vmatprep.subr.mxu0 0.0
    %6734 = vmatpush1.msra.mxu0 0.0
    %6735 = vmatprep.subr.mxu0 0.0
    %6736 = vmatpush1.msra.mxu0 0.0
    %6737 = vmatprep.subr.mxu0 0.0
    %6738 = vmatpush1.msra.mxu0 0.0
    %6739 = vmatprep.subr.mxu0 0.0
    %6740 = vmatpush1.msra.mxu0 0.0
    %6741 = vmatprep.subr.mxu0 0.0
    %6742 = vmatpush1.msra.mxu0 0.0
    %6743 = vmatprep.subr.mxu0 0.0
    %6744 = vmatpush1.msra.mxu0 0.0
    %6745 = vmatprep.subr.mxu0 0.0
    %6746 = vmatpush1.msra.mxu0 0.0
    %6747 = vmatprep.subr.mxu0 0.0
    %6748 = vmatpush1.msra.mxu0 0.0
    %6749 = vmatprep.mubr.f32.mxu0 0.0
    %v6750 = vand.u32 %v6308, 4294901760
    %6751 = vmatmul.mubr.f32.gmra.mrb[0].mxu0 %v6750
    %v6752 = vpop.f32.mrb[0].mxu0
    %v6753 = vadd.f32 %v6681, %v6752
    %v6754 = vpop.f32.mrb[0].mxu0
    %6755 = vdwg.mxu0
    %6756 = vst.msk [vmem:[#allocation2 + $0x8] sm:$0xff] %vm757, %v6753
    %6757 = vrot.lane.b32.xlu0 %v749, 56
    %v6758 = vpop.permute.xlu0 %6757
    %v6761 = vsel %vm757, %v4470, 0
    %6763 = vmatprep.subr.mxu0 0.0
    %v6764 = vand.u32 %v6758, 4294901760
    %6765 = vmatpush1.msra.mxu0 %v6764
    %6766 = vmatprep.subr.mxu0 0.0
    %6767 = vmatpush1.msra.mxu0 0.0
    %6768 = vmatprep.subr.mxu0 0.0
    %6769 = vmatpush1.msra.mxu0 0.0
    %6770 = vmatprep.subr.mxu0 0.0
    %6771 = vmatpush1.msra.mxu0 0.0
    %6772 = vmatprep.subr.mxu0 0.0
    %6773 = vmatpush1.msra.mxu0 0.0
    %6774 = vmatprep.subr.mxu0 0.0
    %6775 = vmatpush1.msra.mxu0 0.0
    %6776 = vmatprep.subr.mxu0 0.0
    %6777 = vmatpush1.msra.mxu0 0.0
    %6778 = vmatprep.subr.mxu0 0.0
    %6779 = vmatpush1.msra.mxu0 0.0
    %6780 = vmatprep.subr.mxu0 0.0
    %6781 = vmatpush1.msra.mxu0 0.0
    %6782 = vmatprep.subr.mxu0 0.0
    %6783 = vmatpush1.msra.mxu0 0.0
    %6784 = vmatprep.subr.mxu0 0.0
    %6785 = vmatpush1.msra.mxu0 0.0
    %6786 = vmatprep.subr.mxu0 0.0
    %6787 = vmatpush1.msra.mxu0 0.0
    %6788 = vmatprep.subr.mxu0 0.0
    %6789 = vmatpush1.msra.mxu0 0.0
    %6790 = vmatprep.subr.mxu0 0.0
    %6791 = vmatpush1.msra.mxu0 0.0
    %6792 = vmatprep.subr.mxu0 0.0
    %6793 = vmatpush1.msra.mxu0 0.0
    %6794 = vmatprep.subr.mxu0 0.0
    %6795 = vmatpush1.msra.mxu0 0.0
    %6796 = vmatprep.subr.mxu0 0.0
    %6797 = vmatpush1.msra.mxu0 0.0
    %6798 = vmatprep.subr.mxu0 0.0
    %6799 = vmatpush1.msra.mxu0 0.0
    %6800 = vmatprep.subr.mxu0 0.0
    %6801 = vmatpush1.msra.mxu0 0.0
    %6802 = vmatprep.subr.mxu0 0.0
    %6803 = vmatpush1.msra.mxu0 0.0
    %6804 = vmatprep.subr.mxu0 0.0
    %6805 = vmatpush1.msra.mxu0 0.0
    %6806 = vmatprep.subr.mxu0 0.0
    %6807 = vmatpush1.msra.mxu0 0.0
    %6808 = vmatprep.subr.mxu0 0.0
    %6809 = vmatpush1.msra.mxu0 0.0
    %6810 = vmatprep.subr.mxu0 0.0
    %6811 = vmatpush1.msra.mxu0 0.0
    %6812 = vmatprep.subr.mxu0 0.0
    %6813 = vmatpush1.msra.mxu0 0.0
    %6814 = vmatprep.subr.mxu0 0.0
    %6815 = vmatpush1.msra.mxu0 0.0
    %6816 = vmatprep.subr.mxu0 0.0
    %6817 = vmatpush1.msra.mxu0 0.0
    %6818 = vmatprep.subr.mxu0 0.0
    %6819 = vmatpush1.msra.mxu0 0.0
    %6820 = vmatprep.subr.mxu0 0.0
    %6821 = vmatpush1.msra.mxu0 0.0
    %6822 = vmatprep.subr.mxu0 0.0
    %6823 = vmatpush1.msra.mxu0 0.0
    %6824 = vmatprep.subr.mxu0 0.0
    %6825 = vmatpush1.msra.mxu0 0.0
    %6826 = vmatprep.subr.mxu0 0.0
    %6827 = vmatpush1.msra.mxu0 0.0
    %6828 = vmatprep.mubr.f32.mxu0 0.0
    %v6829 = vand.u32 %v6761, 4294901760
    %v6830 = vsub.f32 %v6761, %v6829
    %v6831 = vand.u32 %v6830, 4294901760
    %v6832 = vsub.f32 %v6830, %v6831
    %v6833 = vand.u32 %v6832, 4294901760
    %6834 = vmatmul.mubr.f32.gmra.mrb[0].mxu0 %v6833
    %v6835 = vpop.f32.mrb[0].mxu0
    %v6836 = vadd.f32 0.0, %v6835
    %v6837 = vpop.f32.mrb[0].mxu0
    %6838 = vdwg.mxu0
    %6839 = vmatprep.subr.mxu0 0.0
    %v6840 = vand.u32 %v6758, 4294901760
    %v6841 = vsub.f32 %v6758, %v6840
    %v6842 = vand.u32 %v6841, 4294901760
    %v6843 = vsub.f32 %v6841, %v6842
    %v6844 = vand.u32 %v6843, 4294901760
    %6845 = vmatpush1.msra.mxu0 %v6844
    %6846 = vmatprep.subr.mxu0 0.0
    %6847 = vmatpush1.msra.mxu0 0.0
    %6848 = vmatprep.subr.mxu0 0.0
    %6849 = vmatpush1.msra.mxu0 0.0
    %6850 = vmatprep.subr.mxu0 0.0
    %6851 = vmatpush1.msra.mxu0 0.0
    %6852 = vmatprep.subr.mxu0 0.0
    %6853 = vmatpush1.msra.mxu0 0.0
    %6854 = vmatprep.subr.mxu0 0.0
    %6855 = vmatpush1.msra.mxu0 0.0
    %6856 = vmatprep.subr.mxu0 0.0
    %6857 = vmatpush1.msra.mxu0 0.0
    %6858 = vmatprep.subr.mxu0 0.0
    %6859 = vmatpush1.msra.mxu0 0.0
    %6860 = vmatprep.subr.mxu0 0.0
    %6861 = vmatpush1.msra.mxu0 0.0
    %6862 = vmatprep.subr.mxu0 0.0
    %6863 = vmatpush1.msra.mxu0 0.0
    %6864 = vmatprep.subr.mxu0 0.0
    %6865 = vmatpush1.msra.mxu0 0.0
    %6866 = vmatprep.subr.mxu0 0.0
    %6867 = vmatpush1.msra.mxu0 0.0
    %6868 = vmatprep.subr.mxu0 0.0
    %6869 = vmatpush1.msra.mxu0 0.0
    %6870 = vmatprep.subr.mxu0 0.0
    %6871 = vmatpush1.msra.mxu0 0.0
    %6872 = vmatprep.subr.mxu0 0.0
    %6873 = vmatpush1.msra.mxu0 0.0
    %6874 = vmatprep.subr.mxu0 0.0
    %6875 = vmatpush1.msra.mxu0 0.0
    %6876 = vmatprep.subr.mxu0 0.0
    %6877 = vmatpush1.msra.mxu0 0.0
    %6878 = vmatprep.subr.mxu0 0.0
    %6879 = vmatpush1.msra.mxu0 0.0
    %6880 = vmatprep.subr.mxu0 0.0
    %6881 = vmatpush1.msra.mxu0 0.0
    %6882 = vmatprep.subr.mxu0 0.0
    %6883 = vmatpush1.msra.mxu0 0.0
    %6884 = vmatprep.subr.mxu0 0.0
    %6885 = vmatpush1.msra.mxu0 0.0
    %6886 = vmatprep.subr.mxu0 0.0
    %6887 = vmatpush1.msra.mxu0 0.0
    %6888 = vmatprep.subr.mxu0 0.0
    %6889 = vmatpush1.msra.mxu0 0.0
    %6890 = vmatprep.subr.mxu0 0.0
    %6891 = vmatpush1.msra.mxu0 0.0
    %6892 = vmatprep.subr.mxu0 0.0
    %6893 = vmatpush1.msra.mxu0 0.0
    %6894 = vmatprep.subr.mxu0 0.0
    %6895 = vmatpush1.msra.mxu0 0.0
    %6896 = vmatprep.subr.mxu0 0.0
    %6897 = vmatpush1.msra.mxu0 0.0
    %6898 = vmatprep.subr.mxu0 0.0
    %6899 = vmatpush1.msra.mxu0 0.0
    %6900 = vmatprep.subr.mxu0 0.0
    %6901 = vmatpush1.msra.mxu0 0.0
    %6902 = vmatprep.subr.mxu0 0.0
    %6903 = vmatpush1.msra.mxu0 0.0
    %6904 = vmatprep.subr.mxu0 0.0
    %6905 = vmatpush1.msra.mxu0 0.0
    %6906 = vmatprep.subr.mxu0 0.0
    %6907 = vmatpush1.msra.mxu0 0.0
    %6908 = vmatprep.mubr.f32.mxu0 0.0
    %v6909 = vand.u32 %v6761, 4294901760
    %6910 = vmatmul.mubr.f32.gmra.mrb[0].mxu0 %v6909
    %v6911 = vpop.f32.mrb[0].mxu0
    %v6912 = vadd.f32 %v6836, %v6911
    %v6913 = vpop.f32.mrb[0].mxu0
    %6914 = vdwg.mxu0
    %6915 = vmatprep.subr.mxu0 0.0
    %v6916 = vand.u32 %v6758, 4294901760
    %v6917 = vsub.f32 %v6758, %v6916
    %6918 = vmatpush1.msra.mxu0 %v6917
    %6919 = vmatprep.subr.mxu0 0.0
    %6920 = vmatpush1.msra.mxu0 0.0
    %6921 = vmatprep.subr.mxu0 0.0
    %6922 = vmatpush1.msra.mxu0 0.0
    %6923 = vmatprep.subr.mxu0 0.0
    %6924 = vmatpush1.msra.mxu0 0.0
    %6925 = vmatprep.subr.mxu0 0.0
    %6926 = vmatpush1.msra.mxu0 0.0
    %6927 = vmatprep.subr.mxu0 0.0
    %6928 = vmatpush1.msra.mxu0 0.0
    %6929 = vmatprep.subr.mxu0 0.0
    %6930 = vmatpush1.msra.mxu0 0.0
    %6931 = vmatprep.subr.mxu0 0.0
    %6932 = vmatpush1.msra.mxu0 0.0
    %6933 = vmatprep.subr.mxu0 0.0
    %6934 = vmatpush1.msra.mxu0 0.0
    %6935 = vmatprep.subr.mxu0 0.0
    %6936 = vmatpush1.msra.mxu0 0.0
    %6937 = vmatprep.subr.mxu0 0.0
    %6938 = vmatpush1.msra.mxu0 0.0
    %6939 = vmatprep.subr.mxu0 0.0
    %6940 = vmatpush1.msra.mxu0 0.0
    %6941 = vmatprep.subr.mxu0 0.0
    %6942 = vmatpush1.msra.mxu0 0.0
    %6943 = vmatprep.subr.mxu0 0.0
    %6944 = vmatpush1.msra.mxu0 0.0
    %6945 = vmatprep.subr.mxu0 0.0
    %6946 = vmatpush1.msra.mxu0 0.0
    %6947 = vmatprep.subr.mxu0 0.0
    %6948 = vmatpush1.msra.mxu0 0.0
    %6949 = vmatprep.subr.mxu0 0.0
    %6950 = vmatpush1.msra.mxu0 0.0
    %6951 = vmatprep.subr.mxu0 0.0
    %6952 = vmatpush1.msra.mxu0 0.0
    %6953 = vmatprep.subr.mxu0 0.0
    %6954 = vmatpush1.msra.mxu0 0.0
    %6955 = vmatprep.subr.mxu0 0.0
    %6956 = vmatpush1.msra.mxu0 0.0
    %6957 = vmatprep.subr.mxu0 0.0
    %6958 = vmatpush1.msra.mxu0 0.0
    %6959 = vmatprep.subr.mxu0 0.0
    %6960 = vmatpush1.msra.mxu0 0.0
    %6961 = vmatprep.subr.mxu0 0.0
    %6962 = vmatpush1.msra.mxu0 0.0
    %6963 = vmatprep.subr.mxu0 0.0
    %6964 = vmatpush1.msra.mxu0 0.0
    %6965 = vmatprep.subr.mxu0 0.0
    %6966 = vmatpush1.msra.mxu0 0.0
    %6967 = vmatprep.subr.mxu0 0.0
    %6968 = vmatpush1.msra.mxu0 0.0
    %6969 = vmatprep.subr.mxu0 0.0
    %6970 = vmatpush1.msra.mxu0 0.0
    %6971 = vmatprep.subr.mxu0 0.0
    %6972 = vmatpush1.msra.mxu0 0.0
    %6973 = vmatprep.subr.mxu0 0.0
    %6974 = vmatpush1.msra.mxu0 0.0
    %6975 = vmatprep.subr.mxu0 0.0
    %6976 = vmatpush1.msra.mxu0 0.0
    %6977 = vmatprep.subr.mxu0 0.0
    %6978 = vmatpush1.msra.mxu0 0.0
    %6979 = vmatprep.subr.mxu0 0.0
    %6980 = vmatpush1.msra.mxu0 0.0
    %6981 = vmatprep.mubr.f32.mxu0 0.0
    %v6982 = vand.u32 %v6761, 4294901760
    %v6983 = vsub.f32 %v6761, %v6982
    %6984 = vmatmul.mubr.f32.gmra.mrb[0].mxu0 %v6983
    %v6985 = vpop.f32.mrb[0].mxu0
    %v6986 = vadd.f32 %v6912, %v6985
    %v6987 = vpop.f32.mrb[0].mxu0
    %6988 = vdwg.mxu0
    %6989 = vmatprep.subr.mxu0 0.0
    %v6990 = vand.u32 %v6758, 4294901760
    %6991 = vmatpush1.msra.mxu0 %v6990
    %6992 = vmatprep.subr.mxu0 0.0
    %6993 = vmatpush1.msra.mxu0 0.0
    %6994 = vmatprep.subr.mxu0 0.0
    %6995 = vmatpush1.msra.mxu0 0.0
    %6996 = vmatprep.subr.mxu0 0.0
    %6997 = vmatpush1.msra.mxu0 0.0
    %6998 = vmatprep.subr.mxu0 0.0
    %6999 = vmatpush1.msra.mxu0 0.0
    %7000 = vmatprep.subr.mxu0 0.0
    %7001 = vmatpush1.msra.mxu0 0.0
    %7002 = vmatprep.subr.mxu0 0.0
    %7003 = vmatpush1.msra.mxu0 0.0
    %7004 = vmatprep.subr.mxu0 0.0
    %7005 = vmatpush1.msra.mxu0 0.0
    %7006 = vmatprep.subr.mxu0 0.0
    %7007 = vmatpush1.msra.mxu0 0.0
    %7008 = vmatprep.subr.mxu0 0.0
    %7009 = vmatpush1.msra.mxu0 0.0
    %7010 = vmatprep.subr.mxu0 0.0
    %7011 = vmatpush1.msra.mxu0 0.0
    %7012 = vmatprep.subr.mxu0 0.0
    %7013 = vmatpush1.msra.mxu0 0.0
    %7014 = vmatprep.subr.mxu0 0.0
    %7015 = vmatpush1.msra.mxu0 0.0
    %7016 = vmatprep.subr.mxu0 0.0
    %7017 = vmatpush1.msra.mxu0 0.0
    %7018 = vmatprep.subr.mxu0 0.0
    %7019 = vmatpush1.msra.mxu0 0.0
    %7020 = vmatprep.subr.mxu0 0.0
    %7021 = vmatpush1.msra.mxu0 0.0
    %7022 = vmatprep.subr.mxu0 0.0
    %7023 = vmatpush1.msra.mxu0 0.0
    %7024 = vmatprep.subr.mxu0 0.0
    %7025 = vmatpush1.msra.mxu0 0.0
    %7026 = vmatprep.subr.mxu0 0.0
    %7027 = vmatpush1.msra.mxu0 0.0
    %7028 = vmatprep.subr.mxu0 0.0
    %7029 = vmatpush1.msra.mxu0 0.0
    %7030 = vmatprep.subr.mxu0 0.0
    %7031 = vmatpush1.msra.mxu0 0.0
    %7032 = vmatprep.subr.mxu0 0.0
    %7033 = vmatpush1.msra.mxu0 0.0
    %7034 = vmatprep.subr.mxu0 0.0
    %7035 = vmatpush1.msra.mxu0 0.0
    %7036 = vmatprep.subr.mxu0 0.0
    %7037 = vmatpush1.msra.mxu0 0.0
    %7038 = vmatprep.subr.mxu0 0.0
    %7039 = vmatpush1.msra.mxu0 0.0
    %7040 = vmatprep.subr.mxu0 0.0
    %7041 = vmatpush1.msra.mxu0 0.0
    %7042 = vmatprep.subr.mxu0 0.0
    %7043 = vmatpush1.msra.mxu0 0.0
    %7044 = vmatprep.subr.mxu0 0.0
    %7045 = vmatpush1.msra.mxu0 0.0
    %7046 = vmatprep.subr.mxu0 0.0
    %7047 = vmatpush1.msra.mxu0 0.0
    %7048 = vmatprep.subr.mxu0 0.0
    %7049 = vmatpush1.msra.mxu0 0.0
    %7050 = vmatprep.subr.mxu0 0.0
    %7051 = vmatpush1.msra.mxu0 0.0
    %7052 = vmatprep.subr.mxu0 0.0
    %7053 = vmatpush1.msra.mxu0 0.0
    %7054 = vmatprep.mubr.f32.mxu0 0.0
    %v7055 = vand.u32 %v6761, 4294901760
    %v7056 = vsub.f32 %v6761, %v7055
    %v7057 = vand.u32 %v7056, 4294901760
    %7058 = vmatmul.mubr.f32.gmra.mrb[0].mxu0 %v7057
    %v7059 = vpop.f32.mrb[0].mxu0
    %v7060 = vadd.f32 %v6986, %v7059
    %v7061 = vpop.f32.mrb[0].mxu0
    %7062 = vdwg.mxu0
    %7063 = vmatprep.subr.mxu0 0.0
    %v7064 = vand.u32 %v6758, 4294901760
    %v7065 = vsub.f32 %v6758, %v7064
    %v7066 = vand.u32 %v7065, 4294901760
    %7067 = vmatpush1.msra.mxu0 %v7066
    %7068 = vmatprep.subr.mxu0 0.0
    %7069 = vmatpush1.msra.mxu0 0.0
    %7070 = vmatprep.subr.mxu0 0.0
    %7071 = vmatpush1.msra.mxu0 0.0
    %7072 = vmatprep.subr.mxu0 0.0
    %7073 = vmatpush1.msra.mxu0 0.0
    %7074 = vmatprep.subr.mxu0 0.0
    %7075 = vmatpush1.msra.mxu0 0.0
    %7076 = vmatprep.subr.mxu0 0.0
    %7077 = vmatpush1.msra.mxu0 0.0
    %7078 = vmatprep.subr.mxu0 0.0
    %7079 = vmatpush1.msra.mxu0 0.0
    %7080 = vmatprep.subr.mxu0 0.0
    %7081 = vmatpush1.msra.mxu0 0.0
    %7082 = vmatprep.subr.mxu0 0.0
    %7083 = vmatpush1.msra.mxu0 0.0
    %7084 = vmatprep.subr.mxu0 0.0
    %7085 = vmatpush1.msra.mxu0 0.0
    %7086 = vmatprep.subr.mxu0 0.0
    %7087 = vmatpush1.msra.mxu0 0.0
    %7088 = vmatprep.subr.mxu0 0.0
    %7089 = vmatpush1.msra.mxu0 0.0
    %7090 = vmatprep.subr.mxu0 0.0
    %7091 = vmatpush1.msra.mxu0 0.0
    %7092 = vmatprep.subr.mxu0 0.0
    %7093 = vmatpush1.msra.mxu0 0.0
    %7094 = vmatprep.subr.mxu0 0.0
    %7095 = vmatpush1.msra.mxu0 0.0
    %7096 = vmatprep.subr.mxu0 0.0
    %7097 = vmatpush1.msra.mxu0 0.0
    %7098 = vmatprep.subr.mxu0 0.0
    %7099 = vmatpush1.msra.mxu0 0.0
    %7100 = vmatprep.subr.mxu0 0.0
    %7101 = vmatpush1.msra.mxu0 0.0
    %7102 = vmatprep.subr.mxu0 0.0
    %7103 = vmatpush1.msra.mxu0 0.0
    %7104 = vmatprep.subr.mxu0 0.0
    %7105 = vmatpush1.msra.mxu0 0.0
    %7106 = vmatprep.subr.mxu0 0.0
    %7107 = vmatpush1.msra.mxu0 0.0
    %7108 = vmatprep.subr.mxu0 0.0
    %7109 = vmatpush1.msra.mxu0 0.0
    %7110 = vmatprep.subr.mxu0 0.0
    %7111 = vmatpush1.msra.mxu0 0.0
    %7112 = vmatprep.subr.mxu0 0.0
    %7113 = vmatpush1.msra.mxu0 0.0
    %7114 = vmatprep.subr.mxu0 0.0
    %7115 = vmatpush1.msra.mxu0 0.0
    %7116 = vmatprep.subr.mxu0 0.0
    %7117 = vmatpush1.msra.mxu0 0.0
    %7118 = vmatprep.subr.mxu0 0.0
    %7119 = vmatpush1.msra.mxu0 0.0
    %7120 = vmatprep.subr.mxu0 0.0
    %7121 = vmatpush1.msra.mxu0 0.0
    %7122 = vmatprep.subr.mxu0 0.0
    %7123 = vmatpush1.msra.mxu0 0.0
    %7124 = vmatprep.subr.mxu0 0.0
    %7125 = vmatpush1.msra.mxu0 0.0
    %7126 = vmatprep.subr.mxu0 0.0
    %7127 = vmatpush1.msra.mxu0 0.0
    %7128 = vmatprep.subr.mxu0 0.0
    %7129 = vmatpush1.msra.mxu0 0.0
    %7130 = vmatprep.mubr.f32.mxu0 0.0
    %v7131 = vand.u32 %v6761, 4294901760
    %7132 = vmatmul.mubr.f32.gmra.mrb[0].mxu0 %v7131
    %v7133 = vpop.f32.mrb[0].mxu0
    %v7134 = vadd.f32 %v7060, %v7133
    %v7135 = vpop.f32.mrb[0].mxu0
    %7136 = vdwg.mxu0
    %7137 = vmatprep.subr.mxu0 0.0
    %v7138 = vand.u32 %v6758, 4294901760
    %7139 = vmatpush1.msra.mxu0 %v7138
    %7140 = vmatprep.subr.mxu0 0.0
    %7141 = vmatpush1.msra.mxu0 0.0
    %7142 = vmatprep.subr.mxu0 0.0
    %7143 = vmatpush1.msra.mxu0 0.0
    %7144 = vmatprep.subr.mxu0 0.0
    %7145 = vmatpush1.msra.mxu0 0.0
    %7146 = vmatprep.subr.mxu0 0.0
    %7147 = vmatpush1.msra.mxu0 0.0
    %7148 = vmatprep.subr.mxu0 0.0
    %7149 = vmatpush1.msra.mxu0 0.0
    %7150 = vmatprep.subr.mxu0 0.0
    %7151 = vmatpush1.msra.mxu0 0.0
    %7152 = vmatprep.subr.mxu0 0.0
    %7153 = vmatpush1.msra.mxu0 0.0
    %7154 = vmatprep.subr.mxu0 0.0
    %7155 = vmatpush1.msra.mxu0 0.0
    %7156 = vmatprep.subr.mxu0 0.0
    %7157 = vmatpush1.msra.mxu0 0.0
    %7158 = vmatprep.subr.mxu0 0.0
    %7159 = vmatpush1.msra.mxu0 0.0
    %7160 = vmatprep.subr.mxu0 0.0
    %7161 = vmatpush1.msra.mxu0 0.0
    %7162 = vmatprep.subr.mxu0 0.0
    %7163 = vmatpush1.msra.mxu0 0.0
    %7164 = vmatprep.subr.mxu0 0.0
    %7165 = vmatpush1.msra.mxu0 0.0
    %7166 = vmatprep.subr.mxu0 0.0
    %7167 = vmatpush1.msra.mxu0 0.0
    %7168 = vmatprep.subr.mxu0 0.0
    %7169 = vmatpush1.msra.mxu0 0.0
    %7170 = vmatprep.subr.mxu0 0.0
    %7171 = vmatpush1.msra.mxu0 0.0
    %7172 = vmatprep.subr.mxu0 0.0
    %7173 = vmatpush1.msra.mxu0 0.0
    %7174 = vmatprep.subr.mxu0 0.0
    %7175 = vmatpush1.msra.mxu0 0.0
    %7176 = vmatprep.subr.mxu0 0.0
    %7177 = vmatpush1.msra.mxu0 0.0
    %7178 = vmatprep.subr.mxu0 0.0
    %7179 = vmatpush1.msra.mxu0 0.0
    %7180 = vmatprep.subr.mxu0 0.0
    %7181 = vmatpush1.msra.mxu0 0.0
    %7182 = vmatprep.subr.mxu0 0.0
    %7183 = vmatpush1.msra.mxu0 0.0
    %7184 = vmatprep.subr.mxu0 0.0
    %7185 = vmatpush1.msra.mxu0 0.0
    %7186 = vmatprep.subr.mxu0 0.0
    %7187 = vmatpush1.msra.mxu0 0.0
    %7188 = vmatprep.subr.mxu0 0.0
    %7189 = vmatpush1.msra.mxu0 0.0
    %7190 = vmatprep.subr.mxu0 0.0
    %7191 = vmatpush1.msra.mxu0 0.0
    %7192 = vmatprep.subr.mxu0 0.0
    %7193 = vmatpush1.msra.mxu0 0.0
    %7194 = vmatprep.subr.mxu0 0.0
    %7195 = vmatpush1.msra.mxu0 0.0
    %7196 = vmatprep.subr.mxu0 0.0
    %7197 = vmatpush1.msra.mxu0 0.0
    %7198 = vmatprep.subr.mxu0 0.0
    %7199 = vmatpush1.msra.mxu0 0.0
    %7200 = vmatprep.subr.mxu0 0.0
    %7201 = vmatpush1.msra.mxu0 0.0
    %7202 = vmatprep.mubr.f32.mxu0 0.0
    %v7203 = vand.u32 %v6761, 4294901760
    %7204 = vmatmul.mubr.f32.gmra.mrb[0].mxu0 %v7203
    %v7205 = vpop.f32.mrb[0].mxu0
    %v7206 = vadd.f32 %v7134, %v7205
    %v7207 = vpop.f32.mrb[0].mxu0
    %7208 = vdwg.mxu0
    %7210 = vrot.lane.b32.xlu0 %v7206, 8
    %v7211 = vpop.permute.xlu0 %7210
    %7213 = vst.msk [vmem:[#allocation2 + $0x8] sm:$0xff] %vm5385, %v7211
    %7214 = vrot.lane.b32.xlu0 %v749, 48
    %v7215 = vpop.permute.xlu0 %7214
    %v7218 = vsel %vm757, %v4472, 0
    %7220 = vmatprep.subr.mxu0 0.0
    %v7221 = vand.u32 %v7215, 4294901760
    %7222 = vmatpush1.msra.mxu0 %v7221
    %7223 = vmatprep.subr.mxu0 0.0
    %7224 = vmatpush1.msra.mxu0 0.0
    %7225 = vmatprep.subr.mxu0 0.0
    %7226 = vmatpush1.msra.mxu0 0.0
    %7227 = vmatprep.subr.mxu0 0.0
    %7228 = vmatpush1.msra.mxu0 0.0
    %7229 = vmatprep.subr.mxu0 0.0
    %7230 = vmatpush1.msra.mxu0 0.0
    %7231 = vmatprep.subr.mxu0 0.0
    %7232 = vmatpush1.msra.mxu0 0.0
    %7233 = vmatprep.subr.mxu0 0.0
    %7234 = vmatpush1.msra.mxu0 0.0
    %7235 = vmatprep.subr.mxu0 0.0
    %7236 = vmatpush1.msra.mxu0 0.0
    %7237 = vmatprep.subr.mxu0 0.0
    %7238 = vmatpush1.msra.mxu0 0.0
    %7239 = vmatprep.subr.mxu0 0.0
    %7240 = vmatpush1.msra.mxu0 0.0
    %7241 = vmatprep.subr.mxu0 0.0
    %7242 = vmatpush1.msra.mxu0 0.0
    %7243 = vmatprep.subr.mxu0 0.0
    %7244 = vmatpush1.msra.mxu0 0.0
    %7245 = vmatprep.subr.mxu0 0.0
    %7246 = vmatpush1.msra.mxu0 0.0
    %7247 = vmatprep.subr.mxu0 0.0
    %7248 = vmatpush1.msra.mxu0 0.0
    %7249 = vmatprep.subr.mxu0 0.0
    %7250 = vmatpush1.msra.mxu0 0.0
    %7251 = vmatprep.subr.mxu0 0.0
    %7252 = vmatpush1.msra.mxu0 0.0
    %7253 = vmatprep.subr.mxu0 0.0
    %7254 = vmatpush1.msra.mxu0 0.0
    %7255 = vmatprep.subr.mxu0 0.0
    %7256 = vmatpush1.msra.mxu0 0.0
    %7257 = vmatprep.subr.mxu0 0.0
    %7258 = vmatpush1.msra.mxu0 0.0
    %7259 = vmatprep.subr.mxu0 0.0
    %7260 = vmatpush1.msra.mxu0 0.0
    %7261 = vmatprep.subr.mxu0 0.0
    %7262 = vmatpush1.msra.mxu0 0.0
    %7263 = vmatprep.subr.mxu0 0.0
    %7264 = vmatpush1.msra.mxu0 0.0
    %7265 = vmatprep.subr.mxu0 0.0
    %7266 = vmatpush1.msra.mxu0 0.0
    %7267 = vmatprep.subr.mxu0 0.0
    %7268 = vmatpush1.msra.mxu0 0.0
    %7269 = vmatprep.subr.mxu0 0.0
    %7270 = vmatpush1.msra.mxu0 0.0
    %7271 = vmatprep.subr.mxu0 0.0
    %7272 = vmatpush1.msra.mxu0 0.0
    %7273 = vmatprep.subr.mxu0 0.0
    %7274 = vmatpush1.msra.mxu0 0.0
    %7275 = vmatprep.subr.mxu0 0.0
    %7276 = vmatpush1.msra.mxu0 0.0
    %7277 = vmatprep.subr.mxu0 0.0
    %7278 = vmatpush1.msra.mxu0 0.0
    %7279 = vmatprep.subr.mxu0 0.0
    %7280 = vmatpush1.msra.mxu0 0.0
    %7281 = vmatprep.subr.mxu0 0.0
    %7282 = vmatpush1.msra.mxu0 0.0
    %7283 = vmatprep.subr.mxu0 0.0
    %7284 = vmatpush1.msra.mxu0 0.0
    %7285 = vmatprep.mubr.f32.mxu0 0.0
    %v7286 = vand.u32 %v7218, 4294901760
    %v7287 = vsub.f32 %v7218, %v7286
    %v7288 = vand.u32 %v7287, 4294901760
    %v7289 = vsub.f32 %v7287, %v7288
    %v7290 = vand.u32 %v7289, 4294901760
    %7291 = vmatmul.mubr.f32.gmra.mrb[0].mxu0 %v7290
    %v7292 = vpop.f32.mrb[0].mxu0
    %v7293 = vadd.f32 0.0, %v7292
    %v7294 = vpop.f32.mrb[0].mxu0
    %7295 = vdwg.mxu0
    %7296 = vmatprep.subr.mxu0 0.0
    %v7297 = vand.u32 %v7215, 4294901760
    %v7298 = vsub.f32 %v7215, %v7297
    %v7299 = vand.u32 %v7298, 4294901760
    %v7300 = vsub.f32 %v7298, %v7299
    %v7301 = vand.u32 %v7300, 4294901760
    %7302 = vmatpush1.msra.mxu0 %v7301
    %7303 = vmatprep.subr.mxu0 0.0
    %7304 = vmatpush1.msra.mxu0 0.0
    %7305 = vmatprep.subr.mxu0 0.0
    %7306 = vmatpush1.msra.mxu0 0.0
    %7307 = vmatprep.subr.mxu0 0.0
    %7308 = vmatpush1.msra.mxu0 0.0
    %7309 = vmatprep.subr.mxu0 0.0
    %7310 = vmatpush1.msra.mxu0 0.0
    %7311 = vmatprep.subr.mxu0 0.0
    %7312 = vmatpush1.msra.mxu0 0.0
    %7313 = vmatprep.subr.mxu0 0.0
    %7314 = vmatpush1.msra.mxu0 0.0
    %7315 = vmatprep.subr.mxu0 0.0
    %7316 = vmatpush1.msra.mxu0 0.0
    %7317 = vmatprep.subr.mxu0 0.0
    %7318 = vmatpush1.msra.mxu0 0.0
    %7319 = vmatprep.subr.mxu0 0.0
    %7320 = vmatpush1.msra.mxu0 0.0
    %7321 = vmatprep.subr.mxu0 0.0
    %7322 = vmatpush1.msra.mxu0 0.0
    %7323 = vmatprep.subr.mxu0 0.0
    %7324 = vmatpush1.msra.mxu0 0.0
    %7325 = vmatprep.subr.mxu0 0.0
    %7326 = vmatpush1.msra.mxu0 0.0
    %7327 = vmatprep.subr.mxu0 0.0
    %7328 = vmatpush1.msra.mxu0 0.0
    %7329 = vmatprep.subr.mxu0 0.0
    %7330 = vmatpush1.msra.mxu0 0.0
    %7331 = vmatprep.subr.mxu0 0.0
    %7332 = vmatpush1.msra.mxu0 0.0
    %7333 = vmatprep.subr.mxu0 0.0
    %7334 = vmatpush1.msra.mxu0 0.0
    %7335 = vmatprep.subr.mxu0 0.0
    %7336 = vmatpush1.msra.mxu0 0.0
    %7337 = vmatprep.subr.mxu0 0.0
    %7338 = vmatpush1.msra.mxu0 0.0
    %7339 = vmatprep.subr.mxu0 0.0
    %7340 = vmatpush1.msra.mxu0 0.0
    %7341 = vmatprep.subr.mxu0 0.0
    %7342 = vmatpush1.msra.mxu0 0.0
    %7343 = vmatprep.subr.mxu0 0.0
    %7344 = vmatpush1.msra.mxu0 0.0
    %7345 = vmatprep.subr.mxu0 0.0
    %7346 = vmatpush1.msra.mxu0 0.0
    %7347 = vmatprep.subr.mxu0 0.0
    %7348 = vmatpush1.msra.mxu0 0.0
    %7349 = vmatprep.subr.mxu0 0.0
    %7350 = vmatpush1.msra.mxu0 0.0
    %7351 = vmatprep.subr.mxu0 0.0
    %7352 = vmatpush1.msra.mxu0 0.0
    %7353 = vmatprep.subr.mxu0 0.0
    %7354 = vmatpush1.msra.mxu0 0.0
    %7355 = vmatprep.subr.mxu0 0.0
    %7356 = vmatpush1.msra.mxu0 0.0
    %7357 = vmatprep.subr.mxu0 0.0
    %7358 = vmatpush1.msra.mxu0 0.0
    %7359 = vmatprep.subr.mxu0 0.0
    %7360 = vmatpush1.msra.mxu0 0.0
    %7361 = vmatprep.subr.mxu0 0.0
    %7362 = vmatpush1.msra.mxu0 0.0
    %7363 = vmatprep.subr.mxu0 0.0
    %7364 = vmatpush1.msra.mxu0 0.0
    %7365 = vmatprep.mubr.f32.mxu0 0.0
    %v7366 = vand.u32 %v7218, 4294901760
    %7367 = vmatmul.mubr.f32.gmra.mrb[0].mxu0 %v7366
    %v7368 = vpop.f32.mrb[0].mxu0
    %v7369 = vadd.f32 %v7293, %v7368
    %v7370 = vpop.f32.mrb[0].mxu0
    %7371 = vdwg.mxu0
    %7372 = vmatprep.subr.mxu0 0.0
    %v7373 = vand.u32 %v7215, 4294901760
    %v7374 = vsub.f32 %v7215, %v7373
    %7375 = vmatpush1.msra.mxu0 %v7374
    %7376 = vmatprep.subr.mxu0 0.0
    %7377 = vmatpush1.msra.mxu0 0.0
    %7378 = vmatprep.subr.mxu0 0.0
    %7379 = vmatpush1.msra.mxu0 0.0
    %7380 = vmatprep.subr.mxu0 0.0
    %7381 = vmatpush1.msra.mxu0 0.0
    %7382 = vmatprep.subr.mxu0 0.0
    %7383 = vmatpush1.msra.mxu0 0.0
    %7384 = vmatprep.subr.mxu0 0.0
    %7385 = vmatpush1.msra.mxu0 0.0
    %7386 = vmatprep.subr.mxu0 0.0
    %7387 = vmatpush1.msra.mxu0 0.0
    %7388 = vmatprep.subr.mxu0 0.0
    %7389 = vmatpush1.msra.mxu0 0.0
    %7390 = vmatprep.subr.mxu0 0.0
    %7391 = vmatpush1.msra.mxu0 0.0
    %7392 = vmatprep.subr.mxu0 0.0
    %7393 = vmatpush1.msra.mxu0 0.0
    %7394 = vmatprep.subr.mxu0 0.0
    %7395 = vmatpush1.msra.mxu0 0.0
    %7396 = vmatprep.subr.mxu0 0.0
    %7397 = vmatpush1.msra.mxu0 0.0
    %7398 = vmatprep.subr.mxu0 0.0
    %7399 = vmatpush1.msra.mxu0 0.0
    %7400 = vmatprep.subr.mxu0 0.0
    %7401 = vmatpush1.msra.mxu0 0.0
    %7402 = vmatprep.subr.mxu0 0.0
    %7403 = vmatpush1.msra.mxu0 0.0
    %7404 = vmatprep.subr.mxu0 0.0
    %7405 = vmatpush1.msra.mxu0 0.0
    %7406 = vmatprep.subr.mxu0 0.0
    %7407 = vmatpush1.msra.mxu0 0.0
    %7408 = vmatprep.subr.mxu0 0.0
    %7409 = vmatpush1.msra.mxu0 0.0
    %7410 = vmatprep.subr.mxu0 0.0
    %7411 = vmatpush1.msra.mxu0 0.0
    %7412 = vmatprep.subr.mxu0 0.0
    %7413 = vmatpush1.msra.mxu0 0.0
    %7414 = vmatprep.subr.mxu0 0.0
    %7415 = vmatpush1.msra.mxu0 0.0
    %7416 = vmatprep.subr.mxu0 0.0
    %7417 = vmatpush1.msra.mxu0 0.0
    %7418 = vmatprep.subr.mxu0 0.0
    %7419 = vmatpush1.msra.mxu0 0.0
    %7420 = vmatprep.subr.mxu0 0.0
    %7421 = vmatpush1.msra.mxu0 0.0
    %7422 = vmatprep.subr.mxu0 0.0
    %7423 = vmatpush1.msra.mxu0 0.0
    %7424 = vmatprep.subr.mxu0 0.0
    %7425 = vmatpush1.msra.mxu0 0.0
    %7426 = vmatprep.subr.mxu0 0.0
    %7427 = vmatpush1.msra.mxu0 0.0
    %7428 = vmatprep.subr.mxu0 0.0
    %7429 = vmatpush1.msra.mxu0 0.0
    %7430 = vmatprep.subr.mxu0 0.0
    %7431 = vmatpush1.msra.mxu0 0.0
    %7432 = vmatprep.subr.mxu0 0.0
    %7433 = vmatpush1.msra.mxu0 0.0
    %7434 = vmatprep.subr.mxu0 0.0
    %7435 = vmatpush1.msra.mxu0 0.0
    %7436 = vmatprep.subr.mxu0 0.0
    %7437 = vmatpush1.msra.mxu0 0.0
    %7438 = vmatprep.mubr.f32.mxu0 0.0
    %v7439 = vand.u32 %v7218, 4294901760
    %v7440 = vsub.f32 %v7218, %v7439
    %7441 = vmatmul.mubr.f32.gmra.mrb[0].mxu0 %v7440
    %v7442 = vpop.f32.mrb[0].mxu0
    %v7443 = vadd.f32 %v7369, %v7442
    %v7444 = vpop.f32.mrb[0].mxu0
    %7445 = vdwg.mxu0
    %7446 = vmatprep.subr.mxu0 0.0
    %v7447 = vand.u32 %v7215, 4294901760
    %7448 = vmatpush1.msra.mxu0 %v7447
    %7449 = vmatprep.subr.mxu0 0.0
    %7450 = vmatpush1.msra.mxu0 0.0
    %7451 = vmatprep.subr.mxu0 0.0
    %7452 = vmatpush1.msra.mxu0 0.0
    %7453 = vmatprep.subr.mxu0 0.0
    %7454 = vmatpush1.msra.mxu0 0.0
    %7455 = vmatprep.subr.mxu0 0.0
    %7456 = vmatpush1.msra.mxu0 0.0
    %7457 = vmatprep.subr.mxu0 0.0
    %7458 = vmatpush1.msra.mxu0 0.0
    %7459 = vmatprep.subr.mxu0 0.0
    %7460 = vmatpush1.msra.mxu0 0.0
    %7461 = vmatprep.subr.mxu0 0.0
    %7462 = vmatpush1.msra.mxu0 0.0
    %7463 = vmatprep.subr.mxu0 0.0
    %7464 = vmatpush1.msra.mxu0 0.0
    %7465 = vmatprep.subr.mxu0 0.0
    %7466 = vmatpush1.msra.mxu0 0.0
    %7467 = vmatprep.subr.mxu0 0.0
    %7468 = vmatpush1.msra.mxu0 0.0
    %7469 = vmatprep.subr.mxu0 0.0
    %7470 = vmatpush1.msra.mxu0 0.0
    %7471 = vmatprep.subr.mxu0 0.0
    %7472 = vmatpush1.msra.mxu0 0.0
    %7473 = vmatprep.subr.mxu0 0.0
    %7474 = vmatpush1.msra.mxu0 0.0
    %7475 = vmatprep.subr.mxu0 0.0
    %7476 = vmatpush1.msra.mxu0 0.0
    %7477 = vmatprep.subr.mxu0 0.0
    %7478 = vmatpush1.msra.mxu0 0.0
    %7479 = vmatprep.subr.mxu0 0.0
    %7480 = vmatpush1.msra.mxu0 0.0
    %7481 = vmatprep.subr.mxu0 0.0
    %7482 = vmatpush1.msra.mxu0 0.0
    %7483 = vmatprep.subr.mxu0 0.0
    %7484 = vmatpush1.msra.mxu0 0.0
    %7485 = vmatprep.subr.mxu0 0.0
    %7486 = vmatpush1.msra.mxu0 0.0
    %7487 = vmatprep.subr.mxu0 0.0
    %7488 = vmatpush1.msra.mxu0 0.0
    %7489 = vmatprep.subr.mxu0 0.0
    %7490 = vmatpush1.msra.mxu0 0.0
    %7491 = vmatprep.subr.mxu0 0.0
    %7492 = vmatpush1.msra.mxu0 0.0
    %7493 = vmatprep.subr.mxu0 0.0
    %7494 = vmatpush1.msra.mxu0 0.0
    %7495 = vmatprep.subr.mxu0 0.0
    %7496 = vmatpush1.msra.mxu0 0.0
    %7497 = vmatprep.subr.mxu0 0.0
    %7498 = vmatpush1.msra.mxu0 0.0
    %7499 = vmatprep.subr.mxu0 0.0
    %7500 = vmatpush1.msra.mxu0 0.0
    %7501 = vmatprep.subr.mxu0 0.0
    %7502 = vmatpush1.msra.mxu0 0.0
    %7503 = vmatprep.subr.mxu0 0.0
    %7504 = vmatpush1.msra.mxu0 0.0
    %7505 = vmatprep.subr.mxu0 0.0
    %7506 = vmatpush1.msra.mxu0 0.0
    %7507 = vmatprep.subr.mxu0 0.0
    %7508 = vmatpush1.msra.mxu0 0.0
    %7509 = vmatprep.subr.mxu0 0.0
    %7510 = vmatpush1.msra.mxu0 0.0
    %7511 = vmatprep.mubr.f32.mxu0 0.0
    %v7512 = vand.u32 %v7218, 4294901760
    %v7513 = vsub.f32 %v7218, %v7512
    %v7514 = vand.u32 %v7513, 4294901760
    %7515 = vmatmul.mubr.f32.gmra.mrb[0].mxu0 %v7514
    %v7516 = vpop.f32.mrb[0].mxu0
    %v7517 = vadd.f32 %v7443, %v7516
    %v7518 = vpop.f32.mrb[0].mxu0
    %7519 = vdwg.mxu0
    %7520 = vmatprep.subr.mxu0 0.0
    %v7521 = vand.u32 %v7215, 4294901760
    %v7522 = vsub.f32 %v7215, %v7521
    %v7523 = vand.u32 %v7522, 4294901760
    %7524 = vmatpush1.msra.mxu0 %v7523
    %7525 = vmatprep.subr.mxu0 0.0
    %7526 = vmatpush1.msra.mxu0 0.0
    %7527 = vmatprep.subr.mxu0 0.0
    %7528 = vmatpush1.msra.mxu0 0.0
    %7529 = vmatprep.subr.mxu0 0.0
    %7530 = vmatpush1.msra.mxu0 0.0
    %7531 = vmatprep.subr.mxu0 0.0
    %7532 = vmatpush1.msra.mxu0 0.0
    %7533 = vmatprep.subr.mxu0 0.0
    %7534 = vmatpush1.msra.mxu0 0.0
    %7535 = vmatprep.subr.mxu0 0.0
    %7536 = vmatpush1.msra.mxu0 0.0
    %7537 = vmatprep.subr.mxu0 0.0
    %7538 = vmatpush1.msra.mxu0 0.0
    %7539 = vmatprep.subr.mxu0 0.0
    %7540 = vmatpush1.msra.mxu0 0.0
    %7541 = vmatprep.subr.mxu0 0.0
    %7542 = vmatpush1.msra.mxu0 0.0
    %7543 = vmatprep.subr.mxu0 0.0
    %7544 = vmatpush1.msra.mxu0 0.0
    %7545 = vmatprep.subr.mxu0 0.0
    %7546 = vmatpush1.msra.mxu0 0.0
    %7547 = vmatprep.subr.mxu0 0.0
    %7548 = vmatpush1.msra.mxu0 0.0
    %7549 = vmatprep.subr.mxu0 0.0
    %7550 = vmatpush1.msra.mxu0 0.0
    %7551 = vmatprep.subr.mxu0 0.0
    %7552 = vmatpush1.msra.mxu0 0.0
    %7553 = vmatprep.subr.mxu0 0.0
    %7554 = vmatpush1.msra.mxu0 0.0
    %7555 = vmatprep.subr.mxu0 0.0
    %7556 = vmatpush1.msra.mxu0 0.0
    %7557 = vmatprep.subr.mxu0 0.0
    %7558 = vmatpush1.msra.mxu0 0.0
    %7559 = vmatprep.subr.mxu0 0.0
    %7560 = vmatpush1.msra.mxu0 0.0
    %7561 = vmatprep.subr.mxu0 0.0
    %7562 = vmatpush1.msra.mxu0 0.0
    %7563 = vmatprep.subr.mxu0 0.0
    %7564 = vmatpush1.msra.mxu0 0.0
    %7565 = vmatprep.subr.mxu0 0.0
    %7566 = vmatpush1.msra.mxu0 0.0
    %7567 = vmatprep.subr.mxu0 0.0
    %7568 = vmatpush1.msra.mxu0 0.0
    %7569 = vmatprep.subr.mxu0 0.0
    %7570 = vmatpush1.msra.mxu0 0.0
    %7571 = vmatprep.subr.mxu0 0.0
    %7572 = vmatpush1.msra.mxu0 0.0
    %7573 = vmatprep.subr.mxu0 0.0
    %7574 = vmatpush1.msra.mxu0 0.0
    %7575 = vmatprep.subr.mxu0 0.0
    %7576 = vmatpush1.msra.mxu0 0.0
    %7577 = vmatprep.subr.mxu0 0.0
    %7578 = vmatpush1.msra.mxu0 0.0
    %7579 = vmatprep.subr.mxu0 0.0
    %7580 = vmatpush1.msra.mxu0 0.0
    %7581 = vmatprep.subr.mxu0 0.0
    %7582 = vmatpush1.msra.mxu0 0.0
    %7583 = vmatprep.subr.mxu0 0.0
    %7584 = vmatpush1.msra.mxu0 0.0
    %7585 = vmatprep.subr.mxu0 0.0
    %7586 = vmatpush1.msra.mxu0 0.0
    %7587 = vmatprep.mubr.f32.mxu0 0.0
    %v7588 = vand.u32 %v7218, 4294901760
    %7589 = vmatmul.mubr.f32.gmra.mrb[0].mxu0 %v7588
    %v7590 = vpop.f32.mrb[0].mxu0
    %v7591 = vadd.f32 %v7517, %v7590
    %v7592 = vpop.f32.mrb[0].mxu0
    %7593 = vdwg.mxu0
    %7594 = vmatprep.subr.mxu0 0.0
    %v7595 = vand.u32 %v7215, 4294901760
    %7596 = vmatpush1.msra.mxu0 %v7595
    %7597 = vmatprep.subr.mxu0 0.0
    %7598 = vmatpush1.msra.mxu0 0.0
    %7599 = vmatprep.subr.mxu0 0.0
    %7600 = vmatpush1.msra.mxu0 0.0
    %7601 = vmatprep.subr.mxu0 0.0
    %7602 = vmatpush1.msra.mxu0 0.0
    %7603 = vmatprep.subr.mxu0 0.0
    %7604 = vmatpush1.msra.mxu0 0.0
    %7605 = vmatprep.subr.mxu0 0.0
    %7606 = vmatpush1.msra.mxu0 0.0
    %7607 = vmatprep.subr.mxu0 0.0
    %7608 = vmatpush1.msra.mxu0 0.0
    %7609 = vmatprep.subr.mxu0 0.0
    %7610 = vmatpush1.msra.mxu0 0.0
    %7611 = vmatprep.subr.mxu0 0.0
    %7612 = vmatpush1.msra.mxu0 0.0
    %7613 = vmatprep.subr.mxu0 0.0
    %7614 = vmatpush1.msra.mxu0 0.0
    %7615 = vmatprep.subr.mxu0 0.0
    %7616 = vmatpush1.msra.mxu0 0.0
    %7617 = vmatprep.subr.mxu0 0.0
    %7618 = vmatpush1.msra.mxu0 0.0
    %7619 = vmatprep.subr.mxu0 0.0
    %7620 = vmatpush1.msra.mxu0 0.0
    %7621 = vmatprep.subr.mxu0 0.0
    %7622 = vmatpush1.msra.mxu0 0.0
    %7623 = vmatprep.subr.mxu0 0.0
    %7624 = vmatpush1.msra.mxu0 0.0
    %7625 = vmatprep.subr.mxu0 0.0
    %7626 = vmatpush1.msra.mxu0 0.0
    %7627 = vmatprep.subr.mxu0 0.0
    %7628 = vmatpush1.msra.mxu0 0.0
    %7629 = vmatprep.subr.mxu0 0.0
    %7630 = vmatpush1.msra.mxu0 0.0
    %7631 = vmatprep.subr.mxu0 0.0
    %7632 = vmatpush1.msra.mxu0 0.0
    %7633 = vmatprep.subr.mxu0 0.0
    %7634 = vmatpush1.msra.mxu0 0.0
    %7635 = vmatprep.subr.mxu0 0.0
    %7636 = vmatpush1.msra.mxu0 0.0
    %7637 = vmatprep.subr.mxu0 0.0
    %7638 = vmatpush1.msra.mxu0 0.0
    %7639 = vmatprep.subr.mxu0 0.0
    %7640 = vmatpush1.msra.mxu0 0.0
    %7641 = vmatprep.subr.mxu0 0.0
    %7642 = vmatpush1.msra.mxu0 0.0
    %7643 = vmatprep.subr.mxu0 0.0
    %7644 = vmatpush1.msra.mxu0 0.0
    %7645 = vmatprep.subr.mxu0 0.0
    %7646 = vmatpush1.msra.mxu0 0.0
    %7647 = vmatprep.subr.mxu0 0.0
    %7648 = vmatpush1.msra.mxu0 0.0
    %7649 = vmatprep.subr.mxu0 0.0
    %7650 = vmatpush1.msra.mxu0 0.0
    %7651 = vmatprep.subr.mxu0 0.0
    %7652 = vmatpush1.msra.mxu0 0.0
    %7653 = vmatprep.subr.mxu0 0.0
    %7654 = vmatpush1.msra.mxu0 0.0
    %7655 = vmatprep.subr.mxu0 0.0
    %7656 = vmatpush1.msra.mxu0 0.0
    %7657 = vmatprep.subr.mxu0 0.0
    %7658 = vmatpush1.msra.mxu0 0.0
    %7659 = vmatprep.mubr.f32.mxu0 0.0
    %v7660 = vand.u32 %v7218, 4294901760
    %7661 = vmatmul.mubr.f32.gmra.mrb[0].mxu0 %v7660
    %v7662 = vpop.f32.mrb[0].mxu0
    %v7663 = vadd.f32 %v7591, %v7662
    %v7664 = vpop.f32.mrb[0].mxu0
    %7665 = vdwg.mxu0
    %7667 = vrot.lane.b32.xlu0 %v7663, 16
    %v7668 = vpop.permute.xlu0 %7667
    %7670 = vst.msk [vmem:[#allocation2 + $0x8] sm:$0xff] %vm5843, %v7668
    %7671 = vrot.lane.b32.xlu0 %v749, 40
    %v7672 = vpop.permute.xlu0 %7671
    %v7675 = vsel %vm757, %v4474, 0
    %7677 = vmatprep.subr.mxu0 0.0
    %v7678 = vand.u32 %v7672, 4294901760
    %7679 = vmatpush1.msra.mxu0 %v7678
    %7680 = vmatprep.subr.mxu0 0.0
    %7681 = vmatpush1.msra.mxu0 0.0
    %7682 = vmatprep.subr.mxu0 0.0
    %7683 = vmatpush1.msra.mxu0 0.0
    %7684 = vmatprep.subr.mxu0 0.0
    %7685 = vmatpush1.msra.mxu0 0.0
    %7686 = vmatprep.subr.mxu0 0.0
    %7687 = vmatpush1.msra.mxu0 0.0
    %7688 = vmatprep.subr.mxu0 0.0
    %7689 = vmatpush1.msra.mxu0 0.0
    %7690 = vmatprep.subr.mxu0 0.0
    %7691 = vmatpush1.msra.mxu0 0.0
    %7692 = vmatprep.subr.mxu0 0.0
    %7693 = vmatpush1.msra.mxu0 0.0
    %7694 = vmatprep.subr.mxu0 0.0
    %7695 = vmatpush1.msra.mxu0 0.0
    %7696 = vmatprep.subr.mxu0 0.0
    %7697 = vmatpush1.msra.mxu0 0.0
    %7698 = vmatprep.subr.mxu0 0.0
    %7699 = vmatpush1.msra.mxu0 0.0
    %7700 = vmatprep.subr.mxu0 0.0
    %7701 = vmatpush1.msra.mxu0 0.0
    %7702 = vmatprep.subr.mxu0 0.0
    %7703 = vmatpush1.msra.mxu0 0.0
    %7704 = vmatprep.subr.mxu0 0.0
    %7705 = vmatpush1.msra.mxu0 0.0
    %7706 = vmatprep.subr.mxu0 0.0
    %7707 = vmatpush1.msra.mxu0 0.0
    %7708 = vmatprep.subr.mxu0 0.0
    %7709 = vmatpush1.msra.mxu0 0.0
    %7710 = vmatprep.subr.mxu0 0.0
    %7711 = vmatpush1.msra.mxu0 0.0
    %7712 = vmatprep.subr.mxu0 0.0
    %7713 = vmatpush1.msra.mxu0 0.0
    %7714 = vmatprep.subr.mxu0 0.0
    %7715 = vmatpush1.msra.mxu0 0.0
    %7716 = vmatprep.subr.mxu0 0.0
    %7717 = vmatpush1.msra.mxu0 0.0
    %7718 = vmatprep.subr.mxu0 0.0
    %7719 = vmatpush1.msra.mxu0 0.0
    %7720 = vmatprep.subr.mxu0 0.0
    %7721 = vmatpush1.msra.mxu0 0.0
    %7722 = vmatprep.subr.mxu0 0.0
    %7723 = vmatpush1.msra.mxu0 0.0
    %7724 = vmatprep.subr.mxu0 0.0
    %7725 = vmatpush1.msra.mxu0 0.0
    %7726 = vmatprep.subr.mxu0 0.0
    %7727 = vmatpush1.msra.mxu0 0.0
    %7728 = vmatprep.subr.mxu0 0.0
    %7729 = vmatpush1.msra.mxu0 0.0
    %7730 = vmatprep.subr.mxu0 0.0
    %7731 = vmatpush1.msra.mxu0 0.0
    %7732 = vmatprep.subr.mxu0 0.0
    %7733 = vmatpush1.msra.mxu0 0.0
    %7734 = vmatprep.subr.mxu0 0.0
    %7735 = vmatpush1.msra.mxu0 0.0
    %7736 = vmatprep.subr.mxu0 0.0
    %7737 = vmatpush1.msra.mxu0 0.0
    %7738 = vmatprep.subr.mxu0 0.0
    %7739 = vmatpush1.msra.mxu0 0.0
    %7740 = vmatprep.subr.mxu0 0.0
    %7741 = vmatpush1.msra.mxu0 0.0
    %7742 = vmatprep.mubr.f32.mxu0 0.0
    %v7743 = vand.u32 %v7675, 4294901760
    %v7744 = vsub.f32 %v7675, %v7743
    %v7745 = vand.u32 %v7744, 4294901760
    %v7746 = vsub.f32 %v7744, %v7745
    %v7747 = vand.u32 %v7746, 4294901760
    %7748 = vmatmul.mubr.f32.gmra.mrb[0].mxu0 %v7747
    %v7749 = vpop.f32.mrb[0].mxu0
    %v7750 = vadd.f32 0.0, %v7749
    %v7751 = vpop.f32.mrb[0].mxu0
    %7752 = vdwg.mxu0
    %7753 = vmatprep.subr.mxu0 0.0
    %v7754 = vand.u32 %v7672, 4294901760
    %v7755 = vsub.f32 %v7672, %v7754
    %v7756 = vand.u32 %v7755, 4294901760
    %v7757 = vsub.f32 %v7755, %v7756
    %v7758 = vand.u32 %v7757, 4294901760
    %7759 = vmatpush1.msra.mxu0 %v7758
    %7760 = vmatprep.subr.mxu0 0.0
    %7761 = vmatpush1.msra.mxu0 0.0
    %7762 = vmatprep.subr.mxu0 0.0
    %7763 = vmatpush1.msra.mxu0 0.0
    %7764 = vmatprep.subr.mxu0 0.0
    %7765 = vmatpush1.msra.mxu0 0.0
    %7766 = vmatprep.subr.mxu0 0.0
    %7767 = vmatpush1.msra.mxu0 0.0
    %7768 = vmatprep.subr.mxu0 0.0
    %7769 = vmatpush1.msra.mxu0 0.0
    %7770 = vmatprep.subr.mxu0 0.0
    %7771 = vmatpush1.msra.mxu0 0.0
    %7772 = vmatprep.subr.mxu0 0.0
    %7773 = vmatpush1.msra.mxu0 0.0
    %7774 = vmatprep.subr.mxu0 0.0
    %7775 = vmatpush1.msra.mxu0 0.0
    %7776 = vmatprep.subr.mxu0 0.0
    %7777 = vmatpush1.msra.mxu0 0.0
    %7778 = vmatprep.subr.mxu0 0.0
    %7779 = vmatpush1.msra.mxu0 0.0
    %7780 = vmatprep.subr.mxu0 0.0
    %7781 = vmatpush1.msra.mxu0 0.0
    %7782 = vmatprep.subr.mxu0 0.0
    %7783 = vmatpush1.msra.mxu0 0.0
    %7784 = vmatprep.subr.mxu0 0.0
    %7785 = vmatpush1.msra.mxu0 0.0
    %7786 = vmatprep.subr.mxu0 0.0
    %7787 = vmatpush1.msra.mxu0 0.0
    %7788 = vmatprep.subr.mxu0 0.0
    %7789 = vmatpush1.msra.mxu0 0.0
    %7790 = vmatprep.subr.mxu0 0.0
    %7791 = vmatpush1.msra.mxu0 0.0
    %7792 = vmatprep.subr.mxu0 0.0
    %7793 = vmatpush1.msra.mxu0 0.0
    %7794 = vmatprep.subr.mxu0 0.0
    %7795 = vmatpush1.msra.mxu0 0.0
    %7796 = vmatprep.subr.mxu0 0.0
    %7797 = vmatpush1.msra.mxu0 0.0
    %7798 = vmatprep.subr.mxu0 0.0
    %7799 = vmatpush1.msra.mxu0 0.0
    %7800 = vmatprep.subr.mxu0 0.0
    %7801 = vmatpush1.msra.mxu0 0.0
    %7802 = vmatprep.subr.mxu0 0.0
    %7803 = vmatpush1.msra.mxu0 0.0
    %7804 = vmatprep.subr.mxu0 0.0
    %7805 = vmatpush1.msra.mxu0 0.0
    %7806 = vmatprep.subr.mxu0 0.0
    %7807 = vmatpush1.msra.mxu0 0.0
    %7808 = vmatprep.subr.mxu0 0.0
    %7809 = vmatpush1.msra.mxu0 0.0
    %7810 = vmatprep.subr.mxu0 0.0
    %7811 = vmatpush1.msra.mxu0 0.0
    %7812 = vmatprep.subr.mxu0 0.0
    %7813 = vmatpush1.msra.mxu0 0.0
    %7814 = vmatprep.subr.mxu0 0.0
    %7815 = vmatpush1.msra.mxu0 0.0
    %7816 = vmatprep.subr.mxu0 0.0
    %7817 = vmatpush1.msra.mxu0 0.0
    %7818 = vmatprep.subr.mxu0 0.0
    %7819 = vmatpush1.msra.mxu0 0.0
    %7820 = vmatprep.subr.mxu0 0.0
    %7821 = vmatpush1.msra.mxu0 0.0
    %7822 = vmatprep.mubr.f32.mxu0 0.0
    %v7823 = vand.u32 %v7675, 4294901760
    %7824 = vmatmul.mubr.f32.gmra.mrb[0].mxu0 %v7823
    %v7825 = vpop.f32.mrb[0].mxu0
    %v7826 = vadd.f32 %v7750, %v7825
    %v7827 = vpop.f32.mrb[0].mxu0
    %7828 = vdwg.mxu0
    %7829 = vmatprep.subr.mxu0 0.0
    %v7830 = vand.u32 %v7672, 4294901760
    %v7831 = vsub.f32 %v7672, %v7830
    %7832 = vmatpush1.msra.mxu0 %v7831
    %7833 = vmatprep.subr.mxu0 0.0
    %7834 = vmatpush1.msra.mxu0 0.0
    %7835 = vmatprep.subr.mxu0 0.0
    %7836 = vmatpush1.msra.mxu0 0.0
    %7837 = vmatprep.subr.mxu0 0.0
    %7838 = vmatpush1.msra.mxu0 0.0
    %7839 = vmatprep.subr.mxu0 0.0
    %7840 = vmatpush1.msra.mxu0 0.0
    %7841 = vmatprep.subr.mxu0 0.0
    %7842 = vmatpush1.msra.mxu0 0.0
    %7843 = vmatprep.subr.mxu0 0.0
    %7844 = vmatpush1.msra.mxu0 0.0
    %7845 = vmatprep.subr.mxu0 0.0
    %7846 = vmatpush1.msra.mxu0 0.0
    %7847 = vmatprep.subr.mxu0 0.0
    %7848 = vmatpush1.msra.mxu0 0.0
    %7849 = vmatprep.subr.mxu0 0.0
    %7850 = vmatpush1.msra.mxu0 0.0
    %7851 = vmatprep.subr.mxu0 0.0
    %7852 = vmatpush1.msra.mxu0 0.0
    %7853 = vmatprep.subr.mxu0 0.0
    %7854 = vmatpush1.msra.mxu0 0.0
    %7855 = vmatprep.subr.mxu0 0.0
    %7856 = vmatpush1.msra.mxu0 0.0
    %7857 = vmatprep.subr.mxu0 0.0
    %7858 = vmatpush1.msra.mxu0 0.0
    %7859 = vmatprep.subr.mxu0 0.0
    %7860 = vmatpush1.msra.mxu0 0.0
    %7861 = vmatprep.subr.mxu0 0.0
    %7862 = vmatpush1.msra.mxu0 0.0
    %7863 = vmatprep.subr.mxu0 0.0
    %7864 = vmatpush1.msra.mxu0 0.0
    %7865 = vmatprep.subr.mxu0 0.0
    %7866 = vmatpush1.msra.mxu0 0.0
    %7867 = vmatprep.subr.mxu0 0.0
    %7868 = vmatpush1.msra.mxu0 0.0
    %7869 = vmatprep.subr.mxu0 0.0
    %7870 = vmatpush1.msra.mxu0 0.0
    %7871 = vmatprep.subr.mxu0 0.0
    %7872 = vmatpush1.msra.mxu0 0.0
    %7873 = vmatprep.subr.mxu0 0.0
    %7874 = vmatpush1.msra.mxu0 0.0
    %7875 = vmatprep.subr.mxu0 0.0
    %7876 = vmatpush1.msra.mxu0 0.0
    %7877 = vmatprep.subr.mxu0 0.0
    %7878 = vmatpush1.msra.mxu0 0.0
    %7879 = vmatprep.subr.mxu0 0.0
    %7880 = vmatpush1.msra.mxu0 0.0
    %7881 = vmatprep.subr.mxu0 0.0
    %7882 = vmatpush1.msra.mxu0 0.0
    %7883 = vmatprep.subr.mxu0 0.0
    %7884 = vmatpush1.msra.mxu0 0.0
    %7885 = vmatprep.subr.mxu0 0.0
    %7886 = vmatpush1.msra.mxu0 0.0
    %7887 = vmatprep.subr.mxu0 0.0
    %7888 = vmatpush1.msra.mxu0 0.0
    %7889 = vmatprep.subr.mxu0 0.0
    %7890 = vmatpush1.msra.mxu0 0.0
    %7891 = vmatprep.subr.mxu0 0.0
    %7892 = vmatpush1.msra.mxu0 0.0
    %7893 = vmatprep.subr.mxu0 0.0
    %7894 = vmatpush1.msra.mxu0 0.0
    %7895 = vmatprep.mubr.f32.mxu0 0.0
    %v7896 = vand.u32 %v7675, 4294901760
    %v7897 = vsub.f32 %v7675, %v7896
    %7898 = vmatmul.mubr.f32.gmra.mrb[0].mxu0 %v7897
    %v7899 = vpop.f32.mrb[0].mxu0
    %v7900 = vadd.f32 %v7826, %v7899
    %v7901 = vpop.f32.mrb[0].mxu0
    %7902 = vdwg.mxu0
    %7903 = vmatprep.subr.mxu0 0.0
    %v7904 = vand.u32 %v7672, 4294901760
    %7905 = vmatpush1.msra.mxu0 %v7904
    %7906 = vmatprep.subr.mxu0 0.0
    %7907 = vmatpush1.msra.mxu0 0.0
    %7908 = vmatprep.subr.mxu0 0.0
    %7909 = vmatpush1.msra.mxu0 0.0
    %7910 = vmatprep.subr.mxu0 0.0
    %7911 = vmatpush1.msra.mxu0 0.0
    %7912 = vmatprep.subr.mxu0 0.0
    %7913 = vmatpush1.msra.mxu0 0.0
    %7914 = vmatprep.subr.mxu0 0.0
    %7915 = vmatpush1.msra.mxu0 0.0
    %7916 = vmatprep.subr.mxu0 0.0
    %7917 = vmatpush1.msra.mxu0 0.0
    %7918 = vmatprep.subr.mxu0 0.0
    %7919 = vmatpush1.msra.mxu0 0.0
    %7920 = vmatprep.subr.mxu0 0.0
    %7921 = vmatpush1.msra.mxu0 0.0
    %7922 = vmatprep.subr.mxu0 0.0
    %7923 = vmatpush1.msra.mxu0 0.0
    %7924 = vmatprep.subr.mxu0 0.0
    %7925 = vmatpush1.msra.mxu0 0.0
    %7926 = vmatprep.subr.mxu0 0.0
    %7927 = vmatpush1.msra.mxu0 0.0
    %7928 = vmatprep.subr.mxu0 0.0
    %7929 = vmatpush1.msra.mxu0 0.0
    %7930 = vmatprep.subr.mxu0 0.0
    %7931 = vmatpush1.msra.mxu0 0.0
    %7932 = vmatprep.subr.mxu0 0.0
    %7933 = vmatpush1.msra.mxu0 0.0
    %7934 = vmatprep.subr.mxu0 0.0
    %7935 = vmatpush1.msra.mxu0 0.0
    %7936 = vmatprep.subr.mxu0 0.0
    %7937 = vmatpush1.msra.mxu0 0.0
    %7938 = vmatprep.subr.mxu0 0.0
    %7939 = vmatpush1.msra.mxu0 0.0
    %7940 = vmatprep.subr.mxu0 0.0
    %7941 = vmatpush1.msra.mxu0 0.0
    %7942 = vmatprep.subr.mxu0 0.0
    %7943 = vmatpush1.msra.mxu0 0.0
    %7944 = vmatprep.subr.mxu0 0.0
    %7945 = vmatpush1.msra.mxu0 0.0
    %7946 = vmatprep.subr.mxu0 0.0
    %7947 = vmatpush1.msra.mxu0 0.0
    %7948 = vmatprep.subr.mxu0 0.0
    %7949 = vmatpush1.msra.mxu0 0.0
    %7950 = vmatprep.subr.mxu0 0.0
    %7951 = vmatpush1.msra.mxu0 0.0
    %7952 = vmatprep.subr.mxu0 0.0
    %7953 = vmatpush1.msra.mxu0 0.0
    %7954 = vmatprep.subr.mxu0 0.0
    %7955 = vmatpush1.msra.mxu0 0.0
    %7956 = vmatprep.subr.mxu0 0.0
    %7957 = vmatpush1.msra.mxu0 0.0
    %7958 = vmatprep.subr.mxu0 0.0
    %7959 = vmatpush1.msra.mxu0 0.0
    %7960 = vmatprep.subr.mxu0 0.0
    %7961 = vmatpush1.msra.mxu0 0.0
    %7962 = vmatprep.subr.mxu0 0.0
    %7963 = vmatpush1.msra.mxu0 0.0
    %7964 = vmatprep.subr.mxu0 0.0
    %7965 = vmatpush1.msra.mxu0 0.0
    %7966 = vmatprep.subr.mxu0 0.0
    %7967 = vmatpush1.msra.mxu0 0.0
    %7968 = vmatprep.mubr.f32.mxu0 0.0
    %v7969 = vand.u32 %v7675, 4294901760
    %v7970 = vsub.f32 %v7675, %v7969
    %v7971 = vand.u32 %v7970, 4294901760
    %7972 = vmatmul.mubr.f32.gmra.mrb[0].mxu0 %v7971
    %v7973 = vpop.f32.mrb[0].mxu0
    %v7974 = vadd.f32 %v7900, %v7973
    %v7975 = vpop.f32.mrb[0].mxu0
    %7976 = vdwg.mxu0
    %7977 = vmatprep.subr.mxu0 0.0
    %v7978 = vand.u32 %v7672, 4294901760
    %v7979 = vsub.f32 %v7672, %v7978
    %v7980 = vand.u32 %v7979, 4294901760
    %7981 = vmatpush1.msra.mxu0 %v7980
    %7982 = vmatprep.subr.mxu0 0.0
    %7983 = vmatpush1.msra.mxu0 0.0
    %7984 = vmatprep.subr.mxu0 0.0
    %7985 = vmatpush1.msra.mxu0 0.0
    %7986 = vmatprep.subr.mxu0 0.0
    %7987 = vmatpush1.msra.mxu0 0.0
    %7988 = vmatprep.subr.mxu0 0.0
    %7989 = vmatpush1.msra.mxu0 0.0
    %7990 = vmatprep.subr.mxu0 0.0
    %7991 = vmatpush1.msra.mxu0 0.0
    %7992 = vmatprep.subr.mxu0 0.0
    %7993 = vmatpush1.msra.mxu0 0.0
    %7994 = vmatprep.subr.mxu0 0.0
    %7995 = vmatpush1.msra.mxu0 0.0
    %7996 = vmatprep.subr.mxu0 0.0
    %7997 = vmatpush1.msra.mxu0 0.0
    %7998 = vmatprep.subr.mxu0 0.0
    %7999 = vmatpush1.msra.mxu0 0.0
    %8000 = vmatprep.subr.mxu0 0.0
    %8001 = vmatpush1.msra.mxu0 0.0
    %8002 = vmatprep.subr.mxu0 0.0
    %8003 = vmatpush1.msra.mxu0 0.0
    %8004 = vmatprep.subr.mxu0 0.0
    %8005 = vmatpush1.msra.mxu0 0.0
    %8006 = vmatprep.subr.mxu0 0.0
    %8007 = vmatpush1.msra.mxu0 0.0
    %8008 = vmatprep.subr.mxu0 0.0
    %8009 = vmatpush1.msra.mxu0 0.0
    %8010 = vmatprep.subr.mxu0 0.0
    %8011 = vmatpush1.msra.mxu0 0.0
    %8012 = vmatprep.subr.mxu0 0.0
    %8013 = vmatpush1.msra.mxu0 0.0
    %8014 = vmatprep.subr.mxu0 0.0
    %8015 = vmatpush1.msra.mxu0 0.0
    %8016 = vmatprep.subr.mxu0 0.0
    %8017 = vmatpush1.msra.mxu0 0.0
    %8018 = vmatprep.subr.mxu0 0.0
    %8019 = vmatpush1.msra.mxu0 0.0
    %8020 = vmatprep.subr.mxu0 0.0
    %8021 = vmatpush1.msra.mxu0 0.0
    %8022 = vmatprep.subr.mxu0 0.0
    %8023 = vmatpush1.msra.mxu0 0.0
    %8024 = vmatprep.subr.mxu0 0.0
    %8025 = vmatpush1.msra.mxu0 0.0
    %8026 = vmatprep.subr.mxu0 0.0
    %8027 = vmatpush1.msra.mxu0 0.0
    %8028 = vmatprep.subr.mxu0 0.0
    %8029 = vmatpush1.msra.mxu0 0.0
    %8030 = vmatprep.subr.mxu0 0.0
    %8031 = vmatpush1.msra.mxu0 0.0
    %8032 = vmatprep.subr.mxu0 0.0
    %8033 = vmatpush1.msra.mxu0 0.0
    %8034 = vmatprep.subr.mxu0 0.0
    %8035 = vmatpush1.msra.mxu0 0.0
    %8036 = vmatprep.subr.mxu0 0.0
    %8037 = vmatpush1.msra.mxu0 0.0
    %8038 = vmatprep.subr.mxu0 0.0
    %8039 = vmatpush1.msra.mxu0 0.0
    %8040 = vmatprep.subr.mxu0 0.0
    %8041 = vmatpush1.msra.mxu0 0.0
    %8042 = vmatprep.subr.mxu0 0.0
    %8043 = vmatpush1.msra.mxu0 0.0
    %8044 = vmatprep.mubr.f32.mxu0 0.0
    %v8045 = vand.u32 %v7675, 4294901760
    %8046 = vmatmul.mubr.f32.gmra.mrb[0].mxu0 %v8045
    %v8047 = vpop.f32.mrb[0].mxu0
    %v8048 = vadd.f32 %v7974, %v8047
    %v8049 = vpop.f32.mrb[0].mxu0
    %8050 = vdwg.mxu0
    %8051 = vmatprep.subr.mxu0 0.0
    %v8052 = vand.u32 %v7672, 4294901760
    %8053 = vmatpush1.msra.mxu0 %v8052
    %8054 = vmatprep.subr.mxu0 0.0
    %8055 = vmatpush1.msra.mxu0 0.0
    %8056 = vmatprep.subr.mxu0 0.0
    %8057 = vmatpush1.msra.mxu0 0.0
    %8058 = vmatprep.subr.mxu0 0.0
    %8059 = vmatpush1.msra.mxu0 0.0
    %8060 = vmatprep.subr.mxu0 0.0
    %8061 = vmatpush1.msra.mxu0 0.0
    %8062 = vmatprep.subr.mxu0 0.0
    %8063 = vmatpush1.msra.mxu0 0.0
    %8064 = vmatprep.subr.mxu0 0.0
    %8065 = vmatpush1.msra.mxu0 0.0
    %8066 = vmatprep.subr.mxu0 0.0
    %8067 = vmatpush1.msra.mxu0 0.0
    %8068 = vmatprep.subr.mxu0 0.0
    %8069 = vmatpush1.msra.mxu0 0.0
    %8070 = vmatprep.subr.mxu0 0.0
    %8071 = vmatpush1.msra.mxu0 0.0
    %8072 = vmatprep.subr.mxu0 0.0
    %8073 = vmatpush1.msra.mxu0 0.0
    %8074 = vmatprep.subr.mxu0 0.0
    %8075 = vmatpush1.msra.mxu0 0.0
    %8076 = vmatprep.subr.mxu0 0.0
    %8077 = vmatpush1.msra.mxu0 0.0
    %8078 = vmatprep.subr.mxu0 0.0
    %8079 = vmatpush1.msra.mxu0 0.0
    %8080 = vmatprep.subr.mxu0 0.0
    %8081 = vmatpush1.msra.mxu0 0.0
    %8082 = vmatprep.subr.mxu0 0.0
    %8083 = vmatpush1.msra.mxu0 0.0
    %8084 = vmatprep.subr.mxu0 0.0
    %8085 = vmatpush1.msra.mxu0 0.0
    %8086 = vmatprep.subr.mxu0 0.0
    %8087 = vmatpush1.msra.mxu0 0.0
    %8088 = vmatprep.subr.mxu0 0.0
    %8089 = vmatpush1.msra.mxu0 0.0
    %8090 = vmatprep.subr.mxu0 0.0
    %8091 = vmatpush1.msra.mxu0 0.0
    %8092 = vmatprep.subr.mxu0 0.0
    %8093 = vmatpush1.msra.mxu0 0.0
    %8094 = vmatprep.subr.mxu0 0.0
    %8095 = vmatpush1.msra.mxu0 0.0
    %8096 = vmatprep.subr.mxu0 0.0
    %8097 = vmatpush1.msra.mxu0 0.0
    %8098 = vmatprep.subr.mxu0 0.0
    %8099 = vmatpush1.msra.mxu0 0.0
    %8100 = vmatprep.subr.mxu0 0.0
    %8101 = vmatpush1.msra.mxu0 0.0
    %8102 = vmatprep.subr.mxu0 0.0
    %8103 = vmatpush1.msra.mxu0 0.0
    %8104 = vmatprep.subr.mxu0 0.0
    %8105 = vmatpush1.msra.mxu0 0.0
    %8106 = vmatprep.subr.mxu0 0.0
    %8107 = vmatpush1.msra.mxu0 0.0
    %8108 = vmatprep.subr.mxu0 0.0
    %8109 = vmatpush1.msra.mxu0 0.0
    %8110 = vmatprep.subr.mxu0 0.0
    %8111 = vmatpush1.msra.mxu0 0.0
    %8112 = vmatprep.subr.mxu0 0.0
    %8113 = vmatpush1.msra.mxu0 0.0
    %8114 = vmatprep.subr.mxu0 0.0
    %8115 = vmatpush1.msra.mxu0 0.0
    %8116 = vmatprep.mubr.f32.mxu0 0.0
    %v8117 = vand.u32 %v7675, 4294901760
    %8118 = vmatmul.mubr.f32.gmra.mrb[0].mxu0 %v8117
    %v8119 = vpop.f32.mrb[0].mxu0
    %v8120 = vadd.f32 %v8048, %v8119
    %v8121 = vpop.f32.mrb[0].mxu0
    %8122 = vdwg.mxu0
    %8124 = vrot.lane.b32.xlu0 %v8120, 24
    %v8125 = vpop.permute.xlu0 %8124
    %8127 = vst.msk [vmem:[#allocation2 + $0x8] sm:$0xff] %vm6301, %v8125
    %v8128 = vld [vmem:[%s3 + $0x1] sm:$0x1]
    %v8129 = vld [vmem:[#allocation2] sm:$0xff]
    %v8130 = vld [vmem:[#allocation2 + $0x8] sm:$0xff]
    %v8131 = vld [vmem:[%s2] sm:$0xff]
    %v8132 = vld [vmem:[%s2 + $0x8] sm:$0xff]
    %v8133 = vld [vmem:[%s2 + $0x10] sm:$0xff]
    %v8134 = vld [vmem:[%s2 + $0x18] sm:$0xff]
    %v8135 = vlaneseq
    %v8136 = vshrl.u32 %v8135, 7
    %v8137 = vsub.s32 0, %v8136
    %v8138 = vrot.slane %v8128, %v8137
    %v8140 = vsel %vm33, %v8129, 0
    %v8143 = vsel %vm33, %v8130, 0
    %8145 = vmatprep.subr.mxu0 0.0
    %v8146 = vand.u32 %v8131, 4294901760
    %8147 = vmatpush1.msra.mxu0 %v8146
    %8148 = vmatprep.subr.mxu0 0.0
    %v8149 = vand.u32 %v8132, 4294901760
    %8150 = vmatpush1.msra.mxu0 %v8149
    %8151 = vmatprep.subr.mxu0 0.0
    %v8152 = vand.u32 %v8133, 4294901760
    %8153 = vmatpush1.msra.mxu0 %v8152
    %8154 = vmatprep.subr.mxu0 0.0
    %v8155 = vand.u32 %v8134, 4294901760
    %8156 = vmatpush1.msra.mxu0 %v8155
    %8157 = vmatprep.subr.mxu0 0.0
    %8158 = vmatpush1.msra.mxu0 0.0
    %8159 = vmatprep.subr.mxu0 0.0
    %8160 = vmatpush1.msra.mxu0 0.0
    %8161 = vmatprep.subr.mxu0 0.0
    %8162 = vmatpush1.msra.mxu0 0.0
    %8163 = vmatprep.subr.mxu0 0.0
    %8164 = vmatpush1.msra.mxu0 0.0
    %8165 = vmatprep.subr.mxu0 0.0
    %8166 = vmatpush1.msra.mxu0 0.0
    %8167 = vmatprep.subr.mxu0 0.0
    %8168 = vmatpush1.msra.mxu0 0.0
    %8169 = vmatprep.subr.mxu0 0.0
    %8170 = vmatpush1.msra.mxu0 0.0
    %8171 = vmatprep.subr.mxu0 0.0
    %8172 = vmatpush1.msra.mxu0 0.0
    %8173 = vmatprep.subr.mxu0 0.0
    %8174 = vmatpush1.msra.mxu0 0.0
    %8175 = vmatprep.subr.mxu0 0.0
    %8176 = vmatpush1.msra.mxu0 0.0
    %8177 = vmatprep.subr.mxu0 0.0
    %8178 = vmatpush1.msra.mxu0 0.0
    %8179 = vmatprep.subr.mxu0 0.0
    %8180 = vmatpush1.msra.mxu0 0.0
    %8181 = vmatprep.subr.mxu0 0.0
    %8182 = vmatpush1.msra.mxu0 0.0
    %8183 = vmatprep.subr.mxu0 0.0
    %8184 = vmatpush1.msra.mxu0 0.0
    %8185 = vmatprep.subr.mxu0 0.0
    %8186 = vmatpush1.msra.mxu0 0.0
    %8187 = vmatprep.subr.mxu0 0.0
    %8188 = vmatpush1.msra.mxu0 0.0
    %8189 = vmatprep.subr.mxu0 0.0
    %8190 = vmatpush1.msra.mxu0 0.0
    %8191 = vmatprep.subr.mxu0 0.0
    %8192 = vmatpush1.msra.mxu0 0.0
    %8193 = vmatprep.subr.mxu0 0.0
    %8194 = vmatpush1.msra.mxu0 0.0
    %8195 = vmatprep.subr.mxu0 0.0
    %8196 = vmatpush1.msra.mxu0 0.0
    %8197 = vmatprep.subr.mxu0 0.0
    %8198 = vmatpush1.msra.mxu0 0.0
    %8199 = vmatprep.subr.mxu0 0.0
    %8200 = vmatpush1.msra.mxu0 0.0
    %8201 = vmatprep.subr.mxu0 0.0
    %8202 = vmatpush1.msra.mxu0 0.0
    %8203 = vmatprep.subr.mxu0 0.0
    %8204 = vmatpush1.msra.mxu0 0.0
    %8205 = vmatprep.subr.mxu0 0.0
    %8206 = vmatpush1.msra.mxu0 0.0
    %8207 = vmatprep.subr.mxu0 0.0
    %8208 = vmatpush1.msra.mxu0 0.0
    %8209 = vmatprep.subr.mxu0 0.0
    %8210 = vmatpush1.msra.mxu0 0.0
    %8211 = vmatprep.subr.mxu0 0.0
    %8212 = vmatpush1.msra.mxu0 0.0
    %8213 = vmatprep.mubr.f32.mxu0 0.0
    %v8214 = vand.u32 %v8140, 4294901760
    %v8215 = vsub.f32 %v8140, %v8214
    %v8216 = vand.u32 %v8215, 4294901760
    %v8217 = vsub.f32 %v8215, %v8216
    %v8218 = vand.u32 %v8217, 4294901760
    %8219 = vmatmul.mubr.f32.gmra.mrb[0].mxu0 %v8218
    %v8220 = vpop.f32.mrb[0].mxu0
    %v8221 = vadd.f32 %v8138, %v8220
    %v8222 = vpop.f32.mrb[0].mxu0
    %8223 = vmatprep.mubr.f32.mxu0 0.0
    %v8224 = vand.u32 %v8143, 4294901760
    %v8225 = vsub.f32 %v8143, %v8224
    %v8226 = vand.u32 %v8225, 4294901760
    %v8227 = vsub.f32 %v8225, %v8226
    %v8228 = vand.u32 %v8227, 4294901760
    %8229 = vmatmul.mubr.f32.gmra.mrb[0].mxu0 %v8228
    %v8230 = vpop.f32.mrb[0].mxu0
    %v8231 = vadd.f32 %v8138, %v8230
    %v8232 = vpop.f32.mrb[0].mxu0
    %8233 = vdwg.mxu0
    %8234 = vmatprep.subr.mxu0 0.0
    %v8235 = vand.u32 %v8131, 4294901760
    %v8236 = vsub.f32 %v8131, %v8235
    %v8237 = vand.u32 %v8236, 4294901760
    %v8238 = vsub.f32 %v8236, %v8237
    %v8239 = vand.u32 %v8238, 4294901760
    %8240 = vmatpush1.msra.mxu0 %v8239
    %8241 = vmatprep.subr.mxu0 0.0
    %v8242 = vand.u32 %v8132, 4294901760
    %v8243 = vsub.f32 %v8132, %v8242
    %v8244 = vand.u32 %v8243, 4294901760
    %v8245 = vsub.f32 %v8243, %v8244
    %v8246 = vand.u32 %v8245, 4294901760
    %8247 = vmatpush1.msra.mxu0 %v8246
    %8248 = vmatprep.subr.mxu0 0.0
    %v8249 = vand.u32 %v8133, 4294901760
    %v8250 = vsub.f32 %v8133, %v8249
    %v8251 = vand.u32 %v8250, 4294901760
    %v8252 = vsub.f32 %v8250, %v8251
    %v8253 = vand.u32 %v8252, 4294901760
    %8254 = vmatpush1.msra.mxu0 %v8253
    %8255 = vmatprep.subr.mxu0 0.0
    %v8256 = vand.u32 %v8134, 4294901760
    %v8257 = vsub.f32 %v8134, %v8256
    %v8258 = vand.u32 %v8257, 4294901760
    %v8259 = vsub.f32 %v8257, %v8258
    %v8260 = vand.u32 %v8259, 4294901760
    %8261 = vmatpush1.msra.mxu0 %v8260
    %8262 = vmatprep.subr.mxu0 0.0
    %8263 = vmatpush1.msra.mxu0 0.0
    %8264 = vmatprep.subr.mxu0 0.0
    %8265 = vmatpush1.msra.mxu0 0.0
    %8266 = vmatprep.subr.mxu0 0.0
    %8267 = vmatpush1.msra.mxu0 0.0
    %8268 = vmatprep.subr.mxu0 0.0
    %8269 = vmatpush1.msra.mxu0 0.0
    %8270 = vmatprep.subr.mxu0 0.0
    %8271 = vmatpush1.msra.mxu0 0.0
    %8272 = vmatprep.subr.mxu0 0.0
    %8273 = vmatpush1.msra.mxu0 0.0
    %8274 = vmatprep.subr.mxu0 0.0
    %8275 = vmatpush1.msra.mxu0 0.0
    %8276 = vmatprep.subr.mxu0 0.0
    %8277 = vmatpush1.msra.mxu0 0.0
    %8278 = vmatprep.subr.mxu0 0.0
    %8279 = vmatpush1.msra.mxu0 0.0
    %8280 = vmatprep.subr.mxu0 0.0
    %8281 = vmatpush1.msra.mxu0 0.0
    %8282 = vmatprep.subr.mxu0 0.0
    %8283 = vmatpush1.msra.mxu0 0.0
    %8284 = vmatprep.subr.mxu0 0.0
    %8285 = vmatpush1.msra.mxu0 0.0
    %8286 = vmatprep.subr.mxu0 0.0
    %8287 = vmatpush1.msra.mxu0 0.0
    %8288 = vmatprep.subr.mxu0 0.0
    %8289 = vmatpush1.msra.mxu0 0.0
    %8290 = vmatprep.subr.mxu0 0.0
    %8291 = vmatpush1.msra.mxu0 0.0
    %8292 = vmatprep.subr.mxu0 0.0
    %8293 = vmatpush1.msra.mxu0 0.0
    %8294 = vmatprep.subr.mxu0 0.0
    %8295 = vmatpush1.msra.mxu0 0.0
    %8296 = vmatprep.subr.mxu0 0.0
    %8297 = vmatpush1.msra.mxu0 0.0
    %8298 = vmatprep.subr.mxu0 0.0
    %8299 = vmatpush1.msra.mxu0 0.0
    %8300 = vmatprep.subr.mxu0 0.0
    %8301 = vmatpush1.msra.mxu0 0.0
    %8302 = vmatprep.subr.mxu0 0.0
    %8303 = vmatpush1.msra.mxu0 0.0
    %8304 = vmatprep.subr.mxu0 0.0
    %8305 = vmatpush1.msra.mxu0 0.0
    %8306 = vmatprep.subr.mxu0 0.0
    %8307 = vmatpush1.msra.mxu0 0.0
    %8308 = vmatprep.subr.mxu0 0.0
    %8309 = vmatpush1.msra.mxu0 0.0
    %8310 = vmatprep.subr.mxu0 0.0
    %8311 = vmatpush1.msra.mxu0 0.0
    %8312 = vmatprep.subr.mxu0 0.0
    %8313 = vmatpush1.msra.mxu0 0.0
    %8314 = vmatprep.subr.mxu0 0.0
    %8315 = vmatpush1.msra.mxu0 0.0
    %8316 = vmatprep.subr.mxu0 0.0
    %8317 = vmatpush1.msra.mxu0 0.0
    %8318 = vmatprep.mubr.f32.mxu0 0.0
    %v8319 = vand.u32 %v8140, 4294901760
    %8320 = vmatmul.mubr.f32.gmra.mrb[0].mxu0 %v8319
    %v8321 = vpop.f32.mrb[0].mxu0
    %v8322 = vadd.f32 %v8221, %v8321
    %v8323 = vpop.f32.mrb[0].mxu0
    %8324 = vmatprep.mubr.f32.mxu0 0.0
    %v8325 = vand.u32 %v8143, 4294901760
    %8326 = vmatmul.mubr.f32.gmra.mrb[0].mxu0 %v8325
    %v8327 = vpop.f32.mrb[0].mxu0
    %v8328 = vadd.f32 %v8231, %v8327
    %v8329 = vpop.f32.mrb[0].mxu0
    %8330 = vdwg.mxu0
    %8331 = vmatprep.subr.mxu0 0.0
    %v8332 = vand.u32 %v8131, 4294901760
    %v8333 = vsub.f32 %v8131, %v8332
    %8334 = vmatpush1.msra.mxu0 %v8333
    %8335 = vmatprep.subr.mxu0 0.0
    %v8336 = vand.u32 %v8132, 4294901760
    %v8337 = vsub.f32 %v8132, %v8336
    %8338 = vmatpush1.msra.mxu0 %v8337
    %8339 = vmatprep.subr.mxu0 0.0
    %v8340 = vand.u32 %v8133, 4294901760
    %v8341 = vsub.f32 %v8133, %v8340
    %8342 = vmatpush1.msra.mxu0 %v8341
    %8343 = vmatprep.subr.mxu0 0.0
    %v8344 = vand.u32 %v8134, 4294901760
    %v8345 = vsub.f32 %v8134, %v8344
    %8346 = vmatpush1.msra.mxu0 %v8345
    %8347 = vmatprep.subr.mxu0 0.0
    %8348 = vmatpush1.msra.mxu0 0.0
    %8349 = vmatprep.subr.mxu0 0.0
    %8350 = vmatpush1.msra.mxu0 0.0
    %8351 = vmatprep.subr.mxu0 0.0
    %8352 = vmatpush1.msra.mxu0 0.0
    %8353 = vmatprep.subr.mxu0 0.0
    %8354 = vmatpush1.msra.mxu0 0.0
    %8355 = vmatprep.subr.mxu0 0.0
    %8356 = vmatpush1.msra.mxu0 0.0
    %8357 = vmatprep.subr.mxu0 0.0
    %8358 = vmatpush1.msra.mxu0 0.0
    %8359 = vmatprep.subr.mxu0 0.0
    %8360 = vmatpush1.msra.mxu0 0.0
    %8361 = vmatprep.subr.mxu0 0.0
    %8362 = vmatpush1.msra.mxu0 0.0
    %8363 = vmatprep.subr.mxu0 0.0
    %8364 = vmatpush1.msra.mxu0 0.0
    %8365 = vmatprep.subr.mxu0 0.0
    %8366 = vmatpush1.msra.mxu0 0.0
    %8367 = vmatprep.subr.mxu0 0.0
    %8368 = vmatpush1.msra.mxu0 0.0
    %8369 = vmatprep.subr.mxu0 0.0
    %8370 = vmatpush1.msra.mxu0 0.0
    %8371 = vmatprep.subr.mxu0 0.0
    %8372 = vmatpush1.msra.mxu0 0.0
    %8373 = vmatprep.subr.mxu0 0.0
    %8374 = vmatpush1.msra.mxu0 0.0
    %8375 = vmatprep.subr.mxu0 0.0
    %8376 = vmatpush1.msra.mxu0 0.0
    %8377 = vmatprep.subr.mxu0 0.0
    %8378 = vmatpush1.msra.mxu0 0.0
    %8379 = vmatprep.subr.mxu0 0.0
    %8380 = vmatpush1.msra.mxu0 0.0
    %8381 = vmatprep.subr.mxu0 0.0
    %8382 = vmatpush1.msra.mxu0 0.0
    %8383 = vmatprep.subr.mxu0 0.0
    %8384 = vmatpush1.msra.mxu0 0.0
    %8385 = vmatprep.subr.mxu0 0.0
    %8386 = vmatpush1.msra.mxu0 0.0
    %8387 = vmatprep.subr.mxu0 0.0
    %8388 = vmatpush1.msra.mxu0 0.0
    %8389 = vmatprep.subr.mxu0 0.0
    %8390 = vmatpush1.msra.mxu0 0.0
    %8391 = vmatprep.subr.mxu0 0.0
    %8392 = vmatpush1.msra.mxu0 0.0
    %8393 = vmatprep.subr.mxu0 0.0
    %8394 = vmatpush1.msra.mxu0 0.0
    %8395 = vmatprep.subr.mxu0 0.0
    %8396 = vmatpush1.msra.mxu0 0.0
    %8397 = vmatprep.subr.mxu0 0.0
    %8398 = vmatpush1.msra.mxu0 0.0
    %8399 = vmatprep.subr.mxu0 0.0
    %8400 = vmatpush1.msra.mxu0 0.0
    %8401 = vmatprep.subr.mxu0 0.0
    %8402 = vmatpush1.msra.mxu0 0.0
    %8403 = vmatprep.mubr.f32.mxu0 0.0
    %v8404 = vand.u32 %v8140, 4294901760
    %v8405 = vsub.f32 %v8140, %v8404
    %8406 = vmatmul.mubr.f32.gmra.mrb[0].mxu0 %v8405
    %v8407 = vpop.f32.mrb[0].mxu0
    %v8408 = vadd.f32 %v8322, %v8407
    %v8409 = vpop.f32.mrb[0].mxu0
    %8410 = vmatprep.mubr.f32.mxu0 0.0
    %v8411 = vand.u32 %v8143, 4294901760
    %v8412 = vsub.f32 %v8143, %v8411
    %8413 = vmatmul.mubr.f32.gmra.mrb[0].mxu0 %v8412
    %v8414 = vpop.f32.mrb[0].mxu0
    %v8415 = vadd.f32 %v8328, %v8414
    %v8416 = vpop.f32.mrb[0].mxu0
    %8417 = vdwg.mxu0
    %8418 = vmatprep.subr.mxu0 0.0
    %v8419 = vand.u32 %v8131, 4294901760
    %8420 = vmatpush1.msra.mxu0 %v8419
    %8421 = vmatprep.subr.mxu0 0.0
    %v8422 = vand.u32 %v8132, 4294901760
    %8423 = vmatpush1.msra.mxu0 %v8422
    %8424 = vmatprep.subr.mxu0 0.0
    %v8425 = vand.u32 %v8133, 4294901760
    %8426 = vmatpush1.msra.mxu0 %v8425
    %8427 = vmatprep.subr.mxu0 0.0
    %v8428 = vand.u32 %v8134, 4294901760
    %8429 = vmatpush1.msra.mxu0 %v8428
    %8430 = vmatprep.subr.mxu0 0.0
    %8431 = vmatpush1.msra.mxu0 0.0
    %8432 = vmatprep.subr.mxu0 0.0
    %8433 = vmatpush1.msra.mxu0 0.0
    %8434 = vmatprep.subr.mxu0 0.0
    %8435 = vmatpush1.msra.mxu0 0.0
    %8436 = vmatprep.subr.mxu0 0.0
    %8437 = vmatpush1.msra.mxu0 0.0
    %8438 = vmatprep.subr.mxu0 0.0
    %8439 = vmatpush1.msra.mxu0 0.0
    %8440 = vmatprep.subr.mxu0 0.0
    %8441 = vmatpush1.msra.mxu0 0.0
    %8442 = vmatprep.subr.mxu0 0.0
    %8443 = vmatpush1.msra.mxu0 0.0
    %8444 = vmatprep.subr.mxu0 0.0
    %8445 = vmatpush1.msra.mxu0 0.0
    %8446 = vmatprep.subr.mxu0 0.0
    %8447 = vmatpush1.msra.mxu0 0.0
    %8448 = vmatprep.subr.mxu0 0.0
    %8449 = vmatpush1.msra.mxu0 0.0
    %8450 = vmatprep.subr.mxu0 0.0
    %8451 = vmatpush1.msra.mxu0 0.0
    %8452 = vmatprep.subr.mxu0 0.0
    %8453 = vmatpush1.msra.mxu0 0.0
    %8454 = vmatprep.subr.mxu0 0.0
    %8455 = vmatpush1.msra.mxu0 0.0
    %8456 = vmatprep.subr.mxu0 0.0
    %8457 = vmatpush1.msra.mxu0 0.0
    %8458 = vmatprep.subr.mxu0 0.0
    %8459 = vmatpush1.msra.mxu0 0.0
    %8460 = vmatprep.subr.mxu0 0.0
    %8461 = vmatpush1.msra.mxu0 0.0
    %8462 = vmatprep.subr.mxu0 0.0
    %8463 = vmatpush1.msra.mxu0 0.0
    %8464 = vmatprep.subr.mxu0 0.0
    %8465 = vmatpush1.msra.mxu0 0.0
    %8466 = vmatprep.subr.mxu0 0.0
    %8467 = vmatpush1.msra.mxu0 0.0
    %8468 = vmatprep.subr.mxu0 0.0
    %8469 = vmatpush1.msra.mxu0 0.0
    %8470 = vmatprep.subr.mxu0 0.0
    %8471 = vmatpush1.msra.mxu0 0.0
    %8472 = vmatprep.subr.mxu0 0.0
    %8473 = vmatpush1.msra.mxu0 0.0
    %8474 = vmatprep.subr.mxu0 0.0
    %8475 = vmatpush1.msra.mxu0 0.0
    %8476 = vmatprep.subr.mxu0 0.0
    %8477 = vmatpush1.msra.mxu0 0.0
    %8478 = vmatprep.subr.mxu0 0.0
    %8479 = vmatpush1.msra.mxu0 0.0
    %8480 = vmatprep.subr.mxu0 0.0
    %8481 = vmatpush1.msra.mxu0 0.0
    %8482 = vmatprep.subr.mxu0 0.0
    %8483 = vmatpush1.msra.mxu0 0.0
    %8484 = vmatprep.subr.mxu0 0.0
    %8485 = vmatpush1.msra.mxu0 0.0
    %8486 = vmatprep.mubr.f32.mxu0 0.0
    %v8487 = vand.u32 %v8140, 4294901760
    %v8488 = vsub.f32 %v8140, %v8487
    %v8489 = vand.u32 %v8488, 4294901760
    %8490 = vmatmul.mubr.f32.gmra.mrb[0].mxu0 %v8489
    %v8491 = vpop.f32.mrb[0].mxu0
    %v8492 = vadd.f32 %v8408, %v8491
    %v8493 = vpop.f32.mrb[0].mxu0
    %8494 = vmatprep.mubr.f32.mxu0 0.0
    %v8495 = vand.u32 %v8143, 4294901760
    %v8496 = vsub.f32 %v8143, %v8495
    %v8497 = vand.u32 %v8496, 4294901760
    %8498 = vmatmul.mubr.f32.gmra.mrb[0].mxu0 %v8497
    %v8499 = vpop.f32.mrb[0].mxu0
    %v8500 = vadd.f32 %v8415, %v8499
    %v8501 = vpop.f32.mrb[0].mxu0
    %8502 = vdwg.mxu0
    %8503 = vmatprep.subr.mxu0 0.0
    %v8504 = vand.u32 %v8131, 4294901760
    %v8505 = vsub.f32 %v8131, %v8504
    %v8506 = vand.u32 %v8505, 4294901760
    %8507 = vmatpush1.msra.mxu0 %v8506
    %8508 = vmatprep.subr.mxu0 0.0
    %v8509 = vand.u32 %v8132, 4294901760
    %v8510 = vsub.f32 %v8132, %v8509
    %v8511 = vand.u32 %v8510, 4294901760
    %8512 = vmatpush1.msra.mxu0 %v8511
    %8513 = vmatprep.subr.mxu0 0.0
    %v8514 = vand.u32 %v8133, 4294901760
    %v8515 = vsub.f32 %v8133, %v8514
    %v8516 = vand.u32 %v8515, 4294901760
    %8517 = vmatpush1.msra.mxu0 %v8516
    %8518 = vmatprep.subr.mxu0 0.0
    %v8519 = vand.u32 %v8134, 4294901760
    %v8520 = vsub.f32 %v8134, %v8519
    %v8521 = vand.u32 %v8520, 4294901760
    %8522 = vmatpush1.msra.mxu0 %v8521
    %8523 = vmatprep.subr.mxu0 0.0
    %8524 = vmatpush1.msra.mxu0 0.0
    %8525 = vmatprep.subr.mxu0 0.0
    %8526 = vmatpush1.msra.mxu0 0.0
    %8527 = vmatprep.subr.mxu0 0.0
    %8528 = vmatpush1.msra.mxu0 0.0
    %8529 = vmatprep.subr.mxu0 0.0
    %8530 = vmatpush1.msra.mxu0 0.0
    %8531 = vmatprep.subr.mxu0 0.0
    %8532 = vmatpush1.msra.mxu0 0.0
    %8533 = vmatprep.subr.mxu0 0.0
    %8534 = vmatpush1.msra.mxu0 0.0
    %8535 = vmatprep.subr.mxu0 0.0
    %8536 = vmatpush1.msra.mxu0 0.0
    %8537 = vmatprep.subr.mxu0 0.0
    %8538 = vmatpush1.msra.mxu0 0.0
    %8539 = vmatprep.subr.mxu0 0.0
    %8540 = vmatpush1.msra.mxu0 0.0
    %8541 = vmatprep.subr.mxu0 0.0
    %8542 = vmatpush1.msra.mxu0 0.0
    %8543 = vmatprep.subr.mxu0 0.0
    %8544 = vmatpush1.msra.mxu0 0.0
    %8545 = vmatprep.subr.mxu0 0.0
    %8546 = vmatpush1.msra.mxu0 0.0
    %8547 = vmatprep.subr.mxu0 0.0
    %8548 = vmatpush1.msra.mxu0 0.0
    %8549 = vmatprep.subr.mxu0 0.0
    %8550 = vmatpush1.msra.mxu0 0.0
    %8551 = vmatprep.subr.mxu0 0.0
    %8552 = vmatpush1.msra.mxu0 0.0
    %8553 = vmatprep.subr.mxu0 0.0
    %8554 = vmatpush1.msra.mxu0 0.0
    %8555 = vmatprep.subr.mxu0 0.0
    %8556 = vmatpush1.msra.mxu0 0.0
    %8557 = vmatprep.subr.mxu0 0.0
    %8558 = vmatpush1.msra.mxu0 0.0
    %8559 = vmatprep.subr.mxu0 0.0
    %8560 = vmatpush1.msra.mxu0 0.0
    %8561 = vmatprep.subr.mxu0 0.0
    %8562 = vmatpush1.msra.mxu0 0.0
    %8563 = vmatprep.subr.mxu0 0.0
    %8564 = vmatpush1.msra.mxu0 0.0
    %8565 = vmatprep.subr.mxu0 0.0
    %8566 = vmatpush1.msra.mxu0 0.0
    %8567 = vmatprep.subr.mxu0 0.0
    %8568 = vmatpush1.msra.mxu0 0.0
    %8569 = vmatprep.subr.mxu0 0.0
    %8570 = vmatpush1.msra.mxu0 0.0
    %8571 = vmatprep.subr.mxu0 0.0
    %8572 = vmatpush1.msra.mxu0 0.0
    %8573 = vmatprep.subr.mxu0 0.0
    %8574 = vmatpush1.msra.mxu0 0.0
    %8575 = vmatprep.subr.mxu0 0.0
    %8576 = vmatpush1.msra.mxu0 0.0
    %8577 = vmatprep.subr.mxu0 0.0
    %8578 = vmatpush1.msra.mxu0 0.0
    %8579 = vmatprep.mubr.f32.mxu0 0.0
    %v8580 = vand.u32 %v8140, 4294901760
    %8581 = vmatmul.mubr.f32.gmra.mrb[0].mxu0 %v8580
    %v8582 = vpop.f32.mrb[0].mxu0
    %v8583 = vadd.f32 %v8492, %v8582
    %v8584 = vpop.f32.mrb[0].mxu0
    %8585 = vmatprep.mubr.f32.mxu0 0.0
    %v8586 = vand.u32 %v8143, 4294901760
    %8587 = vmatmul.mubr.f32.gmra.mrb[0].mxu0 %v8586
    %v8588 = vpop.f32.mrb[0].mxu0
    %v8589 = vadd.f32 %v8500, %v8588
    %v8590 = vpop.f32.mrb[0].mxu0
    %8591 = vdwg.mxu0
    %8592 = vmatprep.subr.mxu0 0.0
    %v8593 = vand.u32 %v8131, 4294901760
    %8594 = vmatpush1.msra.mxu0 %v8593
    %8595 = vmatprep.subr.mxu0 0.0
    %v8596 = vand.u32 %v8132, 4294901760
    %8597 = vmatpush1.msra.mxu0 %v8596
    %8598 = vmatprep.subr.mxu0 0.0
    %v8599 = vand.u32 %v8133, 4294901760
    %8600 = vmatpush1.msra.mxu0 %v8599
    %8601 = vmatprep.subr.mxu0 0.0
    %v8602 = vand.u32 %v8134, 4294901760
    %8603 = vmatpush1.msra.mxu0 %v8602
    %8604 = vmatprep.subr.mxu0 0.0
    %8605 = vmatpush1.msra.mxu0 0.0
    %8606 = vmatprep.subr.mxu0 0.0
    %8607 = vmatpush1.msra.mxu0 0.0
    %8608 = vmatprep.subr.mxu0 0.0
    %8609 = vmatpush1.msra.mxu0 0.0
    %8610 = vmatprep.subr.mxu0 0.0
    %8611 = vmatpush1.msra.mxu0 0.0
    %8612 = vmatprep.subr.mxu0 0.0
    %8613 = vmatpush1.msra.mxu0 0.0
    %8614 = vmatprep.subr.mxu0 0.0
    %8615 = vmatpush1.msra.mxu0 0.0
    %8616 = vmatprep.subr.mxu0 0.0
    %8617 = vmatpush1.msra.mxu0 0.0
    %8618 = vmatprep.subr.mxu0 0.0
    %8619 = vmatpush1.msra.mxu0 0.0
    %8620 = vmatprep.subr.mxu0 0.0
    %8621 = vmatpush1.msra.mxu0 0.0
    %8622 = vmatprep.subr.mxu0 0.0
    %8623 = vmatpush1.msra.mxu0 0.0
    %8624 = vmatprep.subr.mxu0 0.0
    %8625 = vmatpush1.msra.mxu0 0.0
    %8626 = vmatprep.subr.mxu0 0.0
    %8627 = vmatpush1.msra.mxu0 0.0
    %8628 = vmatprep.subr.mxu0 0.0
    %8629 = vmatpush1.msra.mxu0 0.0
    %8630 = vmatprep.subr.mxu0 0.0
    %8631 = vmatpush1.msra.mxu0 0.0
    %8632 = vmatprep.subr.mxu0 0.0
    %8633 = vmatpush1.msra.mxu0 0.0
    %8634 = vmatprep.subr.mxu0 0.0
    %8635 = vmatpush1.msra.mxu0 0.0
    %8636 = vmatprep.subr.mxu0 0.0
    %8637 = vmatpush1.msra.mxu0 0.0
    %8638 = vmatprep.subr.mxu0 0.0
    %8639 = vmatpush1.msra.mxu0 0.0
    %8640 = vmatprep.subr.mxu0 0.0
    %8641 = vmatpush1.msra.mxu0 0.0
    %8642 = vmatprep.subr.mxu0 0.0
    %8643 = vmatpush1.msra.mxu0 0.0
    %8644 = vmatprep.subr.mxu0 0.0
    %8645 = vmatpush1.msra.mxu0 0.0
    %8646 = vmatprep.subr.mxu0 0.0
    %8647 = vmatpush1.msra.mxu0 0.0
    %8648 = vmatprep.subr.mxu0 0.0
    %8649 = vmatpush1.msra.mxu0 0.0
    %8650 = vmatprep.subr.mxu0 0.0
    %8651 = vmatpush1.msra.mxu0 0.0
    %8652 = vmatprep.subr.mxu0 0.0
    %8653 = vmatpush1.msra.mxu0 0.0
    %8654 = vmatprep.subr.mxu0 0.0
    %8655 = vmatpush1.msra.mxu0 0.0
    %8656 = vmatprep.subr.mxu0 0.0
    %8657 = vmatpush1.msra.mxu0 0.0
    %8658 = vmatprep.subr.mxu0 0.0
    %8659 = vmatpush1.msra.mxu0 0.0
    %8660 = vmatprep.mubr.f32.mxu0 0.0
    %v8661 = vand.u32 %v8140, 4294901760
    %8662 = vmatmul.mubr.f32.gmra.mrb[0].mxu0 %v8661
    %v8663 = vpop.f32.mrb[0].mxu0
    %v8664 = vadd.f32 %v8583, %v8663
    %v8665 = vpop.f32.mrb[0].mxu0
    %8666 = vmatprep.mubr.f32.mxu0 0.0
    %v8667 = vand.u32 %v8143, 4294901760
    %8668 = vmatmul.mubr.f32.gmra.mrb[0].mxu0 %v8667
    %v8669 = vpop.f32.mrb[0].mxu0
    %v8670 = vadd.f32 %v8589, %v8669
    %v8671 = vpop.f32.mrb[0].mxu0
    %8672 = vdwg.mxu0
    %v8673 = vadd.f32 %v8664, %v18
    %v8674 = vadd.f32 %v8670, %v19
    %v8675 = vsel %vm33, %v8673, 0.0
    %8676 = vadd.xlane.f32.xlu0 %v8675
    %v8677 = vpop.xlane.xlu0 %8676
    %v8678 = vsel %vm33, %v8674, 0.0
    %8679 = vadd.xlane.f32.xlu0 %v8678
    %v8680 = vpop.xlane.xlu0 %8679
    %v8681 = vrcp.pop 32.0
    %v8682 = vmul.f32 %v8677, %v8681
    %v8683 = vmul.f32 %v8680, %v8681
    %v8684 = vsub.f32 %v8673, %v8682
    %v8685 = vsub.f32 %v8674, %v8683
    %v8686 = vmul.f32 %v8684, %v8684
    %v8687 = vmul.f32 %v8685, %v8685
    %v8688 = vsel %vm33, %v8686, 0.0
    %8689 = vadd.xlane.f32.xlu0 %v8688
    %v8690 = vpop.xlane.xlu0 %8689
    %v8691 = vsel %vm33, %v8687, 0.0
    %8692 = vadd.xlane.f32.xlu0 %v8691
    %v8693 = vpop.xlane.xlu0 %8692
    %v8694 = vmul.f32 %v8690, %v8681
    %v8695 = vmul.f32 %v8693, %v8681
    %v8696 = vadd.f32 %v8694, 1e-05
    %v8697 = vadd.f32 %v8695, 1e-05
    %v8698 = vrsqrt.pop %v8696
    %v8699 = vrsqrt.pop %v8697
    %v8700 = vmul.f32 %v8684, %v8698
    %v8701 = vmul.f32 %v8685, %v8699
    %8703 = vrot.lane.b32.xlu0 %v8138, 96
    %v8704 = vpop.permute.xlu0 %8703
    %v8706 = vmul.f32 %v8700, %v8704
    %v8707 = vmul.f32 %v8701, %v8704
    %8708 = vrot.lane.b32.xlu0 %v8138, 64
    %v8709 = vpop.permute.xlu0 %8708
    %v8711 = vadd.f32 %v8706, %v8709
    %v8712 = vadd.f32 %v8707, %v8709
    %8713 = vst.msk [vmem:[#allocation3] sm:$0xff] %vm33, %v8711
    %8714 = vst.msk [vmem:[#allocation3 + $0x8] sm:$0xff] %vm33, %v8712
    // Predicated region
    $region18: #{multi_head_attention.1} parent=1 // pred_check
      _
    $region19: #{multi_head_attention.1} parent=1 // pred_check_branch
      %8716 = sbr.rel (0) target = $region21
    $region20: #{multi_head_attention.1} parent=1 // pred_region
      %s8718 = ssub.s32 256, 256
      %8719 = vsyncadd [#allocation4], %s8718
      %s8720 = sshll.u32 [#allocation3], 4
      %s8721 = int_to_ptr.vmem [resolvable:$true] %s8720
      %8726 = dma.vmem_to_hbm [thread:$0]  %s8721, 256, %s4, [#allocation4], 128, 128, 8
    $region21: #{multi_head_attention.1} parent=1 // pred_fallthru
      _
    // Predicated region
    $region22: #{multi_head_attention.1} parent=1 // pred_check
      _
    $region23: #{multi_head_attention.1} parent=1 // pred_check_branch
      %8728 = sbr.rel (0) target = $region25
    $region24: #{multi_head_attention.1} parent=1 // pred_region
      %8729 = dma.done [#allocation4], 256
    $region25: #{multi_head_attention.1} parent=1 // pred_fallthru
      _
    %8730 = vsyncpa [#allocation4], 1

</llo_original>
